<compile_context>
chip_gen: v6e
topology: v6e:2x2x1
jax: 0.10.0
libtpu: 0.0.40
codegen_flags: <defaults>
</compile_context>

<pallas_src>
import functools

import jax
import jax.numpy as jnp
import numpy as np
from jax import lax
from jax.experimental import pallas as pl
from jax.experimental.pallas import tpu as pltpu

_LANES = 128
_EPS = 1e-5


def _round_up_lanes(c):
    return max(_LANES, ((c + _LANES - 1) // _LANES) * _LANES)


# ----------------------------- Pallas kernels ------------------------------ #

def _accum_conv_taps(x_ref, w_ref, taps, Ho, Wo, cin, cout):
    """3x3 conv as 9 shifted (Ho*Wo, cin) @ (cin, cout) matmuls, f32 accumulate."""
    acc = jnp.zeros((Ho * Wo, cout), jnp.float32)
    for t, (ro, co, ch) in enumerate(taps):
        xs = x_ref[ro:ro + Ho, co:co + Wo, ch:ch + cin]       # halo window
        acc = acc + jnp.dot(xs.reshape(Ho * Wo, cin), w_ref[t],
                            preferred_element_type=jnp.float32)
    return acc


def _conv_bn_kernel(x_ref, w_ref, shift_ref, o_ref, *, taps, Ho, Wo, cin, relu):
    """out = [relu]( conv3x3(x) * bn_scale + bn_shift )  (scale pre-folded into w)."""
    cout = o_ref.shape[-1]
    out = _accum_conv_taps(x_ref, w_ref, taps, Ho, Wo, cin, cout) + shift_ref[...]
    if relu:
        out = jnp.maximum(out, 0.0)
    o_ref[...] = out.astype(o_ref.dtype)


def _conv_bn_add_relu_kernel(x_ref, w_ref, shift_ref, res_ref, o_ref, *,
                             taps, Ho, Wo, cin):
    """out = relu( conv3x3(x)*s2 + b2 + residual )   (identity shortcut)."""
    cout = o_ref.shape[-1]
    out = _accum_conv_taps(x_ref, w_ref, taps, Ho, Wo, cin, cout) + shift_ref[...]
    out = out + res_ref[...].astype(jnp.float32)
    o_ref[...] = jnp.maximum(out, 0.0).astype(o_ref.dtype)


def _conv_bn_proj_add_relu_kernel(x_ref, w_ref, shift_ref,
                                  rx_ref, rw_ref, rshift_ref, o_ref, *,
                                  taps, Ho, Wo, cin):
    """out = relu( conv3x3(x)*s2 + b2 + (xs @ ws_scaled) + bs ).
    Projection shortcut (1x1 conv + BN) fused into the same grid step."""
    cout = o_ref.shape[-1]
    out = _accum_conv_taps(x_ref, w_ref, taps, Ho, Wo, cin, cout) + shift_ref[...]
    res = jnp.dot(rx_ref[...], rw_ref[...], preferred_element_type=jnp.float32)
    out = out + res + rshift_ref[...]
    o_ref[...] = jnp.maximum(out, 0.0).astype(o_ref.dtype)


def _conv_pallas_call(kernel, x_pad, w_taps, shift, extra, extra_specs,
                      Ho, Wo, cout_p, out_dtype):
    N, Hp, Wp, Cx = x_pad.shape
    T, cin, _ = w_taps.shape
    M = Ho * Wo
    in_specs = [
        # one (halo-padded) image per grid step; weights / shift stay resident
        pl.BlockSpec((None, Hp, Wp, Cx), lambda n: (n, 0, 0, 0)),
        pl.BlockSpec((T, cin, cout_p), lambda n: (0, 0, 0)),
        pl.BlockSpec((1, cout_p), lambda n: (0, 0)),
    ] + list(extra_specs)
    return pl.pallas_call(
        kernel,
        out_shape=jax.ShapeDtypeStruct((N, M, cout_p), out_dtype),
        grid=(N,),
        in_specs=in_specs,
        out_specs=pl.BlockSpec((None, M, cout_p), lambda n: (n, 0, 0)),
        compiler_params=pltpu.CompilerParams(
            dimension_semantics=("parallel",),
            vmem_limit_bytes=32 * 1024 * 1024,
        ),
    )(x_pad, w_taps, shift, *extra)


# ------------------------------ weight / BN prep --------------------------- #

def _bn_scale(gamma, var):
    return gamma / jnp.sqrt(var + _EPS)


def _bn_shift(gamma, beta, mean, var, cpad):
    scale = _bn_scale(gamma, var)
    shift = beta - mean * scale
    return jnp.pad(shift, (0, cpad - shift.shape[0]))[None, :]     # (1, cpad) f32


def _w3x3_taps(w_oihw, gamma, var, cin_p, cout_p):
    """(O,I,3,3) -> (9, cin_p, cout_p) bf16 tap matrices, BN scale folded in."""
    scale = _bn_scale(gamma, var)                                  # (O,)
    w = jnp.transpose(w_oihw, (2, 3, 1, 0)) * scale                # (3,3,I,O)
    w = w.reshape(9, w.shape[2], w.shape[3])                       # tap = dh*3+dw
    w = jnp.pad(w, ((0, 0), (0, cin_p - w.shape[1]), (0, cout_p - w.shape[2])))
    return w.astype(jnp.bfloat16)


def _w1x1(w_oihw, gamma, var, cin_p, cout_p):
    scale = _bn_scale(gamma, var)
    w = jnp.transpose(w_oihw, (2, 3, 1, 0)).reshape(w_oihw.shape[1], w_oihw.shape[0])
    w = w * scale
    w = jnp.pad(w, ((0, cin_p - w.shape[0]), (0, cout_p - w.shape[1])))
    return w.astype(jnp.bfloat16)


def _prep_conv_input(x_cp, stride, cin_p):
    """Zero-pad spatially (pad=1); for stride>1 do one space-to-depth pass so
    every 3x3 tap becomes a contiguous (Ho, Wo, cin_p) window (no strided or
    9x-duplicated reads).  Returns (kernel input, [(row_off, col_off, chan_off)])."""
    N, H, W, _ = x_cp.shape
    xp = jnp.pad(x_cp, ((0, 0), (1, 1), (1, 1), (0, 0)))
    if stride == 1:
        taps = [(dh, dw, 0) for dh in range(3) for dw in range(3)]
        return xp, taps
    s = stride
    Hp, Wp = H + 2, W + 2
    Hs = ((Hp + s - 1) // s) * s
    Ws = ((Wp + s - 1) // s) * s
    xp = jnp.pad(xp, ((0, 0), (0, Hs - Hp), (0, Ws - Wp), (0, 0)))
    xp = xp.reshape(N, Hs // s, s, Ws // s, s, cin_p)
    xp = jnp.transpose(xp, (0, 1, 3, 2, 4, 5)).reshape(N, Hs // s, Ws // s, s * s * cin_p)
    taps = [(dh // s, dw // s, ((dh % s) * s + (dw % s)) * cin_p)
            for dh in range(3) for dw in range(3)]
    return xp, taps


# ------------------------------ block forward ------------------------------ #

def basic_block_nhwc(x, p, *, stride):
    """Fused BasicBlock forward: NHWC f32 in -> NHWC f32 out."""
    N, H, W, cin = x.shape
    planes = p["conv1_w"].shape[0]
    Ho = (H - 1) // stride + 1
    Wo = (W - 1) // stride + 1
    cin_p = _round_up_lanes(cin)
    cout_p = _round_up_lanes(planes)

    # channel-pad once to a lane-dense width; bf16 storage (f32 accumulation).
    x_cp = jnp.pad(x, ((0, 0), (0, 0), (0, 0), (0, cin_p - cin))).astype(jnp.bfloat16)

    # ---- conv1(3x3, stride) + bn1 + relu --------------------------------- #
    w1 = _w3x3_taps(p["conv1_w"], p["bn1_gamma"], p["bn1_var"], cin_p, cout_p)
    b1 = _bn_shift(p["bn1_gamma"], p["bn1_beta"], p["bn1_mean"], p["bn1_var"], cout_p)
    x1_in, taps1 = _prep_conv_input(x_cp, stride, cin_p)
    k1 = functools.partial(_conv_bn_kernel, taps=tuple(taps1),
                           Ho=Ho, Wo=Wo, cin=cin_p, relu=True)
    out1 = _conv_pallas_call(k1, x1_in, w1, b1, (), (), Ho, Wo, cout_p, jnp.bfloat16)

    # ---- conv2(3x3, 1) + bn2 + shortcut + relu (single fused kernel) ------ #
    w2 = _w3x3_taps(p["conv2_w"], p["bn2_gamma"], p["bn2_var"], cout_p, cout_p)
    b2 = _bn_shift(p["bn2_gamma"], p["bn2_beta"], p["bn2_mean"], p["bn2_var"], cout_p)
    x2_in = jnp.pad(out1.reshape(N, Ho, Wo, cout_p), ((0, 0), (1, 1), (1, 1), (0, 0)))
    taps2 = tuple((dh, dw, 0) for dh in range(3) for dw in range(3))
    M = Ho * Wo

    if stride != 1 or cin != planes:
        # projection shortcut: strided 1x1 conv + BN, fused into the 2nd kernel
        ws = _w1x1(p["sc_w"], p["sc_bn_gamma"], p["sc_bn_var"], cin_p, cout_p)
        bs = _bn_shift(p["sc_bn_gamma"], p["sc_bn_beta"],
                       p["sc_bn_mean"], p["sc_bn_var"], cout_p)
        xs = x_cp[:, ::stride, ::stride, :][:, :Ho, :Wo, :].reshape(N, M, cin_p)
        k2 = functools.partial(_conv_bn_proj_add_relu_kernel, taps=taps2,
                               Ho=Ho, Wo=Wo, cin=cout_p)
        extra = (xs, ws, bs)
        extra_specs = (
            pl.BlockSpec((None, M, cin_p), lambda n: (n, 0, 0)),
            pl.BlockSpec((cin_p, cout_p), lambda n: (0, 0)),
            pl.BlockSpec((1, cout_p), lambda n: (0, 0)),
        )
    else:
        # identity shortcut (cin_p == cout_p by construction)
        res = x_cp.reshape(N, M, cin_p)
        k2 = functools.partial(_conv_bn_add_relu_kernel, taps=taps2,
                               Ho=Ho, Wo=Wo, cin=cout_p)
        extra = (res,)
        extra_specs = (pl.BlockSpec((None, M, cin_p), lambda n: (n, 0, 0)),)

    out = _conv_pallas_call(k2, x2_in, w2, b2, extra, extra_specs,
                            Ho, Wo, cout_p, jnp.float32)
    return out.reshape(N, Ho, Wo, cout_p)[..., :planes]


def basic_block_nchw(x_nchw, p, *, stride):
    # NOTE: a full ResNet should chain basic_block_nhwc directly and transpose
    # only once at the network boundary; this wrapper mirrors the PyTorch
    # module's NCHW interface for a single block.
    x = jnp.transpose(x_nchw, (0, 2, 3, 1))
    y = basic_block_nhwc(x, p, stride=stride)
    return jnp.transpose(y, (0, 3, 1, 2))


# ---------------------------- pure-JAX reference ---------------------------- #

def _reference(x_nchw, p, stride):
    def conv(x, w, s, pad):
        return lax.conv_general_dilated(
            x, w, window_strides=(s, s), padding=[(pad, pad), (pad, pad)],
            dimension_numbers=("NCHW", "OIHW", "NCHW"),
            precision=lax.Precision.HIGHEST)

    def bn(x, g, b, m, v):
        scale = g / jnp.sqrt(v + _EPS)
        shift = b - m * scale
        return x * scale[None, :, None, None] + shift[None, :, None, None]

    planes = p["conv1_w"].shape[0]
    cin = x_nchw.shape[1]
    out = jax.nn.relu(bn(conv(x_nchw, p["conv1_w"], stride, 1),
                         p["bn1_gamma"], p["bn1_beta"], p["bn1_mean"], p["bn1_var"]))
    out = bn(conv(out, p["conv2_w"], 1, 1),
             p["bn2_gamma"], p["bn2_beta"], p["bn2_mean"], p["bn2_var"])
    if stride != 1 or cin != planes:
        sc = bn(conv(x_nchw, p["sc_w"], stride, 0),
                p["sc_bn_gamma"], p["sc_bn_beta"], p["sc_bn_mean"], p["sc_bn_var"])
    else:
        sc = x_nchw
    return jax.nn.relu(out + sc)


def _make_block_params(key, in_planes, planes, *, with_projection):
    ks = jax.random.split(key, 16)
    p = {
        "conv1_w": 0.1 * jax.random.normal(ks[0], (planes, in_planes, 3, 3), jnp.float32),
        "bn1_gamma": 1.0 + 0.1 * jax.random.normal(ks[1], (planes,), jnp.float32),
        "bn1_beta": 0.1 * jax.random.normal(ks[2], (planes,), jnp.float32),
        "bn1_mean": 0.1 * jax.random.normal(ks[3], (planes,), jnp.float32),
        "bn1_var": jax.random.uniform(ks[4], (planes,), jnp.float32, 0.5, 1.5),
        "conv2_w": 0.1 * jax.random.normal(ks[5], (planes, planes, 3, 3), jnp.float32),
        "bn2_gamma": 1.0 + 0.1 * jax.random.normal(ks[6], (planes,), jnp.float32),
        "bn2_beta": 0.1 * jax.random.normal(ks[7], (planes,), jnp.float32),
        "bn2_mean": 0.1 * jax.random.normal(ks[8], (planes,), jnp.float32),
        "bn2_var": jax.random.uniform(ks[9], (planes,), jnp.float32, 0.5, 1.5),
    }
    if with_projection:
        p.update({
            "sc_w": 0.1 * jax.random.normal(ks[10], (planes, in_planes, 1, 1), jnp.float32),
            "sc_bn_gamma": 1.0 + 0.1 * jax.random.normal(ks[11], (planes,), jnp.float32),
            "sc_bn_beta": 0.1 * jax.random.normal(ks[12], (planes,), jnp.float32),
            "sc_bn_mean": 0.1 * jax.random.normal(ks[13], (planes,), jnp.float32),
            "sc_bn_var": jax.random.uniform(ks[14], (planes,), jnp.float32, 0.5, 1.5),
        })
    return p


# ----------------------------------- main ----------------------------------- #

if __name__ == "__main__":
    N, in_planes, planes, H, W = 2, 4, 8, 32, 32
    key = jax.random.PRNGKey(0)
    ka, kb, kx = jax.random.split(key, 3)

    pA = _make_block_params(ka, in_planes, planes, with_projection=True)   # stride 2
    pB = _make_block_params(kb, planes, planes, with_projection=False)     # stride 1

    x = jax.random.normal(kx, (N, in_planes, H, W), jnp.float32)           # NCHW input

    block_a = jax.jit(functools.partial(basic_block_nchw, stride=2))
    block_b = jax.jit(functools.partial(basic_block_nchw, stride=1))

    # Block A: projection shortcut (stride 2, channel change 4 -> 8)
    out_a = jax.block_until_ready(block_a(x, pA))
    ref_a = jax.block_until_ready(_reference(x, pA, 2))
    assert out_a.shape == (N, planes, H // 2, W // 2), out_a.shape
    # bf16 storage + f32 accumulation vs. pure-f32 reference -> loosened tolerance.
    np.testing.assert_allclose(np.asarray(out_a), np.asarray(ref_a), rtol=5e-2, atol=5e-2)

    # Block B: identity shortcut (stride 1, 8 -> 8), applied to the f32 reference
    out_b = jax.block_until_ready(block_b(ref_a, pB))
    ref_b = jax.block_until_ready(_reference(ref_a, pB, 1))
    assert out_b.shape == ref_a.shape, out_b.shape
    np.testing.assert_allclose(np.asarray(out_b), np.asarray(ref_b), rtol=5e-2, atol=5e-2)

    print("KERNEL_OK")
</pallas_src>

<mosaic_0001>
module attributes {stable_mosaic.version = 11 : i64} {
  func.func @_conv_bn_kernel(%arg0: i32, %arg1: memref<1x17x17x512xbf16, #tpu.memory_space<vmem>>, %arg2: memref<9x128x128xbf16, #tpu.memory_space<vmem>>, %arg3: memref<1x128xf32, #tpu.memory_space<vmem>>, %arg4: memref<1x256x128xbf16, #tpu.memory_space<vmem>>) attributes {dimension_semantics = [#tpu.dimension_semantics<parallel>], iteration_bounds = array<i64: 2>, scalar_prefetch = 0 : i64, scratch_operands = 0 : i64, tpu.core_type = #tpu.core_type<tc>, window_params = [{transform_indices = @transform_0, window_bounds = array<i64: 1, 17, 17, 512>}, {pipeline_mode = #tpu.pipeline_mode<synchronous>, transform_indices = @transform_1, window_bounds = array<i64: 9, 128, 128>}, {pipeline_mode = #tpu.pipeline_mode<synchronous>, transform_indices = @transform_2, window_bounds = array<i64: 1, 128>}, {transform_indices = @transform_3, window_bounds = array<i64: 1, 256, 128>}]} {
    %cst = arith.constant 0.000000e+00 : f32
    %0 = vector.broadcast %cst : f32 to vector<256x128xf32>
    %c0 = arith.constant 0 : index
    %c0_0 = arith.constant 0 : index
    %c0_1 = arith.constant 0 : index
    %c0_2 = arith.constant 0 : index
    %1 = vector.load %arg1[%c0, %c0_0, %c0_1, %c0_2] : memref<1x17x17x512xbf16, #tpu.memory_space<vmem>>, vector<1x16x16x128xbf16>
    %2 = vector.shape_cast %1 : vector<1x16x16x128xbf16> to vector<16x16x128xbf16>
    %3 = vector.shape_cast %2 : vector<16x16x128xbf16> to vector<256x128xbf16>
    %c0_3 = arith.constant 0 : index
    %c0_4 = arith.constant 0 : index
    %c0_5 = arith.constant 0 : index
    %4 = vector.load %arg2[%c0_3, %c0_4, %c0_5] : memref<9x128x128xbf16, #tpu.memory_space<vmem>>, vector<1x128x128xbf16>
    %5 = vector.shape_cast %4 : vector<1x128x128xbf16> to vector<128x128xbf16>
    %cst_6 = arith.constant dense<0.000000e+00> : vector<256x128xf32>
    %6 = tpu.matmul %3, %5, %cst_6 {dimension_numbers = #tpu.dot_dimension_numbers<[1], [0], [0], [1], [0, 0, 1, 1], [], []>} : vector<256x128xbf16>, vector<128x128xbf16>, vector<256x128xf32> -> vector<256x128xf32>
    %7 = arith.addf %0, %6 : vector<256x128xf32>
    %c0_7 = arith.constant 0 : index
    %c0_8 = arith.constant 0 : index
    %c0_9 = arith.constant 0 : index
    %c128 = arith.constant 128 : index
    %8 = vector.load %arg1[%c0_7, %c0_8, %c0_9, %c128] : memref<1x17x17x512xbf16, #tpu.memory_space<vmem>>, vector<1x16x16x128xbf16>
    %9 = vector.shape_cast %8 : vector<1x16x16x128xbf16> to vector<16x16x128xbf16>
    %10 = vector.shape_cast %9 : vector<16x16x128xbf16> to vector<256x128xbf16>
    %c1 = arith.constant 1 : index
    %c0_10 = arith.constant 0 : index
    %c0_11 = arith.constant 0 : index
    %11 = vector.load %arg2[%c1, %c0_10, %c0_11] : memref<9x128x128xbf16, #tpu.memory_space<vmem>>, vector<1x128x128xbf16>
    %12 = vector.shape_cast %11 : vector<1x128x128xbf16> to vector<128x128xbf16>
    %cst_12 = arith.constant dense<0.000000e+00> : vector<256x128xf32>
    %13 = tpu.matmul %10, %12, %cst_12 {dimension_numbers = #tpu.dot_dimension_numbers<[1], [0], [0], [1], [0, 0, 1, 1], [], []>} : vector<256x128xbf16>, vector<128x128xbf16>, vector<256x128xf32> -> vector<256x128xf32>
    %14 = arith.addf %7, %13 : vector<256x128xf32>
    %c0_13 = arith.constant 0 : index
    %c0_14 = arith.constant 0 : index
    %c1_15 = arith.constant 1 : index
    %c0_16 = arith.constant 0 : index
    %15 = vector.load %arg1[%c0_13, %c0_14, %c1_15, %c0_16] : memref<1x17x17x512xbf16, #tpu.memory_space<vmem>>, vector<1x16x16x128xbf16>
    %16 = vector.shape_cast %15 : vector<1x16x16x128xbf16> to vector<16x16x128xbf16>
    %17 = vector.shape_cast %16 : vector<16x16x128xbf16> to vector<256x128xbf16>
    %c2 = arith.constant 2 : index
    %c0_17 = arith.constant 0 : index
    %c0_18 = arith.constant 0 : index
    %18 = vector.load %arg2[%c2, %c0_17, %c0_18] : memref<9x128x128xbf16, #tpu.memory_space<vmem>>, vector<1x128x128xbf16>
    %19 = vector.shape_cast %18 : vector<1x128x128xbf16> to vector<128x128xbf16>
    %cst_19 = arith.constant dense<0.000000e+00> : vector<256x128xf32>
    %20 = tpu.matmul %17, %19, %cst_19 {dimension_numbers = #tpu.dot_dimension_numbers<[1], [0], [0], [1], [0, 0, 1, 1], [], []>} : vector<256x128xbf16>, vector<128x128xbf16>, vector<256x128xf32> -> vector<256x128xf32>
    %21 = arith.addf %14, %20 : vector<256x128xf32>
    %c0_20 = arith.constant 0 : index
    %c0_21 = arith.constant 0 : index
    %c0_22 = arith.constant 0 : index
    %c256 = arith.constant 256 : index
    %22 = vector.load %arg1[%c0_20, %c0_21, %c0_22, %c256] : memref<1x17x17x512xbf16, #tpu.memory_space<vmem>>, vector<1x16x16x128xbf16>
    %23 = vector.shape_cast %22 : vector<1x16x16x128xbf16> to vector<16x16x128xbf16>
    %24 = vector.shape_cast %23 : vector<16x16x128xbf16> to vector<256x128xbf16>
    %c3 = arith.constant 3 : index
    %c0_23 = arith.constant 0 : index
    %c0_24 = arith.constant 0 : index
    %25 = vector.load %arg2[%c3, %c0_23, %c0_24] : memref<9x128x128xbf16, #tpu.memory_space<vmem>>, vector<1x128x128xbf16>
    %26 = vector.shape_cast %25 : vector<1x128x128xbf16> to vector<128x128xbf16>
    %cst_25 = arith.constant dense<0.000000e+00> : vector<256x128xf32>
    %27 = tpu.matmul %24, %26, %cst_25 {dimension_numbers = #tpu.dot_dimension_numbers<[1], [0], [0], [1], [0, 0, 1, 1], [], []>} : vector<256x128xbf16>, vector<128x128xbf16>, vector<256x128xf32> -> vector<256x128xf32>
    %28 = arith.addf %21, %27 : vector<256x128xf32>
    %c0_26 = arith.constant 0 : index
    %c0_27 = arith.constant 0 : index
    %c0_28 = arith.constant 0 : index
    %c384 = arith.constant 384 : index
    %29 = vector.load %arg1[%c0_26, %c0_27, %c0_28, %c384] : memref<1x17x17x512xbf16, #tpu.memory_space<vmem>>, vector<1x16x16x128xbf16>
    %30 = vector.shape_cast %29 : vector<1x16x16x128xbf16> to vector<16x16x128xbf16>
    %31 = vector.shape_cast %30 : vector<16x16x128xbf16> to vector<256x128xbf16>
    %c4 = arith.constant 4 : index
    %c0_29 = arith.constant 0 : index
    %c0_30 = arith.constant 0 : index
    %32 = vector.load %arg2[%c4, %c0_29, %c0_30] : memref<9x128x128xbf16, #tpu.memory_space<vmem>>, vector<1x128x128xbf16>
    %33 = vector.shape_cast %32 : vector<1x128x128xbf16> to vector<128x128xbf16>
    %cst_31 = arith.constant dense<0.000000e+00> : vector<256x128xf32>
    %34 = tpu.matmul %31, %33, %cst_31 {dimension_numbers = #tpu.dot_dimension_numbers<[1], [0], [0], [1], [0, 0, 1, 1], [], []>} : vector<256x128xbf16>, vector<128x128xbf16>, vector<256x128xf32> -> vector<256x128xf32>
    %35 = arith.addf %28, %34 : vector<256x128xf32>
    %c0_32 = arith.constant 0 : index
    %c0_33 = arith.constant 0 : index
    %c1_34 = arith.constant 1 : index
    %c256_35 = arith.constant 256 : index
    %36 = vector.load %arg1[%c0_32, %c0_33, %c1_34, %c256_35] : memref<1x17x17x512xbf16, #tpu.memory_space<vmem>>, vector<1x16x16x128xbf16>
    %37 = vector.shape_cast %36 : vector<1x16x16x128xbf16> to vector<16x16x128xbf16>
    %38 = vector.shape_cast %37 : vector<16x16x128xbf16> to vector<256x128xbf16>
    %c5 = arith.constant 5 : index
    %c0_36 = arith.constant 0 : index
    %c0_37 = arith.constant 0 : index
    %39 = vector.load %arg2[%c5, %c0_36, %c0_37] : memref<9x128x128xbf16, #tpu.memory_space<vmem>>, vector<1x128x128xbf16>
    %40 = vector.shape_cast %39 : vector<1x128x128xbf16> to vector<128x128xbf16>
    %cst_38 = arith.constant dense<0.000000e+00> : vector<256x128xf32>
    %41 = tpu.matmul %38, %40, %cst_38 {dimension_numbers = #tpu.dot_dimension_numbers<[1], [0], [0], [1], [0, 0, 1, 1], [], []>} : vector<256x128xbf16>, vector<128x128xbf16>, vector<256x128xf32> -> vector<256x128xf32>
    %42 = arith.addf %35, %41 : vector<256x128xf32>
    %c0_39 = arith.constant 0 : index
    %c1_40 = arith.constant 1 : index
    %c0_41 = arith.constant 0 : index
    %c0_42 = arith.constant 0 : index
    %43 = vector.load %arg1[%c0_39, %c1_40, %c0_41, %c0_42] : memref<1x17x17x512xbf16, #tpu.memory_space<vmem>>, vector<1x16x16x128xbf16>
    %44 = vector.shape_cast %43 : vector<1x16x16x128xbf16> to vector<16x16x128xbf16>
    %45 = vector.shape_cast %44 : vector<16x16x128xbf16> to vector<256x128xbf16>
    %c6 = arith.constant 6 : index
    %c0_43 = arith.constant 0 : index
    %c0_44 = arith.constant 0 : index
    %46 = vector.load %arg2[%c6, %c0_43, %c0_44] : memref<9x128x128xbf16, #tpu.memory_space<vmem>>, vector<1x128x128xbf16>
    %47 = vector.shape_cast %46 : vector<1x128x128xbf16> to vector<128x128xbf16>
    %cst_45 = arith.constant dense<0.000000e+00> : vector<256x128xf32>
    %48 = tpu.matmul %45, %47, %cst_45 {dimension_numbers = #tpu.dot_dimension_numbers<[1], [0], [0], [1], [0, 0, 1, 1], [], []>} : vector<256x128xbf16>, vector<128x128xbf16>, vector<256x128xf32> -> vector<256x128xf32>
    %49 = arith.addf %42, %48 : vector<256x128xf32>
    %c0_46 = arith.constant 0 : index
    %c1_47 = arith.constant 1 : index
    %c0_48 = arith.constant 0 : index
    %c128_49 = arith.constant 128 : index
    %50 = vector.load %arg1[%c0_46, %c1_47, %c0_48, %c128_49] : memref<1x17x17x512xbf16, #tpu.memory_space<vmem>>, vector<1x16x16x128xbf16>
    %51 = vector.shape_cast %50 : vector<1x16x16x128xbf16> to vector<16x16x128xbf16>
    %52 = vector.shape_cast %51 : vector<16x16x128xbf16> to vector<256x128xbf16>
    %c7 = arith.constant 7 : index
    %c0_50 = arith.constant 0 : index
    %c0_51 = arith.constant 0 : index
    %53 = vector.load %arg2[%c7, %c0_50, %c0_51] : memref<9x128x128xbf16, #tpu.memory_space<vmem>>, vector<1x128x128xbf16>
    %54 = vector.shape_cast %53 : vector<1x128x128xbf16> to vector<128x128xbf16>
    %cst_52 = arith.constant dense<0.000000e+00> : vector<256x128xf32>
    %55 = tpu.matmul %52, %54, %cst_52 {dimension_numbers = #tpu.dot_dimension_numbers<[1], [0], [0], [1], [0, 0, 1, 1], [], []>} : vector<256x128xbf16>, vector<128x128xbf16>, vector<256x128xf32> -> vector<256x128xf32>
    %56 = arith.addf %49, %55 : vector<256x128xf32>
    %c0_53 = arith.constant 0 : index
    %c1_54 = arith.constant 1 : index
    %c1_55 = arith.constant 1 : index
    %c0_56 = arith.constant 0 : index
    %57 = vector.load %arg1[%c0_53, %c1_54, %c1_55, %c0_56] : memref<1x17x17x512xbf16, #tpu.memory_space<vmem>>, vector<1x16x16x128xbf16>
    %58 = vector.shape_cast %57 : vector<1x16x16x128xbf16> to vector<16x16x128xbf16>
    %59 = vector.shape_cast %58 : vector<16x16x128xbf16> to vector<256x128xbf16>
    %c8 = arith.constant 8 : index
    %c0_57 = arith.constant 0 : index
    %c0_58 = arith.constant 0 : index
    %60 = vector.load %arg2[%c8, %c0_57, %c0_58] : memref<9x128x128xbf16, #tpu.memory_space<vmem>>, vector<1x128x128xbf16>
    %61 = vector.shape_cast %60 : vector<1x128x128xbf16> to vector<128x128xbf16>
    %cst_59 = arith.constant dense<0.000000e+00> : vector<256x128xf32>
    %62 = tpu.matmul %59, %61, %cst_59 {dimension_numbers = #tpu.dot_dimension_numbers<[1], [0], [0], [1], [0, 0, 1, 1], [], []>} : vector<256x128xbf16>, vector<128x128xbf16>, vector<256x128xf32> -> vector<256x128xf32>
    %63 = arith.addf %56, %62 : vector<256x128xf32>
    %c0_60 = arith.constant 0 : index
    %c0_61 = arith.constant 0 : index
    %64 = vector.load %arg3[%c0_60, %c0_61] : memref<1x128xf32, #tpu.memory_space<vmem>>, vector<1x128xf32>
    %65 = vector.broadcast %64 : vector<1x128xf32> to vector<256x128xf32>
    %66 = arith.addf %63, %65 : vector<256x128xf32>
    %cst_62 = arith.constant 0.000000e+00 : f32
    %67 = vector.broadcast %cst_62 : f32 to vector<256x128xf32>
    %68 = arith.maximumf %66, %67 : vector<256x128xf32>
    %69 = arith.truncf %68 : vector<256x128xf32> to vector<256x128xbf16>
    %c0_63 = arith.constant 0 : index
    %c0_64 = arith.constant 0 : index
    %c0_65 = arith.constant 0 : index
    %70 = vector.load %arg4[%c0_63, %c0_64, %c0_65] : memref<1x256x128xbf16, #tpu.memory_space<vmem>>, vector<1x256x128xbf16>
    %71 = vector.shape_cast %70 : vector<1x256x128xbf16> to vector<256x128xbf16>
    %72 = vector.shape_cast %69 : vector<256x128xbf16> to vector<1x256x128xbf16>
    tpu.vector_store %arg4[%c0_63, %c0_64, %c0_65], %72 {strides = array<i32>} : memref<1x256x128xbf16, #tpu.memory_space<vmem>>, vector<1x256x128xbf16>,
    return
  }
  func.func @transform_0(%arg0: i32) -> (i32, i32, i32, i32) {
    %c0_i32 = arith.constant 0 : i32
    %c0_i32_0 = arith.constant 0 : i32
    %c0_i32_1 = arith.constant 0 : i32
    %c0_i32_2 = arith.constant 0 : i32
    return %arg0, %c0_i32, %c0_i32_0, %c0_i32_1 : i32, i32, i32, i32
  }
  func.func @transform_1(%arg0: i32) -> (i32, i32, i32) {
    %c0_i32 = arith.constant 0 : i32
    %c0_i32_0 = arith.constant 0 : i32
    %c0_i32_1 = arith.constant 0 : i32
    %c0_i32_2 = arith.constant 0 : i32
    return %c0_i32, %c0_i32_0, %c0_i32_1 : i32, i32, i32
  }
  func.func @transform_2(%arg0: i32) -> (i32, i32) {
    %c0_i32 = arith.constant 0 : i32
    %c0_i32_0 = arith.constant 0 : i32
    %c0_i32_1 = arith.constant 0 : i32
    return %c0_i32, %c0_i32_0 : i32, i32
  }
  func.func @transform_3(%arg0: i32) -> (i32, i32, i32) {
    %c0_i32 = arith.constant 0 : i32
    %c0_i32_0 = arith.constant 0 : i32
    %c0_i32_1 = arith.constant 0 : i32
    return %arg0, %c0_i32, %c0_i32_0 : i32, i32, i32
  }
}

module attributes {stable_mosaic.version = 11 : i64} {
  func.func @_conv_bn_proj_add_relu_kernel(%arg0: i32, %arg1: memref<1x18x18x128xbf16, #tpu.memory_space<vmem>>, %arg2: memref<9x128x128xbf16, #tpu.memory_space<vmem>>, %arg3: memref<1x128xf32, #tpu.memory_space<vmem>>, %arg4: memref<1x256x128xbf16, #tpu.memory_space<vmem>>, %arg5: memref<128x128xbf16, #tpu.memory_space<vmem>>, %arg6: memref<1x128xf32, #tpu.memory_space<vmem>>, %arg7: memref<1x256x128xf32, #tpu.memory_space<vmem>>) attributes {dimension_semantics = [#tpu.dimension_semantics<parallel>], iteration_bounds = array<i64: 2>, scalar_prefetch = 0 : i64, scratch_operands = 0 : i64, tpu.core_type = #tpu.core_type<tc>, window_params = [{transform_indices = @transform_0, window_bounds = array<i64: 1, 18, 18, 128>}, {pipeline_mode = #tpu.pipeline_mode<synchronous>, transform_indices = @transform_1, window_bounds = array<i64: 9, 128, 128>}, {pipeline_mode = #tpu.pipeline_mode<synchronous>, transform_indices = @transform_2, window_bounds = array<i64: 1, 128>}, {transform_indices = @transform_3, window_bounds = array<i64: 1, 256, 128>}, {pipeline_mode = #tpu.pipeline_mode<synchronous>, transform_indices = @transform_4, window_bounds = array<i64: 128, 128>}, {pipeline_mode = #tpu.pipeline_mode<synchronous>, transform_indices = @transform_5, window_bounds = array<i64: 1, 128>}, {transform_indices = @transform_6, window_bounds = array<i64: 1, 256, 128>}]} {
    %cst = arith.constant 0.000000e+00 : f32
    %0 = vector.broadcast %cst : f32 to vector<256x128xf32>
    %c0 = arith.constant 0 : index
    %c0_0 = arith.constant 0 : index
    %c0_1 = arith.constant 0 : index
    %c0_2 = arith.constant 0 : index
    %1 = vector.load %arg1[%c0, %c0_0, %c0_1, %c0_2] : memref<1x18x18x128xbf16, #tpu.memory_space<vmem>>, vector<1x16x16x128xbf16>
    %2 = vector.shape_cast %1 : vector<1x16x16x128xbf16> to vector<16x16x128xbf16>
    %3 = vector.shape_cast %2 : vector<16x16x128xbf16> to vector<256x128xbf16>
    %c0_3 = arith.constant 0 : index
    %c0_4 = arith.constant 0 : index
    %c0_5 = arith.constant 0 : index
    %4 = vector.load %arg2[%c0_3, %c0_4, %c0_5] : memref<9x128x128xbf16, #tpu.memory_space<vmem>>, vector<1x128x128xbf16>
    %5 = vector.shape_cast %4 : vector<1x128x128xbf16> to vector<128x128xbf16>
    %cst_6 = arith.constant dense<0.000000e+00> : vector<256x128xf32>
    %6 = tpu.matmul %3, %5, %cst_6 {dimension_numbers = #tpu.dot_dimension_numbers<[1], [0], [0], [1], [0, 0, 1, 1], [], []>} : vector<256x128xbf16>, vector<128x128xbf16>, vector<256x128xf32> -> vector<256x128xf32>
    %7 = arith.addf %0, %6 : vector<256x128xf32>
    %c0_7 = arith.constant 0 : index
    %c0_8 = arith.constant 0 : index
    %c1 = arith.constant 1 : index
    %c0_9 = arith.constant 0 : index
    %8 = vector.load %arg1[%c0_7, %c0_8, %c1, %c0_9] : memref<1x18x18x128xbf16, #tpu.memory_space<vmem>>, vector<1x16x16x128xbf16>
    %9 = vector.shape_cast %8 : vector<1x16x16x128xbf16> to vector<16x16x128xbf16>
    %10 = vector.shape_cast %9 : vector<16x16x128xbf16> to vector<256x128xbf16>
    %c1_10 = arith.constant 1 : index
    %c0_11 = arith.constant 0 : index
    %c0_12 = arith.constant 0 : index
    %11 = vector.load %arg2[%c1_10, %c0_11, %c0_12] : memref<9x128x128xbf16, #tpu.memory_space<vmem>>, vector<1x128x128xbf16>
    %12 = vector.shape_cast %11 : vector<1x128x128xbf16> to vector<128x128xbf16>
    %cst_13 = arith.constant dense<0.000000e+00> : vector<256x128xf32>
    %13 = tpu.matmul %10, %12, %cst_13 {dimension_numbers = #tpu.dot_dimension_numbers<[1], [0], [0], [1], [0, 0, 1, 1], [], []>} : vector<256x128xbf16>, vector<128x128xbf16>, vector<256x128xf32> -> vector<256x128xf32>
    %14 = arith.addf %7, %13 : vector<256x128xf32>
    %c0_14 = arith.constant 0 : index
    %c0_15 = arith.constant 0 : index
    %c2 = arith.constant 2 : index
    %c0_16 = arith.constant 0 : index
    %15 = vector.load %arg1[%c0_14, %c0_15, %c2, %c0_16] : memref<1x18x18x128xbf16, #tpu.memory_space<vmem>>, vector<1x16x16x128xbf16>
    %16 = vector.shape_cast %15 : vector<1x16x16x128xbf16> to vector<16x16x128xbf16>
    %17 = vector.shape_cast %16 : vector<16x16x128xbf16> to vector<256x128xbf16>
    %c2_17 = arith.constant 2 : index
    %c0_18 = arith.constant 0 : index
    %c0_19 = arith.constant 0 : index
    %18 = vector.load %arg2[%c2_17, %c0_18, %c0_19] : memref<9x128x128xbf16, #tpu.memory_space<vmem>>, vector<1x128x128xbf16>
    %19 = vector.shape_cast %18 : vector<1x128x128xbf16> to vector<128x128xbf16>
    %cst_20 = arith.constant dense<0.000000e+00> : vector<256x128xf32>
    %20 = tpu.matmul %17, %19, %cst_20 {dimension_numbers = #tpu.dot_dimension_numbers<[1], [0], [0], [1], [0, 0, 1, 1], [], []>} : vector<256x128xbf16>, vector<128x128xbf16>, vector<256x128xf32> -> vector<256x128xf32>
    %21 = arith.addf %14, %20 : vector<256x128xf32>
    %c0_21 = arith.constant 0 : index
    %c1_22 = arith.constant 1 : index
    %c0_23 = arith.constant 0 : index
    %c0_24 = arith.constant 0 : index
    %22 = vector.load %arg1[%c0_21, %c1_22, %c0_23, %c0_24] : memref<1x18x18x128xbf16, #tpu.memory_space<vmem>>, vector<1x16x16x128xbf16>
    %23 = vector.shape_cast %22 : vector<1x16x16x128xbf16> to vector<16x16x128xbf16>
    %24 = vector.shape_cast %23 : vector<16x16x128xbf16> to vector<256x128xbf16>
    %c3 = arith.constant 3 : index
    %c0_25 = arith.constant 0 : index
    %c0_26 = arith.constant 0 : index
    %25 = vector.load %arg2[%c3, %c0_25, %c0_26] : memref<9x128x128xbf16, #tpu.memory_space<vmem>>, vector<1x128x128xbf16>
    %26 = vector.shape_cast %25 : vector<1x128x128xbf16> to vector<128x128xbf16>
    %cst_27 = arith.constant dense<0.000000e+00> : vector<256x128xf32>
    %27 = tpu.matmul %24, %26, %cst_27 {dimension_numbers = #tpu.dot_dimension_numbers<[1], [0], [0], [1], [0, 0, 1, 1], [], []>} : vector<256x128xbf16>, vector<128x128xbf16>, vector<256x128xf32> -> vector<256x128xf32>
    %28 = arith.addf %21, %27 : vector<256x128xf32>
    %c0_28 = arith.constant 0 : index
    %c1_29 = arith.constant 1 : index
    %c1_30 = arith.constant 1 : index
    %c0_31 = arith.constant 0 : index
    %29 = vector.load %arg1[%c0_28, %c1_29, %c1_30, %c0_31] : memref<1x18x18x128xbf16, #tpu.memory_space<vmem>>, vector<1x16x16x128xbf16>
    %30 = vector.shape_cast %29 : vector<1x16x16x128xbf16> to vector<16x16x128xbf16>
    %31 = vector.shape_cast %30 : vector<16x16x128xbf16> to vector<256x128xbf16>
    %c4 = arith.constant 4 : index
    %c0_32 = arith.constant 0 : index
    %c0_33 = arith.constant 0 : index
    %32 = vector.load %arg2[%c4, %c0_32, %c0_33] : memref<9x128x128xbf16, #tpu.memory_space<vmem>>, vector<1x128x128xbf16>
    %33 = vector.shape_cast %32 : vector<1x128x128xbf16> to vector<128x128xbf16>
    %cst_34 = arith.constant dense<0.000000e+00> : vector<256x128xf32>
    %34 = tpu.matmul %31, %33, %cst_34 {dimension_numbers = #tpu.dot_dimension_numbers<[1], [0], [0], [1], [0, 0, 1, 1], [], []>} : vector<256x128xbf16>, vector<128x128xbf16>, vector<256x128xf32> -> vector<256x128xf32>
    %35 = arith.addf %28, %34 : vector<256x128xf32>
    %c0_35 = arith.constant 0 : index
    %c1_36 = arith.constant 1 : index
    %c2_37 = arith.constant 2 : index
    %c0_38 = arith.constant 0 : index
    %36 = vector.load %arg1[%c0_35, %c1_36, %c2_37, %c0_38] : memref<1x18x18x128xbf16, #tpu.memory_space<vmem>>, vector<1x16x16x128xbf16>
    %37 = vector.shape_cast %36 : vector<1x16x16x128xbf16> to vector<16x16x128xbf16>
    %38 = vector.shape_cast %37 : vector<16x16x128xbf16> to vector<256x128xbf16>
    %c5 = arith.constant 5 : index
    %c0_39 = arith.constant 0 : index
    %c0_40 = arith.constant 0 : index
    %39 = vector.load %arg2[%c5, %c0_39, %c0_40] : memref<9x128x128xbf16, #tpu.memory_space<vmem>>, vector<1x128x128xbf16>
    %40 = vector.shape_cast %39 : vector<1x128x128xbf16> to vector<128x128xbf16>
    %cst_41 = arith.constant dense<0.000000e+00> : vector<256x128xf32>
    %41 = tpu.matmul %38, %40, %cst_41 {dimension_numbers = #tpu.dot_dimension_numbers<[1], [0], [0], [1], [0, 0, 1, 1], [], []>} : vector<256x128xbf16>, vector<128x128xbf16>, vector<256x128xf32> -> vector<256x128xf32>
    %42 = arith.addf %35, %41 : vector<256x128xf32>
    %c0_42 = arith.constant 0 : index
    %c2_43 = arith.constant 2 : index
    %c0_44 = arith.constant 0 : index
    %c0_45 = arith.constant 0 : index
    %43 = vector.load %arg1[%c0_42, %c2_43, %c0_44, %c0_45] : memref<1x18x18x128xbf16, #tpu.memory_space<vmem>>, vector<1x16x16x128xbf16>
    %44 = vector.shape_cast %43 : vector<1x16x16x128xbf16> to vector<16x16x128xbf16>
    %45 = vector.shape_cast %44 : vector<16x16x128xbf16> to vector<256x128xbf16>
    %c6 = arith.constant 6 : index
    %c0_46 = arith.constant 0 : index
    %c0_47 = arith.constant 0 : index
    %46 = vector.load %arg2[%c6, %c0_46, %c0_47] : memref<9x128x128xbf16, #tpu.memory_space<vmem>>, vector<1x128x128xbf16>
    %47 = vector.shape_cast %46 : vector<1x128x128xbf16> to vector<128x128xbf16>
    %cst_48 = arith.constant dense<0.000000e+00> : vector<256x128xf32>
    %48 = tpu.matmul %45, %47, %cst_48 {dimension_numbers = #tpu.dot_dimension_numbers<[1], [0], [0], [1], [0, 0, 1, 1], [], []>} : vector<256x128xbf16>, vector<128x128xbf16>, vector<256x128xf32> -> vector<256x128xf32>
    %49 = arith.addf %42, %48 : vector<256x128xf32>
    %c0_49 = arith.constant 0 : index
    %c2_50 = arith.constant 2 : index
    %c1_51 = arith.constant 1 : index
    %c0_52 = arith.constant 0 : index
    %50 = vector.load %arg1[%c0_49, %c2_50, %c1_51, %c0_52] : memref<1x18x18x128xbf16, #tpu.memory_space<vmem>>, vector<1x16x16x128xbf16>
    %51 = vector.shape_cast %50 : vector<1x16x16x128xbf16> to vector<16x16x128xbf16>
    %52 = vector.shape_cast %51 : vector<16x16x128xbf16> to vector<256x128xbf16>
    %c7 = arith.constant 7 : index
    %c0_53 = arith.constant 0 : index
    %c0_54 = arith.constant 0 : index
    %53 = vector.load %arg2[%c7, %c0_53, %c0_54] : memref<9x128x128xbf16, #tpu.memory_space<vmem>>, vector<1x128x128xbf16>
    %54 = vector.shape_cast %53 : vector<1x128x128xbf16> to vector<128x128xbf16>
    %cst_55 = arith.constant dense<0.000000e+00> : vector<256x128xf32>
    %55 = tpu.matmul %52, %54, %cst_55 {dimension_numbers = #tpu.dot_dimension_numbers<[1], [0], [0], [1], [0, 0, 1, 1], [], []>} : vector<256x128xbf16>, vector<128x128xbf16>, vector<256x128xf32> -> vector<256x128xf32>
    %56 = arith.addf %49, %55 : vector<256x128xf32>
    %c0_56 = arith.constant 0 : index
    %c2_57 = arith.constant 2 : index
    %c2_58 = arith.constant 2 : index
    %c0_59 = arith.constant 0 : index
    %57 = vector.load %arg1[%c0_56, %c2_57, %c2_58, %c0_59] : memref<1x18x18x128xbf16, #tpu.memory_space<vmem>>, vector<1x16x16x128xbf16>
    %58 = vector.shape_cast %57 : vector<1x16x16x128xbf16> to vector<16x16x128xbf16>
    %59 = vector.shape_cast %58 : vector<16x16x128xbf16> to vector<256x128xbf16>
    %c8 = arith.constant 8 : index
    %c0_60 = arith.constant 0 : index
    %c0_61 = arith.constant 0 : index
    %60 = vector.load %arg2[%c8, %c0_60, %c0_61] : memref<9x128x128xbf16, #tpu.memory_space<vmem>>, vector<1x128x128xbf16>
    %61 = vector.shape_cast %60 : vector<1x128x128xbf16> to vector<128x128xbf16>
    %cst_62 = arith.constant dense<0.000000e+00> : vector<256x128xf32>
    %62 = tpu.matmul %59, %61, %cst_62 {dimension_numbers = #tpu.dot_dimension_numbers<[1], [0], [0], [1], [0, 0, 1, 1], [], []>} : vector<256x128xbf16>, vector<128x128xbf16>, vector<256x128xf32> -> vector<256x128xf32>
    %63 = arith.addf %56, %62 : vector<256x128xf32>
    %c0_63 = arith.constant 0 : index
    %c0_64 = arith.constant 0 : index
    %64 = vector.load %arg3[%c0_63, %c0_64] : memref<1x128xf32, #tpu.memory_space<vmem>>, vector<1x128xf32>
    %65 = vector.broadcast %64 : vector<1x128xf32> to vector<256x128xf32>
    %66 = arith.addf %63, %65 : vector<256x128xf32>
    %c0_65 = arith.constant 0 : index
    %c0_66 = arith.constant 0 : index
    %c0_67 = arith.constant 0 : index
    %67 = vector.load %arg4[%c0_65, %c0_66, %c0_67] : memref<1x256x128xbf16, #tpu.memory_space<vmem>>, vector<1x256x128xbf16>
    %68 = vector.shape_cast %67 : vector<1x256x128xbf16> to vector<256x128xbf16>
    %c0_68 = arith.constant 0 : index
    %c0_69 = arith.constant 0 : index
    %69 = vector.load %arg5[%c0_68, %c0_69] : memref<128x128xbf16, #tpu.memory_space<vmem>>, vector<128x128xbf16>
    %cst_70 = arith.constant dense<0.000000e+00> : vector<256x128xf32>
    %70 = tpu.matmul %68, %69, %cst_70 {dimension_numbers = #tpu.dot_dimension_numbers<[1], [0], [0], [1], [0, 0, 1, 1], [], []>} : vector<256x128xbf16>, vector<128x128xbf16>, vector<256x128xf32> -> vector<256x128xf32>
    %71 = arith.addf %66, %70 : vector<256x128xf32>
    %c0_71 = arith.constant 0 : index
    %c0_72 = arith.constant 0 : index
    %72 = vector.load %arg6[%c0_71, %c0_72] : memref<1x128xf32, #tpu.memory_space<vmem>>, vector<1x128xf32>
    %73 = vector.broadcast %72 : vector<1x128xf32> to vector<256x128xf32>
    %74 = arith.addf %71, %73 : vector<256x128xf32>
    %cst_73 = arith.constant 0.000000e+00 : f32
    %75 = vector.broadcast %cst_73 : f32 to vector<256x128xf32>
    %76 = arith.maximumf %74, %75 : vector<256x128xf32>
    %c0_74 = arith.constant 0 : index
    %c0_75 = arith.constant 0 : index
    %c0_76 = arith.constant 0 : index
    %77 = vector.load %arg7[%c0_74, %c0_75, %c0_76] : memref<1x256x128xf32, #tpu.memory_space<vmem>>, vector<1x256x128xf32>
    %78 = vector.shape_cast %77 : vector<1x256x128xf32> to vector<256x128xf32>
    %79 = vector.shape_cast %76 : vector<256x128xf32> to vector<1x256x128xf32>
    tpu.vector_store %arg7[%c0_74, %c0_75, %c0_76], %79 {strides = array<i32>} : memref<1x256x128xf32, #tpu.memory_space<vmem>>, vector<1x256x128xf32>,
    return
  }
  func.func @transform_0(%arg0: i32) -> (i32, i32, i32, i32) {
    %c0_i32 = arith.constant 0 : i32
    %c0_i32_0 = arith.constant 0 : i32
    %c0_i32_1 = arith.constant 0 : i32
    %c0_i32_2 = arith.constant 0 : i32
    return %arg0, %c0_i32, %c0_i32_0, %c0_i32_1 : i32, i32, i32, i32
  }
  func.func @transform_1(%arg0: i32) -> (i32, i32, i32) {
    %c0_i32 = arith.constant 0 : i32
    %c0_i32_0 = arith.constant 0 : i32
    %c0_i32_1 = arith.constant 0 : i32
    %c0_i32_2 = arith.constant 0 : i32
    return %c0_i32, %c0_i32_0, %c0_i32_1 : i32, i32, i32
  }
  func.func @transform_2(%arg0: i32) -> (i32, i32) {
    %c0_i32 = arith.constant 0 : i32
    %c0_i32_0 = arith.constant 0 : i32
    %c0_i32_1 = arith.constant 0 : i32
    return %c0_i32, %c0_i32_0 : i32, i32
  }
  func.func @transform_3(%arg0: i32) -> (i32, i32, i32) {
    %c0_i32 = arith.constant 0 : i32
    %c0_i32_0 = arith.constant 0 : i32
    %c0_i32_1 = arith.constant 0 : i32
    return %arg0, %c0_i32, %c0_i32_0 : i32, i32, i32
  }
  func.func @transform_4(%arg0: i32) -> (i32, i32) {
    %c0_i32 = arith.constant 0 : i32
    %c0_i32_0 = arith.constant 0 : i32
    %c0_i32_1 = arith.constant 0 : i32
    return %c0_i32, %c0_i32_0 : i32, i32
  }
  func.func @transform_5(%arg0: i32) -> (i32, i32) {
    %c0_i32 = arith.constant 0 : i32
    %c0_i32_0 = arith.constant 0 : i32
    %c0_i32_1 = arith.constant 0 : i32
    return %c0_i32, %c0_i32_0 : i32, i32
  }
  func.func @transform_6(%arg0: i32) -> (i32, i32, i32) {
    %c0_i32 = arith.constant 0 : i32
    %c0_i32_0 = arith.constant 0 : i32
    %c0_i32_1 = arith.constant 0 : i32
    return %arg0, %c0_i32, %c0_i32_0 : i32, i32, i32
  }
}

</mosaic_0001>

<llo_original>
// kernel: basic_block_nchw.2
$region0: #{basic_block_nchw.2}
  #allocation0 [shape = 'u32[]', space=smem, size = 0x4, offset = 0x4, fixed_abs, tag = 'smem constant byte address 0x4 - core index']
  #allocation1 [shape = 'u32[144,128]{1,0:T(1,128)}', space=vmem, size = 0x12000, scoped, tag = 'internal scratch']
  %s0 = inlined_call_operand.vmem [shape: bf16[2,17,17,512], index: 0, kind: input, shape index: {}]
  %s1 = inlined_call_operand.vmem [shape: bf16[9,128,128], index: 1, kind: input, shape index: {}]
  %s2 = inlined_call_operand.vmem [shape: f32[1,128], index: 2, kind: input, shape index: {}]
  %s3 = inlined_call_operand.vmem [shape: bf16[2,256,128], index: 3, kind: output, shape index: {}]
  %s4 = sld [smem:[#allocation0]]
  $region45: #{basic_block_nchw.2} parent=0
    _
  %s6 = ssub.s32 1, %s4
  %s7 = scalar_select 0, %s6, %s4
  loop: start=0, step=1, limit=4
  $region2: #{basic_block_nchw.2} parent=0 // loop_pre_header
    _
  $region3: #{basic_block_nchw.2} parent=0 // loop_header
    %s9 = sphi 0, %s13
    %p10 = scmp.ge.s32.totalorder %s9, 4
    %s19 = sphi 0, %s21
    %s22 = sphi 0, %s19
    %s23 = sphi 0, %s22
    %s39 = sphi 0, %s23
    %s43 = sphi 0, %s43
    %s45 = sphi 0, %s43
    %s46 = sphi 0, %s45
    %s60 = sphi 0, %s46
    %s64 = sphi 0, %s64
    %s66 = sphi 0, %s64
    %s67 = sphi 0, %s66
    %s81 = sphi 0, %s67
    %s87 = sphi 0, %s89
    %s90 = sphi 0, %s87
    %s91 = sphi 0, %s90
    %s107 = sphi 0, %s91
  $region4: #{basic_block_nchw.2} parent=0 // loop_header_branch
    %12 = sbr.rel (%p10) target = $region8
  $region5: #{basic_block_nchw.2} parent=0 // loop_body
    %s14 = ssub.s32 %s9, 1
    %s15 = ssub.s32 %s9, 2
    %s16 = sadd.s32 %s9, 1
    %s17 = ssub.s32 %s9, %s16
    %p18 = scmp.eq.s32.totalorder %s17, 0
    %s20 = sadd.s32 %s19, 1
    %s21 = scalar_select %p18, %s19, %s20
    %p24 = pneg %p18
    %p25 = scmp.eq.s32.totalorder %s9, 1
    %p26 = por %p24, %p25
    %p27 = scmp.ne.s32.totalorder %s19, %s22
    %p28 = scmp.eq.s32.totalorder %s9, 0
    %p29 = por %p27, %p28
    %p30 = scmp.ne.s32.totalorder %s19, %s22
    %p31 = scmp.eq.s32.totalorder %s14, 1
    %p32 = por %p30, %p31
    %p33 = scmp.ne.s32.totalorder %s22, %s23
    %p34 = scmp.eq.s32.totalorder %s14, 0
    %p35 = por %p33, %p34
    %p36 = scmp.ne.s32.totalorder %s22, %s23
    %p37 = scmp.eq.s32.totalorder %s15, 1
    %p38 = por %p36, %p37
    %p40 = scmp.ne.s32.totalorder %s23, %s39
    %p41 = scmp.eq.s32.totalorder %s15, 0
    %p42 = por %p40, %p41
    %s44 = sadd.s32 %s43, 1
    %p47 = scmp.eq.s32.totalorder %s9, 1
    %p48 = scmp.ne.s32.totalorder %s43, %s45
    %p49 = scmp.eq.s32.totalorder %s9, 0
    %p50 = por %p48, %p49
    %p51 = scmp.ne.s32.totalorder %s43, %s45
    %p52 = scmp.eq.s32.totalorder %s14, 1
    %p53 = por %p51, %p52
    %p54 = scmp.ne.s32.totalorder %s45, %s46
    %p55 = scmp.eq.s32.totalorder %s14, 0
    %p56 = por %p54, %p55
    %p57 = scmp.ne.s32.totalorder %s45, %s46
    %p58 = scmp.eq.s32.totalorder %s15, 1
    %p59 = por %p57, %p58
    %p61 = scmp.ne.s32.totalorder %s46, %s60
    %p62 = scmp.eq.s32.totalorder %s15, 0
    %p63 = por %p61, %p62
    %s65 = sadd.s32 %s64, 1
    %p68 = scmp.eq.s32.totalorder %s9, 1
    %p69 = scmp.ne.s32.totalorder %s64, %s66
    %p70 = scmp.eq.s32.totalorder %s9, 0
    %p71 = por %p69, %p70
    %p72 = scmp.ne.s32.totalorder %s64, %s66
    %p73 = scmp.eq.s32.totalorder %s14, 1
    %p74 = por %p72, %p73
    %p75 = scmp.ne.s32.totalorder %s66, %s67
    %p76 = scmp.eq.s32.totalorder %s14, 0
    %p77 = por %p75, %p76
    %p78 = scmp.ne.s32.totalorder %s66, %s67
    %p79 = scmp.eq.s32.totalorder %s15, 1
    %p80 = por %p78, %p79
    %p82 = scmp.ne.s32.totalorder %s67, %s81
    %p83 = scmp.eq.s32.totalorder %s15, 0
    %p84 = por %p82, %p83
    %s85 = ssub.s32 %s9, %s16
    %p86 = scmp.eq.s32.totalorder %s85, 0
    %s88 = sadd.s32 %s87, 1
    %s89 = scalar_select %p86, %s87, %s88
    %p92 = pneg %p86
    %p93 = scmp.eq.s32.totalorder %s9, 1
    %p94 = por %p92, %p93
    %p95 = scmp.ne.s32.totalorder %s87, %s90
    %p96 = scmp.eq.s32.totalorder %s9, 0
    %p97 = por %p95, %p96
    %p98 = scmp.ne.s32.totalorder %s87, %s90
    %p99 = scmp.eq.s32.totalorder %s14, 1
    %p100 = por %p98, %p99
    %p101 = scmp.ne.s32.totalorder %s90, %s91
    %p102 = scmp.eq.s32.totalorder %s14, 0
    %p103 = por %p101, %p102
    %p104 = scmp.ne.s32.totalorder %s90, %s91
    %p105 = scmp.eq.s32.totalorder %s15, 1
    %p106 = por %p104, %p105
    %p108 = scmp.ne.s32.totalorder %s91, %s107
    %p109 = scmp.eq.s32.totalorder %s15, 0
    %p110 = por %p108, %p109
    %p111 = scmp.le.s32.totalorder 1, %s9
    %p112 = scmp.lt.s32.totalorder %s9, 3
    %p113 = pnand %p111, %p112
    %p114 = pneg %p113
    // Predicated region
    $region9: #{basic_block_nchw.2} parent=5 // pred_check
      _
    $region10: #{basic_block_nchw.2} parent=5 // pred_check_branch
      %116 = sbr.rel (%p113) target = $region12
    $region11: #{basic_block_nchw.2} parent=5 // pred_region
      %s117 = ssub.s32 %s9, 1
      // Predicated region
      $region13: #{basic_block_nchw.2} parent=11 // pred_check
        %p118 = pneg %p56
      $region14: #{basic_block_nchw.2} parent=11 // pred_check_branch
        %120 = sbr.rel (%p118) target = $region16
      $region15: #{basic_block_nchw.2} parent=11 // pred_region
        _
      $region16: #{basic_block_nchw.2} parent=11 // pred_fallthru
        _
      // Predicated region
      $region17: #{basic_block_nchw.2} parent=11 // pred_check
        %p121 = pneg %p77
      $region18: #{basic_block_nchw.2} parent=11 // pred_check_branch
        %123 = sbr.rel (%p121) target = $region20
      $region19: #{basic_block_nchw.2} parent=11 // pred_region
        _
      $region20: #{basic_block_nchw.2} parent=11 // pred_fallthru
        _
    $region12: #{basic_block_nchw.2} parent=5 // pred_fallthru
      _
    %p124 = scmp.lt.s32.totalorder %s9, 2
    // Predicated region
    $region21: #{basic_block_nchw.2} parent=5 // pred_check
      %p125 = pneg %p124
    $region22: #{basic_block_nchw.2} parent=5 // pred_check_branch
      %127 = sbr.rel (%p125) target = $region24
    $region23: #{basic_block_nchw.2} parent=5 // pred_region
      // Predicated region
      $region25: #{basic_block_nchw.2} parent=23 // pred_check
        %p128 = pneg %p29
      $region26: #{basic_block_nchw.2} parent=23 // pred_check_branch
        %130 = sbr.rel (%p128) target = $region28
      $region27: #{basic_block_nchw.2} parent=23 // pred_region
        %p131 = scmp.lt.s32.totalorder %s9, 1
        %s132 = scalar_select %p131, %s9, 1
        %s133 = smul.addr %s132, 204
        %s134 = smul.addr %s133, 4
        %s135 = scalar_lea.vmem %s0, %s134
      $region28: #{basic_block_nchw.2} parent=23 // pred_fallthru
        _
    $region24: #{basic_block_nchw.2} parent=5 // pred_fallthru
      _
    %p136 = scmp.le.s32.totalorder 1, %s9
    %p137 = scmp.lt.s32.totalorder %s9, 3
    %p138 = pnand %p136, %p137
    %p139 = pneg %p138
    // Predicated region
    $region29: #{basic_block_nchw.2} parent=5 // pred_check
      _
    $region30: #{basic_block_nchw.2} parent=5 // pred_check_branch
      %141 = sbr.rel (%p138) target = $region32
    $region31: #{basic_block_nchw.2} parent=5 // pred_region
      %s142 = ssub.s32 %s9, 1
      %p143 = scmp.lt.s32.totalorder %s14, 1
      %s144 = scalar_select %p143, %s14, 1
      %s145 = smul.addr %s144, 204
      %s146 = smul.addr %s145, 4
      %s147 = scalar_lea.vmem %s0, %s146
      %p148 = pneg %p35
      %p149 = pneg %p32
      %p150 = pneg %p56
      %p151 = pneg %p53
      %p152 = pneg %p77
      %p153 = pneg %p74
      %p154 = pneg %p103
      %p155 = pneg %p100
      %p156 = scmp.lt.s32.totalorder %s14, 1
      %s157 = scalar_select %p156, %s14, 1
      %s158 = smul.addr %s157, 32
      %s159 = smul.addr %s158, 4
      %s160 = scalar_lea.vmem %s3, %s159
      %p161 = scmp.lt.s32.totalorder %s14, 1
      %s162 = scalar_select %p161, %s14, 1
      %s163 = smul.addr %s162, 204
      %s164 = smul.addr %s163, 4
      %s165 = scalar_lea.vmem %s0, %s164
      %p166 = scmp.lt.s32.totalorder %s14, 1
      %s167 = scalar_select %p166, %s14, 1
      %s168 = smul.addr %s167, 32
      %s169 = smul.addr %s168, 4
      %s170 = scalar_lea.vmem %s3, %s169
      %v172 = vld [vmem:[%s165] sm:$0xf]
      %v173 = vld [vmem:[%s165 + $0x10] sm:$0xf]
      %v174 = vld [vmem:[%s165 + $0x30] sm:$0xf]
      %v175 = vld [vmem:[%s165 + $0x40] sm:$0xf]
      %v176 = vld [vmem:[%s165 + $0x60] sm:$0xf]
      %v177 = vld [vmem:[%s165 + $0x70] sm:$0xf]
      %v178 = vld [vmem:[%s165 + $0x90] sm:$0xf]
      %v179 = vld [vmem:[%s165 + $0xa0] sm:$0xf]
      %v180 = vld [vmem:[%s165 + $0xc0] sm:$0xf]
      %v181 = vld [vmem:[%s165 + $0xd0] sm:$0xf]
      %v182 = vld [vmem:[%s165 + $0xf0] sm:$0xf]
      %v183 = vld [vmem:[%s165 + $0x100] sm:$0xf]
      %v184 = vld [vmem:[%s165 + $0x120] sm:$0xf]
      %v185 = vld [vmem:[%s165 + $0x130] sm:$0xf]
      %v186 = vld [vmem:[%s165 + $0x150] sm:$0xf]
      %v187 = vld [vmem:[%s165 + $0x160] sm:$0xf]
      %v188 = vld [vmem:[%s165 + $0x180] sm:$0xf]
      %v189 = vld [vmem:[%s165 + $0x190] sm:$0xf]
      %v190 = vld [vmem:[%s165 + $0x1b0] sm:$0xf]
      %v191 = vld [vmem:[%s165 + $0x1c0] sm:$0xf]
      %v192 = vld [vmem:[%s165 + $0x1e0] sm:$0xf]
      %v193 = vld [vmem:[%s165 + $0x1f0] sm:$0xf]
      %v194 = vld [vmem:[%s165 + $0x210] sm:$0xf]
      %v195 = vld [vmem:[%s165 + $0x220] sm:$0xf]
      %v196 = vld [vmem:[%s165 + $0x240] sm:$0xf]
      %v197 = vld [vmem:[%s165 + $0x250] sm:$0xf]
      %v198 = vld [vmem:[%s165 + $0x270] sm:$0xf]
      %v199 = vld [vmem:[%s165 + $0x280] sm:$0xf]
      %v200 = vld [vmem:[%s165 + $0x2a0] sm:$0xf]
      %v201 = vld [vmem:[%s165 + $0x2b0] sm:$0xf]
      %v202 = vld [vmem:[%s165 + $0x2d0] sm:$0xf]
      %v203 = vld [vmem:[%s165 + $0x2e0] sm:$0xf]
      %v204 = vld [vmem:[%s1] sm:$0xf]
      %v205 = vld [vmem:[%s1 + $0x4] sm:$0xf]
      %v206 = vld [vmem:[%s1 + $0x8] sm:$0xf]
      %v207 = vld [vmem:[%s1 + $0xc] sm:$0xf]
      %v208 = vld [vmem:[%s1 + $0x10] sm:$0xf]
      %v209 = vld [vmem:[%s1 + $0x14] sm:$0xf]
      %v210 = vld [vmem:[%s1 + $0x18] sm:$0xf]
      %v211 = vld [vmem:[%s1 + $0x1c] sm:$0xf]
      %v212 = vld [vmem:[%s1 + $0x20] sm:$0xf]
      %v213 = vld [vmem:[%s1 + $0x24] sm:$0xf]
      %v214 = vld [vmem:[%s1 + $0x28] sm:$0xf]
      %v215 = vld [vmem:[%s1 + $0x2c] sm:$0xf]
      %v216 = vld [vmem:[%s1 + $0x30] sm:$0xf]
      %v217 = vld [vmem:[%s1 + $0x34] sm:$0xf]
      %v218 = vld [vmem:[%s1 + $0x38] sm:$0xf]
      %v219 = vld [vmem:[%s1 + $0x3c] sm:$0xf]
      %v220 = vld [vmem:[%s165 + $0x4] sm:$0xf]
      %v221 = vld [vmem:[%s165 + $0x14] sm:$0xf]
      %v222 = vld [vmem:[%s165 + $0x34] sm:$0xf]
      %v223 = vld [vmem:[%s165 + $0x44] sm:$0xf]
      %v224 = vld [vmem:[%s165 + $0x64] sm:$0xf]
      %v225 = vld [vmem:[%s165 + $0x74] sm:$0xf]
      %v226 = vld [vmem:[%s165 + $0x94] sm:$0xf]
      %v227 = vld [vmem:[%s165 + $0xa4] sm:$0xf]
      %v228 = vld [vmem:[%s165 + $0xc4] sm:$0xf]
      %v229 = vld [vmem:[%s165 + $0xd4] sm:$0xf]
      %v230 = vld [vmem:[%s165 + $0xf4] sm:$0xf]
      %v231 = vld [vmem:[%s165 + $0x104] sm:$0xf]
      %v232 = vld [vmem:[%s165 + $0x124] sm:$0xf]
      %v233 = vld [vmem:[%s165 + $0x134] sm:$0xf]
      %v234 = vld [vmem:[%s165 + $0x154] sm:$0xf]
      %v235 = vld [vmem:[%s165 + $0x164] sm:$0xf]
      %v236 = vld [vmem:[%s165 + $0x184] sm:$0xf]
      %v237 = vld [vmem:[%s165 + $0x194] sm:$0xf]
      %v238 = vld [vmem:[%s165 + $0x1b4] sm:$0xf]
      %v239 = vld [vmem:[%s165 + $0x1c4] sm:$0xf]
      %v240 = vld [vmem:[%s165 + $0x1e4] sm:$0xf]
      %v241 = vld [vmem:[%s165 + $0x1f4] sm:$0xf]
      %v242 = vld [vmem:[%s165 + $0x214] sm:$0xf]
      %v243 = vld [vmem:[%s165 + $0x224] sm:$0xf]
      %v244 = vld [vmem:[%s165 + $0x244] sm:$0xf]
      %v245 = vld [vmem:[%s165 + $0x254] sm:$0xf]
      %v246 = vld [vmem:[%s165 + $0x274] sm:$0xf]
      %v247 = vld [vmem:[%s165 + $0x284] sm:$0xf]
      %v248 = vld [vmem:[%s165 + $0x2a4] sm:$0xf]
      %v249 = vld [vmem:[%s165 + $0x2b4] sm:$0xf]
      %v250 = vld [vmem:[%s165 + $0x2d4] sm:$0xf]
      %v251 = vld [vmem:[%s165 + $0x2e4] sm:$0xf]
      %s252 = scalar_lea.vmem %s1, 64
      %v253 = vld [vmem:[%s252] sm:$0xf]
      %v254 = vld [vmem:[%s252 + $0x4] sm:$0xf]
      %v255 = vld [vmem:[%s252 + $0x8] sm:$0xf]
      %v256 = vld [vmem:[%s252 + $0xc] sm:$0xf]
      %v257 = vld [vmem:[%s252 + $0x10] sm:$0xf]
      %v258 = vld [vmem:[%s252 + $0x14] sm:$0xf]
      %v259 = vld [vmem:[%s252 + $0x18] sm:$0xf]
      %v260 = vld [vmem:[%s252 + $0x1c] sm:$0xf]
      %v261 = vld [vmem:[%s252 + $0x20] sm:$0xf]
      %v262 = vld [vmem:[%s252 + $0x24] sm:$0xf]
      %v263 = vld [vmem:[%s252 + $0x28] sm:$0xf]
      %v264 = vld [vmem:[%s252 + $0x2c] sm:$0xf]
      %v265 = vld [vmem:[%s252 + $0x30] sm:$0xf]
      %v266 = vld [vmem:[%s252 + $0x34] sm:$0xf]
      %v267 = vld [vmem:[%s252 + $0x38] sm:$0xf]
      %v268 = vld [vmem:[%s252 + $0x3c] sm:$0xf]
      %v301 = vunpack.c.l.b16 %v220
      %v302 = vunpack.c.l.b16 %v221
      %v303 = vunpack.c.l.b16 %v222
      %v304 = vunpack.c.l.b16 %v223
      %v305 = vunpack.c.l.b16 %v224
      %v306 = vunpack.c.l.b16 %v225
      %v307 = vunpack.c.l.b16 %v226
      %v308 = vunpack.c.l.b16 %v227
      %v309 = vunpack.c.l.b16 %v228
      %v310 = vunpack.c.l.b16 %v229
      %v311 = vunpack.c.l.b16 %v230
      %v312 = vunpack.c.l.b16 %v231
      %v313 = vunpack.c.l.b16 %v232
      %v314 = vunpack.c.l.b16 %v233
      %v315 = vunpack.c.l.b16 %v234
      %v316 = vunpack.c.l.b16 %v235
      %v317 = vunpack.c.l.b16 %v236
      %v318 = vunpack.c.l.b16 %v237
      %v319 = vunpack.c.l.b16 %v238
      %v320 = vunpack.c.l.b16 %v239
      %v321 = vunpack.c.l.b16 %v240
      %v322 = vunpack.c.l.b16 %v241
      %v323 = vunpack.c.l.b16 %v242
      %v324 = vunpack.c.l.b16 %v243
      %v325 = vunpack.c.l.b16 %v244
      %v326 = vunpack.c.l.b16 %v245
      %v327 = vunpack.c.l.b16 %v246
      %v328 = vunpack.c.l.b16 %v247
      %v329 = vunpack.c.l.b16 %v248
      %v330 = vunpack.c.l.b16 %v249
      %v331 = vunpack.c.l.b16 %v250
      %v332 = vunpack.c.l.b16 %v251
      %v333 = vpack.c.b16 %v302, %v301
      %v334 = vpack.c.b16 %v304, %v303
      %v335 = vpack.c.b16 %v306, %v305
      %v336 = vpack.c.b16 %v308, %v307
      %v337 = vpack.c.b16 %v310, %v309
      %v338 = vpack.c.b16 %v312, %v311
      %v339 = vpack.c.b16 %v314, %v313
      %v340 = vpack.c.b16 %v316, %v315
      %v341 = vpack.c.b16 %v318, %v317
      %v342 = vpack.c.b16 %v320, %v319
      %v343 = vpack.c.b16 %v322, %v321
      %v344 = vpack.c.b16 %v324, %v323
      %v345 = vpack.c.b16 %v326, %v325
      %v346 = vpack.c.b16 %v328, %v327
      %v347 = vpack.c.b16 %v330, %v329
      %v348 = vpack.c.b16 %v332, %v331
      %v381 = vunpack.c.l.b16 %v253
      %v382 = vunpack.c.l.b16 %v254
      %v383 = vunpack.c.l.b16 %v255
      %v384 = vunpack.c.l.b16 %v256
      %v385 = vunpack.c.l.b16 %v257
      %v386 = vunpack.c.l.b16 %v258
      %v387 = vunpack.c.l.b16 %v259
      %v388 = vunpack.c.l.b16 %v260
      %v389 = vunpack.c.l.b16 %v261
      %v390 = vunpack.c.l.b16 %v262
      %v391 = vunpack.c.l.b16 %v263
      %v392 = vunpack.c.l.b16 %v264
      %v393 = vunpack.c.l.b16 %v265
      %v394 = vunpack.c.l.b16 %v266
      %v395 = vunpack.c.l.b16 %v267
      %v396 = vunpack.c.l.b16 %v268
      %v397 = vpack.c.b16 %v382, %v381
      %v398 = vpack.c.b16 %v384, %v383
      %v399 = vpack.c.b16 %v386, %v385
      %v400 = vpack.c.b16 %v388, %v387
      %v401 = vpack.c.b16 %v390, %v389
      %v402 = vpack.c.b16 %v392, %v391
      %v403 = vpack.c.b16 %v394, %v393
      %v404 = vpack.c.b16 %v396, %v395
      %413 = vmatprep.subr.bf16.mxu0 0
      %414 = vmatpush1.bf16.msra.mxu0 %v404
      %415 = vmatprep.subr.bf16.mxu0 0
      %416 = vmatpush1.bf16.msra.mxu0 %v403
      %417 = vmatprep.subr.bf16.mxu0 0
      %418 = vmatpush1.bf16.msra.mxu0 %v402
      %419 = vmatprep.subr.bf16.mxu0 0
      %420 = vmatpush1.bf16.msra.mxu0 %v401
      %421 = vmatprep.subr.bf16.mxu0 0
      %422 = vmatpush1.bf16.msra.mxu0 %v400
      %423 = vmatprep.subr.bf16.mxu0 0
      %424 = vmatpush1.bf16.msra.mxu0 %v399
      %425 = vmatprep.subr.bf16.mxu0 0
      %426 = vmatpush1.bf16.msra.mxu0 %v398
      %427 = vmatprep.subr.bf16.mxu0 0
      %428 = vmatpush1.bf16.msra.mxu0 %v397
      %429 = vmatprep.subr.bf16.mxu0 0
      %430 = vmatpush2.bf16.msra.mxu0 0
      %431 = vmatprep.subr.bf16.mxu0 0
      %432 = vmatpush2.bf16.msra.mxu0 0
      %433 = vmatprep.subr.bf16.mxu0 0
      %434 = vmatpush2.bf16.msra.mxu0 0
      %435 = vmatprep.subr.bf16.mxu0 0
      %436 = vmatpush2.bf16.msra.mxu0 0
      %437 = vmatprep.subr.bf16.mxu0 0
      %438 = vmatpush2.bf16.msra.mxu0 0
      %439 = vmatprep.subr.bf16.mxu0 0
      %440 = vmatpush2.bf16.msra.mxu0 0
      %441 = vmatprep.subr.bf16.mxu0 0
      %442 = vmatpush2.bf16.msra.mxu0 0
      %443 = vmatprep.subr.bf16.mxu0 0
      %444 = vmatpush2.bf16.msra.mxu0 0
      %445 = vmatprep.mubr.bf16.mxu0 0
      %446 = vmatmul.mubr.bf16.gmra.mxu0 %v333
      %v447 = vpop.f32.mrf.mxu0
      %v448 = vadd.f32 0.0, %v447
      %v449 = vpop.f32.mrf.mxu0
      %v450 = vpop.f32.mrf.mxu0
      %v451 = vadd.f32 0.0, %v450
      %v452 = vpop.f32.mrf.mxu0
      %453 = vmatprep.mubr.bf16.mxu0 0
      %454 = vmatmul.mubr.bf16.gmra.mxu0 %v334
      %v455 = vpop.f32.mrf.mxu0
      %v456 = vadd.f32 0.0, %v455
      %v457 = vpop.f32.mrf.mxu0
      %v458 = vpop.f32.mrf.mxu0
      %v459 = vadd.f32 0.0, %v458
      %v460 = vpop.f32.mrf.mxu0
      %461 = vmatprep.mubr.bf16.mxu0 0
      %462 = vmatmul.mubr.bf16.gmra.mxu0 %v335
      %v463 = vpop.f32.mrf.mxu0
      %v464 = vadd.f32 0.0, %v463
      %v465 = vpop.f32.mrf.mxu0
      %v466 = vpop.f32.mrf.mxu0
      %v467 = vadd.f32 0.0, %v466
      %v468 = vpop.f32.mrf.mxu0
      %469 = vmatprep.mubr.bf16.mxu0 0
      %470 = vmatmul.mubr.bf16.gmra.mxu0 %v336
      %v471 = vpop.f32.mrf.mxu0
      %v472 = vadd.f32 0.0, %v471
      %v473 = vpop.f32.mrf.mxu0
      %v474 = vpop.f32.mrf.mxu0
      %v475 = vadd.f32 0.0, %v474
      %v476 = vpop.f32.mrf.mxu0
      %477 = vmatprep.mubr.bf16.mxu0 0
      %478 = vmatmul.mubr.bf16.gmra.mxu0 %v337
      %v479 = vpop.f32.mrf.mxu0
      %v480 = vadd.f32 0.0, %v479
      %v481 = vpop.f32.mrf.mxu0
      %v482 = vpop.f32.mrf.mxu0
      %v483 = vadd.f32 0.0, %v482
      %v484 = vpop.f32.mrf.mxu0
      %485 = vmatprep.mubr.bf16.mxu0 0
      %486 = vmatmul.mubr.bf16.gmra.mxu0 %v338
      %v487 = vpop.f32.mrf.mxu0
      %v488 = vadd.f32 0.0, %v487
      %v489 = vpop.f32.mrf.mxu0
      %v490 = vpop.f32.mrf.mxu0
      %v491 = vadd.f32 0.0, %v490
      %v492 = vpop.f32.mrf.mxu0
      %493 = vmatprep.mubr.bf16.mxu0 0
      %494 = vmatmul.mubr.bf16.gmra.mxu0 %v339
      %v495 = vpop.f32.mrf.mxu0
      %v496 = vadd.f32 0.0, %v495
      %v497 = vpop.f32.mrf.mxu0
      %v498 = vpop.f32.mrf.mxu0
      %v499 = vadd.f32 0.0, %v498
      %v500 = vpop.f32.mrf.mxu0
      %501 = vmatprep.mubr.bf16.mxu0 0
      %502 = vmatmul.mubr.bf16.gmra.mxu0 %v340
      %v503 = vpop.f32.mrf.mxu0
      %v504 = vadd.f32 0.0, %v503
      %v505 = vpop.f32.mrf.mxu0
      %v506 = vpop.f32.mrf.mxu0
      %v507 = vadd.f32 0.0, %v506
      %v508 = vpop.f32.mrf.mxu0
      %509 = vmatprep.mubr.bf16.mxu0 0
      %510 = vmatmul.mubr.bf16.gmra.mxu0 %v341
      %v511 = vpop.f32.mrf.mxu0
      %v512 = vadd.f32 0.0, %v511
      %v513 = vpop.f32.mrf.mxu0
      %v514 = vpop.f32.mrf.mxu0
      %v515 = vadd.f32 0.0, %v514
      %v516 = vpop.f32.mrf.mxu0
      %517 = vmatprep.mubr.bf16.mxu0 0
      %518 = vmatmul.mubr.bf16.gmra.mxu0 %v342
      %v519 = vpop.f32.mrf.mxu0
      %v520 = vadd.f32 0.0, %v519
      %v521 = vpop.f32.mrf.mxu0
      %v522 = vpop.f32.mrf.mxu0
      %v523 = vadd.f32 0.0, %v522
      %v524 = vpop.f32.mrf.mxu0
      %525 = vmatprep.mubr.bf16.mxu0 0
      %526 = vmatmul.mubr.bf16.gmra.mxu0 %v343
      %v527 = vpop.f32.mrf.mxu0
      %v528 = vadd.f32 0.0, %v527
      %v529 = vpop.f32.mrf.mxu0
      %v530 = vpop.f32.mrf.mxu0
      %v531 = vadd.f32 0.0, %v530
      %v532 = vpop.f32.mrf.mxu0
      %533 = vmatprep.mubr.bf16.mxu0 0
      %534 = vmatmul.mubr.bf16.gmra.mxu0 %v344
      %v535 = vpop.f32.mrf.mxu0
      %v536 = vadd.f32 0.0, %v535
      %v537 = vpop.f32.mrf.mxu0
      %v538 = vpop.f32.mrf.mxu0
      %v539 = vadd.f32 0.0, %v538
      %v540 = vpop.f32.mrf.mxu0
      %541 = vmatprep.mubr.bf16.mxu0 0
      %542 = vmatmul.mubr.bf16.gmra.mxu0 %v345
      %v543 = vpop.f32.mrf.mxu0
      %v544 = vadd.f32 0.0, %v543
      %v545 = vpop.f32.mrf.mxu0
      %v546 = vpop.f32.mrf.mxu0
      %v547 = vadd.f32 0.0, %v546
      %v548 = vpop.f32.mrf.mxu0
      %549 = vmatprep.mubr.bf16.mxu0 0
      %550 = vmatmul.mubr.bf16.gmra.mxu0 %v346
      %v551 = vpop.f32.mrf.mxu0
      %v552 = vadd.f32 0.0, %v551
      %v553 = vpop.f32.mrf.mxu0
      %v554 = vpop.f32.mrf.mxu0
      %v555 = vadd.f32 0.0, %v554
      %v556 = vpop.f32.mrf.mxu0
      %557 = vmatprep.mubr.bf16.mxu0 0
      %558 = vmatmul.mubr.bf16.gmra.mxu0 %v347
      %v559 = vpop.f32.mrf.mxu0
      %v560 = vadd.f32 0.0, %v559
      %v561 = vpop.f32.mrf.mxu0
      %v562 = vpop.f32.mrf.mxu0
      %v563 = vadd.f32 0.0, %v562
      %v564 = vpop.f32.mrf.mxu0
      %565 = vmatprep.mubr.bf16.mxu0 0
      %566 = vmatmul.mubr.bf16.gmra.mxu0 %v348
      %v567 = vpop.f32.mrf.mxu0
      %v568 = vadd.f32 0.0, %v567
      %v569 = vpop.f32.mrf.mxu0
      %v570 = vpop.f32.mrf.mxu0
      %v571 = vadd.f32 0.0, %v570
      %v572 = vpop.f32.mrf.mxu0
      %573 = vdwg.mxu0
      %v606 = vunpack.c.l.b16 %v172
      %v607 = vunpack.c.l.b16 %v173
      %v608 = vunpack.c.l.b16 %v174
      %v609 = vunpack.c.l.b16 %v175
      %v610 = vunpack.c.l.b16 %v176
      %v611 = vunpack.c.l.b16 %v177
      %v612 = vunpack.c.l.b16 %v178
      %v613 = vunpack.c.l.b16 %v179
      %v614 = vunpack.c.l.b16 %v180
      %v615 = vunpack.c.l.b16 %v181
      %v616 = vunpack.c.l.b16 %v182
      %v617 = vunpack.c.l.b16 %v183
      %v618 = vunpack.c.l.b16 %v184
      %v619 = vunpack.c.l.b16 %v185
      %v620 = vunpack.c.l.b16 %v186
      %v621 = vunpack.c.l.b16 %v187
      %v622 = vunpack.c.l.b16 %v188
      %v623 = vunpack.c.l.b16 %v189
      %v624 = vunpack.c.l.b16 %v190
      %v625 = vunpack.c.l.b16 %v191
      %v626 = vunpack.c.l.b16 %v192
      %v627 = vunpack.c.l.b16 %v193
      %v628 = vunpack.c.l.b16 %v194
      %v629 = vunpack.c.l.b16 %v195
      %v630 = vunpack.c.l.b16 %v196
      %v631 = vunpack.c.l.b16 %v197
      %v632 = vunpack.c.l.b16 %v198
      %v633 = vunpack.c.l.b16 %v199
      %v634 = vunpack.c.l.b16 %v200
      %v635 = vunpack.c.l.b16 %v201
      %v636 = vunpack.c.l.b16 %v202
      %v637 = vunpack.c.l.b16 %v203
      %v638 = vpack.c.b16 %v607, %v606
      %v639 = vpack.c.b16 %v609, %v608
      %v640 = vpack.c.b16 %v611, %v610
      %v641 = vpack.c.b16 %v613, %v612
      %v642 = vpack.c.b16 %v615, %v614
      %v643 = vpack.c.b16 %v617, %v616
      %v644 = vpack.c.b16 %v619, %v618
      %v645 = vpack.c.b16 %v621, %v620
      %v646 = vpack.c.b16 %v623, %v622
      %v647 = vpack.c.b16 %v625, %v624
      %v648 = vpack.c.b16 %v627, %v626
      %v649 = vpack.c.b16 %v629, %v628
      %v650 = vpack.c.b16 %v631, %v630
      %v651 = vpack.c.b16 %v633, %v632
      %v652 = vpack.c.b16 %v635, %v634
      %v653 = vpack.c.b16 %v637, %v636
      %v686 = vunpack.c.l.b16 %v204
      %v687 = vunpack.c.l.b16 %v205
      %v688 = vunpack.c.l.b16 %v206
      %v689 = vunpack.c.l.b16 %v207
      %v690 = vunpack.c.l.b16 %v208
      %v691 = vunpack.c.l.b16 %v209
      %v692 = vunpack.c.l.b16 %v210
      %v693 = vunpack.c.l.b16 %v211
      %v694 = vunpack.c.l.b16 %v212
      %v695 = vunpack.c.l.b16 %v213
      %v696 = vunpack.c.l.b16 %v214
      %v697 = vunpack.c.l.b16 %v215
      %v698 = vunpack.c.l.b16 %v216
      %v699 = vunpack.c.l.b16 %v217
      %v700 = vunpack.c.l.b16 %v218
      %v701 = vunpack.c.l.b16 %v219
      %v702 = vpack.c.b16 %v687, %v686
      %v703 = vpack.c.b16 %v689, %v688
      %v704 = vpack.c.b16 %v691, %v690
      %v705 = vpack.c.b16 %v693, %v692
      %v706 = vpack.c.b16 %v695, %v694
      %v707 = vpack.c.b16 %v697, %v696
      %v708 = vpack.c.b16 %v699, %v698
      %v709 = vpack.c.b16 %v701, %v700
      %718 = vmatprep.subr.bf16.mxu0 0
      %719 = vmatpush1.bf16.msra.mxu0 %v709
      %720 = vmatprep.subr.bf16.mxu0 0
      %721 = vmatpush1.bf16.msra.mxu0 %v708
      %722 = vmatprep.subr.bf16.mxu0 0
      %723 = vmatpush1.bf16.msra.mxu0 %v707
      %724 = vmatprep.subr.bf16.mxu0 0
      %725 = vmatpush1.bf16.msra.mxu0 %v706
      %726 = vmatprep.subr.bf16.mxu0 0
      %727 = vmatpush1.bf16.msra.mxu0 %v705
      %728 = vmatprep.subr.bf16.mxu0 0
      %729 = vmatpush1.bf16.msra.mxu0 %v704
      %730 = vmatprep.subr.bf16.mxu0 0
      %731 = vmatpush1.bf16.msra.mxu0 %v703
      %732 = vmatprep.subr.bf16.mxu0 0
      %733 = vmatpush1.bf16.msra.mxu0 %v702
      %734 = vmatprep.subr.bf16.mxu0 0
      %735 = vmatpush2.bf16.msra.mxu0 0
      %736 = vmatprep.subr.bf16.mxu0 0
      %737 = vmatpush2.bf16.msra.mxu0 0
      %738 = vmatprep.subr.bf16.mxu0 0
      %739 = vmatpush2.bf16.msra.mxu0 0
      %740 = vmatprep.subr.bf16.mxu0 0
      %741 = vmatpush2.bf16.msra.mxu0 0
      %742 = vmatprep.subr.bf16.mxu0 0
      %743 = vmatpush2.bf16.msra.mxu0 0
      %744 = vmatprep.subr.bf16.mxu0 0
      %745 = vmatpush2.bf16.msra.mxu0 0
      %746 = vmatprep.subr.bf16.mxu0 0
      %747 = vmatpush2.bf16.msra.mxu0 0
      %748 = vmatprep.subr.bf16.mxu0 0
      %749 = vmatpush2.bf16.msra.mxu0 0
      %750 = vmatprep.mubr.bf16.mxu0 0
      %751 = vmatmul.mubr.bf16.gmra.mxu0 %v638
      %v752 = vpop.f32.mrf.mxu0
      %v753 = vadd.f32 %v448, %v752
      %v754 = vpop.f32.mrf.mxu0
      %v755 = vpop.f32.mrf.mxu0
      %v756 = vadd.f32 %v451, %v755
      %v757 = vpop.f32.mrf.mxu0
      %758 = vmatprep.mubr.bf16.mxu0 0
      %759 = vmatmul.mubr.bf16.gmra.mxu0 %v639
      %v760 = vpop.f32.mrf.mxu0
      %v761 = vadd.f32 %v456, %v760
      %v762 = vpop.f32.mrf.mxu0
      %v763 = vpop.f32.mrf.mxu0
      %v764 = vadd.f32 %v459, %v763
      %v765 = vpop.f32.mrf.mxu0
      %766 = vmatprep.mubr.bf16.mxu0 0
      %767 = vmatmul.mubr.bf16.gmra.mxu0 %v640
      %v768 = vpop.f32.mrf.mxu0
      %v769 = vadd.f32 %v464, %v768
      %v770 = vpop.f32.mrf.mxu0
      %v771 = vpop.f32.mrf.mxu0
      %v772 = vadd.f32 %v467, %v771
      %v773 = vpop.f32.mrf.mxu0
      %774 = vmatprep.mubr.bf16.mxu0 0
      %775 = vmatmul.mubr.bf16.gmra.mxu0 %v641
      %v776 = vpop.f32.mrf.mxu0
      %v777 = vadd.f32 %v472, %v776
      %v778 = vpop.f32.mrf.mxu0
      %v779 = vpop.f32.mrf.mxu0
      %v780 = vadd.f32 %v475, %v779
      %v781 = vpop.f32.mrf.mxu0
      %782 = vmatprep.mubr.bf16.mxu0 0
      %783 = vmatmul.mubr.bf16.gmra.mxu0 %v642
      %v784 = vpop.f32.mrf.mxu0
      %v785 = vadd.f32 %v480, %v784
      %v786 = vpop.f32.mrf.mxu0
      %v787 = vpop.f32.mrf.mxu0
      %v788 = vadd.f32 %v483, %v787
      %v789 = vpop.f32.mrf.mxu0
      %790 = vmatprep.mubr.bf16.mxu0 0
      %791 = vmatmul.mubr.bf16.gmra.mxu0 %v643
      %v792 = vpop.f32.mrf.mxu0
      %v793 = vadd.f32 %v488, %v792
      %v794 = vpop.f32.mrf.mxu0
      %v795 = vpop.f32.mrf.mxu0
      %v796 = vadd.f32 %v491, %v795
      %v797 = vpop.f32.mrf.mxu0
      %798 = vmatprep.mubr.bf16.mxu0 0
      %799 = vmatmul.mubr.bf16.gmra.mxu0 %v644
      %v800 = vpop.f32.mrf.mxu0
      %v801 = vadd.f32 %v496, %v800
      %v802 = vpop.f32.mrf.mxu0
      %v803 = vpop.f32.mrf.mxu0
      %v804 = vadd.f32 %v499, %v803
      %v805 = vpop.f32.mrf.mxu0
      %806 = vmatprep.mubr.bf16.mxu0 0
      %807 = vmatmul.mubr.bf16.gmra.mxu0 %v645
      %v808 = vpop.f32.mrf.mxu0
      %v809 = vadd.f32 %v504, %v808
      %v810 = vpop.f32.mrf.mxu0
      %v811 = vpop.f32.mrf.mxu0
      %v812 = vadd.f32 %v507, %v811
      %v813 = vpop.f32.mrf.mxu0
      %814 = vmatprep.mubr.bf16.mxu0 0
      %815 = vmatmul.mubr.bf16.gmra.mxu0 %v646
      %v816 = vpop.f32.mrf.mxu0
      %v817 = vadd.f32 %v512, %v816
      %v818 = vpop.f32.mrf.mxu0
      %v819 = vpop.f32.mrf.mxu0
      %v820 = vadd.f32 %v515, %v819
      %v821 = vpop.f32.mrf.mxu0
      %822 = vmatprep.mubr.bf16.mxu0 0
      %823 = vmatmul.mubr.bf16.gmra.mxu0 %v647
      %v824 = vpop.f32.mrf.mxu0
      %v825 = vadd.f32 %v520, %v824
      %v826 = vpop.f32.mrf.mxu0
      %v827 = vpop.f32.mrf.mxu0
      %v828 = vadd.f32 %v523, %v827
      %v829 = vpop.f32.mrf.mxu0
      %830 = vmatprep.mubr.bf16.mxu0 0
      %831 = vmatmul.mubr.bf16.gmra.mxu0 %v648
      %v832 = vpop.f32.mrf.mxu0
      %v833 = vadd.f32 %v528, %v832
      %v834 = vpop.f32.mrf.mxu0
      %v835 = vpop.f32.mrf.mxu0
      %v836 = vadd.f32 %v531, %v835
      %v837 = vpop.f32.mrf.mxu0
      %838 = vmatprep.mubr.bf16.mxu0 0
      %839 = vmatmul.mubr.bf16.gmra.mxu0 %v649
      %v840 = vpop.f32.mrf.mxu0
      %v841 = vadd.f32 %v536, %v840
      %v842 = vpop.f32.mrf.mxu0
      %v843 = vpop.f32.mrf.mxu0
      %v844 = vadd.f32 %v539, %v843
      %v845 = vpop.f32.mrf.mxu0
      %846 = vmatprep.mubr.bf16.mxu0 0
      %847 = vmatmul.mubr.bf16.gmra.mxu0 %v650
      %v848 = vpop.f32.mrf.mxu0
      %v849 = vadd.f32 %v544, %v848
      %v850 = vpop.f32.mrf.mxu0
      %v851 = vpop.f32.mrf.mxu0
      %v852 = vadd.f32 %v547, %v851
      %v853 = vpop.f32.mrf.mxu0
      %854 = vmatprep.mubr.bf16.mxu0 0
      %855 = vmatmul.mubr.bf16.gmra.mxu0 %v651
      %v856 = vpop.f32.mrf.mxu0
      %v857 = vadd.f32 %v552, %v856
      %v858 = vpop.f32.mrf.mxu0
      %v859 = vpop.f32.mrf.mxu0
      %v860 = vadd.f32 %v555, %v859
      %v861 = vpop.f32.mrf.mxu0
      %862 = vmatprep.mubr.bf16.mxu0 0
      %863 = vmatmul.mubr.bf16.gmra.mxu0 %v652
      %v864 = vpop.f32.mrf.mxu0
      %v865 = vadd.f32 %v560, %v864
      %v866 = vpop.f32.mrf.mxu0
      %v867 = vpop.f32.mrf.mxu0
      %v868 = vadd.f32 %v563, %v867
      %v869 = vpop.f32.mrf.mxu0
      %870 = vmatprep.mubr.bf16.mxu0 0
      %871 = vmatmul.mubr.bf16.gmra.mxu0 %v653
      %v872 = vpop.f32.mrf.mxu0
      %v873 = vadd.f32 %v568, %v872
      %v874 = vpop.f32.mrf.mxu0
      %v875 = vpop.f32.mrf.mxu0
      %v876 = vadd.f32 %v571, %v875
      %v877 = vpop.f32.mrf.mxu0
      %878 = vdwg.mxu0
      %v879 = vld [vmem:[%s165] sm:$0xf]
      %v880 = vld [vmem:[%s165 + $0x10] sm:$0xf]
      %v881 = vld [vmem:[%s165 + $0x20] sm:$0x1]
      %v882 = vld [vmem:[%s165 + $0x30] sm:$0xf]
      %v883 = vld [vmem:[%s165 + $0x40] sm:$0xf]
      %v884 = vld [vmem:[%s165 + $0x50] sm:$0x1]
      %v885 = vld [vmem:[%s165 + $0x60] sm:$0xf]
      %v886 = vld [vmem:[%s165 + $0x70] sm:$0xf]
      %v887 = vld [vmem:[%s165 + $0x80] sm:$0x1]
      %v888 = vld [vmem:[%s165 + $0x90] sm:$0xf]
      %v889 = vld [vmem:[%s165 + $0xa0] sm:$0xf]
      %v890 = vld [vmem:[%s165 + $0xb0] sm:$0x1]
      %v891 = vld [vmem:[%s165 + $0xc0] sm:$0xf]
      %v892 = vld [vmem:[%s165 + $0xd0] sm:$0xf]
      %v893 = vld [vmem:[%s165 + $0xe0] sm:$0x1]
      %v894 = vld [vmem:[%s165 + $0xf0] sm:$0xf]
      %v895 = vld [vmem:[%s165 + $0x100] sm:$0xf]
      %v896 = vld [vmem:[%s165 + $0x110] sm:$0x1]
      %v897 = vld [vmem:[%s165 + $0x120] sm:$0xf]
      %v898 = vld [vmem:[%s165 + $0x130] sm:$0xf]
      %v899 = vld [vmem:[%s165 + $0x140] sm:$0x1]
      %v900 = vld [vmem:[%s165 + $0x150] sm:$0xf]
      %v901 = vld [vmem:[%s165 + $0x160] sm:$0xf]
      %v902 = vld [vmem:[%s165 + $0x170] sm:$0x1]
      %v903 = vld [vmem:[%s165 + $0x180] sm:$0xf]
      %v904 = vld [vmem:[%s165 + $0x190] sm:$0xf]
      %v905 = vld [vmem:[%s165 + $0x1a0] sm:$0x1]
      %v906 = vld [vmem:[%s165 + $0x1b0] sm:$0xf]
      %v907 = vld [vmem:[%s165 + $0x1c0] sm:$0xf]
      %v908 = vld [vmem:[%s165 + $0x1d0] sm:$0x1]
      %v909 = vld [vmem:[%s165 + $0x1e0] sm:$0xf]
      %v910 = vld [vmem:[%s165 + $0x1f0] sm:$0xf]
      %v911 = vld [vmem:[%s165 + $0x200] sm:$0x1]
      %v912 = vld [vmem:[%s165 + $0x210] sm:$0xf]
      %v913 = vld [vmem:[%s165 + $0x220] sm:$0xf]
      %v914 = vld [vmem:[%s165 + $0x230] sm:$0x1]
      %v915 = vld [vmem:[%s165 + $0x240] sm:$0xf]
      %v916 = vld [vmem:[%s165 + $0x250] sm:$0xf]
      %v917 = vld [vmem:[%s165 + $0x260] sm:$0x1]
      %v918 = vld [vmem:[%s165 + $0x270] sm:$0xf]
      %v919 = vld [vmem:[%s165 + $0x280] sm:$0xf]
      %v920 = vld [vmem:[%s165 + $0x290] sm:$0x1]
      %v921 = vld [vmem:[%s165 + $0x2a0] sm:$0xf]
      %v922 = vld [vmem:[%s165 + $0x2b0] sm:$0xf]
      %v923 = vld [vmem:[%s165 + $0x2c0] sm:$0x1]
      %v924 = vld [vmem:[%s165 + $0x2d0] sm:$0xf]
      %v925 = vld [vmem:[%s165 + $0x2e0] sm:$0xf]
      %v926 = vld [vmem:[%s165 + $0x2f0] sm:$0x1]
      %vm927 = vsmask.f32 3328
      %vm928 = vsmask.f32 7440
      %vm929 = vmor %vm927, %vm928
      %v931 = vshrl.u32 %v879, 16
      %v933 = vrot.slane %v931, 4
      %v934 = vshll.u32 %v879, 16
      %v936 = vrot.slane %v934, 5
      %v937 = vor.u32 %v933, %v936
      %v938 = vrot.slane %v937, 4
      %v940 = vshll.u32 %v880, 16
      %v942 = vrot.slane %v940, 5
      %v943 = vsel %vm929, %v938, %v942
      %v944 = vshrl.u32 %v880, 16
      %v946 = vrot.slane %v944, 4
      %v947 = vor.u32 %v946, %v942
      %v948 = vrot.slane %v947, 4
      %v950 = vshll.u32 %v881, 16
      %v952 = vrot.slane %v950, 5
      %v953 = vsel %vm929, %v948, %v952
      %v955 = vshrl.u32 %v882, 16
      %v957 = vrot.slane %v955, 4
      %v958 = vshll.u32 %v882, 16
      %v960 = vrot.slane %v958, 5
      %v961 = vor.u32 %v957, %v960
      %v962 = vrot.slane %v961, 4
      %v964 = vshll.u32 %v883, 16
      %v966 = vrot.slane %v964, 5
      %v967 = vsel %vm929, %v962, %v966
      %v968 = vshrl.u32 %v883, 16
      %v970 = vrot.slane %v968, 4
      %v971 = vor.u32 %v970, %v966
      %v972 = vrot.slane %v971, 4
      %v974 = vshll.u32 %v884, 16
      %v976 = vrot.slane %v974, 5
      %v977 = vsel %vm929, %v972, %v976
      %v979 = vshrl.u32 %v885, 16
      %v981 = vrot.slane %v979, 4
      %v982 = vshll.u32 %v885, 16
      %v984 = vrot.slane %v982, 5
      %v985 = vor.u32 %v981, %v984
      %v986 = vrot.slane %v985, 4
      %v988 = vshll.u32 %v886, 16
      %v990 = vrot.slane %v988, 5
      %v991 = vsel %vm929, %v986, %v990
      %v992 = vshrl.u32 %v886, 16
      %v994 = vrot.slane %v992, 4
      %v995 = vor.u32 %v994, %v990
      %v996 = vrot.slane %v995, 4
      %v998 = vshll.u32 %v887, 16
      %v1000 = vrot.slane %v998, 5
      %v1001 = vsel %vm929, %v996, %v1000
      %v1003 = vshrl.u32 %v888, 16
      %v1005 = vrot.slane %v1003, 4
      %v1006 = vshll.u32 %v888, 16
      %v1008 = vrot.slane %v1006, 5
      %v1009 = vor.u32 %v1005, %v1008
      %v1010 = vrot.slane %v1009, 4
      %v1012 = vshll.u32 %v889, 16
      %v1014 = vrot.slane %v1012, 5
      %v1015 = vsel %vm929, %v1010, %v1014
      %v1016 = vshrl.u32 %v889, 16
      %v1018 = vrot.slane %v1016, 4
      %v1019 = vor.u32 %v1018, %v1014
      %v1020 = vrot.slane %v1019, 4
      %v1022 = vshll.u32 %v890, 16
      %v1024 = vrot.slane %v1022, 5
      %v1025 = vsel %vm929, %v1020, %v1024
      %v1027 = vshrl.u32 %v891, 16
      %v1029 = vrot.slane %v1027, 4
      %v1030 = vshll.u32 %v891, 16
      %v1032 = vrot.slane %v1030, 5
      %v1033 = vor.u32 %v1029, %v1032
      %v1034 = vrot.slane %v1033, 4
      %v1036 = vshll.u32 %v892, 16
      %v1038 = vrot.slane %v1036, 5
      %v1039 = vsel %vm929, %v1034, %v1038
      %v1040 = vshrl.u32 %v892, 16
      %v1042 = vrot.slane %v1040, 4
      %v1043 = vor.u32 %v1042, %v1038
      %v1044 = vrot.slane %v1043, 4
      %v1046 = vshll.u32 %v893, 16
      %v1048 = vrot.slane %v1046, 5
      %v1049 = vsel %vm929, %v1044, %v1048
      %v1051 = vshrl.u32 %v894, 16
      %v1053 = vrot.slane %v1051, 4
      %v1054 = vshll.u32 %v894, 16
      %v1056 = vrot.slane %v1054, 5
      %v1057 = vor.u32 %v1053, %v1056
      %v1058 = vrot.slane %v1057, 4
      %v1060 = vshll.u32 %v895, 16
      %v1062 = vrot.slane %v1060, 5
      %v1063 = vsel %vm929, %v1058, %v1062
      %v1064 = vshrl.u32 %v895, 16
      %v1066 = vrot.slane %v1064, 4
      %v1067 = vor.u32 %v1066, %v1062
      %v1068 = vrot.slane %v1067, 4
      %v1070 = vshll.u32 %v896, 16
      %v1072 = vrot.slane %v1070, 5
      %v1073 = vsel %vm929, %v1068, %v1072
      %v1075 = vshrl.u32 %v897, 16
      %v1077 = vrot.slane %v1075, 4
      %v1078 = vshll.u32 %v897, 16
      %v1080 = vrot.slane %v1078, 5
      %v1081 = vor.u32 %v1077, %v1080
      %v1082 = vrot.slane %v1081, 4
      %v1084 = vshll.u32 %v898, 16
      %v1086 = vrot.slane %v1084, 5
      %v1087 = vsel %vm929, %v1082, %v1086
      %v1088 = vshrl.u32 %v898, 16
      %v1090 = vrot.slane %v1088, 4
      %v1091 = vor.u32 %v1090, %v1086
      %v1092 = vrot.slane %v1091, 4
      %v1094 = vshll.u32 %v899, 16
      %v1096 = vrot.slane %v1094, 5
      %v1097 = vsel %vm929, %v1092, %v1096
      %v1099 = vshrl.u32 %v900, 16
      %v1101 = vrot.slane %v1099, 4
      %v1102 = vshll.u32 %v900, 16
      %v1104 = vrot.slane %v1102, 5
      %v1105 = vor.u32 %v1101, %v1104
      %v1106 = vrot.slane %v1105, 4
      %v1108 = vshll.u32 %v901, 16
      %v1110 = vrot.slane %v1108, 5
      %v1111 = vsel %vm929, %v1106, %v1110
      %v1112 = vshrl.u32 %v901, 16
      %v1114 = vrot.slane %v1112, 4
      %v1115 = vor.u32 %v1114, %v1110
      %v1116 = vrot.slane %v1115, 4
      %v1118 = vshll.u32 %v902, 16
      %v1120 = vrot.slane %v1118, 5
      %v1121 = vsel %vm929, %v1116, %v1120
      %v1123 = vshrl.u32 %v903, 16
      %v1125 = vrot.slane %v1123, 4
      %v1126 = vshll.u32 %v903, 16
      %v1128 = vrot.slane %v1126, 5
      %v1129 = vor.u32 %v1125, %v1128
      %v1130 = vrot.slane %v1129, 4
      %v1132 = vshll.u32 %v904, 16
      %v1134 = vrot.slane %v1132, 5
      %v1135 = vsel %vm929, %v1130, %v1134
      %v1136 = vshrl.u32 %v904, 16
      %v1138 = vrot.slane %v1136, 4
      %v1139 = vor.u32 %v1138, %v1134
      %v1140 = vrot.slane %v1139, 4
      %v1142 = vshll.u32 %v905, 16
      %v1144 = vrot.slane %v1142, 5
      %v1145 = vsel %vm929, %v1140, %v1144
      %v1147 = vshrl.u32 %v906, 16
      %v1149 = vrot.slane %v1147, 4
      %v1150 = vshll.u32 %v906, 16
      %v1152 = vrot.slane %v1150, 5
      %v1153 = vor.u32 %v1149, %v1152
      %v1154 = vrot.slane %v1153, 4
      %v1156 = vshll.u32 %v907, 16
      %v1158 = vrot.slane %v1156, 5
      %v1159 = vsel %vm929, %v1154, %v1158
      %v1160 = vshrl.u32 %v907, 16
      %v1162 = vrot.slane %v1160, 4
      %v1163 = vor.u32 %v1162, %v1158
      %v1164 = vrot.slane %v1163, 4
      %v1166 = vshll.u32 %v908, 16
      %v1168 = vrot.slane %v1166, 5
      %v1169 = vsel %vm929, %v1164, %v1168
      %v1171 = vshrl.u32 %v909, 16
      %v1173 = vrot.slane %v1171, 4
      %v1174 = vshll.u32 %v909, 16
      %v1176 = vrot.slane %v1174, 5
      %v1177 = vor.u32 %v1173, %v1176
      %v1178 = vrot.slane %v1177, 4
      %v1180 = vshll.u32 %v910, 16
      %v1182 = vrot.slane %v1180, 5
      %v1183 = vsel %vm929, %v1178, %v1182
      %v1184 = vshrl.u32 %v910, 16
      %v1186 = vrot.slane %v1184, 4
      %v1187 = vor.u32 %v1186, %v1182
      %v1188 = vrot.slane %v1187, 4
      %v1190 = vshll.u32 %v911, 16
      %v1192 = vrot.slane %v1190, 5
      %v1193 = vsel %vm929, %v1188, %v1192
      %v1195 = vshrl.u32 %v912, 16
      %v1197 = vrot.slane %v1195, 4
      %v1198 = vshll.u32 %v912, 16
      %v1200 = vrot.slane %v1198, 5
      %v1201 = vor.u32 %v1197, %v1200
      %v1202 = vrot.slane %v1201, 4
      %v1204 = vshll.u32 %v913, 16
      %v1206 = vrot.slane %v1204, 5
      %v1207 = vsel %vm929, %v1202, %v1206
      %v1208 = vshrl.u32 %v913, 16
      %v1210 = vrot.slane %v1208, 4
      %v1211 = vor.u32 %v1210, %v1206
      %v1212 = vrot.slane %v1211, 4
      %v1214 = vshll.u32 %v914, 16
      %v1216 = vrot.slane %v1214, 5
      %v1217 = vsel %vm929, %v1212, %v1216
      %v1219 = vshrl.u32 %v915, 16
      %v1221 = vrot.slane %v1219, 4
      %v1222 = vshll.u32 %v915, 16
      %v1224 = vrot.slane %v1222, 5
      %v1225 = vor.u32 %v1221, %v1224
      %v1226 = vrot.slane %v1225, 4
      %v1228 = vshll.u32 %v916, 16
      %v1230 = vrot.slane %v1228, 5
      %v1231 = vsel %vm929, %v1226, %v1230
      %v1232 = vshrl.u32 %v916, 16
      %v1234 = vrot.slane %v1232, 4
      %v1235 = vor.u32 %v1234, %v1230
      %v1236 = vrot.slane %v1235, 4
      %v1238 = vshll.u32 %v917, 16
      %v1240 = vrot.slane %v1238, 5
      %v1241 = vsel %vm929, %v1236, %v1240
      %v1243 = vshrl.u32 %v918, 16
      %v1245 = vrot.slane %v1243, 4
      %v1246 = vshll.u32 %v918, 16
      %v1248 = vrot.slane %v1246, 5
      %v1249 = vor.u32 %v1245, %v1248
      %v1250 = vrot.slane %v1249, 4
      %v1252 = vshll.u32 %v919, 16
      %v1254 = vrot.slane %v1252, 5
      %v1255 = vsel %vm929, %v1250, %v1254
      %v1256 = vshrl.u32 %v919, 16
      %v1258 = vrot.slane %v1256, 4
      %v1259 = vor.u32 %v1258, %v1254
      %v1260 = vrot.slane %v1259, 4
      %v1262 = vshll.u32 %v920, 16
      %v1264 = vrot.slane %v1262, 5
      %v1265 = vsel %vm929, %v1260, %v1264
      %v1267 = vshrl.u32 %v921, 16
      %v1269 = vrot.slane %v1267, 4
      %v1270 = vshll.u32 %v921, 16
      %v1272 = vrot.slane %v1270, 5
      %v1273 = vor.u32 %v1269, %v1272
      %v1274 = vrot.slane %v1273, 4
      %v1276 = vshll.u32 %v922, 16
      %v1278 = vrot.slane %v1276, 5
      %v1279 = vsel %vm929, %v1274, %v1278
      %v1280 = vshrl.u32 %v922, 16
      %v1282 = vrot.slane %v1280, 4
      %v1283 = vor.u32 %v1282, %v1278
      %v1284 = vrot.slane %v1283, 4
      %v1286 = vshll.u32 %v923, 16
      %v1288 = vrot.slane %v1286, 5
      %v1289 = vsel %vm929, %v1284, %v1288
      %v1291 = vshrl.u32 %v924, 16
      %v1293 = vrot.slane %v1291, 4
      %v1294 = vshll.u32 %v924, 16
      %v1296 = vrot.slane %v1294, 5
      %v1297 = vor.u32 %v1293, %v1296
      %v1298 = vrot.slane %v1297, 4
      %v1300 = vshll.u32 %v925, 16
      %v1302 = vrot.slane %v1300, 5
      %v1303 = vsel %vm929, %v1298, %v1302
      %v1304 = vshrl.u32 %v925, 16
      %v1306 = vrot.slane %v1304, 4
      %v1307 = vor.u32 %v1306, %v1302
      %v1308 = vrot.slane %v1307, 4
      %v1310 = vshll.u32 %v926, 16
      %v1312 = vrot.slane %v1310, 5
      %v1313 = vsel %vm929, %v1308, %v1312
      %s1314 = scalar_lea.vmem %s1, 128
      %v1315 = vld [vmem:[%s1314] sm:$0xf]
      %v1316 = vld [vmem:[%s1314 + $0x4] sm:$0xf]
      %v1317 = vld [vmem:[%s1314 + $0x8] sm:$0xf]
      %v1318 = vld [vmem:[%s1314 + $0xc] sm:$0xf]
      %v1319 = vld [vmem:[%s1314 + $0x10] sm:$0xf]
      %v1320 = vld [vmem:[%s1314 + $0x14] sm:$0xf]
      %v1321 = vld [vmem:[%s1314 + $0x18] sm:$0xf]
      %v1322 = vld [vmem:[%s1314 + $0x1c] sm:$0xf]
      %v1323 = vld [vmem:[%s1314 + $0x20] sm:$0xf]
      %v1324 = vld [vmem:[%s1314 + $0x24] sm:$0xf]
      %v1325 = vld [vmem:[%s1314 + $0x28] sm:$0xf]
      %v1326 = vld [vmem:[%s1314 + $0x2c] sm:$0xf]
      %v1327 = vld [vmem:[%s1314 + $0x30] sm:$0xf]
      %v1328 = vld [vmem:[%s1314 + $0x34] sm:$0xf]
      %v1329 = vld [vmem:[%s1314 + $0x38] sm:$0xf]
      %v1330 = vld [vmem:[%s1314 + $0x3c] sm:$0xf]
      %v1331 = vunpack.c.l.b16 %v943
      %v1332 = vunpack.c.l.b16 %v953
      %v1333 = vunpack.c.l.b16 %v967
      %v1334 = vunpack.c.l.b16 %v977
      %v1335 = vunpack.c.l.b16 %v991
      %v1336 = vunpack.c.l.b16 %v1001
      %v1337 = vunpack.c.l.b16 %v1015
      %v1338 = vunpack.c.l.b16 %v1025
      %v1339 = vunpack.c.l.b16 %v1039
      %v1340 = vunpack.c.l.b16 %v1049
      %v1341 = vunpack.c.l.b16 %v1063
      %v1342 = vunpack.c.l.b16 %v1073
      %v1343 = vunpack.c.l.b16 %v1087
      %v1344 = vunpack.c.l.b16 %v1097
      %v1345 = vunpack.c.l.b16 %v1111
      %v1346 = vunpack.c.l.b16 %v1121
      %v1347 = vunpack.c.l.b16 %v1135
      %v1348 = vunpack.c.l.b16 %v1145
      %v1349 = vunpack.c.l.b16 %v1159
      %v1350 = vunpack.c.l.b16 %v1169
      %v1351 = vunpack.c.l.b16 %v1183
      %v1352 = vunpack.c.l.b16 %v1193
      %v1353 = vunpack.c.l.b16 %v1207
      %v1354 = vunpack.c.l.b16 %v1217
      %v1355 = vunpack.c.l.b16 %v1231
      %v1356 = vunpack.c.l.b16 %v1241
      %v1357 = vunpack.c.l.b16 %v1255
      %v1358 = vunpack.c.l.b16 %v1265
      %v1359 = vunpack.c.l.b16 %v1279
      %v1360 = vunpack.c.l.b16 %v1289
      %v1361 = vunpack.c.l.b16 %v1303
      %v1362 = vunpack.c.l.b16 %v1313
      %v1363 = vpack.c.b16 %v1332, %v1331
      %v1364 = vpack.c.b16 %v1334, %v1333
      %v1365 = vpack.c.b16 %v1336, %v1335
      %v1366 = vpack.c.b16 %v1338, %v1337
      %v1367 = vpack.c.b16 %v1340, %v1339
      %v1368 = vpack.c.b16 %v1342, %v1341
      %v1369 = vpack.c.b16 %v1344, %v1343
      %v1370 = vpack.c.b16 %v1346, %v1345
      %v1371 = vpack.c.b16 %v1348, %v1347
      %v1372 = vpack.c.b16 %v1350, %v1349
      %v1373 = vpack.c.b16 %v1352, %v1351
      %v1374 = vpack.c.b16 %v1354, %v1353
      %v1375 = vpack.c.b16 %v1356, %v1355
      %v1376 = vpack.c.b16 %v1358, %v1357
      %v1377 = vpack.c.b16 %v1360, %v1359
      %v1378 = vpack.c.b16 %v1362, %v1361
      %v1411 = vunpack.c.l.b16 %v1315
      %v1412 = vunpack.c.l.b16 %v1316
      %v1413 = vunpack.c.l.b16 %v1317
      %v1414 = vunpack.c.l.b16 %v1318
      %v1415 = vunpack.c.l.b16 %v1319
      %v1416 = vunpack.c.l.b16 %v1320
      %v1417 = vunpack.c.l.b16 %v1321
      %v1418 = vunpack.c.l.b16 %v1322
      %v1419 = vunpack.c.l.b16 %v1323
      %v1420 = vunpack.c.l.b16 %v1324
      %v1421 = vunpack.c.l.b16 %v1325
      %v1422 = vunpack.c.l.b16 %v1326
      %v1423 = vunpack.c.l.b16 %v1327
      %v1424 = vunpack.c.l.b16 %v1328
      %v1425 = vunpack.c.l.b16 %v1329
      %v1426 = vunpack.c.l.b16 %v1330
      %v1427 = vpack.c.b16 %v1412, %v1411
      %v1428 = vpack.c.b16 %v1414, %v1413
      %v1429 = vpack.c.b16 %v1416, %v1415
      %v1430 = vpack.c.b16 %v1418, %v1417
      %v1431 = vpack.c.b16 %v1420, %v1419
      %v1432 = vpack.c.b16 %v1422, %v1421
      %v1433 = vpack.c.b16 %v1424, %v1423
      %v1434 = vpack.c.b16 %v1426, %v1425
      %1443 = vmatprep.subr.bf16.mxu0 0
      %1444 = vmatpush1.bf16.msra.mxu0 %v1434
      %1445 = vmatprep.subr.bf16.mxu0 0
      %1446 = vmatpush1.bf16.msra.mxu0 %v1433
      %1447 = vmatprep.subr.bf16.mxu0 0
      %1448 = vmatpush1.bf16.msra.mxu0 %v1432
      %1449 = vmatprep.subr.bf16.mxu0 0
      %1450 = vmatpush1.bf16.msra.mxu0 %v1431
      %1451 = vmatprep.subr.bf16.mxu0 0
      %1452 = vmatpush1.bf16.msra.mxu0 %v1430
      %1453 = vmatprep.subr.bf16.mxu0 0
      %1454 = vmatpush1.bf16.msra.mxu0 %v1429
      %1455 = vmatprep.subr.bf16.mxu0 0
      %1456 = vmatpush1.bf16.msra.mxu0 %v1428
      %1457 = vmatprep.subr.bf16.mxu0 0
      %1458 = vmatpush1.bf16.msra.mxu0 %v1427
      %1459 = vmatprep.subr.bf16.mxu0 0
      %1460 = vmatpush2.bf16.msra.mxu0 0
      %1461 = vmatprep.subr.bf16.mxu0 0
      %1462 = vmatpush2.bf16.msra.mxu0 0
      %1463 = vmatprep.subr.bf16.mxu0 0
      %1464 = vmatpush2.bf16.msra.mxu0 0
      %1465 = vmatprep.subr.bf16.mxu0 0
      %1466 = vmatpush2.bf16.msra.mxu0 0
      %1467 = vmatprep.subr.bf16.mxu0 0
      %1468 = vmatpush2.bf16.msra.mxu0 0
      %1469 = vmatprep.subr.bf16.mxu0 0
      %1470 = vmatpush2.bf16.msra.mxu0 0
      %1471 = vmatprep.subr.bf16.mxu0 0
      %1472 = vmatpush2.bf16.msra.mxu0 0
      %1473 = vmatprep.subr.bf16.mxu0 0
      %1474 = vmatpush2.bf16.msra.mxu0 0
      %1475 = vmatprep.mubr.bf16.mxu0 0
      %1476 = vmatmul.mubr.bf16.gmra.mxu0 %v1363
      %v1477 = vpop.f32.mrf.mxu0
      %v1478 = vadd.f32 0.0, %v1477
      %v1479 = vpop.f32.mrf.mxu0
      %v1480 = vpop.f32.mrf.mxu0
      %v1481 = vadd.f32 0.0, %v1480
      %v1482 = vpop.f32.mrf.mxu0
      %1483 = vmatprep.mubr.bf16.mxu0 0
      %1484 = vmatmul.mubr.bf16.gmra.mxu0 %v1364
      %v1485 = vpop.f32.mrf.mxu0
      %v1486 = vadd.f32 0.0, %v1485
      %v1487 = vpop.f32.mrf.mxu0
      %v1488 = vpop.f32.mrf.mxu0
      %v1489 = vadd.f32 0.0, %v1488
      %v1490 = vpop.f32.mrf.mxu0
      %1491 = vmatprep.mubr.bf16.mxu0 0
      %1492 = vmatmul.mubr.bf16.gmra.mxu0 %v1365
      %v1493 = vpop.f32.mrf.mxu0
      %v1494 = vadd.f32 0.0, %v1493
      %v1495 = vpop.f32.mrf.mxu0
      %v1496 = vpop.f32.mrf.mxu0
      %v1497 = vadd.f32 0.0, %v1496
      %v1498 = vpop.f32.mrf.mxu0
      %1499 = vmatprep.mubr.bf16.mxu0 0
      %1500 = vmatmul.mubr.bf16.gmra.mxu0 %v1366
      %v1501 = vpop.f32.mrf.mxu0
      %v1502 = vadd.f32 0.0, %v1501
      %v1503 = vpop.f32.mrf.mxu0
      %v1504 = vpop.f32.mrf.mxu0
      %v1505 = vadd.f32 0.0, %v1504
      %v1506 = vpop.f32.mrf.mxu0
      %1507 = vmatprep.mubr.bf16.mxu0 0
      %1508 = vmatmul.mubr.bf16.gmra.mxu0 %v1367
      %v1509 = vpop.f32.mrf.mxu0
      %v1510 = vadd.f32 0.0, %v1509
      %v1511 = vpop.f32.mrf.mxu0
      %v1512 = vpop.f32.mrf.mxu0
      %v1513 = vadd.f32 0.0, %v1512
      %v1514 = vpop.f32.mrf.mxu0
      %1515 = vmatprep.mubr.bf16.mxu0 0
      %1516 = vmatmul.mubr.bf16.gmra.mxu0 %v1368
      %v1517 = vpop.f32.mrf.mxu0
      %v1518 = vadd.f32 0.0, %v1517
      %v1519 = vpop.f32.mrf.mxu0
      %v1520 = vpop.f32.mrf.mxu0
      %v1521 = vadd.f32 0.0, %v1520
      %v1522 = vpop.f32.mrf.mxu0
      %1523 = vmatprep.mubr.bf16.mxu0 0
      %1524 = vmatmul.mubr.bf16.gmra.mxu0 %v1369
      %v1525 = vpop.f32.mrf.mxu0
      %v1526 = vadd.f32 0.0, %v1525
      %v1527 = vpop.f32.mrf.mxu0
      %v1528 = vpop.f32.mrf.mxu0
      %v1529 = vadd.f32 0.0, %v1528
      %v1530 = vpop.f32.mrf.mxu0
      %1531 = vmatprep.mubr.bf16.mxu0 0
      %1532 = vmatmul.mubr.bf16.gmra.mxu0 %v1370
      %v1533 = vpop.f32.mrf.mxu0
      %v1534 = vadd.f32 0.0, %v1533
      %v1535 = vpop.f32.mrf.mxu0
      %v1536 = vpop.f32.mrf.mxu0
      %v1537 = vadd.f32 0.0, %v1536
      %v1538 = vpop.f32.mrf.mxu0
      %1539 = vmatprep.mubr.bf16.mxu0 0
      %1540 = vmatmul.mubr.bf16.gmra.mxu0 %v1371
      %v1541 = vpop.f32.mrf.mxu0
      %v1542 = vadd.f32 0.0, %v1541
      %v1543 = vpop.f32.mrf.mxu0
      %v1544 = vpop.f32.mrf.mxu0
      %v1545 = vadd.f32 0.0, %v1544
      %v1546 = vpop.f32.mrf.mxu0
      %1547 = vmatprep.mubr.bf16.mxu0 0
      %1548 = vmatmul.mubr.bf16.gmra.mxu0 %v1372
      %v1549 = vpop.f32.mrf.mxu0
      %v1550 = vadd.f32 0.0, %v1549
      %v1551 = vpop.f32.mrf.mxu0
      %v1552 = vpop.f32.mrf.mxu0
      %v1553 = vadd.f32 0.0, %v1552
      %v1554 = vpop.f32.mrf.mxu0
      %1555 = vmatprep.mubr.bf16.mxu0 0
      %1556 = vmatmul.mubr.bf16.gmra.mxu0 %v1373
      %v1557 = vpop.f32.mrf.mxu0
      %v1558 = vadd.f32 0.0, %v1557
      %v1559 = vpop.f32.mrf.mxu0
      %v1560 = vpop.f32.mrf.mxu0
      %v1561 = vadd.f32 0.0, %v1560
      %v1562 = vpop.f32.mrf.mxu0
      %1563 = vmatprep.mubr.bf16.mxu0 0
      %1564 = vmatmul.mubr.bf16.gmra.mxu0 %v1374
      %v1565 = vpop.f32.mrf.mxu0
      %v1566 = vadd.f32 0.0, %v1565
      %v1567 = vpop.f32.mrf.mxu0
      %v1568 = vpop.f32.mrf.mxu0
      %v1569 = vadd.f32 0.0, %v1568
      %v1570 = vpop.f32.mrf.mxu0
      %1571 = vmatprep.mubr.bf16.mxu0 0
      %1572 = vmatmul.mubr.bf16.gmra.mxu0 %v1375
      %v1573 = vpop.f32.mrf.mxu0
      %v1574 = vadd.f32 0.0, %v1573
      %v1575 = vpop.f32.mrf.mxu0
      %v1576 = vpop.f32.mrf.mxu0
      %v1577 = vadd.f32 0.0, %v1576
      %v1578 = vpop.f32.mrf.mxu0
      %1579 = vmatprep.mubr.bf16.mxu0 0
      %1580 = vmatmul.mubr.bf16.gmra.mxu0 %v1376
      %v1581 = vpop.f32.mrf.mxu0
      %v1582 = vadd.f32 0.0, %v1581
      %v1583 = vpop.f32.mrf.mxu0
      %v1584 = vpop.f32.mrf.mxu0
      %v1585 = vadd.f32 0.0, %v1584
      %v1586 = vpop.f32.mrf.mxu0
      %1587 = vmatprep.mubr.bf16.mxu0 0
      %1588 = vmatmul.mubr.bf16.gmra.mxu0 %v1377
      %v1589 = vpop.f32.mrf.mxu0
      %v1590 = vadd.f32 0.0, %v1589
      %v1591 = vpop.f32.mrf.mxu0
      %v1592 = vpop.f32.mrf.mxu0
      %v1593 = vadd.f32 0.0, %v1592
      %v1594 = vpop.f32.mrf.mxu0
      %1595 = vmatprep.mubr.bf16.mxu0 0
      %1596 = vmatmul.mubr.bf16.gmra.mxu0 %v1378
      %v1597 = vpop.f32.mrf.mxu0
      %v1598 = vadd.f32 0.0, %v1597
      %v1599 = vpop.f32.mrf.mxu0
      %v1600 = vpop.f32.mrf.mxu0
      %v1601 = vadd.f32 0.0, %v1600
      %v1602 = vpop.f32.mrf.mxu0
      %1603 = vdwg.mxu0
      %v1604 = vadd.f32 %v753, %v1478
      %v1605 = vadd.f32 %v756, %v1481
      %v1606 = vadd.f32 %v761, %v1486
      %v1607 = vadd.f32 %v764, %v1489
      %v1608 = vadd.f32 %v769, %v1494
      %v1609 = vadd.f32 %v772, %v1497
      %v1610 = vadd.f32 %v777, %v1502
      %v1611 = vadd.f32 %v780, %v1505
      %v1612 = vadd.f32 %v785, %v1510
      %v1613 = vadd.f32 %v788, %v1513
      %v1614 = vadd.f32 %v793, %v1518
      %v1615 = vadd.f32 %v796, %v1521
      %v1616 = vadd.f32 %v801, %v1526
      %v1617 = vadd.f32 %v804, %v1529
      %v1618 = vadd.f32 %v809, %v1534
      %v1619 = vadd.f32 %v812, %v1537
      %v1620 = vadd.f32 %v817, %v1542
      %v1621 = vadd.f32 %v820, %v1545
      %v1622 = vadd.f32 %v825, %v1550
      %v1623 = vadd.f32 %v828, %v1553
      %v1624 = vadd.f32 %v833, %v1558
      %v1625 = vadd.f32 %v836, %v1561
      %v1626 = vadd.f32 %v841, %v1566
      %v1627 = vadd.f32 %v844, %v1569
      %v1628 = vadd.f32 %v849, %v1574
      %v1629 = vadd.f32 %v852, %v1577
      %v1630 = vadd.f32 %v857, %v1582
      %v1631 = vadd.f32 %v860, %v1585
      %v1632 = vadd.f32 %v865, %v1590
      %v1633 = vadd.f32 %v868, %v1593
      %v1634 = vadd.f32 %v873, %v1598
      %v1635 = vadd.f32 %v876, %v1601
      %v1636 = vld [vmem:[%s165 + $0x8] sm:$0xf]
      %v1637 = vld [vmem:[%s165 + $0x18] sm:$0xf]
      %v1638 = vld [vmem:[%s165 + $0x38] sm:$0xf]
      %v1639 = vld [vmem:[%s165 + $0x48] sm:$0xf]
      %v1640 = vld [vmem:[%s165 + $0x68] sm:$0xf]
      %v1641 = vld [vmem:[%s165 + $0x78] sm:$0xf]
      %v1642 = vld [vmem:[%s165 + $0x98] sm:$0xf]
      %v1643 = vld [vmem:[%s165 + $0xa8] sm:$0xf]
      %v1644 = vld [vmem:[%s165 + $0xc8] sm:$0xf]
      %v1645 = vld [vmem:[%s165 + $0xd8] sm:$0xf]
      %v1646 = vld [vmem:[%s165 + $0xf8] sm:$0xf]
      %v1647 = vld [vmem:[%s165 + $0x108] sm:$0xf]
      %v1648 = vld [vmem:[%s165 + $0x128] sm:$0xf]
      %v1649 = vld [vmem:[%s165 + $0x138] sm:$0xf]
      %v1650 = vld [vmem:[%s165 + $0x158] sm:$0xf]
      %v1651 = vld [vmem:[%s165 + $0x168] sm:$0xf]
      %v1652 = vld [vmem:[%s165 + $0x188] sm:$0xf]
      %v1653 = vld [vmem:[%s165 + $0x198] sm:$0xf]
      %v1654 = vld [vmem:[%s165 + $0x1b8] sm:$0xf]
      %v1655 = vld [vmem:[%s165 + $0x1c8] sm:$0xf]
      %v1656 = vld [vmem:[%s165 + $0x1e8] sm:$0xf]
      %v1657 = vld [vmem:[%s165 + $0x1f8] sm:$0xf]
      %v1658 = vld [vmem:[%s165 + $0x218] sm:$0xf]
      %v1659 = vld [vmem:[%s165 + $0x228] sm:$0xf]
      %v1660 = vld [vmem:[%s165 + $0x248] sm:$0xf]
      %v1661 = vld [vmem:[%s165 + $0x258] sm:$0xf]
      %v1662 = vld [vmem:[%s165 + $0x278] sm:$0xf]
      %v1663 = vld [vmem:[%s165 + $0x288] sm:$0xf]
      %v1664 = vld [vmem:[%s165 + $0x2a8] sm:$0xf]
      %v1665 = vld [vmem:[%s165 + $0x2b8] sm:$0xf]
      %v1666 = vld [vmem:[%s165 + $0x2d8] sm:$0xf]
      %v1667 = vld [vmem:[%s165 + $0x2e8] sm:$0xf]
      %s1668 = scalar_lea.vmem %s1, 192
      %v1669 = vld [vmem:[%s1668] sm:$0xf]
      %v1670 = vld [vmem:[%s1668 + $0x4] sm:$0xf]
      %v1671 = vld [vmem:[%s1668 + $0x8] sm:$0xf]
      %v1672 = vld [vmem:[%s1668 + $0xc] sm:$0xf]
      %v1673 = vld [vmem:[%s1668 + $0x10] sm:$0xf]
      %v1674 = vld [vmem:[%s1668 + $0x14] sm:$0xf]
      %v1675 = vld [vmem:[%s1668 + $0x18] sm:$0xf]
      %v1676 = vld [vmem:[%s1668 + $0x1c] sm:$0xf]
      %v1677 = vld [vmem:[%s1668 + $0x20] sm:$0xf]
      %v1678 = vld [vmem:[%s1668 + $0x24] sm:$0xf]
      %v1679 = vld [vmem:[%s1668 + $0x28] sm:$0xf]
      %v1680 = vld [vmem:[%s1668 + $0x2c] sm:$0xf]
      %v1681 = vld [vmem:[%s1668 + $0x30] sm:$0xf]
      %v1682 = vld [vmem:[%s1668 + $0x34] sm:$0xf]
      %v1683 = vld [vmem:[%s1668 + $0x38] sm:$0xf]
      %v1684 = vld [vmem:[%s1668 + $0x3c] sm:$0xf]
      %v1717 = vunpack.c.l.b16 %v1636
      %v1718 = vunpack.c.l.b16 %v1637
      %v1719 = vunpack.c.l.b16 %v1638
      %v1720 = vunpack.c.l.b16 %v1639
      %v1721 = vunpack.c.l.b16 %v1640
      %v1722 = vunpack.c.l.b16 %v1641
      %v1723 = vunpack.c.l.b16 %v1642
      %v1724 = vunpack.c.l.b16 %v1643
      %v1725 = vunpack.c.l.b16 %v1644
      %v1726 = vunpack.c.l.b16 %v1645
      %v1727 = vunpack.c.l.b16 %v1646
      %v1728 = vunpack.c.l.b16 %v1647
      %v1729 = vunpack.c.l.b16 %v1648
      %v1730 = vunpack.c.l.b16 %v1649
      %v1731 = vunpack.c.l.b16 %v1650
      %v1732 = vunpack.c.l.b16 %v1651
      %v1733 = vunpack.c.l.b16 %v1652
      %v1734 = vunpack.c.l.b16 %v1653
      %v1735 = vunpack.c.l.b16 %v1654
      %v1736 = vunpack.c.l.b16 %v1655
      %v1737 = vunpack.c.l.b16 %v1656
      %v1738 = vunpack.c.l.b16 %v1657
      %v1739 = vunpack.c.l.b16 %v1658
      %v1740 = vunpack.c.l.b16 %v1659
      %v1741 = vunpack.c.l.b16 %v1660
      %v1742 = vunpack.c.l.b16 %v1661
      %v1743 = vunpack.c.l.b16 %v1662
      %v1744 = vunpack.c.l.b16 %v1663
      %v1745 = vunpack.c.l.b16 %v1664
      %v1746 = vunpack.c.l.b16 %v1665
      %v1747 = vunpack.c.l.b16 %v1666
      %v1748 = vunpack.c.l.b16 %v1667
      %v1749 = vpack.c.b16 %v1718, %v1717
      %v1750 = vpack.c.b16 %v1720, %v1719
      %v1751 = vpack.c.b16 %v1722, %v1721
      %v1752 = vpack.c.b16 %v1724, %v1723
      %v1753 = vpack.c.b16 %v1726, %v1725
      %v1754 = vpack.c.b16 %v1728, %v1727
      %v1755 = vpack.c.b16 %v1730, %v1729
      %v1756 = vpack.c.b16 %v1732, %v1731
      %v1757 = vpack.c.b16 %v1734, %v1733
      %v1758 = vpack.c.b16 %v1736, %v1735
      %v1759 = vpack.c.b16 %v1738, %v1737
      %v1760 = vpack.c.b16 %v1740, %v1739
      %v1761 = vpack.c.b16 %v1742, %v1741
      %v1762 = vpack.c.b16 %v1744, %v1743
      %v1763 = vpack.c.b16 %v1746, %v1745
      %v1764 = vpack.c.b16 %v1748, %v1747
      %v1797 = vunpack.c.l.b16 %v1669
      %v1798 = vunpack.c.l.b16 %v1670
      %v1799 = vunpack.c.l.b16 %v1671
      %v1800 = vunpack.c.l.b16 %v1672
      %v1801 = vunpack.c.l.b16 %v1673
      %v1802 = vunpack.c.l.b16 %v1674
      %v1803 = vunpack.c.l.b16 %v1675
      %v1804 = vunpack.c.l.b16 %v1676
      %v1805 = vunpack.c.l.b16 %v1677
      %v1806 = vunpack.c.l.b16 %v1678
      %v1807 = vunpack.c.l.b16 %v1679
      %v1808 = vunpack.c.l.b16 %v1680
      %v1809 = vunpack.c.l.b16 %v1681
      %v1810 = vunpack.c.l.b16 %v1682
      %v1811 = vunpack.c.l.b16 %v1683
      %v1812 = vunpack.c.l.b16 %v1684
      %v1813 = vpack.c.b16 %v1798, %v1797
      %v1814 = vpack.c.b16 %v1800, %v1799
      %v1815 = vpack.c.b16 %v1802, %v1801
      %v1816 = vpack.c.b16 %v1804, %v1803
      %v1817 = vpack.c.b16 %v1806, %v1805
      %v1818 = vpack.c.b16 %v1808, %v1807
      %v1819 = vpack.c.b16 %v1810, %v1809
      %v1820 = vpack.c.b16 %v1812, %v1811
      %1829 = vmatprep.subr.bf16.mxu0 0
      %1830 = vmatpush1.bf16.msra.mxu0 %v1820
      %1831 = vmatprep.subr.bf16.mxu0 0
      %1832 = vmatpush1.bf16.msra.mxu0 %v1819
      %1833 = vmatprep.subr.bf16.mxu0 0
      %1834 = vmatpush1.bf16.msra.mxu0 %v1818
      %1835 = vmatprep.subr.bf16.mxu0 0
      %1836 = vmatpush1.bf16.msra.mxu0 %v1817
      %1837 = vmatprep.subr.bf16.mxu0 0
      %1838 = vmatpush1.bf16.msra.mxu0 %v1816
      %1839 = vmatprep.subr.bf16.mxu0 0
      %1840 = vmatpush1.bf16.msra.mxu0 %v1815
      %1841 = vmatprep.subr.bf16.mxu0 0
      %1842 = vmatpush1.bf16.msra.mxu0 %v1814
      %1843 = vmatprep.subr.bf16.mxu0 0
      %1844 = vmatpush1.bf16.msra.mxu0 %v1813
      %1845 = vmatprep.subr.bf16.mxu0 0
      %1846 = vmatpush2.bf16.msra.mxu0 0
      %1847 = vmatprep.subr.bf16.mxu0 0
      %1848 = vmatpush2.bf16.msra.mxu0 0
      %1849 = vmatprep.subr.bf16.mxu0 0
      %1850 = vmatpush2.bf16.msra.mxu0 0
      %1851 = vmatprep.subr.bf16.mxu0 0
      %1852 = vmatpush2.bf16.msra.mxu0 0
      %1853 = vmatprep.subr.bf16.mxu0 0
      %1854 = vmatpush2.bf16.msra.mxu0 0
      %1855 = vmatprep.subr.bf16.mxu0 0
      %1856 = vmatpush2.bf16.msra.mxu0 0
      %1857 = vmatprep.subr.bf16.mxu0 0
      %1858 = vmatpush2.bf16.msra.mxu0 0
      %1859 = vmatprep.subr.bf16.mxu0 0
      %1860 = vmatpush2.bf16.msra.mxu0 0
      %1861 = vmatprep.mubr.bf16.mxu0 0
      %1862 = vmatmul.mubr.bf16.gmra.mxu0 %v1749
      %v1863 = vpop.f32.mrf.mxu0
      %v1864 = vadd.f32 0.0, %v1863
      %v1865 = vpop.f32.mrf.mxu0
      %v1866 = vpop.f32.mrf.mxu0
      %v1867 = vadd.f32 0.0, %v1866
      %v1868 = vpop.f32.mrf.mxu0
      %1869 = vmatprep.mubr.bf16.mxu0 0
      %1870 = vmatmul.mubr.bf16.gmra.mxu0 %v1750
      %v1871 = vpop.f32.mrf.mxu0
      %v1872 = vadd.f32 0.0, %v1871
      %v1873 = vpop.f32.mrf.mxu0
      %v1874 = vpop.f32.mrf.mxu0
      %v1875 = vadd.f32 0.0, %v1874
      %v1876 = vpop.f32.mrf.mxu0
      %1877 = vmatprep.mubr.bf16.mxu0 0
      %1878 = vmatmul.mubr.bf16.gmra.mxu0 %v1751
      %v1879 = vpop.f32.mrf.mxu0
      %v1880 = vadd.f32 0.0, %v1879
      %v1881 = vpop.f32.mrf.mxu0
      %v1882 = vpop.f32.mrf.mxu0
      %v1883 = vadd.f32 0.0, %v1882
      %v1884 = vpop.f32.mrf.mxu0
      %1885 = vmatprep.mubr.bf16.mxu0 0
      %1886 = vmatmul.mubr.bf16.gmra.mxu0 %v1752
      %v1887 = vpop.f32.mrf.mxu0
      %v1888 = vadd.f32 0.0, %v1887
      %v1889 = vpop.f32.mrf.mxu0
      %v1890 = vpop.f32.mrf.mxu0
      %v1891 = vadd.f32 0.0, %v1890
      %v1892 = vpop.f32.mrf.mxu0
      %1893 = vmatprep.mubr.bf16.mxu0 0
      %1894 = vmatmul.mubr.bf16.gmra.mxu0 %v1753
      %v1895 = vpop.f32.mrf.mxu0
      %v1896 = vadd.f32 0.0, %v1895
      %v1897 = vpop.f32.mrf.mxu0
      %v1898 = vpop.f32.mrf.mxu0
      %v1899 = vadd.f32 0.0, %v1898
      %v1900 = vpop.f32.mrf.mxu0
      %1901 = vmatprep.mubr.bf16.mxu0 0
      %1902 = vmatmul.mubr.bf16.gmra.mxu0 %v1754
      %v1903 = vpop.f32.mrf.mxu0
      %v1904 = vadd.f32 0.0, %v1903
      %v1905 = vpop.f32.mrf.mxu0
      %v1906 = vpop.f32.mrf.mxu0
      %v1907 = vadd.f32 0.0, %v1906
      %v1908 = vpop.f32.mrf.mxu0
      %1909 = vmatprep.mubr.bf16.mxu0 0
      %1910 = vmatmul.mubr.bf16.gmra.mxu0 %v1755
      %v1911 = vpop.f32.mrf.mxu0
      %v1912 = vadd.f32 0.0, %v1911
      %v1913 = vpop.f32.mrf.mxu0
      %v1914 = vpop.f32.mrf.mxu0
      %v1915 = vadd.f32 0.0, %v1914
      %v1916 = vpop.f32.mrf.mxu0
      %1917 = vmatprep.mubr.bf16.mxu0 0
      %1918 = vmatmul.mubr.bf16.gmra.mxu0 %v1756
      %v1919 = vpop.f32.mrf.mxu0
      %v1920 = vadd.f32 0.0, %v1919
      %v1921 = vpop.f32.mrf.mxu0
      %v1922 = vpop.f32.mrf.mxu0
      %v1923 = vadd.f32 0.0, %v1922
      %v1924 = vpop.f32.mrf.mxu0
      %1925 = vmatprep.mubr.bf16.mxu0 0
      %1926 = vmatmul.mubr.bf16.gmra.mxu0 %v1757
      %v1927 = vpop.f32.mrf.mxu0
      %v1928 = vadd.f32 0.0, %v1927
      %v1929 = vpop.f32.mrf.mxu0
      %v1930 = vpop.f32.mrf.mxu0
      %v1931 = vadd.f32 0.0, %v1930
      %v1932 = vpop.f32.mrf.mxu0
      %1933 = vmatprep.mubr.bf16.mxu0 0
      %1934 = vmatmul.mubr.bf16.gmra.mxu0 %v1758
      %v1935 = vpop.f32.mrf.mxu0
      %v1936 = vadd.f32 0.0, %v1935
      %v1937 = vpop.f32.mrf.mxu0
      %v1938 = vpop.f32.mrf.mxu0
      %v1939 = vadd.f32 0.0, %v1938
      %v1940 = vpop.f32.mrf.mxu0
      %1941 = vmatprep.mubr.bf16.mxu0 0
      %1942 = vmatmul.mubr.bf16.gmra.mxu0 %v1759
      %v1943 = vpop.f32.mrf.mxu0
      %v1944 = vadd.f32 0.0, %v1943
      %v1945 = vpop.f32.mrf.mxu0
      %v1946 = vpop.f32.mrf.mxu0
      %v1947 = vadd.f32 0.0, %v1946
      %v1948 = vpop.f32.mrf.mxu0
      %1949 = vmatprep.mubr.bf16.mxu0 0
      %1950 = vmatmul.mubr.bf16.gmra.mxu0 %v1760
      %v1951 = vpop.f32.mrf.mxu0
      %v1952 = vadd.f32 0.0, %v1951
      %v1953 = vpop.f32.mrf.mxu0
      %v1954 = vpop.f32.mrf.mxu0
      %v1955 = vadd.f32 0.0, %v1954
      %v1956 = vpop.f32.mrf.mxu0
      %1957 = vmatprep.mubr.bf16.mxu0 0
      %1958 = vmatmul.mubr.bf16.gmra.mxu0 %v1761
      %v1959 = vpop.f32.mrf.mxu0
      %v1960 = vadd.f32 0.0, %v1959
      %v1961 = vpop.f32.mrf.mxu0
      %v1962 = vpop.f32.mrf.mxu0
      %v1963 = vadd.f32 0.0, %v1962
      %v1964 = vpop.f32.mrf.mxu0
      %1965 = vmatprep.mubr.bf16.mxu0 0
      %1966 = vmatmul.mubr.bf16.gmra.mxu0 %v1762
      %v1967 = vpop.f32.mrf.mxu0
      %v1968 = vadd.f32 0.0, %v1967
      %v1969 = vpop.f32.mrf.mxu0
      %v1970 = vpop.f32.mrf.mxu0
      %v1971 = vadd.f32 0.0, %v1970
      %v1972 = vpop.f32.mrf.mxu0
      %1973 = vmatprep.mubr.bf16.mxu0 0
      %1974 = vmatmul.mubr.bf16.gmra.mxu0 %v1763
      %v1975 = vpop.f32.mrf.mxu0
      %v1976 = vadd.f32 0.0, %v1975
      %v1977 = vpop.f32.mrf.mxu0
      %v1978 = vpop.f32.mrf.mxu0
      %v1979 = vadd.f32 0.0, %v1978
      %v1980 = vpop.f32.mrf.mxu0
      %1981 = vmatprep.mubr.bf16.mxu0 0
      %1982 = vmatmul.mubr.bf16.gmra.mxu0 %v1764
      %v1983 = vpop.f32.mrf.mxu0
      %v1984 = vadd.f32 0.0, %v1983
      %v1985 = vpop.f32.mrf.mxu0
      %v1986 = vpop.f32.mrf.mxu0
      %v1987 = vadd.f32 0.0, %v1986
      %v1988 = vpop.f32.mrf.mxu0
      %1989 = vdwg.mxu0
      %v1990 = vadd.f32 %v1604, %v1864
      %v1991 = vadd.f32 %v1605, %v1867
      %v1992 = vadd.f32 %v1606, %v1872
      %v1993 = vadd.f32 %v1607, %v1875
      %v1994 = vadd.f32 %v1608, %v1880
      %v1995 = vadd.f32 %v1609, %v1883
      %v1996 = vadd.f32 %v1610, %v1888
      %v1997 = vadd.f32 %v1611, %v1891
      %v1998 = vadd.f32 %v1612, %v1896
      %v1999 = vadd.f32 %v1613, %v1899
      %v2000 = vadd.f32 %v1614, %v1904
      %v2001 = vadd.f32 %v1615, %v1907
      %v2002 = vadd.f32 %v1616, %v1912
      %v2003 = vadd.f32 %v1617, %v1915
      %v2004 = vadd.f32 %v1618, %v1920
      %v2005 = vadd.f32 %v1619, %v1923
      %v2006 = vadd.f32 %v1620, %v1928
      %v2007 = vadd.f32 %v1621, %v1931
      %v2008 = vadd.f32 %v1622, %v1936
      %v2009 = vadd.f32 %v1623, %v1939
      %v2010 = vadd.f32 %v1624, %v1944
      %v2011 = vadd.f32 %v1625, %v1947
      %v2012 = vadd.f32 %v1626, %v1952
      %v2013 = vadd.f32 %v1627, %v1955
      %v2014 = vadd.f32 %v1628, %v1960
      %v2015 = vadd.f32 %v1629, %v1963
      %v2016 = vadd.f32 %v1630, %v1968
      %v2017 = vadd.f32 %v1631, %v1971
      %v2018 = vadd.f32 %v1632, %v1976
      %v2019 = vadd.f32 %v1633, %v1979
      %v2020 = vadd.f32 %v1634, %v1984
      %v2021 = vadd.f32 %v1635, %v1987
      %v2022 = vld [vmem:[%s165 + $0xc] sm:$0xf]
      %v2023 = vld [vmem:[%s165 + $0x1c] sm:$0xf]
      %v2024 = vld [vmem:[%s165 + $0x3c] sm:$0xf]
      %v2025 = vld [vmem:[%s165 + $0x4c] sm:$0xf]
      %v2026 = vld [vmem:[%s165 + $0x6c] sm:$0xf]
      %v2027 = vld [vmem:[%s165 + $0x7c] sm:$0xf]
      %v2028 = vld [vmem:[%s165 + $0x9c] sm:$0xf]
      %v2029 = vld [vmem:[%s165 + $0xac] sm:$0xf]
      %v2030 = vld [vmem:[%s165 + $0xcc] sm:$0xf]
      %v2031 = vld [vmem:[%s165 + $0xdc] sm:$0xf]
      %v2032 = vld [vmem:[%s165 + $0xfc] sm:$0xf]
      %v2033 = vld [vmem:[%s165 + $0x10c] sm:$0xf]
      %v2034 = vld [vmem:[%s165 + $0x12c] sm:$0xf]
      %v2035 = vld [vmem:[%s165 + $0x13c] sm:$0xf]
      %v2036 = vld [vmem:[%s165 + $0x15c] sm:$0xf]
      %v2037 = vld [vmem:[%s165 + $0x16c] sm:$0xf]
      %v2038 = vld [vmem:[%s165 + $0x18c] sm:$0xf]
      %v2039 = vld [vmem:[%s165 + $0x19c] sm:$0xf]
      %v2040 = vld [vmem:[%s165 + $0x1bc] sm:$0xf]
      %v2041 = vld [vmem:[%s165 + $0x1cc] sm:$0xf]
      %v2042 = vld [vmem:[%s165 + $0x1ec] sm:$0xf]
      %v2043 = vld [vmem:[%s165 + $0x1fc] sm:$0xf]
      %v2044 = vld [vmem:[%s165 + $0x21c] sm:$0xf]
      %v2045 = vld [vmem:[%s165 + $0x22c] sm:$0xf]
      %v2046 = vld [vmem:[%s165 + $0x24c] sm:$0xf]
      %v2047 = vld [vmem:[%s165 + $0x25c] sm:$0xf]
      %v2048 = vld [vmem:[%s165 + $0x27c] sm:$0xf]
      %v2049 = vld [vmem:[%s165 + $0x28c] sm:$0xf]
      %v2050 = vld [vmem:[%s165 + $0x2ac] sm:$0xf]
      %v2051 = vld [vmem:[%s165 + $0x2bc] sm:$0xf]
      %v2052 = vld [vmem:[%s165 + $0x2dc] sm:$0xf]
      %v2053 = vld [vmem:[%s165 + $0x2ec] sm:$0xf]
      %s2054 = scalar_lea.vmem %s1, 256
      %v2055 = vld [vmem:[%s2054] sm:$0xf]
      %v2056 = vld [vmem:[%s2054 + $0x4] sm:$0xf]
      %v2057 = vld [vmem:[%s2054 + $0x8] sm:$0xf]
      %v2058 = vld [vmem:[%s2054 + $0xc] sm:$0xf]
      %v2059 = vld [vmem:[%s2054 + $0x10] sm:$0xf]
      %v2060 = vld [vmem:[%s2054 + $0x14] sm:$0xf]
      %v2061 = vld [vmem:[%s2054 + $0x18] sm:$0xf]
      %v2062 = vld [vmem:[%s2054 + $0x1c] sm:$0xf]
      %v2063 = vld [vmem:[%s2054 + $0x20] sm:$0xf]
      %v2064 = vld [vmem:[%s2054 + $0x24] sm:$0xf]
      %v2065 = vld [vmem:[%s2054 + $0x28] sm:$0xf]
      %v2066 = vld [vmem:[%s2054 + $0x2c] sm:$0xf]
      %v2067 = vld [vmem:[%s2054 + $0x30] sm:$0xf]
      %v2068 = vld [vmem:[%s2054 + $0x34] sm:$0xf]
      %v2069 = vld [vmem:[%s2054 + $0x38] sm:$0xf]
      %v2070 = vld [vmem:[%s2054 + $0x3c] sm:$0xf]
      %v2103 = vunpack.c.l.b16 %v2022
      %v2104 = vunpack.c.l.b16 %v2023
      %v2105 = vunpack.c.l.b16 %v2024
      %v2106 = vunpack.c.l.b16 %v2025
      %v2107 = vunpack.c.l.b16 %v2026
      %v2108 = vunpack.c.l.b16 %v2027
      %v2109 = vunpack.c.l.b16 %v2028
      %v2110 = vunpack.c.l.b16 %v2029
      %v2111 = vunpack.c.l.b16 %v2030
      %v2112 = vunpack.c.l.b16 %v2031
      %v2113 = vunpack.c.l.b16 %v2032
      %v2114 = vunpack.c.l.b16 %v2033
      %v2115 = vunpack.c.l.b16 %v2034
      %v2116 = vunpack.c.l.b16 %v2035
      %v2117 = vunpack.c.l.b16 %v2036
      %v2118 = vunpack.c.l.b16 %v2037
      %v2119 = vunpack.c.l.b16 %v2038
      %v2120 = vunpack.c.l.b16 %v2039
      %v2121 = vunpack.c.l.b16 %v2040
      %v2122 = vunpack.c.l.b16 %v2041
      %v2123 = vunpack.c.l.b16 %v2042
      %v2124 = vunpack.c.l.b16 %v2043
      %v2125 = vunpack.c.l.b16 %v2044
      %v2126 = vunpack.c.l.b16 %v2045
      %v2127 = vunpack.c.l.b16 %v2046
      %v2128 = vunpack.c.l.b16 %v2047
      %v2129 = vunpack.c.l.b16 %v2048
      %v2130 = vunpack.c.l.b16 %v2049
      %v2131 = vunpack.c.l.b16 %v2050
      %v2132 = vunpack.c.l.b16 %v2051
      %v2133 = vunpack.c.l.b16 %v2052
      %v2134 = vunpack.c.l.b16 %v2053
      %v2135 = vpack.c.b16 %v2104, %v2103
      %v2136 = vpack.c.b16 %v2106, %v2105
      %v2137 = vpack.c.b16 %v2108, %v2107
      %v2138 = vpack.c.b16 %v2110, %v2109
      %v2139 = vpack.c.b16 %v2112, %v2111
      %v2140 = vpack.c.b16 %v2114, %v2113
      %v2141 = vpack.c.b16 %v2116, %v2115
      %v2142 = vpack.c.b16 %v2118, %v2117
      %v2143 = vpack.c.b16 %v2120, %v2119
      %v2144 = vpack.c.b16 %v2122, %v2121
      %v2145 = vpack.c.b16 %v2124, %v2123
      %v2146 = vpack.c.b16 %v2126, %v2125
      %v2147 = vpack.c.b16 %v2128, %v2127
      %v2148 = vpack.c.b16 %v2130, %v2129
      %v2149 = vpack.c.b16 %v2132, %v2131
      %v2150 = vpack.c.b16 %v2134, %v2133
      %v2183 = vunpack.c.l.b16 %v2055
      %v2184 = vunpack.c.l.b16 %v2056
      %v2185 = vunpack.c.l.b16 %v2057
      %v2186 = vunpack.c.l.b16 %v2058
      %v2187 = vunpack.c.l.b16 %v2059
      %v2188 = vunpack.c.l.b16 %v2060
      %v2189 = vunpack.c.l.b16 %v2061
      %v2190 = vunpack.c.l.b16 %v2062
      %v2191 = vunpack.c.l.b16 %v2063
      %v2192 = vunpack.c.l.b16 %v2064
      %v2193 = vunpack.c.l.b16 %v2065
      %v2194 = vunpack.c.l.b16 %v2066
      %v2195 = vunpack.c.l.b16 %v2067
      %v2196 = vunpack.c.l.b16 %v2068
      %v2197 = vunpack.c.l.b16 %v2069
      %v2198 = vunpack.c.l.b16 %v2070
      %v2199 = vpack.c.b16 %v2184, %v2183
      %v2200 = vpack.c.b16 %v2186, %v2185
      %v2201 = vpack.c.b16 %v2188, %v2187
      %v2202 = vpack.c.b16 %v2190, %v2189
      %v2203 = vpack.c.b16 %v2192, %v2191
      %v2204 = vpack.c.b16 %v2194, %v2193
      %v2205 = vpack.c.b16 %v2196, %v2195
      %v2206 = vpack.c.b16 %v2198, %v2197
      %2215 = vmatprep.subr.bf16.mxu0 0
      %2216 = vmatpush1.bf16.msra.mxu0 %v2206
      %2217 = vmatprep.subr.bf16.mxu0 0
      %2218 = vmatpush1.bf16.msra.mxu0 %v2205
      %2219 = vmatprep.subr.bf16.mxu0 0
      %2220 = vmatpush1.bf16.msra.mxu0 %v2204
      %2221 = vmatprep.subr.bf16.mxu0 0
      %2222 = vmatpush1.bf16.msra.mxu0 %v2203
      %2223 = vmatprep.subr.bf16.mxu0 0
      %2224 = vmatpush1.bf16.msra.mxu0 %v2202
      %2225 = vmatprep.subr.bf16.mxu0 0
      %2226 = vmatpush1.bf16.msra.mxu0 %v2201
      %2227 = vmatprep.subr.bf16.mxu0 0
      %2228 = vmatpush1.bf16.msra.mxu0 %v2200
      %2229 = vmatprep.subr.bf16.mxu0 0
      %2230 = vmatpush1.bf16.msra.mxu0 %v2199
      %2231 = vmatprep.subr.bf16.mxu0 0
      %2232 = vmatpush2.bf16.msra.mxu0 0
      %2233 = vmatprep.subr.bf16.mxu0 0
      %2234 = vmatpush2.bf16.msra.mxu0 0
      %2235 = vmatprep.subr.bf16.mxu0 0
      %2236 = vmatpush2.bf16.msra.mxu0 0
      %2237 = vmatprep.subr.bf16.mxu0 0
      %2238 = vmatpush2.bf16.msra.mxu0 0
      %2239 = vmatprep.subr.bf16.mxu0 0
      %2240 = vmatpush2.bf16.msra.mxu0 0
      %2241 = vmatprep.subr.bf16.mxu0 0
      %2242 = vmatpush2.bf16.msra.mxu0 0
      %2243 = vmatprep.subr.bf16.mxu0 0
      %2244 = vmatpush2.bf16.msra.mxu0 0
      %2245 = vmatprep.subr.bf16.mxu0 0
      %2246 = vmatpush2.bf16.msra.mxu0 0
      %2247 = vmatprep.mubr.bf16.mxu0 0
      %2248 = vmatmul.mubr.bf16.gmra.mxu0 %v2135
      %v2249 = vpop.f32.mrf.mxu0
      %v2250 = vadd.f32 0.0, %v2249
      %v2251 = vpop.f32.mrf.mxu0
      %v2252 = vpop.f32.mrf.mxu0
      %v2253 = vadd.f32 0.0, %v2252
      %v2254 = vpop.f32.mrf.mxu0
      %2255 = vmatprep.mubr.bf16.mxu0 0
      %2256 = vmatmul.mubr.bf16.gmra.mxu0 %v2136
      %v2257 = vpop.f32.mrf.mxu0
      %v2258 = vadd.f32 0.0, %v2257
      %v2259 = vpop.f32.mrf.mxu0
      %v2260 = vpop.f32.mrf.mxu0
      %v2261 = vadd.f32 0.0, %v2260
      %v2262 = vpop.f32.mrf.mxu0
      %2263 = vmatprep.mubr.bf16.mxu0 0
      %2264 = vmatmul.mubr.bf16.gmra.mxu0 %v2137
      %v2265 = vpop.f32.mrf.mxu0
      %v2266 = vadd.f32 0.0, %v2265
      %v2267 = vpop.f32.mrf.mxu0
      %v2268 = vpop.f32.mrf.mxu0
      %v2269 = vadd.f32 0.0, %v2268
      %v2270 = vpop.f32.mrf.mxu0
      %2271 = vmatprep.mubr.bf16.mxu0 0
      %2272 = vmatmul.mubr.bf16.gmra.mxu0 %v2138
      %v2273 = vpop.f32.mrf.mxu0
      %v2274 = vadd.f32 0.0, %v2273
      %v2275 = vpop.f32.mrf.mxu0
      %v2276 = vpop.f32.mrf.mxu0
      %v2277 = vadd.f32 0.0, %v2276
      %v2278 = vpop.f32.mrf.mxu0
      %2279 = vmatprep.mubr.bf16.mxu0 0
      %2280 = vmatmul.mubr.bf16.gmra.mxu0 %v2139
      %v2281 = vpop.f32.mrf.mxu0
      %v2282 = vadd.f32 0.0, %v2281
      %v2283 = vpop.f32.mrf.mxu0
      %v2284 = vpop.f32.mrf.mxu0
      %v2285 = vadd.f32 0.0, %v2284
      %v2286 = vpop.f32.mrf.mxu0
      %2287 = vmatprep.mubr.bf16.mxu0 0
      %2288 = vmatmul.mubr.bf16.gmra.mxu0 %v2140
      %v2289 = vpop.f32.mrf.mxu0
      %v2290 = vadd.f32 0.0, %v2289
      %v2291 = vpop.f32.mrf.mxu0
      %v2292 = vpop.f32.mrf.mxu0
      %v2293 = vadd.f32 0.0, %v2292
      %v2294 = vpop.f32.mrf.mxu0
      %2295 = vmatprep.mubr.bf16.mxu0 0
      %2296 = vmatmul.mubr.bf16.gmra.mxu0 %v2141
      %v2297 = vpop.f32.mrf.mxu0
      %v2298 = vadd.f32 0.0, %v2297
      %v2299 = vpop.f32.mrf.mxu0
      %v2300 = vpop.f32.mrf.mxu0
      %v2301 = vadd.f32 0.0, %v2300
      %v2302 = vpop.f32.mrf.mxu0
      %2303 = vmatprep.mubr.bf16.mxu0 0
      %2304 = vmatmul.mubr.bf16.gmra.mxu0 %v2142
      %v2305 = vpop.f32.mrf.mxu0
      %v2306 = vadd.f32 0.0, %v2305
      %v2307 = vpop.f32.mrf.mxu0
      %v2308 = vpop.f32.mrf.mxu0
      %v2309 = vadd.f32 0.0, %v2308
      %v2310 = vpop.f32.mrf.mxu0
      %2311 = vmatprep.mubr.bf16.mxu0 0
      %2312 = vmatmul.mubr.bf16.gmra.mxu0 %v2143
      %v2313 = vpop.f32.mrf.mxu0
      %v2314 = vadd.f32 0.0, %v2313
      %v2315 = vpop.f32.mrf.mxu0
      %v2316 = vpop.f32.mrf.mxu0
      %v2317 = vadd.f32 0.0, %v2316
      %v2318 = vpop.f32.mrf.mxu0
      %2319 = vmatprep.mubr.bf16.mxu0 0
      %2320 = vmatmul.mubr.bf16.gmra.mxu0 %v2144
      %v2321 = vpop.f32.mrf.mxu0
      %v2322 = vadd.f32 0.0, %v2321
      %v2323 = vpop.f32.mrf.mxu0
      %v2324 = vpop.f32.mrf.mxu0
      %v2325 = vadd.f32 0.0, %v2324
      %v2326 = vpop.f32.mrf.mxu0
      %2327 = vmatprep.mubr.bf16.mxu0 0
      %2328 = vmatmul.mubr.bf16.gmra.mxu0 %v2145
      %v2329 = vpop.f32.mrf.mxu0
      %v2330 = vadd.f32 0.0, %v2329
      %v2331 = vpop.f32.mrf.mxu0
      %v2332 = vpop.f32.mrf.mxu0
      %v2333 = vadd.f32 0.0, %v2332
      %v2334 = vpop.f32.mrf.mxu0
      %2335 = vmatprep.mubr.bf16.mxu0 0
      %2336 = vmatmul.mubr.bf16.gmra.mxu0 %v2146
      %v2337 = vpop.f32.mrf.mxu0
      %v2338 = vadd.f32 0.0, %v2337
      %v2339 = vpop.f32.mrf.mxu0
      %v2340 = vpop.f32.mrf.mxu0
      %v2341 = vadd.f32 0.0, %v2340
      %v2342 = vpop.f32.mrf.mxu0
      %2343 = vmatprep.mubr.bf16.mxu0 0
      %2344 = vmatmul.mubr.bf16.gmra.mxu0 %v2147
      %v2345 = vpop.f32.mrf.mxu0
      %v2346 = vadd.f32 0.0, %v2345
      %v2347 = vpop.f32.mrf.mxu0
      %v2348 = vpop.f32.mrf.mxu0
      %v2349 = vadd.f32 0.0, %v2348
      %v2350 = vpop.f32.mrf.mxu0
      %2351 = vmatprep.mubr.bf16.mxu0 0
      %2352 = vmatmul.mubr.bf16.gmra.mxu0 %v2148
      %v2353 = vpop.f32.mrf.mxu0
      %v2354 = vadd.f32 0.0, %v2353
      %v2355 = vpop.f32.mrf.mxu0
      %v2356 = vpop.f32.mrf.mxu0
      %v2357 = vadd.f32 0.0, %v2356
      %v2358 = vpop.f32.mrf.mxu0
      %2359 = vmatprep.mubr.bf16.mxu0 0
      %2360 = vmatmul.mubr.bf16.gmra.mxu0 %v2149
      %v2361 = vpop.f32.mrf.mxu0
      %v2362 = vadd.f32 0.0, %v2361
      %v2363 = vpop.f32.mrf.mxu0
      %v2364 = vpop.f32.mrf.mxu0
      %v2365 = vadd.f32 0.0, %v2364
      %v2366 = vpop.f32.mrf.mxu0
      %2367 = vmatprep.mubr.bf16.mxu0 0
      %2368 = vmatmul.mubr.bf16.gmra.mxu0 %v2150
      %v2369 = vpop.f32.mrf.mxu0
      %v2370 = vadd.f32 0.0, %v2369
      %v2371 = vpop.f32.mrf.mxu0
      %v2372 = vpop.f32.mrf.mxu0
      %v2373 = vadd.f32 0.0, %v2372
      %v2374 = vpop.f32.mrf.mxu0
      %2375 = vdwg.mxu0
      %v2376 = vadd.f32 %v1990, %v2250
      %v2377 = vadd.f32 %v1991, %v2253
      %v2378 = vadd.f32 %v1992, %v2258
      %v2379 = vadd.f32 %v1993, %v2261
      %v2380 = vadd.f32 %v1994, %v2266
      %v2381 = vadd.f32 %v1995, %v2269
      %v2382 = vadd.f32 %v1996, %v2274
      %v2383 = vadd.f32 %v1997, %v2277
      %v2384 = vadd.f32 %v1998, %v2282
      %v2385 = vadd.f32 %v1999, %v2285
      %v2386 = vadd.f32 %v2000, %v2290
      %v2387 = vadd.f32 %v2001, %v2293
      %v2388 = vadd.f32 %v2002, %v2298
      %v2389 = vadd.f32 %v2003, %v2301
      %v2390 = vadd.f32 %v2004, %v2306
      %v2391 = vadd.f32 %v2005, %v2309
      %v2392 = vadd.f32 %v2006, %v2314
      %v2393 = vadd.f32 %v2007, %v2317
      %v2394 = vadd.f32 %v2008, %v2322
      %v2395 = vadd.f32 %v2009, %v2325
      %v2396 = vadd.f32 %v2010, %v2330
      %v2397 = vadd.f32 %v2011, %v2333
      %v2398 = vadd.f32 %v2012, %v2338
      %v2399 = vadd.f32 %v2013, %v2341
      %v2400 = vadd.f32 %v2014, %v2346
      %v2401 = vadd.f32 %v2015, %v2349
      %v2402 = vadd.f32 %v2016, %v2354
      %v2403 = vadd.f32 %v2017, %v2357
      %v2404 = vadd.f32 %v2018, %v2362
      %v2405 = vadd.f32 %v2019, %v2365
      %v2406 = vadd.f32 %v2020, %v2370
      %v2407 = vadd.f32 %v2021, %v2373
      %v2408 = vld [vmem:[%s165 + $0x8] sm:$0xf]
      %v2409 = vld [vmem:[%s165 + $0x18] sm:$0xf]
      %v2410 = vld [vmem:[%s165 + $0x28] sm:$0x1]
      %v2411 = vld [vmem:[%s165 + $0x38] sm:$0xf]
      %v2412 = vld [vmem:[%s165 + $0x48] sm:$0xf]
      %v2413 = vld [vmem:[%s165 + $0x58] sm:$0x1]
      %v2414 = vld [vmem:[%s165 + $0x68] sm:$0xf]
      %v2415 = vld [vmem:[%s165 + $0x78] sm:$0xf]
      %v2416 = vld [vmem:[%s165 + $0x88] sm:$0x1]
      %v2417 = vld [vmem:[%s165 + $0x98] sm:$0xf]
      %v2418 = vld [vmem:[%s165 + $0xa8] sm:$0xf]
      %v2419 = vld [vmem:[%s165 + $0xb8] sm:$0x1]
      %v2420 = vld [vmem:[%s165 + $0xc8] sm:$0xf]
      %v2421 = vld [vmem:[%s165 + $0xd8] sm:$0xf]
      %v2422 = vld [vmem:[%s165 + $0xe8] sm:$0x1]
      %v2423 = vld [vmem:[%s165 + $0xf8] sm:$0xf]
      %v2424 = vld [vmem:[%s165 + $0x108] sm:$0xf]
      %v2425 = vld [vmem:[%s165 + $0x118] sm:$0x1]
      %v2426 = vld [vmem:[%s165 + $0x128] sm:$0xf]
      %v2427 = vld [vmem:[%s165 + $0x138] sm:$0xf]
      %v2428 = vld [vmem:[%s165 + $0x148] sm:$0x1]
      %v2429 = vld [vmem:[%s165 + $0x158] sm:$0xf]
      %v2430 = vld [vmem:[%s165 + $0x168] sm:$0xf]
      %v2431 = vld [vmem:[%s165 + $0x178] sm:$0x1]
      %v2432 = vld [vmem:[%s165 + $0x188] sm:$0xf]
      %v2433 = vld [vmem:[%s165 + $0x198] sm:$0xf]
      %v2434 = vld [vmem:[%s165 + $0x1a8] sm:$0x1]
      %v2435 = vld [vmem:[%s165 + $0x1b8] sm:$0xf]
      %v2436 = vld [vmem:[%s165 + $0x1c8] sm:$0xf]
      %v2437 = vld [vmem:[%s165 + $0x1d8] sm:$0x1]
      %v2438 = vld [vmem:[%s165 + $0x1e8] sm:$0xf]
      %v2439 = vld [vmem:[%s165 + $0x1f8] sm:$0xf]
      %v2440 = vld [vmem:[%s165 + $0x208] sm:$0x1]
      %v2441 = vld [vmem:[%s165 + $0x218] sm:$0xf]
      %v2442 = vld [vmem:[%s165 + $0x228] sm:$0xf]
      %v2443 = vld [vmem:[%s165 + $0x238] sm:$0x1]
      %v2444 = vld [vmem:[%s165 + $0x248] sm:$0xf]
      %v2445 = vld [vmem:[%s165 + $0x258] sm:$0xf]
      %v2446 = vld [vmem:[%s165 + $0x268] sm:$0x1]
      %v2447 = vld [vmem:[%s165 + $0x278] sm:$0xf]
      %v2448 = vld [vmem:[%s165 + $0x288] sm:$0xf]
      %v2449 = vld [vmem:[%s165 + $0x298] sm:$0x1]
      %v2450 = vld [vmem:[%s165 + $0x2a8] sm:$0xf]
      %v2451 = vld [vmem:[%s165 + $0x2b8] sm:$0xf]
      %v2452 = vld [vmem:[%s165 + $0x2c8] sm:$0x1]
      %v2453 = vld [vmem:[%s165 + $0x2d8] sm:$0xf]
      %v2454 = vld [vmem:[%s165 + $0x2e8] sm:$0xf]
      %v2455 = vld [vmem:[%s165 + $0x2f8] sm:$0x1]
      %v2457 = vshrl.u32 %v2408, 16
      %v2459 = vrot.slane %v2457, 4
      %v2460 = vshll.u32 %v2408, 16
      %v2462 = vrot.slane %v2460, 5
      %v2463 = vor.u32 %v2459, %v2462
      %v2464 = vrot.slane %v2463, 4
      %v2466 = vshll.u32 %v2409, 16
      %v2468 = vrot.slane %v2466, 5
      %v2469 = vsel %vm929, %v2464, %v2468
      %v2470 = vshrl.u32 %v2409, 16
      %v2472 = vrot.slane %v2470, 4
      %v2473 = vor.u32 %v2472, %v2468
      %v2474 = vrot.slane %v2473, 4
      %v2476 = vshll.u32 %v2410, 16
      %v2478 = vrot.slane %v2476, 5
      %v2479 = vsel %vm929, %v2474, %v2478
      %v2481 = vshrl.u32 %v2411, 16
      %v2483 = vrot.slane %v2481, 4
      %v2484 = vshll.u32 %v2411, 16
      %v2486 = vrot.slane %v2484, 5
      %v2487 = vor.u32 %v2483, %v2486
      %v2488 = vrot.slane %v2487, 4
      %v2490 = vshll.u32 %v2412, 16
      %v2492 = vrot.slane %v2490, 5
      %v2493 = vsel %vm929, %v2488, %v2492
      %v2494 = vshrl.u32 %v2412, 16
      %v2496 = vrot.slane %v2494, 4
      %v2497 = vor.u32 %v2496, %v2492
      %v2498 = vrot.slane %v2497, 4
      %v2500 = vshll.u32 %v2413, 16
      %v2502 = vrot.slane %v2500, 5
      %v2503 = vsel %vm929, %v2498, %v2502
      %v2505 = vshrl.u32 %v2414, 16
      %v2507 = vrot.slane %v2505, 4
      %v2508 = vshll.u32 %v2414, 16
      %v2510 = vrot.slane %v2508, 5
      %v2511 = vor.u32 %v2507, %v2510
      %v2512 = vrot.slane %v2511, 4
      %v2514 = vshll.u32 %v2415, 16
      %v2516 = vrot.slane %v2514, 5
      %v2517 = vsel %vm929, %v2512, %v2516
      %v2518 = vshrl.u32 %v2415, 16
      %v2520 = vrot.slane %v2518, 4
      %v2521 = vor.u32 %v2520, %v2516
      %v2522 = vrot.slane %v2521, 4
      %v2524 = vshll.u32 %v2416, 16
      %v2526 = vrot.slane %v2524, 5
      %v2527 = vsel %vm929, %v2522, %v2526
      %v2529 = vshrl.u32 %v2417, 16
      %v2531 = vrot.slane %v2529, 4
      %v2532 = vshll.u32 %v2417, 16
      %v2534 = vrot.slane %v2532, 5
      %v2535 = vor.u32 %v2531, %v2534
      %v2536 = vrot.slane %v2535, 4
      %v2538 = vshll.u32 %v2418, 16
      %v2540 = vrot.slane %v2538, 5
      %v2541 = vsel %vm929, %v2536, %v2540
      %v2542 = vshrl.u32 %v2418, 16
      %v2544 = vrot.slane %v2542, 4
      %v2545 = vor.u32 %v2544, %v2540
      %v2546 = vrot.slane %v2545, 4
      %v2548 = vshll.u32 %v2419, 16
      %v2550 = vrot.slane %v2548, 5
      %v2551 = vsel %vm929, %v2546, %v2550
      %v2553 = vshrl.u32 %v2420, 16
      %v2555 = vrot.slane %v2553, 4
      %v2556 = vshll.u32 %v2420, 16
      %v2558 = vrot.slane %v2556, 5
      %v2559 = vor.u32 %v2555, %v2558
      %v2560 = vrot.slane %v2559, 4
      %v2562 = vshll.u32 %v2421, 16
      %v2564 = vrot.slane %v2562, 5
      %v2565 = vsel %vm929, %v2560, %v2564
      %v2566 = vshrl.u32 %v2421, 16
      %v2568 = vrot.slane %v2566, 4
      %v2569 = vor.u32 %v2568, %v2564
      %v2570 = vrot.slane %v2569, 4
      %v2572 = vshll.u32 %v2422, 16
      %v2574 = vrot.slane %v2572, 5
      %v2575 = vsel %vm929, %v2570, %v2574
      %v2577 = vshrl.u32 %v2423, 16
      %v2579 = vrot.slane %v2577, 4
      %v2580 = vshll.u32 %v2423, 16
      %v2582 = vrot.slane %v2580, 5
      %v2583 = vor.u32 %v2579, %v2582
      %v2584 = vrot.slane %v2583, 4
      %v2586 = vshll.u32 %v2424, 16
      %v2588 = vrot.slane %v2586, 5
      %v2589 = vsel %vm929, %v2584, %v2588
      %v2590 = vshrl.u32 %v2424, 16
      %v2592 = vrot.slane %v2590, 4
      %v2593 = vor.u32 %v2592, %v2588
      %v2594 = vrot.slane %v2593, 4
      %v2596 = vshll.u32 %v2425, 16
      %v2598 = vrot.slane %v2596, 5
      %v2599 = vsel %vm929, %v2594, %v2598
      %v2601 = vshrl.u32 %v2426, 16
      %v2603 = vrot.slane %v2601, 4
      %v2604 = vshll.u32 %v2426, 16
      %v2606 = vrot.slane %v2604, 5
      %v2607 = vor.u32 %v2603, %v2606
      %v2608 = vrot.slane %v2607, 4
      %v2610 = vshll.u32 %v2427, 16
      %v2612 = vrot.slane %v2610, 5
      %v2613 = vsel %vm929, %v2608, %v2612
      %v2614 = vshrl.u32 %v2427, 16
      %v2616 = vrot.slane %v2614, 4
      %v2617 = vor.u32 %v2616, %v2612
      %v2618 = vrot.slane %v2617, 4
      %v2620 = vshll.u32 %v2428, 16
      %v2622 = vrot.slane %v2620, 5
      %v2623 = vsel %vm929, %v2618, %v2622
      %v2625 = vshrl.u32 %v2429, 16
      %v2627 = vrot.slane %v2625, 4
      %v2628 = vshll.u32 %v2429, 16
      %v2630 = vrot.slane %v2628, 5
      %v2631 = vor.u32 %v2627, %v2630
      %v2632 = vrot.slane %v2631, 4
      %v2634 = vshll.u32 %v2430, 16
      %v2636 = vrot.slane %v2634, 5
      %v2637 = vsel %vm929, %v2632, %v2636
      %v2638 = vshrl.u32 %v2430, 16
      %v2640 = vrot.slane %v2638, 4
      %v2641 = vor.u32 %v2640, %v2636
      %v2642 = vrot.slane %v2641, 4
      %v2644 = vshll.u32 %v2431, 16
      %v2646 = vrot.slane %v2644, 5
      %v2647 = vsel %vm929, %v2642, %v2646
      %v2649 = vshrl.u32 %v2432, 16
      %v2651 = vrot.slane %v2649, 4
      %v2652 = vshll.u32 %v2432, 16
      %v2654 = vrot.slane %v2652, 5
      %v2655 = vor.u32 %v2651, %v2654
      %v2656 = vrot.slane %v2655, 4
      %v2658 = vshll.u32 %v2433, 16
      %v2660 = vrot.slane %v2658, 5
      %v2661 = vsel %vm929, %v2656, %v2660
      %v2662 = vshrl.u32 %v2433, 16
      %v2664 = vrot.slane %v2662, 4
      %v2665 = vor.u32 %v2664, %v2660
      %v2666 = vrot.slane %v2665, 4
      %v2668 = vshll.u32 %v2434, 16
      %v2670 = vrot.slane %v2668, 5
      %v2671 = vsel %vm929, %v2666, %v2670
      %v2673 = vshrl.u32 %v2435, 16
      %v2675 = vrot.slane %v2673, 4
      %v2676 = vshll.u32 %v2435, 16
      %v2678 = vrot.slane %v2676, 5
      %v2679 = vor.u32 %v2675, %v2678
      %v2680 = vrot.slane %v2679, 4
      %v2682 = vshll.u32 %v2436, 16
      %v2684 = vrot.slane %v2682, 5
      %v2685 = vsel %vm929, %v2680, %v2684
      %v2686 = vshrl.u32 %v2436, 16
      %v2688 = vrot.slane %v2686, 4
      %v2689 = vor.u32 %v2688, %v2684
      %v2690 = vrot.slane %v2689, 4
      %v2692 = vshll.u32 %v2437, 16
      %v2694 = vrot.slane %v2692, 5
      %v2695 = vsel %vm929, %v2690, %v2694
      %v2697 = vshrl.u32 %v2438, 16
      %v2699 = vrot.slane %v2697, 4
      %v2700 = vshll.u32 %v2438, 16
      %v2702 = vrot.slane %v2700, 5
      %v2703 = vor.u32 %v2699, %v2702
      %v2704 = vrot.slane %v2703, 4
      %v2706 = vshll.u32 %v2439, 16
      %v2708 = vrot.slane %v2706, 5
      %v2709 = vsel %vm929, %v2704, %v2708
      %v2710 = vshrl.u32 %v2439, 16
      %v2712 = vrot.slane %v2710, 4
      %v2713 = vor.u32 %v2712, %v2708
      %v2714 = vrot.slane %v2713, 4
      %v2716 = vshll.u32 %v2440, 16
      %v2718 = vrot.slane %v2716, 5
      %v2719 = vsel %vm929, %v2714, %v2718
      %v2721 = vshrl.u32 %v2441, 16
      %v2723 = vrot.slane %v2721, 4
      %v2724 = vshll.u32 %v2441, 16
      %v2726 = vrot.slane %v2724, 5
      %v2727 = vor.u32 %v2723, %v2726
      %v2728 = vrot.slane %v2727, 4
      %v2730 = vshll.u32 %v2442, 16
      %v2732 = vrot.slane %v2730, 5
      %v2733 = vsel %vm929, %v2728, %v2732
      %v2734 = vshrl.u32 %v2442, 16
      %v2736 = vrot.slane %v2734, 4
      %v2737 = vor.u32 %v2736, %v2732
      %v2738 = vrot.slane %v2737, 4
      %v2740 = vshll.u32 %v2443, 16
      %v2742 = vrot.slane %v2740, 5
      %v2743 = vsel %vm929, %v2738, %v2742
      %v2745 = vshrl.u32 %v2444, 16
      %v2747 = vrot.slane %v2745, 4
      %v2748 = vshll.u32 %v2444, 16
      %v2750 = vrot.slane %v2748, 5
      %v2751 = vor.u32 %v2747, %v2750
      %v2752 = vrot.slane %v2751, 4
      %v2754 = vshll.u32 %v2445, 16
      %v2756 = vrot.slane %v2754, 5
      %v2757 = vsel %vm929, %v2752, %v2756
      %v2758 = vshrl.u32 %v2445, 16
      %v2760 = vrot.slane %v2758, 4
      %v2761 = vor.u32 %v2760, %v2756
      %v2762 = vrot.slane %v2761, 4
      %v2764 = vshll.u32 %v2446, 16
      %v2766 = vrot.slane %v2764, 5
      %v2767 = vsel %vm929, %v2762, %v2766
      %v2769 = vshrl.u32 %v2447, 16
      %v2771 = vrot.slane %v2769, 4
      %v2772 = vshll.u32 %v2447, 16
      %v2774 = vrot.slane %v2772, 5
      %v2775 = vor.u32 %v2771, %v2774
      %v2776 = vrot.slane %v2775, 4
      %v2778 = vshll.u32 %v2448, 16
      %v2780 = vrot.slane %v2778, 5
      %v2781 = vsel %vm929, %v2776, %v2780
      %v2782 = vshrl.u32 %v2448, 16
      %v2784 = vrot.slane %v2782, 4
      %v2785 = vor.u32 %v2784, %v2780
      %v2786 = vrot.slane %v2785, 4
      %v2788 = vshll.u32 %v2449, 16
      %v2790 = vrot.slane %v2788, 5
      %v2791 = vsel %vm929, %v2786, %v2790
      %v2793 = vshrl.u32 %v2450, 16
      %v2795 = vrot.slane %v2793, 4
      %v2796 = vshll.u32 %v2450, 16
      %v2798 = vrot.slane %v2796, 5
      %v2799 = vor.u32 %v2795, %v2798
      %v2800 = vrot.slane %v2799, 4
      %v2802 = vshll.u32 %v2451, 16
      %v2804 = vrot.slane %v2802, 5
      %v2805 = vsel %vm929, %v2800, %v2804
      %v2806 = vshrl.u32 %v2451, 16
      %v2808 = vrot.slane %v2806, 4
      %v2809 = vor.u32 %v2808, %v2804
      %v2810 = vrot.slane %v2809, 4
      %v2812 = vshll.u32 %v2452, 16
      %v2814 = vrot.slane %v2812, 5
      %v2815 = vsel %vm929, %v2810, %v2814
      %v2817 = vshrl.u32 %v2453, 16
      %v2819 = vrot.slane %v2817, 4
      %v2820 = vshll.u32 %v2453, 16
      %v2822 = vrot.slane %v2820, 5
      %v2823 = vor.u32 %v2819, %v2822
      %v2824 = vrot.slane %v2823, 4
      %v2826 = vshll.u32 %v2454, 16
      %v2828 = vrot.slane %v2826, 5
      %v2829 = vsel %vm929, %v2824, %v2828
      %v2830 = vshrl.u32 %v2454, 16
      %v2832 = vrot.slane %v2830, 4
      %v2833 = vor.u32 %v2832, %v2828
      %v2834 = vrot.slane %v2833, 4
      %v2836 = vshll.u32 %v2455, 16
      %v2838 = vrot.slane %v2836, 5
      %v2839 = vsel %vm929, %v2834, %v2838
      %s2840 = scalar_lea.vmem %s1, 320
      %v2841 = vld [vmem:[%s2840] sm:$0xf]
      %v2842 = vld [vmem:[%s2840 + $0x4] sm:$0xf]
      %v2843 = vld [vmem:[%s2840 + $0x8] sm:$0xf]
      %v2844 = vld [vmem:[%s2840 + $0xc] sm:$0xf]
      %v2845 = vld [vmem:[%s2840 + $0x10] sm:$0xf]
      %v2846 = vld [vmem:[%s2840 + $0x14] sm:$0xf]
      %v2847 = vld [vmem:[%s2840 + $0x18] sm:$0xf]
      %v2848 = vld [vmem:[%s2840 + $0x1c] sm:$0xf]
      %v2849 = vld [vmem:[%s2840 + $0x20] sm:$0xf]
      %v2850 = vld [vmem:[%s2840 + $0x24] sm:$0xf]
      %v2851 = vld [vmem:[%s2840 + $0x28] sm:$0xf]
      %v2852 = vld [vmem:[%s2840 + $0x2c] sm:$0xf]
      %v2853 = vld [vmem:[%s2840 + $0x30] sm:$0xf]
      %v2854 = vld [vmem:[%s2840 + $0x34] sm:$0xf]
      %v2855 = vld [vmem:[%s2840 + $0x38] sm:$0xf]
      %v2856 = vld [vmem:[%s2840 + $0x3c] sm:$0xf]
      %v2857 = vunpack.c.l.b16 %v2469
      %v2858 = vunpack.c.l.b16 %v2479
      %v2859 = vunpack.c.l.b16 %v2493
      %v2860 = vunpack.c.l.b16 %v2503
      %v2861 = vunpack.c.l.b16 %v2517
      %v2862 = vunpack.c.l.b16 %v2527
      %v2863 = vunpack.c.l.b16 %v2541
      %v2864 = vunpack.c.l.b16 %v2551
      %v2865 = vunpack.c.l.b16 %v2565
      %v2866 = vunpack.c.l.b16 %v2575
      %v2867 = vunpack.c.l.b16 %v2589
      %v2868 = vunpack.c.l.b16 %v2599
      %v2869 = vunpack.c.l.b16 %v2613
      %v2870 = vunpack.c.l.b16 %v2623
      %v2871 = vunpack.c.l.b16 %v2637
      %v2872 = vunpack.c.l.b16 %v2647
      %v2873 = vunpack.c.l.b16 %v2661
      %v2874 = vunpack.c.l.b16 %v2671
      %v2875 = vunpack.c.l.b16 %v2685
      %v2876 = vunpack.c.l.b16 %v2695
      %v2877 = vunpack.c.l.b16 %v2709
      %v2878 = vunpack.c.l.b16 %v2719
      %v2879 = vunpack.c.l.b16 %v2733
      %v2880 = vunpack.c.l.b16 %v2743
      %v2881 = vunpack.c.l.b16 %v2757
      %v2882 = vunpack.c.l.b16 %v2767
      %v2883 = vunpack.c.l.b16 %v2781
      %v2884 = vunpack.c.l.b16 %v2791
      %v2885 = vunpack.c.l.b16 %v2805
      %v2886 = vunpack.c.l.b16 %v2815
      %v2887 = vunpack.c.l.b16 %v2829
      %v2888 = vunpack.c.l.b16 %v2839
      %v2889 = vpack.c.b16 %v2858, %v2857
      %v2890 = vpack.c.b16 %v2860, %v2859
      %v2891 = vpack.c.b16 %v2862, %v2861
      %v2892 = vpack.c.b16 %v2864, %v2863
      %v2893 = vpack.c.b16 %v2866, %v2865
      %v2894 = vpack.c.b16 %v2868, %v2867
      %v2895 = vpack.c.b16 %v2870, %v2869
      %v2896 = vpack.c.b16 %v2872, %v2871
      %v2897 = vpack.c.b16 %v2874, %v2873
      %v2898 = vpack.c.b16 %v2876, %v2875
      %v2899 = vpack.c.b16 %v2878, %v2877
      %v2900 = vpack.c.b16 %v2880, %v2879
      %v2901 = vpack.c.b16 %v2882, %v2881
      %v2902 = vpack.c.b16 %v2884, %v2883
      %v2903 = vpack.c.b16 %v2886, %v2885
      %v2904 = vpack.c.b16 %v2888, %v2887
      %v2937 = vunpack.c.l.b16 %v2841
      %v2938 = vunpack.c.l.b16 %v2842
      %v2939 = vunpack.c.l.b16 %v2843
      %v2940 = vunpack.c.l.b16 %v2844
      %v2941 = vunpack.c.l.b16 %v2845
      %v2942 = vunpack.c.l.b16 %v2846
      %v2943 = vunpack.c.l.b16 %v2847
      %v2944 = vunpack.c.l.b16 %v2848
      %v2945 = vunpack.c.l.b16 %v2849
      %v2946 = vunpack.c.l.b16 %v2850
      %v2947 = vunpack.c.l.b16 %v2851
      %v2948 = vunpack.c.l.b16 %v2852
      %v2949 = vunpack.c.l.b16 %v2853
      %v2950 = vunpack.c.l.b16 %v2854
      %v2951 = vunpack.c.l.b16 %v2855
      %v2952 = vunpack.c.l.b16 %v2856
      %v2953 = vpack.c.b16 %v2938, %v2937
      %v2954 = vpack.c.b16 %v2940, %v2939
      %v2955 = vpack.c.b16 %v2942, %v2941
      %v2956 = vpack.c.b16 %v2944, %v2943
      %v2957 = vpack.c.b16 %v2946, %v2945
      %v2958 = vpack.c.b16 %v2948, %v2947
      %v2959 = vpack.c.b16 %v2950, %v2949
      %v2960 = vpack.c.b16 %v2952, %v2951
      %2969 = vmatprep.subr.bf16.mxu0 0
      %2970 = vmatpush1.bf16.msra.mxu0 %v2960
      %2971 = vmatprep.subr.bf16.mxu0 0
      %2972 = vmatpush1.bf16.msra.mxu0 %v2959
      %2973 = vmatprep.subr.bf16.mxu0 0
      %2974 = vmatpush1.bf16.msra.mxu0 %v2958
      %2975 = vmatprep.subr.bf16.mxu0 0
      %2976 = vmatpush1.bf16.msra.mxu0 %v2957
      %2977 = vmatprep.subr.bf16.mxu0 0
      %2978 = vmatpush1.bf16.msra.mxu0 %v2956
      %2979 = vmatprep.subr.bf16.mxu0 0
      %2980 = vmatpush1.bf16.msra.mxu0 %v2955
      %2981 = vmatprep.subr.bf16.mxu0 0
      %2982 = vmatpush1.bf16.msra.mxu0 %v2954
      %2983 = vmatprep.subr.bf16.mxu0 0
      %2984 = vmatpush1.bf16.msra.mxu0 %v2953
      %2985 = vmatprep.subr.bf16.mxu0 0
      %2986 = vmatpush2.bf16.msra.mxu0 0
      %2987 = vmatprep.subr.bf16.mxu0 0
      %2988 = vmatpush2.bf16.msra.mxu0 0
      %2989 = vmatprep.subr.bf16.mxu0 0
      %2990 = vmatpush2.bf16.msra.mxu0 0
      %2991 = vmatprep.subr.bf16.mxu0 0
      %2992 = vmatpush2.bf16.msra.mxu0 0
      %2993 = vmatprep.subr.bf16.mxu0 0
      %2994 = vmatpush2.bf16.msra.mxu0 0
      %2995 = vmatprep.subr.bf16.mxu0 0
      %2996 = vmatpush2.bf16.msra.mxu0 0
      %2997 = vmatprep.subr.bf16.mxu0 0
      %2998 = vmatpush2.bf16.msra.mxu0 0
      %2999 = vmatprep.subr.bf16.mxu0 0
      %3000 = vmatpush2.bf16.msra.mxu0 0
      %3001 = vmatprep.mubr.bf16.mxu0 0
      %3002 = vmatmul.mubr.bf16.gmra.mxu0 %v2889
      %v3003 = vpop.f32.mrf.mxu0
      %v3004 = vadd.f32 0.0, %v3003
      %v3005 = vpop.f32.mrf.mxu0
      %v3006 = vpop.f32.mrf.mxu0
      %v3007 = vadd.f32 0.0, %v3006
      %v3008 = vpop.f32.mrf.mxu0
      %3009 = vmatprep.mubr.bf16.mxu0 0
      %3010 = vmatmul.mubr.bf16.gmra.mxu0 %v2890
      %v3011 = vpop.f32.mrf.mxu0
      %v3012 = vadd.f32 0.0, %v3011
      %v3013 = vpop.f32.mrf.mxu0
      %v3014 = vpop.f32.mrf.mxu0
      %v3015 = vadd.f32 0.0, %v3014
      %v3016 = vpop.f32.mrf.mxu0
      %3017 = vmatprep.mubr.bf16.mxu0 0
      %3018 = vmatmul.mubr.bf16.gmra.mxu0 %v2891
      %v3019 = vpop.f32.mrf.mxu0
      %v3020 = vadd.f32 0.0, %v3019
      %v3021 = vpop.f32.mrf.mxu0
      %v3022 = vpop.f32.mrf.mxu0
      %v3023 = vadd.f32 0.0, %v3022
      %v3024 = vpop.f32.mrf.mxu0
      %3025 = vmatprep.mubr.bf16.mxu0 0
      %3026 = vmatmul.mubr.bf16.gmra.mxu0 %v2892
      %v3027 = vpop.f32.mrf.mxu0
      %v3028 = vadd.f32 0.0, %v3027
      %v3029 = vpop.f32.mrf.mxu0
      %v3030 = vpop.f32.mrf.mxu0
      %v3031 = vadd.f32 0.0, %v3030
      %v3032 = vpop.f32.mrf.mxu0
      %3033 = vmatprep.mubr.bf16.mxu0 0
      %3034 = vmatmul.mubr.bf16.gmra.mxu0 %v2893
      %v3035 = vpop.f32.mrf.mxu0
      %v3036 = vadd.f32 0.0, %v3035
      %v3037 = vpop.f32.mrf.mxu0
      %v3038 = vpop.f32.mrf.mxu0
      %v3039 = vadd.f32 0.0, %v3038
      %v3040 = vpop.f32.mrf.mxu0
      %3041 = vmatprep.mubr.bf16.mxu0 0
      %3042 = vmatmul.mubr.bf16.gmra.mxu0 %v2894
      %v3043 = vpop.f32.mrf.mxu0
      %v3044 = vadd.f32 0.0, %v3043
      %v3045 = vpop.f32.mrf.mxu0
      %v3046 = vpop.f32.mrf.mxu0
      %v3047 = vadd.f32 0.0, %v3046
      %v3048 = vpop.f32.mrf.mxu0
      %3049 = vmatprep.mubr.bf16.mxu0 0
      %3050 = vmatmul.mubr.bf16.gmra.mxu0 %v2895
      %v3051 = vpop.f32.mrf.mxu0
      %v3052 = vadd.f32 0.0, %v3051
      %v3053 = vpop.f32.mrf.mxu0
      %v3054 = vpop.f32.mrf.mxu0
      %v3055 = vadd.f32 0.0, %v3054
      %v3056 = vpop.f32.mrf.mxu0
      %3057 = vmatprep.mubr.bf16.mxu0 0
      %3058 = vmatmul.mubr.bf16.gmra.mxu0 %v2896
      %v3059 = vpop.f32.mrf.mxu0
      %v3060 = vadd.f32 0.0, %v3059
      %v3061 = vpop.f32.mrf.mxu0
      %v3062 = vpop.f32.mrf.mxu0
      %v3063 = vadd.f32 0.0, %v3062
      %v3064 = vpop.f32.mrf.mxu0
      %3065 = vmatprep.mubr.bf16.mxu0 0
      %3066 = vmatmul.mubr.bf16.gmra.mxu0 %v2897
      %v3067 = vpop.f32.mrf.mxu0
      %v3068 = vadd.f32 0.0, %v3067
      %v3069 = vpop.f32.mrf.mxu0
      %v3070 = vpop.f32.mrf.mxu0
      %v3071 = vadd.f32 0.0, %v3070
      %v3072 = vpop.f32.mrf.mxu0
      %3073 = vmatprep.mubr.bf16.mxu0 0
      %3074 = vmatmul.mubr.bf16.gmra.mxu0 %v2898
      %v3075 = vpop.f32.mrf.mxu0
      %v3076 = vadd.f32 0.0, %v3075
      %v3077 = vpop.f32.mrf.mxu0
      %v3078 = vpop.f32.mrf.mxu0
      %v3079 = vadd.f32 0.0, %v3078
      %v3080 = vpop.f32.mrf.mxu0
      %3081 = vmatprep.mubr.bf16.mxu0 0
      %3082 = vmatmul.mubr.bf16.gmra.mxu0 %v2899
      %v3083 = vpop.f32.mrf.mxu0
      %v3084 = vadd.f32 0.0, %v3083
      %v3085 = vpop.f32.mrf.mxu0
      %v3086 = vpop.f32.mrf.mxu0
      %v3087 = vadd.f32 0.0, %v3086
      %v3088 = vpop.f32.mrf.mxu0
      %3089 = vmatprep.mubr.bf16.mxu0 0
      %3090 = vmatmul.mubr.bf16.gmra.mxu0 %v2900
      %v3091 = vpop.f32.mrf.mxu0
      %v3092 = vadd.f32 0.0, %v3091
      %v3093 = vpop.f32.mrf.mxu0
      %v3094 = vpop.f32.mrf.mxu0
      %v3095 = vadd.f32 0.0, %v3094
      %v3096 = vpop.f32.mrf.mxu0
      %3097 = vmatprep.mubr.bf16.mxu0 0
      %3098 = vmatmul.mubr.bf16.gmra.mxu0 %v2901
      %v3099 = vpop.f32.mrf.mxu0
      %v3100 = vadd.f32 0.0, %v3099
      %v3101 = vpop.f32.mrf.mxu0
      %v3102 = vpop.f32.mrf.mxu0
      %v3103 = vadd.f32 0.0, %v3102
      %v3104 = vpop.f32.mrf.mxu0
      %3105 = vmatprep.mubr.bf16.mxu0 0
      %3106 = vmatmul.mubr.bf16.gmra.mxu0 %v2902
      %v3107 = vpop.f32.mrf.mxu0
      %v3108 = vadd.f32 0.0, %v3107
      %v3109 = vpop.f32.mrf.mxu0
      %v3110 = vpop.f32.mrf.mxu0
      %v3111 = vadd.f32 0.0, %v3110
      %v3112 = vpop.f32.mrf.mxu0
      %3113 = vmatprep.mubr.bf16.mxu0 0
      %3114 = vmatmul.mubr.bf16.gmra.mxu0 %v2903
      %v3115 = vpop.f32.mrf.mxu0
      %v3116 = vadd.f32 0.0, %v3115
      %v3117 = vpop.f32.mrf.mxu0
      %v3118 = vpop.f32.mrf.mxu0
      %v3119 = vadd.f32 0.0, %v3118
      %v3120 = vpop.f32.mrf.mxu0
      %3121 = vmatprep.mubr.bf16.mxu0 0
      %3122 = vmatmul.mubr.bf16.gmra.mxu0 %v2904
      %v3123 = vpop.f32.mrf.mxu0
      %v3124 = vadd.f32 0.0, %v3123
      %v3125 = vpop.f32.mrf.mxu0
      %v3126 = vpop.f32.mrf.mxu0
      %v3127 = vadd.f32 0.0, %v3126
      %v3128 = vpop.f32.mrf.mxu0
      %3129 = vdwg.mxu0
      %v3130 = vadd.f32 %v2376, %v3004
      %v3131 = vadd.f32 %v2377, %v3007
      %v3132 = vadd.f32 %v2378, %v3012
      %v3133 = vadd.f32 %v2379, %v3015
      %v3134 = vadd.f32 %v2380, %v3020
      %v3135 = vadd.f32 %v2381, %v3023
      %v3136 = vadd.f32 %v2382, %v3028
      %v3137 = vadd.f32 %v2383, %v3031
      %v3138 = vadd.f32 %v2384, %v3036
      %v3139 = vadd.f32 %v2385, %v3039
      %v3140 = vadd.f32 %v2386, %v3044
      %v3141 = vadd.f32 %v2387, %v3047
      %v3142 = vadd.f32 %v2388, %v3052
      %v3143 = vadd.f32 %v2389, %v3055
      %v3144 = vadd.f32 %v2390, %v3060
      %v3145 = vadd.f32 %v2391, %v3063
      %v3146 = vadd.f32 %v2392, %v3068
      %v3147 = vadd.f32 %v2393, %v3071
      %v3148 = vadd.f32 %v2394, %v3076
      %v3149 = vadd.f32 %v2395, %v3079
      %v3150 = vadd.f32 %v2396, %v3084
      %v3151 = vadd.f32 %v2397, %v3087
      %v3152 = vadd.f32 %v2398, %v3092
      %v3153 = vadd.f32 %v2399, %v3095
      %v3154 = vadd.f32 %v2400, %v3100
      %v3155 = vadd.f32 %v2401, %v3103
      %v3156 = vadd.f32 %v2402, %v3108
      %v3157 = vadd.f32 %v2403, %v3111
      %v3158 = vadd.f32 %v2404, %v3116
      %v3159 = vadd.f32 %v2405, %v3119
      %v3160 = vadd.f32 %v2406, %v3124
      %v3161 = vadd.f32 %v2407, %v3127
      %s3162 = scalar_lea.vmem %s165, 48
      %v3163 = vld [vmem:[%s3162] sm:$0xf]
      %v3164 = vld [vmem:[%s3162 + $0x10] sm:$0xf]
      %v3165 = vld [vmem:[%s3162 + $0x30] sm:$0xf]
      %v3166 = vld [vmem:[%s3162 + $0x40] sm:$0xf]
      %v3167 = vld [vmem:[%s3162 + $0x60] sm:$0xf]
      %v3168 = vld [vmem:[%s3162 + $0x70] sm:$0xf]
      %v3169 = vld [vmem:[%s3162 + $0x90] sm:$0xf]
      %v3170 = vld [vmem:[%s3162 + $0xa0] sm:$0xf]
      %v3171 = vld [vmem:[%s3162 + $0xc0] sm:$0xf]
      %v3172 = vld [vmem:[%s3162 + $0xd0] sm:$0xf]
      %v3173 = vld [vmem:[%s3162 + $0xf0] sm:$0xf]
      %v3174 = vld [vmem:[%s3162 + $0x100] sm:$0xf]
      %v3175 = vld [vmem:[%s3162 + $0x120] sm:$0xf]
      %v3176 = vld [vmem:[%s3162 + $0x130] sm:$0xf]
      %v3177 = vld [vmem:[%s3162 + $0x150] sm:$0xf]
      %v3178 = vld [vmem:[%s3162 + $0x160] sm:$0xf]
      %v3179 = vld [vmem:[%s3162 + $0x180] sm:$0xf]
      %v3180 = vld [vmem:[%s3162 + $0x190] sm:$0xf]
      %v3181 = vld [vmem:[%s3162 + $0x1b0] sm:$0xf]
      %v3182 = vld [vmem:[%s3162 + $0x1c0] sm:$0xf]
      %v3183 = vld [vmem:[%s3162 + $0x1e0] sm:$0xf]
      %v3184 = vld [vmem:[%s3162 + $0x1f0] sm:$0xf]
      %v3185 = vld [vmem:[%s3162 + $0x210] sm:$0xf]
      %v3186 = vld [vmem:[%s3162 + $0x220] sm:$0xf]
      %v3187 = vld [vmem:[%s3162 + $0x240] sm:$0xf]
      %v3188 = vld [vmem:[%s3162 + $0x250] sm:$0xf]
      %v3189 = vld [vmem:[%s3162 + $0x270] sm:$0xf]
      %v3190 = vld [vmem:[%s3162 + $0x280] sm:$0xf]
      %v3191 = vld [vmem:[%s3162 + $0x2a0] sm:$0xf]
      %v3192 = vld [vmem:[%s3162 + $0x2b0] sm:$0xf]
      %v3193 = vld [vmem:[%s3162 + $0x2d0] sm:$0xf]
      %v3194 = vld [vmem:[%s3162 + $0x2e0] sm:$0xf]
      %s3195 = scalar_lea.vmem %s1, 384
      %v3196 = vld [vmem:[%s3195] sm:$0xf]
      %v3197 = vld [vmem:[%s3195 + $0x4] sm:$0xf]
      %v3198 = vld [vmem:[%s3195 + $0x8] sm:$0xf]
      %v3199 = vld [vmem:[%s3195 + $0xc] sm:$0xf]
      %v3200 = vld [vmem:[%s3195 + $0x10] sm:$0xf]
      %v3201 = vld [vmem:[%s3195 + $0x14] sm:$0xf]
      %v3202 = vld [vmem:[%s3195 + $0x18] sm:$0xf]
      %v3203 = vld [vmem:[%s3195 + $0x1c] sm:$0xf]
      %v3204 = vld [vmem:[%s3195 + $0x20] sm:$0xf]
      %v3205 = vld [vmem:[%s3195 + $0x24] sm:$0xf]
      %v3206 = vld [vmem:[%s3195 + $0x28] sm:$0xf]
      %v3207 = vld [vmem:[%s3195 + $0x2c] sm:$0xf]
      %v3208 = vld [vmem:[%s3195 + $0x30] sm:$0xf]
      %v3209 = vld [vmem:[%s3195 + $0x34] sm:$0xf]
      %v3210 = vld [vmem:[%s3195 + $0x38] sm:$0xf]
      %v3211 = vld [vmem:[%s3195 + $0x3c] sm:$0xf]
      %v3244 = vunpack.c.l.b16 %v3163
      %v3245 = vunpack.c.l.b16 %v3164
      %v3246 = vunpack.c.l.b16 %v3165
      %v3247 = vunpack.c.l.b16 %v3166
      %v3248 = vunpack.c.l.b16 %v3167
      %v3249 = vunpack.c.l.b16 %v3168
      %v3250 = vunpack.c.l.b16 %v3169
      %v3251 = vunpack.c.l.b16 %v3170
      %v3252 = vunpack.c.l.b16 %v3171
      %v3253 = vunpack.c.l.b16 %v3172
      %v3254 = vunpack.c.l.b16 %v3173
      %v3255 = vunpack.c.l.b16 %v3174
      %v3256 = vunpack.c.l.b16 %v3175
      %v3257 = vunpack.c.l.b16 %v3176
      %v3258 = vunpack.c.l.b16 %v3177
      %v3259 = vunpack.c.l.b16 %v3178
      %v3260 = vunpack.c.l.b16 %v3179
      %v3261 = vunpack.c.l.b16 %v3180
      %v3262 = vunpack.c.l.b16 %v3181
      %v3263 = vunpack.c.l.b16 %v3182
      %v3264 = vunpack.c.l.b16 %v3183
      %v3265 = vunpack.c.l.b16 %v3184
      %v3266 = vunpack.c.l.b16 %v3185
      %v3267 = vunpack.c.l.b16 %v3186
      %v3268 = vunpack.c.l.b16 %v3187
      %v3269 = vunpack.c.l.b16 %v3188
      %v3270 = vunpack.c.l.b16 %v3189
      %v3271 = vunpack.c.l.b16 %v3190
      %v3272 = vunpack.c.l.b16 %v3191
      %v3273 = vunpack.c.l.b16 %v3192
      %v3274 = vunpack.c.l.b16 %v3193
      %v3275 = vunpack.c.l.b16 %v3194
      %v3276 = vpack.c.b16 %v3245, %v3244
      %v3277 = vpack.c.b16 %v3247, %v3246
      %v3278 = vpack.c.b16 %v3249, %v3248
      %v3279 = vpack.c.b16 %v3251, %v3250
      %v3280 = vpack.c.b16 %v3253, %v3252
      %v3281 = vpack.c.b16 %v3255, %v3254
      %v3282 = vpack.c.b16 %v3257, %v3256
      %v3283 = vpack.c.b16 %v3259, %v3258
      %v3284 = vpack.c.b16 %v3261, %v3260
      %v3285 = vpack.c.b16 %v3263, %v3262
      %v3286 = vpack.c.b16 %v3265, %v3264
      %v3287 = vpack.c.b16 %v3267, %v3266
      %v3288 = vpack.c.b16 %v3269, %v3268
      %v3289 = vpack.c.b16 %v3271, %v3270
      %v3290 = vpack.c.b16 %v3273, %v3272
      %v3291 = vpack.c.b16 %v3275, %v3274
      %v3324 = vunpack.c.l.b16 %v3196
      %v3325 = vunpack.c.l.b16 %v3197
      %v3326 = vunpack.c.l.b16 %v3198
      %v3327 = vunpack.c.l.b16 %v3199
      %v3328 = vunpack.c.l.b16 %v3200
      %v3329 = vunpack.c.l.b16 %v3201
      %v3330 = vunpack.c.l.b16 %v3202
      %v3331 = vunpack.c.l.b16 %v3203
      %v3332 = vunpack.c.l.b16 %v3204
      %v3333 = vunpack.c.l.b16 %v3205
      %v3334 = vunpack.c.l.b16 %v3206
      %v3335 = vunpack.c.l.b16 %v3207
      %v3336 = vunpack.c.l.b16 %v3208
      %v3337 = vunpack.c.l.b16 %v3209
      %v3338 = vunpack.c.l.b16 %v3210
      %v3339 = vunpack.c.l.b16 %v3211
      %v3340 = vpack.c.b16 %v3325, %v3324
      %v3341 = vpack.c.b16 %v3327, %v3326
      %v3342 = vpack.c.b16 %v3329, %v3328
      %v3343 = vpack.c.b16 %v3331, %v3330
      %v3344 = vpack.c.b16 %v3333, %v3332
      %v3345 = vpack.c.b16 %v3335, %v3334
      %v3346 = vpack.c.b16 %v3337, %v3336
      %v3347 = vpack.c.b16 %v3339, %v3338
      %3356 = vmatprep.subr.bf16.mxu0 0
      %3357 = vmatpush1.bf16.msra.mxu0 %v3347
      %3358 = vmatprep.subr.bf16.mxu0 0
      %3359 = vmatpush1.bf16.msra.mxu0 %v3346
      %3360 = vmatprep.subr.bf16.mxu0 0
      %3361 = vmatpush1.bf16.msra.mxu0 %v3345
      %3362 = vmatprep.subr.bf16.mxu0 0
      %3363 = vmatpush1.bf16.msra.mxu0 %v3344
      %3364 = vmatprep.subr.bf16.mxu0 0
      %3365 = vmatpush1.bf16.msra.mxu0 %v3343
      %3366 = vmatprep.subr.bf16.mxu0 0
      %3367 = vmatpush1.bf16.msra.mxu0 %v3342
      %3368 = vmatprep.subr.bf16.mxu0 0
      %3369 = vmatpush1.bf16.msra.mxu0 %v3341
      %3370 = vmatprep.subr.bf16.mxu0 0
      %3371 = vmatpush1.bf16.msra.mxu0 %v3340
      %3372 = vmatprep.subr.bf16.mxu0 0
      %3373 = vmatpush2.bf16.msra.mxu0 0
      %3374 = vmatprep.subr.bf16.mxu0 0
      %3375 = vmatpush2.bf16.msra.mxu0 0
      %3376 = vmatprep.subr.bf16.mxu0 0
      %3377 = vmatpush2.bf16.msra.mxu0 0
      %3378 = vmatprep.subr.bf16.mxu0 0
      %3379 = vmatpush2.bf16.msra.mxu0 0
      %3380 = vmatprep.subr.bf16.mxu0 0
      %3381 = vmatpush2.bf16.msra.mxu0 0
      %3382 = vmatprep.subr.bf16.mxu0 0
      %3383 = vmatpush2.bf16.msra.mxu0 0
      %3384 = vmatprep.subr.bf16.mxu0 0
      %3385 = vmatpush2.bf16.msra.mxu0 0
      %3386 = vmatprep.subr.bf16.mxu0 0
      %3387 = vmatpush2.bf16.msra.mxu0 0
      %3388 = vmatprep.mubr.bf16.mxu0 0
      %3389 = vmatmul.mubr.bf16.gmra.mxu0 %v3276
      %v3390 = vpop.f32.mrf.mxu0
      %v3391 = vadd.f32 0.0, %v3390
      %v3392 = vpop.f32.mrf.mxu0
      %v3393 = vpop.f32.mrf.mxu0
      %v3394 = vadd.f32 0.0, %v3393
      %v3395 = vpop.f32.mrf.mxu0
      %3396 = vmatprep.mubr.bf16.mxu0 0
      %3397 = vmatmul.mubr.bf16.gmra.mxu0 %v3277
      %v3398 = vpop.f32.mrf.mxu0
      %v3399 = vadd.f32 0.0, %v3398
      %v3400 = vpop.f32.mrf.mxu0
      %v3401 = vpop.f32.mrf.mxu0
      %v3402 = vadd.f32 0.0, %v3401
      %v3403 = vpop.f32.mrf.mxu0
      %3404 = vmatprep.mubr.bf16.mxu0 0
      %3405 = vmatmul.mubr.bf16.gmra.mxu0 %v3278
      %v3406 = vpop.f32.mrf.mxu0
      %v3407 = vadd.f32 0.0, %v3406
      %v3408 = vpop.f32.mrf.mxu0
      %v3409 = vpop.f32.mrf.mxu0
      %v3410 = vadd.f32 0.0, %v3409
      %v3411 = vpop.f32.mrf.mxu0
      %3412 = vmatprep.mubr.bf16.mxu0 0
      %3413 = vmatmul.mubr.bf16.gmra.mxu0 %v3279
      %v3414 = vpop.f32.mrf.mxu0
      %v3415 = vadd.f32 0.0, %v3414
      %v3416 = vpop.f32.mrf.mxu0
      %v3417 = vpop.f32.mrf.mxu0
      %v3418 = vadd.f32 0.0, %v3417
      %v3419 = vpop.f32.mrf.mxu0
      %3420 = vmatprep.mubr.bf16.mxu0 0
      %3421 = vmatmul.mubr.bf16.gmra.mxu0 %v3280
      %v3422 = vpop.f32.mrf.mxu0
      %v3423 = vadd.f32 0.0, %v3422
      %v3424 = vpop.f32.mrf.mxu0
      %v3425 = vpop.f32.mrf.mxu0
      %v3426 = vadd.f32 0.0, %v3425
      %v3427 = vpop.f32.mrf.mxu0
      %3428 = vmatprep.mubr.bf16.mxu0 0
      %3429 = vmatmul.mubr.bf16.gmra.mxu0 %v3281
      %v3430 = vpop.f32.mrf.mxu0
      %v3431 = vadd.f32 0.0, %v3430
      %v3432 = vpop.f32.mrf.mxu0
      %v3433 = vpop.f32.mrf.mxu0
      %v3434 = vadd.f32 0.0, %v3433
      %v3435 = vpop.f32.mrf.mxu0
      %3436 = vmatprep.mubr.bf16.mxu0 0
      %3437 = vmatmul.mubr.bf16.gmra.mxu0 %v3282
      %v3438 = vpop.f32.mrf.mxu0
      %v3439 = vadd.f32 0.0, %v3438
      %v3440 = vpop.f32.mrf.mxu0
      %v3441 = vpop.f32.mrf.mxu0
      %v3442 = vadd.f32 0.0, %v3441
      %v3443 = vpop.f32.mrf.mxu0
      %3444 = vmatprep.mubr.bf16.mxu0 0
      %3445 = vmatmul.mubr.bf16.gmra.mxu0 %v3283
      %v3446 = vpop.f32.mrf.mxu0
      %v3447 = vadd.f32 0.0, %v3446
      %v3448 = vpop.f32.mrf.mxu0
      %v3449 = vpop.f32.mrf.mxu0
      %v3450 = vadd.f32 0.0, %v3449
      %v3451 = vpop.f32.mrf.mxu0
      %3452 = vmatprep.mubr.bf16.mxu0 0
      %3453 = vmatmul.mubr.bf16.gmra.mxu0 %v3284
      %v3454 = vpop.f32.mrf.mxu0
      %v3455 = vadd.f32 0.0, %v3454
      %v3456 = vpop.f32.mrf.mxu0
      %v3457 = vpop.f32.mrf.mxu0
      %v3458 = vadd.f32 0.0, %v3457
      %v3459 = vpop.f32.mrf.mxu0
      %3460 = vmatprep.mubr.bf16.mxu0 0
      %3461 = vmatmul.mubr.bf16.gmra.mxu0 %v3285
      %v3462 = vpop.f32.mrf.mxu0
      %v3463 = vadd.f32 0.0, %v3462
      %v3464 = vpop.f32.mrf.mxu0
      %v3465 = vpop.f32.mrf.mxu0
      %v3466 = vadd.f32 0.0, %v3465
      %v3467 = vpop.f32.mrf.mxu0
      %3468 = vmatprep.mubr.bf16.mxu0 0
      %3469 = vmatmul.mubr.bf16.gmra.mxu0 %v3286
      %v3470 = vpop.f32.mrf.mxu0
      %v3471 = vadd.f32 0.0, %v3470
      %v3472 = vpop.f32.mrf.mxu0
      %v3473 = vpop.f32.mrf.mxu0
      %v3474 = vadd.f32 0.0, %v3473
      %v3475 = vpop.f32.mrf.mxu0
      %3476 = vmatprep.mubr.bf16.mxu0 0
      %3477 = vmatmul.mubr.bf16.gmra.mxu0 %v3287
      %v3478 = vpop.f32.mrf.mxu0
      %v3479 = vadd.f32 0.0, %v3478
      %v3480 = vpop.f32.mrf.mxu0
      %v3481 = vpop.f32.mrf.mxu0
      %v3482 = vadd.f32 0.0, %v3481
      %v3483 = vpop.f32.mrf.mxu0
      %3484 = vmatprep.mubr.bf16.mxu0 0
      %3485 = vmatmul.mubr.bf16.gmra.mxu0 %v3288
      %v3486 = vpop.f32.mrf.mxu0
      %v3487 = vadd.f32 0.0, %v3486
      %v3488 = vpop.f32.mrf.mxu0
      %v3489 = vpop.f32.mrf.mxu0
      %v3490 = vadd.f32 0.0, %v3489
      %v3491 = vpop.f32.mrf.mxu0
      %3492 = vmatprep.mubr.bf16.mxu0 0
      %3493 = vmatmul.mubr.bf16.gmra.mxu0 %v3289
      %v3494 = vpop.f32.mrf.mxu0
      %v3495 = vadd.f32 0.0, %v3494
      %v3496 = vpop.f32.mrf.mxu0
      %v3497 = vpop.f32.mrf.mxu0
      %v3498 = vadd.f32 0.0, %v3497
      %v3499 = vpop.f32.mrf.mxu0
      %3500 = vmatprep.mubr.bf16.mxu0 0
      %3501 = vmatmul.mubr.bf16.gmra.mxu0 %v3290
      %v3502 = vpop.f32.mrf.mxu0
      %v3503 = vadd.f32 0.0, %v3502
      %v3504 = vpop.f32.mrf.mxu0
      %v3505 = vpop.f32.mrf.mxu0
      %v3506 = vadd.f32 0.0, %v3505
      %v3507 = vpop.f32.mrf.mxu0
      %3508 = vmatprep.mubr.bf16.mxu0 0
      %3509 = vmatmul.mubr.bf16.gmra.mxu0 %v3291
      %v3510 = vpop.f32.mrf.mxu0
      %v3511 = vadd.f32 0.0, %v3510
      %v3512 = vpop.f32.mrf.mxu0
      %v3513 = vpop.f32.mrf.mxu0
      %v3514 = vadd.f32 0.0, %v3513
      %v3515 = vpop.f32.mrf.mxu0
      %3516 = vdwg.mxu0
      %v3517 = vadd.f32 %v3130, %v3391
      %v3518 = vadd.f32 %v3131, %v3394
      %v3519 = vadd.f32 %v3132, %v3399
      %v3520 = vadd.f32 %v3133, %v3402
      %v3521 = vadd.f32 %v3134, %v3407
      %v3522 = vadd.f32 %v3135, %v3410
      %v3523 = vadd.f32 %v3136, %v3415
      %v3524 = vadd.f32 %v3137, %v3418
      %v3525 = vadd.f32 %v3138, %v3423
      %v3526 = vadd.f32 %v3139, %v3426
      %v3527 = vadd.f32 %v3140, %v3431
      %v3528 = vadd.f32 %v3141, %v3434
      %v3529 = vadd.f32 %v3142, %v3439
      %v3530 = vadd.f32 %v3143, %v3442
      %v3531 = vadd.f32 %v3144, %v3447
      %v3532 = vadd.f32 %v3145, %v3450
      %v3533 = vadd.f32 %v3146, %v3455
      %v3534 = vadd.f32 %v3147, %v3458
      %v3535 = vadd.f32 %v3148, %v3463
      %v3536 = vadd.f32 %v3149, %v3466
      %v3537 = vadd.f32 %v3150, %v3471
      %v3538 = vadd.f32 %v3151, %v3474
      %v3539 = vadd.f32 %v3152, %v3479
      %v3540 = vadd.f32 %v3153, %v3482
      %v3541 = vadd.f32 %v3154, %v3487
      %v3542 = vadd.f32 %v3155, %v3490
      %v3543 = vadd.f32 %v3156, %v3495
      %v3544 = vadd.f32 %v3157, %v3498
      %v3545 = vadd.f32 %v3158, %v3503
      %v3546 = vadd.f32 %v3159, %v3506
      %v3547 = vadd.f32 %v3160, %v3511
      %v3548 = vadd.f32 %v3161, %v3514
      %v3549 = vld [vmem:[%s3162 + $0x4] sm:$0xf]
      %v3550 = vld [vmem:[%s3162 + $0x14] sm:$0xf]
      %v3551 = vld [vmem:[%s3162 + $0x34] sm:$0xf]
      %v3552 = vld [vmem:[%s3162 + $0x44] sm:$0xf]
      %v3553 = vld [vmem:[%s3162 + $0x64] sm:$0xf]
      %v3554 = vld [vmem:[%s3162 + $0x74] sm:$0xf]
      %v3555 = vld [vmem:[%s3162 + $0x94] sm:$0xf]
      %v3556 = vld [vmem:[%s3162 + $0xa4] sm:$0xf]
      %v3557 = vld [vmem:[%s3162 + $0xc4] sm:$0xf]
      %v3558 = vld [vmem:[%s3162 + $0xd4] sm:$0xf]
      %v3559 = vld [vmem:[%s3162 + $0xf4] sm:$0xf]
      %v3560 = vld [vmem:[%s3162 + $0x104] sm:$0xf]
      %v3561 = vld [vmem:[%s3162 + $0x124] sm:$0xf]
      %v3562 = vld [vmem:[%s3162 + $0x134] sm:$0xf]
      %v3563 = vld [vmem:[%s3162 + $0x154] sm:$0xf]
      %v3564 = vld [vmem:[%s3162 + $0x164] sm:$0xf]
      %v3565 = vld [vmem:[%s3162 + $0x184] sm:$0xf]
      %v3566 = vld [vmem:[%s3162 + $0x194] sm:$0xf]
      %v3567 = vld [vmem:[%s3162 + $0x1b4] sm:$0xf]
      %v3568 = vld [vmem:[%s3162 + $0x1c4] sm:$0xf]
      %v3569 = vld [vmem:[%s3162 + $0x1e4] sm:$0xf]
      %v3570 = vld [vmem:[%s3162 + $0x1f4] sm:$0xf]
      %v3571 = vld [vmem:[%s3162 + $0x214] sm:$0xf]
      %v3572 = vld [vmem:[%s3162 + $0x224] sm:$0xf]
      %v3573 = vld [vmem:[%s3162 + $0x244] sm:$0xf]
      %v3574 = vld [vmem:[%s3162 + $0x254] sm:$0xf]
      %v3575 = vld [vmem:[%s3162 + $0x274] sm:$0xf]
      %v3576 = vld [vmem:[%s3162 + $0x284] sm:$0xf]
      %v3577 = vld [vmem:[%s3162 + $0x2a4] sm:$0xf]
      %v3578 = vld [vmem:[%s3162 + $0x2b4] sm:$0xf]
      %v3579 = vld [vmem:[%s3162 + $0x2d4] sm:$0xf]
      %v3580 = vld [vmem:[%s3162 + $0x2e4] sm:$0xf]
      %s3581 = scalar_lea.vmem %s1, 448
      %v3582 = vld [vmem:[%s3581] sm:$0xf]
      %v3583 = vld [vmem:[%s3581 + $0x4] sm:$0xf]
      %v3584 = vld [vmem:[%s3581 + $0x8] sm:$0xf]
      %v3585 = vld [vmem:[%s3581 + $0xc] sm:$0xf]
      %v3586 = vld [vmem:[%s3581 + $0x10] sm:$0xf]
      %v3587 = vld [vmem:[%s3581 + $0x14] sm:$0xf]
      %v3588 = vld [vmem:[%s3581 + $0x18] sm:$0xf]
      %v3589 = vld [vmem:[%s3581 + $0x1c] sm:$0xf]
      %v3590 = vld [vmem:[%s3581 + $0x20] sm:$0xf]
      %v3591 = vld [vmem:[%s3581 + $0x24] sm:$0xf]
      %v3592 = vld [vmem:[%s3581 + $0x28] sm:$0xf]
      %v3593 = vld [vmem:[%s3581 + $0x2c] sm:$0xf]
      %v3594 = vld [vmem:[%s3581 + $0x30] sm:$0xf]
      %v3595 = vld [vmem:[%s3581 + $0x34] sm:$0xf]
      %v3596 = vld [vmem:[%s3581 + $0x38] sm:$0xf]
      %v3597 = vld [vmem:[%s3581 + $0x3c] sm:$0xf]
      %v3630 = vunpack.c.l.b16 %v3549
      %v3631 = vunpack.c.l.b16 %v3550
      %v3632 = vunpack.c.l.b16 %v3551
      %v3633 = vunpack.c.l.b16 %v3552
      %v3634 = vunpack.c.l.b16 %v3553
      %v3635 = vunpack.c.l.b16 %v3554
      %v3636 = vunpack.c.l.b16 %v3555
      %v3637 = vunpack.c.l.b16 %v3556
      %v3638 = vunpack.c.l.b16 %v3557
      %v3639 = vunpack.c.l.b16 %v3558
      %v3640 = vunpack.c.l.b16 %v3559
      %v3641 = vunpack.c.l.b16 %v3560
      %v3642 = vunpack.c.l.b16 %v3561
      %v3643 = vunpack.c.l.b16 %v3562
      %v3644 = vunpack.c.l.b16 %v3563
      %v3645 = vunpack.c.l.b16 %v3564
      %v3646 = vunpack.c.l.b16 %v3565
      %v3647 = vunpack.c.l.b16 %v3566
      %v3648 = vunpack.c.l.b16 %v3567
      %v3649 = vunpack.c.l.b16 %v3568
      %v3650 = vunpack.c.l.b16 %v3569
      %v3651 = vunpack.c.l.b16 %v3570
      %v3652 = vunpack.c.l.b16 %v3571
      %v3653 = vunpack.c.l.b16 %v3572
      %v3654 = vunpack.c.l.b16 %v3573
      %v3655 = vunpack.c.l.b16 %v3574
      %v3656 = vunpack.c.l.b16 %v3575
      %v3657 = vunpack.c.l.b16 %v3576
      %v3658 = vunpack.c.l.b16 %v3577
      %v3659 = vunpack.c.l.b16 %v3578
      %v3660 = vunpack.c.l.b16 %v3579
      %v3661 = vunpack.c.l.b16 %v3580
      %v3662 = vpack.c.b16 %v3631, %v3630
      %v3663 = vpack.c.b16 %v3633, %v3632
      %v3664 = vpack.c.b16 %v3635, %v3634
      %v3665 = vpack.c.b16 %v3637, %v3636
      %v3666 = vpack.c.b16 %v3639, %v3638
      %v3667 = vpack.c.b16 %v3641, %v3640
      %v3668 = vpack.c.b16 %v3643, %v3642
      %v3669 = vpack.c.b16 %v3645, %v3644
      %v3670 = vpack.c.b16 %v3647, %v3646
      %v3671 = vpack.c.b16 %v3649, %v3648
      %v3672 = vpack.c.b16 %v3651, %v3650
      %v3673 = vpack.c.b16 %v3653, %v3652
      %v3674 = vpack.c.b16 %v3655, %v3654
      %v3675 = vpack.c.b16 %v3657, %v3656
      %v3676 = vpack.c.b16 %v3659, %v3658
      %v3677 = vpack.c.b16 %v3661, %v3660
      %v3710 = vunpack.c.l.b16 %v3582
      %v3711 = vunpack.c.l.b16 %v3583
      %v3712 = vunpack.c.l.b16 %v3584
      %v3713 = vunpack.c.l.b16 %v3585
      %v3714 = vunpack.c.l.b16 %v3586
      %v3715 = vunpack.c.l.b16 %v3587
      %v3716 = vunpack.c.l.b16 %v3588
      %v3717 = vunpack.c.l.b16 %v3589
      %v3718 = vunpack.c.l.b16 %v3590
      %v3719 = vunpack.c.l.b16 %v3591
      %v3720 = vunpack.c.l.b16 %v3592
      %v3721 = vunpack.c.l.b16 %v3593
      %v3722 = vunpack.c.l.b16 %v3594
      %v3723 = vunpack.c.l.b16 %v3595
      %v3724 = vunpack.c.l.b16 %v3596
      %v3725 = vunpack.c.l.b16 %v3597
      %v3726 = vpack.c.b16 %v3711, %v3710
      %v3727 = vpack.c.b16 %v3713, %v3712
      %v3728 = vpack.c.b16 %v3715, %v3714
      %v3729 = vpack.c.b16 %v3717, %v3716
      %v3730 = vpack.c.b16 %v3719, %v3718
      %v3731 = vpack.c.b16 %v3721, %v3720
      %v3732 = vpack.c.b16 %v3723, %v3722
      %v3733 = vpack.c.b16 %v3725, %v3724
      %3742 = vmatprep.subr.bf16.mxu0 0
      %3743 = vmatpush1.bf16.msra.mxu0 %v3733
      %3744 = vmatprep.subr.bf16.mxu0 0
      %3745 = vmatpush1.bf16.msra.mxu0 %v3732
      %3746 = vmatprep.subr.bf16.mxu0 0
      %3747 = vmatpush1.bf16.msra.mxu0 %v3731
      %3748 = vmatprep.subr.bf16.mxu0 0
      %3749 = vmatpush1.bf16.msra.mxu0 %v3730
      %3750 = vmatprep.subr.bf16.mxu0 0
      %3751 = vmatpush1.bf16.msra.mxu0 %v3729
      %3752 = vmatprep.subr.bf16.mxu0 0
      %3753 = vmatpush1.bf16.msra.mxu0 %v3728
      %3754 = vmatprep.subr.bf16.mxu0 0
      %3755 = vmatpush1.bf16.msra.mxu0 %v3727
      %3756 = vmatprep.subr.bf16.mxu0 0
      %3757 = vmatpush1.bf16.msra.mxu0 %v3726
      %3758 = vmatprep.subr.bf16.mxu0 0
      %3759 = vmatpush2.bf16.msra.mxu0 0
      %3760 = vmatprep.subr.bf16.mxu0 0
      %3761 = vmatpush2.bf16.msra.mxu0 0
      %3762 = vmatprep.subr.bf16.mxu0 0
      %3763 = vmatpush2.bf16.msra.mxu0 0
      %3764 = vmatprep.subr.bf16.mxu0 0
      %3765 = vmatpush2.bf16.msra.mxu0 0
      %3766 = vmatprep.subr.bf16.mxu0 0
      %3767 = vmatpush2.bf16.msra.mxu0 0
      %3768 = vmatprep.subr.bf16.mxu0 0
      %3769 = vmatpush2.bf16.msra.mxu0 0
      %3770 = vmatprep.subr.bf16.mxu0 0
      %3771 = vmatpush2.bf16.msra.mxu0 0
      %3772 = vmatprep.subr.bf16.mxu0 0
      %3773 = vmatpush2.bf16.msra.mxu0 0
      %3774 = vmatprep.mubr.bf16.mxu0 0
      %3775 = vmatmul.mubr.bf16.gmra.mxu0 %v3662
      %v3776 = vpop.f32.mrf.mxu0
      %v3777 = vadd.f32 0.0, %v3776
      %v3778 = vpop.f32.mrf.mxu0
      %v3779 = vpop.f32.mrf.mxu0
      %v3780 = vadd.f32 0.0, %v3779
      %v3781 = vpop.f32.mrf.mxu0
      %3782 = vmatprep.mubr.bf16.mxu0 0
      %3783 = vmatmul.mubr.bf16.gmra.mxu0 %v3663
      %v3784 = vpop.f32.mrf.mxu0
      %v3785 = vadd.f32 0.0, %v3784
      %v3786 = vpop.f32.mrf.mxu0
      %v3787 = vpop.f32.mrf.mxu0
      %v3788 = vadd.f32 0.0, %v3787
      %v3789 = vpop.f32.mrf.mxu0
      %3790 = vmatprep.mubr.bf16.mxu0 0
      %3791 = vmatmul.mubr.bf16.gmra.mxu0 %v3664
      %v3792 = vpop.f32.mrf.mxu0
      %v3793 = vadd.f32 0.0, %v3792
      %v3794 = vpop.f32.mrf.mxu0
      %v3795 = vpop.f32.mrf.mxu0
      %v3796 = vadd.f32 0.0, %v3795
      %v3797 = vpop.f32.mrf.mxu0
      %3798 = vmatprep.mubr.bf16.mxu0 0
      %3799 = vmatmul.mubr.bf16.gmra.mxu0 %v3665
      %v3800 = vpop.f32.mrf.mxu0
      %v3801 = vadd.f32 0.0, %v3800
      %v3802 = vpop.f32.mrf.mxu0
      %v3803 = vpop.f32.mrf.mxu0
      %v3804 = vadd.f32 0.0, %v3803
      %v3805 = vpop.f32.mrf.mxu0
      %3806 = vmatprep.mubr.bf16.mxu0 0
      %3807 = vmatmul.mubr.bf16.gmra.mxu0 %v3666
      %v3808 = vpop.f32.mrf.mxu0
      %v3809 = vadd.f32 0.0, %v3808
      %v3810 = vpop.f32.mrf.mxu0
      %v3811 = vpop.f32.mrf.mxu0
      %v3812 = vadd.f32 0.0, %v3811
      %v3813 = vpop.f32.mrf.mxu0
      %3814 = vmatprep.mubr.bf16.mxu0 0
      %3815 = vmatmul.mubr.bf16.gmra.mxu0 %v3667
      %v3816 = vpop.f32.mrf.mxu0
      %v3817 = vadd.f32 0.0, %v3816
      %v3818 = vpop.f32.mrf.mxu0
      %v3819 = vpop.f32.mrf.mxu0
      %v3820 = vadd.f32 0.0, %v3819
      %v3821 = vpop.f32.mrf.mxu0
      %3822 = vmatprep.mubr.bf16.mxu0 0
      %3823 = vmatmul.mubr.bf16.gmra.mxu0 %v3668
      %v3824 = vpop.f32.mrf.mxu0
      %v3825 = vadd.f32 0.0, %v3824
      %v3826 = vpop.f32.mrf.mxu0
      %v3827 = vpop.f32.mrf.mxu0
      %v3828 = vadd.f32 0.0, %v3827
      %v3829 = vpop.f32.mrf.mxu0
      %3830 = vmatprep.mubr.bf16.mxu0 0
      %3831 = vmatmul.mubr.bf16.gmra.mxu0 %v3669
      %v3832 = vpop.f32.mrf.mxu0
      %v3833 = vadd.f32 0.0, %v3832
      %v3834 = vpop.f32.mrf.mxu0
      %v3835 = vpop.f32.mrf.mxu0
      %v3836 = vadd.f32 0.0, %v3835
      %v3837 = vpop.f32.mrf.mxu0
      %3838 = vmatprep.mubr.bf16.mxu0 0
      %3839 = vmatmul.mubr.bf16.gmra.mxu0 %v3670
      %v3840 = vpop.f32.mrf.mxu0
      %v3841 = vadd.f32 0.0, %v3840
      %v3842 = vpop.f32.mrf.mxu0
      %v3843 = vpop.f32.mrf.mxu0
      %v3844 = vadd.f32 0.0, %v3843
      %v3845 = vpop.f32.mrf.mxu0
      %3846 = vmatprep.mubr.bf16.mxu0 0
      %3847 = vmatmul.mubr.bf16.gmra.mxu0 %v3671
      %v3848 = vpop.f32.mrf.mxu0
      %v3849 = vadd.f32 0.0, %v3848
      %v3850 = vpop.f32.mrf.mxu0
      %v3851 = vpop.f32.mrf.mxu0
      %v3852 = vadd.f32 0.0, %v3851
      %v3853 = vpop.f32.mrf.mxu0
      %3854 = vmatprep.mubr.bf16.mxu0 0
      %3855 = vmatmul.mubr.bf16.gmra.mxu0 %v3672
      %v3856 = vpop.f32.mrf.mxu0
      %v3857 = vadd.f32 0.0, %v3856
      %v3858 = vpop.f32.mrf.mxu0
      %v3859 = vpop.f32.mrf.mxu0
      %v3860 = vadd.f32 0.0, %v3859
      %v3861 = vpop.f32.mrf.mxu0
      %3862 = vmatprep.mubr.bf16.mxu0 0
      %3863 = vmatmul.mubr.bf16.gmra.mxu0 %v3673
      %v3864 = vpop.f32.mrf.mxu0
      %v3865 = vadd.f32 0.0, %v3864
      %v3866 = vpop.f32.mrf.mxu0
      %v3867 = vpop.f32.mrf.mxu0
      %v3868 = vadd.f32 0.0, %v3867
      %v3869 = vpop.f32.mrf.mxu0
      %3870 = vmatprep.mubr.bf16.mxu0 0
      %3871 = vmatmul.mubr.bf16.gmra.mxu0 %v3674
      %v3872 = vpop.f32.mrf.mxu0
      %v3873 = vadd.f32 0.0, %v3872
      %v3874 = vpop.f32.mrf.mxu0
      %v3875 = vpop.f32.mrf.mxu0
      %v3876 = vadd.f32 0.0, %v3875
      %v3877 = vpop.f32.mrf.mxu0
      %3878 = vmatprep.mubr.bf16.mxu0 0
      %3879 = vmatmul.mubr.bf16.gmra.mxu0 %v3675
      %v3880 = vpop.f32.mrf.mxu0
      %v3881 = vadd.f32 0.0, %v3880
      %v3882 = vpop.f32.mrf.mxu0
      %v3883 = vpop.f32.mrf.mxu0
      %v3884 = vadd.f32 0.0, %v3883
      %v3885 = vpop.f32.mrf.mxu0
      %3886 = vmatprep.mubr.bf16.mxu0 0
      %3887 = vmatmul.mubr.bf16.gmra.mxu0 %v3676
      %v3888 = vpop.f32.mrf.mxu0
      %v3889 = vadd.f32 0.0, %v3888
      %v3890 = vpop.f32.mrf.mxu0
      %v3891 = vpop.f32.mrf.mxu0
      %v3892 = vadd.f32 0.0, %v3891
      %v3893 = vpop.f32.mrf.mxu0
      %3894 = vmatprep.mubr.bf16.mxu0 0
      %3895 = vmatmul.mubr.bf16.gmra.mxu0 %v3677
      %v3896 = vpop.f32.mrf.mxu0
      %v3897 = vadd.f32 0.0, %v3896
      %v3898 = vpop.f32.mrf.mxu0
      %v3899 = vpop.f32.mrf.mxu0
      %v3900 = vadd.f32 0.0, %v3899
      %v3901 = vpop.f32.mrf.mxu0
      %3902 = vdwg.mxu0
      %v3903 = vadd.f32 %v3517, %v3777
      %v3904 = vadd.f32 %v3518, %v3780
      %v3905 = vadd.f32 %v3519, %v3785
      %v3906 = vadd.f32 %v3520, %v3788
      %v3907 = vadd.f32 %v3521, %v3793
      %v3908 = vadd.f32 %v3522, %v3796
      %v3909 = vadd.f32 %v3523, %v3801
      %v3910 = vadd.f32 %v3524, %v3804
      %v3911 = vadd.f32 %v3525, %v3809
      %v3912 = vadd.f32 %v3526, %v3812
      %v3913 = vadd.f32 %v3527, %v3817
      %v3914 = vadd.f32 %v3528, %v3820
      %v3915 = vadd.f32 %v3529, %v3825
      %v3916 = vadd.f32 %v3530, %v3828
      %v3917 = vadd.f32 %v3531, %v3833
      %v3918 = vadd.f32 %v3532, %v3836
      %v3919 = vadd.f32 %v3533, %v3841
      %v3920 = vadd.f32 %v3534, %v3844
      %v3921 = vadd.f32 %v3535, %v3849
      %v3922 = vadd.f32 %v3536, %v3852
      %v3923 = vadd.f32 %v3537, %v3857
      %v3924 = vadd.f32 %v3538, %v3860
      %v3925 = vadd.f32 %v3539, %v3865
      %v3926 = vadd.f32 %v3540, %v3868
      %v3927 = vadd.f32 %v3541, %v3873
      %v3928 = vadd.f32 %v3542, %v3876
      %v3929 = vadd.f32 %v3543, %v3881
      %v3930 = vadd.f32 %v3544, %v3884
      %v3931 = vadd.f32 %v3545, %v3889
      %v3932 = vadd.f32 %v3546, %v3892
      %v3933 = vadd.f32 %v3547, %v3897
      %v3934 = vadd.f32 %v3548, %v3900
      %v3935 = vld [vmem:[%s3162] sm:$0xf]
      %v3936 = vld [vmem:[%s3162 + $0x10] sm:$0xf]
      %v3937 = vld [vmem:[%s3162 + $0x20] sm:$0x1]
      %v3938 = vld [vmem:[%s3162 + $0x30] sm:$0xf]
      %v3939 = vld [vmem:[%s3162 + $0x40] sm:$0xf]
      %v3940 = vld [vmem:[%s3162 + $0x50] sm:$0x1]
      %v3941 = vld [vmem:[%s3162 + $0x60] sm:$0xf]
      %v3942 = vld [vmem:[%s3162 + $0x70] sm:$0xf]
      %v3943 = vld [vmem:[%s3162 + $0x80] sm:$0x1]
      %v3944 = vld [vmem:[%s3162 + $0x90] sm:$0xf]
      %v3945 = vld [vmem:[%s3162 + $0xa0] sm:$0xf]
      %v3946 = vld [vmem:[%s3162 + $0xb0] sm:$0x1]
      %v3947 = vld [vmem:[%s3162 + $0xc0] sm:$0xf]
      %v3948 = vld [vmem:[%s3162 + $0xd0] sm:$0xf]
      %v3949 = vld [vmem:[%s3162 + $0xe0] sm:$0x1]
      %v3950 = vld [vmem:[%s3162 + $0xf0] sm:$0xf]
      %v3951 = vld [vmem:[%s3162 + $0x100] sm:$0xf]
      %v3952 = vld [vmem:[%s3162 + $0x110] sm:$0x1]
      %v3953 = vld [vmem:[%s3162 + $0x120] sm:$0xf]
      %v3954 = vld [vmem:[%s3162 + $0x130] sm:$0xf]
      %v3955 = vld [vmem:[%s3162 + $0x140] sm:$0x1]
      %v3956 = vld [vmem:[%s3162 + $0x150] sm:$0xf]
      %v3957 = vld [vmem:[%s3162 + $0x160] sm:$0xf]
      %v3958 = vld [vmem:[%s3162 + $0x170] sm:$0x1]
      %v3959 = vld [vmem:[%s3162 + $0x180] sm:$0xf]
      %v3960 = vld [vmem:[%s3162 + $0x190] sm:$0xf]
      %v3961 = vld [vmem:[%s3162 + $0x1a0] sm:$0x1]
      %v3962 = vld [vmem:[%s3162 + $0x1b0] sm:$0xf]
      %v3963 = vld [vmem:[%s3162 + $0x1c0] sm:$0xf]
      %v3964 = vld [vmem:[%s3162 + $0x1d0] sm:$0x1]
      %v3965 = vld [vmem:[%s3162 + $0x1e0] sm:$0xf]
      %v3966 = vld [vmem:[%s3162 + $0x1f0] sm:$0xf]
      %v3967 = vld [vmem:[%s3162 + $0x200] sm:$0x1]
      %v3968 = vld [vmem:[%s3162 + $0x210] sm:$0xf]
      %v3969 = vld [vmem:[%s3162 + $0x220] sm:$0xf]
      %v3970 = vld [vmem:[%s3162 + $0x230] sm:$0x1]
      %v3971 = vld [vmem:[%s3162 + $0x240] sm:$0xf]
      %v3972 = vld [vmem:[%s3162 + $0x250] sm:$0xf]
      %v3973 = vld [vmem:[%s3162 + $0x260] sm:$0x1]
      %v3974 = vld [vmem:[%s3162 + $0x270] sm:$0xf]
      %v3975 = vld [vmem:[%s3162 + $0x280] sm:$0xf]
      %v3976 = vld [vmem:[%s3162 + $0x290] sm:$0x1]
      %v3977 = vld [vmem:[%s3162 + $0x2a0] sm:$0xf]
      %v3978 = vld [vmem:[%s3162 + $0x2b0] sm:$0xf]
      %v3979 = vld [vmem:[%s3162 + $0x2c0] sm:$0x1]
      %v3980 = vld [vmem:[%s3162 + $0x2d0] sm:$0xf]
      %v3981 = vld [vmem:[%s3162 + $0x2e0] sm:$0xf]
      %v3982 = vld [vmem:[%s3162 + $0x2f0] sm:$0x1]
      %v3984 = vshrl.u32 %v3935, 16
      %v3986 = vrot.slane %v3984, 4
      %v3987 = vshll.u32 %v3935, 16
      %v3989 = vrot.slane %v3987, 5
      %v3990 = vor.u32 %v3986, %v3989
      %v3991 = vrot.slane %v3990, 4
      %v3993 = vshll.u32 %v3936, 16
      %v3995 = vrot.slane %v3993, 5
      %v3996 = vsel %vm929, %v3991, %v3995
      %v3997 = vshrl.u32 %v3936, 16
      %v3999 = vrot.slane %v3997, 4
      %v4000 = vor.u32 %v3999, %v3995
      %v4001 = vrot.slane %v4000, 4
      %v4003 = vshll.u32 %v3937, 16
      %v4005 = vrot.slane %v4003, 5
      %v4006 = vsel %vm929, %v4001, %v4005
      %v4008 = vshrl.u32 %v3938, 16
      %v4010 = vrot.slane %v4008, 4
      %v4011 = vshll.u32 %v3938, 16
      %v4013 = vrot.slane %v4011, 5
      %v4014 = vor.u32 %v4010, %v4013
      %v4015 = vrot.slane %v4014, 4
      %v4017 = vshll.u32 %v3939, 16
      %v4019 = vrot.slane %v4017, 5
      %v4020 = vsel %vm929, %v4015, %v4019
      %v4021 = vshrl.u32 %v3939, 16
      %v4023 = vrot.slane %v4021, 4
      %v4024 = vor.u32 %v4023, %v4019
      %v4025 = vrot.slane %v4024, 4
      %v4027 = vshll.u32 %v3940, 16
      %v4029 = vrot.slane %v4027, 5
      %v4030 = vsel %vm929, %v4025, %v4029
      %v4032 = vshrl.u32 %v3941, 16
      %v4034 = vrot.slane %v4032, 4
      %v4035 = vshll.u32 %v3941, 16
      %v4037 = vrot.slane %v4035, 5
      %v4038 = vor.u32 %v4034, %v4037
      %v4039 = vrot.slane %v4038, 4
      %v4041 = vshll.u32 %v3942, 16
      %v4043 = vrot.slane %v4041, 5
      %v4044 = vsel %vm929, %v4039, %v4043
      %v4045 = vshrl.u32 %v3942, 16
      %v4047 = vrot.slane %v4045, 4
      %v4048 = vor.u32 %v4047, %v4043
      %v4049 = vrot.slane %v4048, 4
      %v4051 = vshll.u32 %v3943, 16
      %v4053 = vrot.slane %v4051, 5
      %v4054 = vsel %vm929, %v4049, %v4053
      %v4056 = vshrl.u32 %v3944, 16
      %v4058 = vrot.slane %v4056, 4
      %v4059 = vshll.u32 %v3944, 16
      %v4061 = vrot.slane %v4059, 5
      %v4062 = vor.u32 %v4058, %v4061
      %v4063 = vrot.slane %v4062, 4
      %v4065 = vshll.u32 %v3945, 16
      %v4067 = vrot.slane %v4065, 5
      %v4068 = vsel %vm929, %v4063, %v4067
      %v4069 = vshrl.u32 %v3945, 16
      %v4071 = vrot.slane %v4069, 4
      %v4072 = vor.u32 %v4071, %v4067
      %v4073 = vrot.slane %v4072, 4
      %v4075 = vshll.u32 %v3946, 16
      %v4077 = vrot.slane %v4075, 5
      %v4078 = vsel %vm929, %v4073, %v4077
      %v4080 = vshrl.u32 %v3947, 16
      %v4082 = vrot.slane %v4080, 4
      %v4083 = vshll.u32 %v3947, 16
      %v4085 = vrot.slane %v4083, 5
      %v4086 = vor.u32 %v4082, %v4085
      %v4087 = vrot.slane %v4086, 4
      %v4089 = vshll.u32 %v3948, 16
      %v4091 = vrot.slane %v4089, 5
      %v4092 = vsel %vm929, %v4087, %v4091
      %v4093 = vshrl.u32 %v3948, 16
      %v4095 = vrot.slane %v4093, 4
      %v4096 = vor.u32 %v4095, %v4091
      %v4097 = vrot.slane %v4096, 4
      %v4099 = vshll.u32 %v3949, 16
      %v4101 = vrot.slane %v4099, 5
      %v4102 = vsel %vm929, %v4097, %v4101
      %v4104 = vshrl.u32 %v3950, 16
      %v4106 = vrot.slane %v4104, 4
      %v4107 = vshll.u32 %v3950, 16
      %v4109 = vrot.slane %v4107, 5
      %v4110 = vor.u32 %v4106, %v4109
      %v4111 = vrot.slane %v4110, 4
      %v4113 = vshll.u32 %v3951, 16
      %v4115 = vrot.slane %v4113, 5
      %v4116 = vsel %vm929, %v4111, %v4115
      %v4117 = vshrl.u32 %v3951, 16
      %v4119 = vrot.slane %v4117, 4
      %v4120 = vor.u32 %v4119, %v4115
      %v4121 = vrot.slane %v4120, 4
      %v4123 = vshll.u32 %v3952, 16
      %v4125 = vrot.slane %v4123, 5
      %v4126 = vsel %vm929, %v4121, %v4125
      %v4128 = vshrl.u32 %v3953, 16
      %v4130 = vrot.slane %v4128, 4
      %v4131 = vshll.u32 %v3953, 16
      %v4133 = vrot.slane %v4131, 5
      %v4134 = vor.u32 %v4130, %v4133
      %v4135 = vrot.slane %v4134, 4
      %v4137 = vshll.u32 %v3954, 16
      %v4139 = vrot.slane %v4137, 5
      %v4140 = vsel %vm929, %v4135, %v4139
      %v4141 = vshrl.u32 %v3954, 16
      %v4143 = vrot.slane %v4141, 4
      %v4144 = vor.u32 %v4143, %v4139
      %v4145 = vrot.slane %v4144, 4
      %v4147 = vshll.u32 %v3955, 16
      %v4149 = vrot.slane %v4147, 5
      %v4150 = vsel %vm929, %v4145, %v4149
      %v4152 = vshrl.u32 %v3956, 16
      %v4154 = vrot.slane %v4152, 4
      %v4155 = vshll.u32 %v3956, 16
      %v4157 = vrot.slane %v4155, 5
      %v4158 = vor.u32 %v4154, %v4157
      %v4159 = vrot.slane %v4158, 4
      %v4161 = vshll.u32 %v3957, 16
      %v4163 = vrot.slane %v4161, 5
      %v4164 = vsel %vm929, %v4159, %v4163
      %v4165 = vshrl.u32 %v3957, 16
      %v4167 = vrot.slane %v4165, 4
      %v4168 = vor.u32 %v4167, %v4163
      %v4169 = vrot.slane %v4168, 4
      %v4171 = vshll.u32 %v3958, 16
      %v4173 = vrot.slane %v4171, 5
      %v4174 = vsel %vm929, %v4169, %v4173
      %v4176 = vshrl.u32 %v3959, 16
      %v4178 = vrot.slane %v4176, 4
      %v4179 = vshll.u32 %v3959, 16
      %v4181 = vrot.slane %v4179, 5
      %v4182 = vor.u32 %v4178, %v4181
      %v4183 = vrot.slane %v4182, 4
      %v4185 = vshll.u32 %v3960, 16
      %v4187 = vrot.slane %v4185, 5
      %v4188 = vsel %vm929, %v4183, %v4187
      %v4189 = vshrl.u32 %v3960, 16
      %v4191 = vrot.slane %v4189, 4
      %v4192 = vor.u32 %v4191, %v4187
      %v4193 = vrot.slane %v4192, 4
      %v4195 = vshll.u32 %v3961, 16
      %v4197 = vrot.slane %v4195, 5
      %v4198 = vsel %vm929, %v4193, %v4197
      %v4200 = vshrl.u32 %v3962, 16
      %v4202 = vrot.slane %v4200, 4
      %v4203 = vshll.u32 %v3962, 16
      %v4205 = vrot.slane %v4203, 5
      %v4206 = vor.u32 %v4202, %v4205
      %v4207 = vrot.slane %v4206, 4
      %v4209 = vshll.u32 %v3963, 16
      %v4211 = vrot.slane %v4209, 5
      %v4212 = vsel %vm929, %v4207, %v4211
      %v4213 = vshrl.u32 %v3963, 16
      %v4215 = vrot.slane %v4213, 4
      %v4216 = vor.u32 %v4215, %v4211
      %v4217 = vrot.slane %v4216, 4
      %v4219 = vshll.u32 %v3964, 16
      %v4221 = vrot.slane %v4219, 5
      %v4222 = vsel %vm929, %v4217, %v4221
      %v4224 = vshrl.u32 %v3965, 16
      %v4226 = vrot.slane %v4224, 4
      %v4227 = vshll.u32 %v3965, 16
      %v4229 = vrot.slane %v4227, 5
      %v4230 = vor.u32 %v4226, %v4229
      %v4231 = vrot.slane %v4230, 4
      %v4233 = vshll.u32 %v3966, 16
      %v4235 = vrot.slane %v4233, 5
      %v4236 = vsel %vm929, %v4231, %v4235
      %v4237 = vshrl.u32 %v3966, 16
      %v4239 = vrot.slane %v4237, 4
      %v4240 = vor.u32 %v4239, %v4235
      %v4241 = vrot.slane %v4240, 4
      %v4243 = vshll.u32 %v3967, 16
      %v4245 = vrot.slane %v4243, 5
      %v4246 = vsel %vm929, %v4241, %v4245
      %v4248 = vshrl.u32 %v3968, 16
      %v4250 = vrot.slane %v4248, 4
      %v4251 = vshll.u32 %v3968, 16
      %v4253 = vrot.slane %v4251, 5
      %v4254 = vor.u32 %v4250, %v4253
      %v4255 = vrot.slane %v4254, 4
      %v4257 = vshll.u32 %v3969, 16
      %v4259 = vrot.slane %v4257, 5
      %v4260 = vsel %vm929, %v4255, %v4259
      %v4261 = vshrl.u32 %v3969, 16
      %v4263 = vrot.slane %v4261, 4
      %v4264 = vor.u32 %v4263, %v4259
      %v4265 = vrot.slane %v4264, 4
      %v4267 = vshll.u32 %v3970, 16
      %v4269 = vrot.slane %v4267, 5
      %v4270 = vsel %vm929, %v4265, %v4269
      %v4272 = vshrl.u32 %v3971, 16
      %v4274 = vrot.slane %v4272, 4
      %v4275 = vshll.u32 %v3971, 16
      %v4277 = vrot.slane %v4275, 5
      %v4278 = vor.u32 %v4274, %v4277
      %v4279 = vrot.slane %v4278, 4
      %v4281 = vshll.u32 %v3972, 16
      %v4283 = vrot.slane %v4281, 5
      %v4284 = vsel %vm929, %v4279, %v4283
      %v4285 = vshrl.u32 %v3972, 16
      %v4287 = vrot.slane %v4285, 4
      %v4288 = vor.u32 %v4287, %v4283
      %v4289 = vrot.slane %v4288, 4
      %v4291 = vshll.u32 %v3973, 16
      %v4293 = vrot.slane %v4291, 5
      %v4294 = vsel %vm929, %v4289, %v4293
      %v4296 = vshrl.u32 %v3974, 16
      %v4298 = vrot.slane %v4296, 4
      %v4299 = vshll.u32 %v3974, 16
      %v4301 = vrot.slane %v4299, 5
      %v4302 = vor.u32 %v4298, %v4301
      %v4303 = vrot.slane %v4302, 4
      %v4305 = vshll.u32 %v3975, 16
      %v4307 = vrot.slane %v4305, 5
      %v4308 = vsel %vm929, %v4303, %v4307
      %v4309 = vshrl.u32 %v3975, 16
      %v4311 = vrot.slane %v4309, 4
      %v4312 = vor.u32 %v4311, %v4307
      %v4313 = vrot.slane %v4312, 4
      %v4315 = vshll.u32 %v3976, 16
      %v4317 = vrot.slane %v4315, 5
      %v4318 = vsel %vm929, %v4313, %v4317
      %v4320 = vshrl.u32 %v3977, 16
      %v4322 = vrot.slane %v4320, 4
      %v4323 = vshll.u32 %v3977, 16
      %v4325 = vrot.slane %v4323, 5
      %v4326 = vor.u32 %v4322, %v4325
      %v4327 = vrot.slane %v4326, 4
      %v4329 = vshll.u32 %v3978, 16
      %v4331 = vrot.slane %v4329, 5
      %v4332 = vsel %vm929, %v4327, %v4331
      %v4333 = vshrl.u32 %v3978, 16
      %v4335 = vrot.slane %v4333, 4
      %v4336 = vor.u32 %v4335, %v4331
      %v4337 = vrot.slane %v4336, 4
      %v4339 = vshll.u32 %v3979, 16
      %v4341 = vrot.slane %v4339, 5
      %v4342 = vsel %vm929, %v4337, %v4341
      %v4344 = vshrl.u32 %v3980, 16
      %v4346 = vrot.slane %v4344, 4
      %v4347 = vshll.u32 %v3980, 16
      %v4349 = vrot.slane %v4347, 5
      %v4350 = vor.u32 %v4346, %v4349
      %v4351 = vrot.slane %v4350, 4
      %v4353 = vshll.u32 %v3981, 16
      %v4355 = vrot.slane %v4353, 5
      %v4356 = vsel %vm929, %v4351, %v4355
      %v4357 = vshrl.u32 %v3981, 16
      %v4359 = vrot.slane %v4357, 4
      %v4360 = vor.u32 %v4359, %v4355
      %v4361 = vrot.slane %v4360, 4
      %v4363 = vshll.u32 %v3982, 16
      %v4365 = vrot.slane %v4363, 5
      %v4366 = vsel %vm929, %v4361, %v4365
      %s4367 = scalar_lea.vmem %s1, 512
      %v4368 = vld [vmem:[%s4367] sm:$0xf]
      %v4369 = vld [vmem:[%s4367 + $0x4] sm:$0xf]
      %v4370 = vld [vmem:[%s4367 + $0x8] sm:$0xf]
      %v4371 = vld [vmem:[%s4367 + $0xc] sm:$0xf]
      %v4372 = vld [vmem:[%s4367 + $0x10] sm:$0xf]
      %v4373 = vld [vmem:[%s4367 + $0x14] sm:$0xf]
      %v4374 = vld [vmem:[%s4367 + $0x18] sm:$0xf]
      %v4375 = vld [vmem:[%s4367 + $0x1c] sm:$0xf]
      %v4376 = vld [vmem:[%s4367 + $0x20] sm:$0xf]
      %v4377 = vld [vmem:[%s4367 + $0x24] sm:$0xf]
      %v4378 = vld [vmem:[%s4367 + $0x28] sm:$0xf]
      %v4379 = vld [vmem:[%s4367 + $0x2c] sm:$0xf]
      %v4380 = vld [vmem:[%s4367 + $0x30] sm:$0xf]
      %v4381 = vld [vmem:[%s4367 + $0x34] sm:$0xf]
      %v4382 = vld [vmem:[%s4367 + $0x38] sm:$0xf]
      %v4383 = vld [vmem:[%s4367 + $0x3c] sm:$0xf]
      %v4384 = vunpack.c.l.b16 %v3996
      %v4385 = vunpack.c.l.b16 %v4006
      %v4386 = vunpack.c.l.b16 %v4020
      %v4387 = vunpack.c.l.b16 %v4030
      %v4388 = vunpack.c.l.b16 %v4044
      %v4389 = vunpack.c.l.b16 %v4054
      %v4390 = vunpack.c.l.b16 %v4068
      %v4391 = vunpack.c.l.b16 %v4078
      %v4392 = vunpack.c.l.b16 %v4092
      %v4393 = vunpack.c.l.b16 %v4102
      %v4394 = vunpack.c.l.b16 %v4116
      %v4395 = vunpack.c.l.b16 %v4126
      %v4396 = vunpack.c.l.b16 %v4140
      %v4397 = vunpack.c.l.b16 %v4150
      %v4398 = vunpack.c.l.b16 %v4164
      %v4399 = vunpack.c.l.b16 %v4174
      %v4400 = vunpack.c.l.b16 %v4188
      %v4401 = vunpack.c.l.b16 %v4198
      %v4402 = vunpack.c.l.b16 %v4212
      %v4403 = vunpack.c.l.b16 %v4222
      %v4404 = vunpack.c.l.b16 %v4236
      %v4405 = vunpack.c.l.b16 %v4246
      %v4406 = vunpack.c.l.b16 %v4260
      %v4407 = vunpack.c.l.b16 %v4270
      %v4408 = vunpack.c.l.b16 %v4284
      %v4409 = vunpack.c.l.b16 %v4294
      %v4410 = vunpack.c.l.b16 %v4308
      %v4411 = vunpack.c.l.b16 %v4318
      %v4412 = vunpack.c.l.b16 %v4332
      %v4413 = vunpack.c.l.b16 %v4342
      %v4414 = vunpack.c.l.b16 %v4356
      %v4415 = vunpack.c.l.b16 %v4366
      %v4416 = vpack.c.b16 %v4385, %v4384
      %v4417 = vpack.c.b16 %v4387, %v4386
      %v4418 = vpack.c.b16 %v4389, %v4388
      %v4419 = vpack.c.b16 %v4391, %v4390
      %v4420 = vpack.c.b16 %v4393, %v4392
      %v4421 = vpack.c.b16 %v4395, %v4394
      %v4422 = vpack.c.b16 %v4397, %v4396
      %v4423 = vpack.c.b16 %v4399, %v4398
      %v4424 = vpack.c.b16 %v4401, %v4400
      %v4425 = vpack.c.b16 %v4403, %v4402
      %v4426 = vpack.c.b16 %v4405, %v4404
      %v4427 = vpack.c.b16 %v4407, %v4406
      %v4428 = vpack.c.b16 %v4409, %v4408
      %v4429 = vpack.c.b16 %v4411, %v4410
      %v4430 = vpack.c.b16 %v4413, %v4412
      %v4431 = vpack.c.b16 %v4415, %v4414
      %v4464 = vunpack.c.l.b16 %v4368
      %v4465 = vunpack.c.l.b16 %v4369
      %v4466 = vunpack.c.l.b16 %v4370
      %v4467 = vunpack.c.l.b16 %v4371
      %v4468 = vunpack.c.l.b16 %v4372
      %v4469 = vunpack.c.l.b16 %v4373
      %v4470 = vunpack.c.l.b16 %v4374
      %v4471 = vunpack.c.l.b16 %v4375
      %v4472 = vunpack.c.l.b16 %v4376
      %v4473 = vunpack.c.l.b16 %v4377
      %v4474 = vunpack.c.l.b16 %v4378
      %v4475 = vunpack.c.l.b16 %v4379
      %v4476 = vunpack.c.l.b16 %v4380
      %v4477 = vunpack.c.l.b16 %v4381
      %v4478 = vunpack.c.l.b16 %v4382
      %v4479 = vunpack.c.l.b16 %v4383
      %v4480 = vpack.c.b16 %v4465, %v4464
      %v4481 = vpack.c.b16 %v4467, %v4466
      %v4482 = vpack.c.b16 %v4469, %v4468
      %v4483 = vpack.c.b16 %v4471, %v4470
      %v4484 = vpack.c.b16 %v4473, %v4472
      %v4485 = vpack.c.b16 %v4475, %v4474
      %v4486 = vpack.c.b16 %v4477, %v4476
      %v4487 = vpack.c.b16 %v4479, %v4478
      %4496 = vmatprep.subr.bf16.mxu0 0
      %4497 = vmatpush1.bf16.msra.mxu0 %v4487
      %4498 = vmatprep.subr.bf16.mxu0 0
      %4499 = vmatpush1.bf16.msra.mxu0 %v4486
      %4500 = vmatprep.subr.bf16.mxu0 0
      %4501 = vmatpush1.bf16.msra.mxu0 %v4485
      %4502 = vmatprep.subr.bf16.mxu0 0
      %4503 = vmatpush1.bf16.msra.mxu0 %v4484
      %4504 = vmatprep.subr.bf16.mxu0 0
      %4505 = vmatpush1.bf16.msra.mxu0 %v4483
      %4506 = vmatprep.subr.bf16.mxu0 0
      %4507 = vmatpush1.bf16.msra.mxu0 %v4482
      %4508 = vmatprep.subr.bf16.mxu0 0
      %4509 = vmatpush1.bf16.msra.mxu0 %v4481
      %4510 = vmatprep.subr.bf16.mxu0 0
      %4511 = vmatpush1.bf16.msra.mxu0 %v4480
      %4512 = vmatprep.subr.bf16.mxu0 0
      %4513 = vmatpush2.bf16.msra.mxu0 0
      %4514 = vmatprep.subr.bf16.mxu0 0
      %4515 = vmatpush2.bf16.msra.mxu0 0
      %4516 = vmatprep.subr.bf16.mxu0 0
      %4517 = vmatpush2.bf16.msra.mxu0 0
      %4518 = vmatprep.subr.bf16.mxu0 0
      %4519 = vmatpush2.bf16.msra.mxu0 0
      %4520 = vmatprep.subr.bf16.mxu0 0
      %4521 = vmatpush2.bf16.msra.mxu0 0
      %4522 = vmatprep.subr.bf16.mxu0 0
      %4523 = vmatpush2.bf16.msra.mxu0 0
      %4524 = vmatprep.subr.bf16.mxu0 0
      %4525 = vmatpush2.bf16.msra.mxu0 0
      %4526 = vmatprep.subr.bf16.mxu0 0
      %4527 = vmatpush2.bf16.msra.mxu0 0
      %4528 = vmatprep.mubr.bf16.mxu0 0
      %4529 = vmatmul.mubr.bf16.gmra.mxu0 %v4416
      %v4530 = vpop.f32.mrf.mxu0
      %v4531 = vadd.f32 0.0, %v4530
      %v4532 = vpop.f32.mrf.mxu0
      %v4533 = vpop.f32.mrf.mxu0
      %v4534 = vadd.f32 0.0, %v4533
      %v4535 = vpop.f32.mrf.mxu0
      %4536 = vmatprep.mubr.bf16.mxu0 0
      %4537 = vmatmul.mubr.bf16.gmra.mxu0 %v4417
      %v4538 = vpop.f32.mrf.mxu0
      %v4539 = vadd.f32 0.0, %v4538
      %v4540 = vpop.f32.mrf.mxu0
      %v4541 = vpop.f32.mrf.mxu0
      %v4542 = vadd.f32 0.0, %v4541
      %v4543 = vpop.f32.mrf.mxu0
      %4544 = vmatprep.mubr.bf16.mxu0 0
      %4545 = vmatmul.mubr.bf16.gmra.mxu0 %v4418
      %v4546 = vpop.f32.mrf.mxu0
      %v4547 = vadd.f32 0.0, %v4546
      %v4548 = vpop.f32.mrf.mxu0
      %v4549 = vpop.f32.mrf.mxu0
      %v4550 = vadd.f32 0.0, %v4549
      %v4551 = vpop.f32.mrf.mxu0
      %4552 = vmatprep.mubr.bf16.mxu0 0
      %4553 = vmatmul.mubr.bf16.gmra.mxu0 %v4419
      %v4554 = vpop.f32.mrf.mxu0
      %v4555 = vadd.f32 0.0, %v4554
      %v4556 = vpop.f32.mrf.mxu0
      %v4557 = vpop.f32.mrf.mxu0
      %v4558 = vadd.f32 0.0, %v4557
      %v4559 = vpop.f32.mrf.mxu0
      %4560 = vmatprep.mubr.bf16.mxu0 0
      %4561 = vmatmul.mubr.bf16.gmra.mxu0 %v4420
      %v4562 = vpop.f32.mrf.mxu0
      %v4563 = vadd.f32 0.0, %v4562
      %v4564 = vpop.f32.mrf.mxu0
      %v4565 = vpop.f32.mrf.mxu0
      %v4566 = vadd.f32 0.0, %v4565
      %v4567 = vpop.f32.mrf.mxu0
      %4568 = vmatprep.mubr.bf16.mxu0 0
      %4569 = vmatmul.mubr.bf16.gmra.mxu0 %v4421
      %v4570 = vpop.f32.mrf.mxu0
      %v4571 = vadd.f32 0.0, %v4570
      %v4572 = vpop.f32.mrf.mxu0
      %v4573 = vpop.f32.mrf.mxu0
      %v4574 = vadd.f32 0.0, %v4573
      %v4575 = vpop.f32.mrf.mxu0
      %4576 = vmatprep.mubr.bf16.mxu0 0
      %4577 = vmatmul.mubr.bf16.gmra.mxu0 %v4422
      %v4578 = vpop.f32.mrf.mxu0
      %v4579 = vadd.f32 0.0, %v4578
      %v4580 = vpop.f32.mrf.mxu0
      %v4581 = vpop.f32.mrf.mxu0
      %v4582 = vadd.f32 0.0, %v4581
      %v4583 = vpop.f32.mrf.mxu0
      %4584 = vmatprep.mubr.bf16.mxu0 0
      %4585 = vmatmul.mubr.bf16.gmra.mxu0 %v4423
      %v4586 = vpop.f32.mrf.mxu0
      %v4587 = vadd.f32 0.0, %v4586
      %v4588 = vpop.f32.mrf.mxu0
      %v4589 = vpop.f32.mrf.mxu0
      %v4590 = vadd.f32 0.0, %v4589
      %v4591 = vpop.f32.mrf.mxu0
      %4592 = vmatprep.mubr.bf16.mxu0 0
      %4593 = vmatmul.mubr.bf16.gmra.mxu0 %v4424
      %v4594 = vpop.f32.mrf.mxu0
      %v4595 = vadd.f32 0.0, %v4594
      %v4596 = vpop.f32.mrf.mxu0
      %v4597 = vpop.f32.mrf.mxu0
      %v4598 = vadd.f32 0.0, %v4597
      %v4599 = vpop.f32.mrf.mxu0
      %4600 = vmatprep.mubr.bf16.mxu0 0
      %4601 = vmatmul.mubr.bf16.gmra.mxu0 %v4425
      %v4602 = vpop.f32.mrf.mxu0
      %v4603 = vadd.f32 0.0, %v4602
      %v4604 = vpop.f32.mrf.mxu0
      %v4605 = vpop.f32.mrf.mxu0
      %v4606 = vadd.f32 0.0, %v4605
      %v4607 = vpop.f32.mrf.mxu0
      %4608 = vmatprep.mubr.bf16.mxu0 0
      %4609 = vmatmul.mubr.bf16.gmra.mxu0 %v4426
      %v4610 = vpop.f32.mrf.mxu0
      %v4611 = vadd.f32 0.0, %v4610
      %v4612 = vpop.f32.mrf.mxu0
      %v4613 = vpop.f32.mrf.mxu0
      %v4614 = vadd.f32 0.0, %v4613
      %v4615 = vpop.f32.mrf.mxu0
      %4616 = vmatprep.mubr.bf16.mxu0 0
      %4617 = vmatmul.mubr.bf16.gmra.mxu0 %v4427
      %v4618 = vpop.f32.mrf.mxu0
      %v4619 = vadd.f32 0.0, %v4618
      %v4620 = vpop.f32.mrf.mxu0
      %v4621 = vpop.f32.mrf.mxu0
      %v4622 = vadd.f32 0.0, %v4621
      %v4623 = vpop.f32.mrf.mxu0
      %4624 = vmatprep.mubr.bf16.mxu0 0
      %4625 = vmatmul.mubr.bf16.gmra.mxu0 %v4428
      %v4626 = vpop.f32.mrf.mxu0
      %v4627 = vadd.f32 0.0, %v4626
      %v4628 = vpop.f32.mrf.mxu0
      %v4629 = vpop.f32.mrf.mxu0
      %v4630 = vadd.f32 0.0, %v4629
      %v4631 = vpop.f32.mrf.mxu0
      %4632 = vmatprep.mubr.bf16.mxu0 0
      %4633 = vmatmul.mubr.bf16.gmra.mxu0 %v4429
      %v4634 = vpop.f32.mrf.mxu0
      %v4635 = vadd.f32 0.0, %v4634
      %v4636 = vpop.f32.mrf.mxu0
      %v4637 = vpop.f32.mrf.mxu0
      %v4638 = vadd.f32 0.0, %v4637
      %v4639 = vpop.f32.mrf.mxu0
      %4640 = vmatprep.mubr.bf16.mxu0 0
      %4641 = vmatmul.mubr.bf16.gmra.mxu0 %v4430
      %v4642 = vpop.f32.mrf.mxu0
      %v4643 = vadd.f32 0.0, %v4642
      %v4644 = vpop.f32.mrf.mxu0
      %v4645 = vpop.f32.mrf.mxu0
      %v4646 = vadd.f32 0.0, %v4645
      %v4647 = vpop.f32.mrf.mxu0
      %4648 = vmatprep.mubr.bf16.mxu0 0
      %4649 = vmatmul.mubr.bf16.gmra.mxu0 %v4431
      %v4650 = vpop.f32.mrf.mxu0
      %v4651 = vadd.f32 0.0, %v4650
      %v4652 = vpop.f32.mrf.mxu0
      %v4653 = vpop.f32.mrf.mxu0
      %v4654 = vadd.f32 0.0, %v4653
      %v4655 = vpop.f32.mrf.mxu0
      %4656 = vdwg.mxu0
      %v4657 = vadd.f32 %v3903, %v4531
      %v4658 = vadd.f32 %v3904, %v4534
      %v4659 = vadd.f32 %v3905, %v4539
      %v4660 = vadd.f32 %v3906, %v4542
      %v4661 = vadd.f32 %v3907, %v4547
      %v4662 = vadd.f32 %v3908, %v4550
      %v4663 = vadd.f32 %v3909, %v4555
      %v4664 = vadd.f32 %v3910, %v4558
      %v4665 = vadd.f32 %v3911, %v4563
      %v4666 = vadd.f32 %v3912, %v4566
      %v4667 = vadd.f32 %v3913, %v4571
      %v4668 = vadd.f32 %v3914, %v4574
      %v4669 = vadd.f32 %v3915, %v4579
      %v4670 = vadd.f32 %v3916, %v4582
      %v4671 = vadd.f32 %v3917, %v4587
      %v4672 = vadd.f32 %v3918, %v4590
      %v4673 = vadd.f32 %v3919, %v4595
      %v4674 = vadd.f32 %v3920, %v4598
      %v4675 = vadd.f32 %v3921, %v4603
      %v4676 = vadd.f32 %v3922, %v4606
      %v4677 = vadd.f32 %v3923, %v4611
      %v4678 = vadd.f32 %v3924, %v4614
      %v4679 = vadd.f32 %v3925, %v4619
      %v4680 = vadd.f32 %v3926, %v4622
      %v4681 = vadd.f32 %v3927, %v4627
      %v4682 = vadd.f32 %v3928, %v4630
      %v4683 = vadd.f32 %v3929, %v4635
      %v4684 = vadd.f32 %v3930, %v4638
      %v4685 = vadd.f32 %v3931, %v4643
      %v4686 = vadd.f32 %v3932, %v4646
      %v4687 = vadd.f32 %v3933, %v4651
      %v4688 = vadd.f32 %v3934, %v4654
      %v4689 = vld [vmem:[%s2] sm:$0x1]
      %v4691 = vlaneseq
      %v4692 = vshrl.u32 %v4691, 7
      %v4693 = vsub.s32 0, %v4692
      %v4694 = vrot.slane %v4689, %v4693
      %v4696 = vadd.f32 %v4657, %v4694
      %v4697 = vadd.f32 %v4658, %v4694
      %v4698 = vadd.f32 %v4659, %v4694
      %v4699 = vadd.f32 %v4660, %v4694
      %v4700 = vadd.f32 %v4661, %v4694
      %v4701 = vadd.f32 %v4662, %v4694
      %v4702 = vadd.f32 %v4663, %v4694
      %v4703 = vadd.f32 %v4664, %v4694
      %v4704 = vadd.f32 %v4665, %v4694
      %v4705 = vadd.f32 %v4666, %v4694
      %v4706 = vadd.f32 %v4667, %v4694
      %v4707 = vadd.f32 %v4668, %v4694
      %v4708 = vadd.f32 %v4669, %v4694
      %v4709 = vadd.f32 %v4670, %v4694
      %v4710 = vadd.f32 %v4671, %v4694
      %v4711 = vadd.f32 %v4672, %v4694
      %v4712 = vadd.f32 %v4673, %v4694
      %v4713 = vadd.f32 %v4674, %v4694
      %v4714 = vadd.f32 %v4675, %v4694
      %v4715 = vadd.f32 %v4676, %v4694
      %v4716 = vadd.f32 %v4677, %v4694
      %v4717 = vadd.f32 %v4678, %v4694
      %v4718 = vadd.f32 %v4679, %v4694
      %v4719 = vadd.f32 %v4680, %v4694
      %v4720 = vadd.f32 %v4681, %v4694
      %v4721 = vadd.f32 %v4682, %v4694
      %v4722 = vadd.f32 %v4683, %v4694
      %v4723 = vadd.f32 %v4684, %v4694
      %v4724 = vadd.f32 %v4685, %v4694
      %v4725 = vadd.f32 %v4686, %v4694
      %v4726 = vadd.f32 %v4687, %v4694
      %v4727 = vadd.f32 %v4688, %v4694
      %v4728 = vmax.f32 %v4696, 0.0
      %v4729 = vmax.f32 %v4697, 0.0
      %v4730 = vmax.f32 %v4698, 0.0
      %v4731 = vmax.f32 %v4699, 0.0
      %v4732 = vmax.f32 %v4700, 0.0
      %v4733 = vmax.f32 %v4701, 0.0
      %v4734 = vmax.f32 %v4702, 0.0
      %v4735 = vmax.f32 %v4703, 0.0
      %v4736 = vmax.f32 %v4704, 0.0
      %v4737 = vmax.f32 %v4705, 0.0
      %v4738 = vmax.f32 %v4706, 0.0
      %v4739 = vmax.f32 %v4707, 0.0
      %v4740 = vmax.f32 %v4708, 0.0
      %v4741 = vmax.f32 %v4709, 0.0
      %v4742 = vmax.f32 %v4710, 0.0
      %v4743 = vmax.f32 %v4711, 0.0
      %v4744 = vmax.f32 %v4712, 0.0
      %v4745 = vmax.f32 %v4713, 0.0
      %v4746 = vmax.f32 %v4714, 0.0
      %v4747 = vmax.f32 %v4715, 0.0
      %v4748 = vmax.f32 %v4716, 0.0
      %v4749 = vmax.f32 %v4717, 0.0
      %v4750 = vmax.f32 %v4718, 0.0
      %v4751 = vmax.f32 %v4719, 0.0
      %v4752 = vmax.f32 %v4720, 0.0
      %v4753 = vmax.f32 %v4721, 0.0
      %v4754 = vmax.f32 %v4722, 0.0
      %v4755 = vmax.f32 %v4723, 0.0
      %v4756 = vmax.f32 %v4724, 0.0
      %v4757 = vmax.f32 %v4725, 0.0
      %v4758 = vmax.f32 %v4726, 0.0
      %v4759 = vmax.f32 %v4727, 0.0
      %v4760 = vpack.c.bf16 %v4729, %v4728
      %v4761 = vpack.c.bf16 %v4731, %v4730
      %v4762 = vpack.c.bf16 %v4733, %v4732
      %v4763 = vpack.c.bf16 %v4735, %v4734
      %v4764 = vpack.c.bf16 %v4737, %v4736
      %v4765 = vpack.c.bf16 %v4739, %v4738
      %v4766 = vpack.c.bf16 %v4741, %v4740
      %v4767 = vpack.c.bf16 %v4743, %v4742
      %v4768 = vpack.c.bf16 %v4745, %v4744
      %v4769 = vpack.c.bf16 %v4747, %v4746
      %v4770 = vpack.c.bf16 %v4749, %v4748
      %v4771 = vpack.c.bf16 %v4751, %v4750
      %v4772 = vpack.c.bf16 %v4753, %v4752
      %v4773 = vpack.c.bf16 %v4755, %v4754
      %v4774 = vpack.c.bf16 %v4757, %v4756
      %v4775 = vpack.c.bf16 %v4759, %v4758
      %v4792 = vunpack.c.l.b16 %v4760
      %v4793 = vunpack.c.h.b16 %v4760
      %v4794 = vunpack.c.l.b16 %v4761
      %v4795 = vunpack.c.h.b16 %v4761
      %v4796 = vunpack.c.l.b16 %v4762
      %v4797 = vunpack.c.h.b16 %v4762
      %v4798 = vunpack.c.l.b16 %v4763
      %v4799 = vunpack.c.h.b16 %v4763
      %v4800 = vunpack.c.l.b16 %v4764
      %v4801 = vunpack.c.h.b16 %v4764
      %v4802 = vunpack.c.l.b16 %v4765
      %v4803 = vunpack.c.h.b16 %v4765
      %v4804 = vunpack.c.l.b16 %v4766
      %v4805 = vunpack.c.h.b16 %v4766
      %v4806 = vunpack.c.l.b16 %v4767
      %v4807 = vunpack.c.h.b16 %v4767
      %v4808 = vunpack.c.l.b16 %v4768
      %v4809 = vunpack.c.h.b16 %v4768
      %v4810 = vunpack.c.l.b16 %v4769
      %v4811 = vunpack.c.h.b16 %v4769
      %v4812 = vunpack.c.l.b16 %v4770
      %v4813 = vunpack.c.h.b16 %v4770
      %v4814 = vunpack.c.l.b16 %v4771
      %v4815 = vunpack.c.h.b16 %v4771
      %v4816 = vunpack.c.l.b16 %v4772
      %v4817 = vunpack.c.h.b16 %v4772
      %v4818 = vunpack.c.l.b16 %v4773
      %v4819 = vunpack.c.h.b16 %v4773
      %v4820 = vunpack.c.l.b16 %v4774
      %v4821 = vunpack.c.h.b16 %v4774
      %v4822 = vunpack.c.l.b16 %v4775
      %v4823 = vunpack.c.h.b16 %v4775
      %v4824 = vpack.c.b16 %v4792, %v4792
      %v4825 = vpack.c.b16 %v4793, %v4793
      %v4826 = vpack.c.b16 %v4794, %v4794
      %v4827 = vpack.c.b16 %v4795, %v4795
      %v4828 = vpack.c.b16 %v4796, %v4796
      %v4829 = vpack.c.b16 %v4797, %v4797
      %v4830 = vpack.c.b16 %v4798, %v4798
      %v4831 = vpack.c.b16 %v4799, %v4799
      %v4832 = vpack.c.b16 %v4800, %v4800
      %v4833 = vpack.c.b16 %v4801, %v4801
      %v4834 = vpack.c.b16 %v4802, %v4802
      %v4835 = vpack.c.b16 %v4803, %v4803
      %v4836 = vpack.c.b16 %v4804, %v4804
      %v4837 = vpack.c.b16 %v4805, %v4805
      %v4838 = vpack.c.b16 %v4806, %v4806
      %v4839 = vpack.c.b16 %v4807, %v4807
      %v4840 = vpack.c.b16 %v4808, %v4808
      %v4841 = vpack.c.b16 %v4809, %v4809
      %v4842 = vpack.c.b16 %v4810, %v4810
      %v4843 = vpack.c.b16 %v4811, %v4811
      %v4844 = vpack.c.b16 %v4812, %v4812
      %v4845 = vpack.c.b16 %v4813, %v4813
      %v4846 = vpack.c.b16 %v4814, %v4814
      %v4847 = vpack.c.b16 %v4815, %v4815
      %v4848 = vpack.c.b16 %v4816, %v4816
      %v4849 = vpack.c.b16 %v4817, %v4817
      %v4850 = vpack.c.b16 %v4818, %v4818
      %v4851 = vpack.c.b16 %v4819, %v4819
      %v4852 = vpack.c.b16 %v4820, %v4820
      %v4853 = vpack.c.b16 %v4821, %v4821
      %v4854 = vpack.c.b16 %v4822, %v4822
      %v4855 = vpack.c.b16 %v4823, %v4823
      %4888 = vst [vmem:[%s170] sm:$0xf] %v4824
      %4889 = vst [vmem:[%s170 + $0x4] sm:$0xf] %v4825
      %4890 = vst [vmem:[%s170 + $0x8] sm:$0xf] %v4826
      %4891 = vst [vmem:[%s170 + $0xc] sm:$0xf] %v4827
      %4892 = vst [vmem:[%s170 + $0x10] sm:$0xf] %v4828
      %4893 = vst [vmem:[%s170 + $0x14] sm:$0xf] %v4829
      %4894 = vst [vmem:[%s170 + $0x18] sm:$0xf] %v4830
      %4895 = vst [vmem:[%s170 + $0x1c] sm:$0xf] %v4831
      %4896 = vst [vmem:[%s170 + $0x20] sm:$0xf] %v4832
      %4897 = vst [vmem:[%s170 + $0x24] sm:$0xf] %v4833
      %4898 = vst [vmem:[%s170 + $0x28] sm:$0xf] %v4834
      %4899 = vst [vmem:[%s170 + $0x2c] sm:$0xf] %v4835
      %4900 = vst [vmem:[%s170 + $0x30] sm:$0xf] %v4836
      %4901 = vst [vmem:[%s170 + $0x34] sm:$0xf] %v4837
      %4902 = vst [vmem:[%s170 + $0x38] sm:$0xf] %v4838
      %4903 = vst [vmem:[%s170 + $0x3c] sm:$0xf] %v4839
      %4904 = vst [vmem:[%s170 + $0x40] sm:$0xf] %v4840
      %4905 = vst [vmem:[%s170 + $0x44] sm:$0xf] %v4841
      %4906 = vst [vmem:[%s170 + $0x48] sm:$0xf] %v4842
      %4907 = vst [vmem:[%s170 + $0x4c] sm:$0xf] %v4843
      %4908 = vst [vmem:[%s170 + $0x50] sm:$0xf] %v4844
      %4909 = vst [vmem:[%s170 + $0x54] sm:$0xf] %v4845
      %4910 = vst [vmem:[%s170 + $0x58] sm:$0xf] %v4846
      %4911 = vst [vmem:[%s170 + $0x5c] sm:$0xf] %v4847
      %4912 = vst [vmem:[%s170 + $0x60] sm:$0xf] %v4848
      %4913 = vst [vmem:[%s170 + $0x64] sm:$0xf] %v4849
      %4914 = vst [vmem:[%s170 + $0x68] sm:$0xf] %v4850
      %4915 = vst [vmem:[%s170 + $0x6c] sm:$0xf] %v4851
      %4916 = vst [vmem:[%s170 + $0x70] sm:$0xf] %v4852
      %4917 = vst [vmem:[%s170 + $0x74] sm:$0xf] %v4853
      %4918 = vst [vmem:[%s170 + $0x78] sm:$0xf] %v4854
      %4919 = vst [vmem:[%s170 + $0x7c] sm:$0xf] %v4855
      %p4920 = scmp.lt.s32.totalorder %s14, 1
      %s4921 = scalar_select %p4920, %s14, 1
      %s4922 = smul.addr %s4921, 32
      %s4923 = smul.addr %s4922, 4
      %s4924 = scalar_lea.vmem %s3, %s4923
      // Predicated region
      $region33: #{basic_block_nchw.2} parent=31 // pred_check
        %p4925 = pneg %p100
      $region34: #{basic_block_nchw.2} parent=31 // pred_check_branch
        %4927 = sbr.rel (%p4925) target = $region36
      $region35: #{basic_block_nchw.2} parent=31 // pred_region
        _
      $region36: #{basic_block_nchw.2} parent=31 // pred_fallthru
        _
    $region32: #{basic_block_nchw.2} parent=5 // pred_fallthru
      _
    %p4928 = scmp.le.s32.totalorder 2, %s9
    // Predicated region
    $region37: #{basic_block_nchw.2} parent=5 // pred_check
      %p4929 = pneg %p4928
    $region38: #{basic_block_nchw.2} parent=5 // pred_check_branch
      %4931 = sbr.rel (%p4929) target = $region40
    $region39: #{basic_block_nchw.2} parent=5 // pred_region
      %s4932 = ssub.s32 %s9, 2
      // Predicated region
      $region41: #{basic_block_nchw.2} parent=39 // pred_check
        %p4933 = pneg %p106
      $region42: #{basic_block_nchw.2} parent=39 // pred_check_branch
        %4935 = sbr.rel (%p4933) target = $region44
      $region43: #{basic_block_nchw.2} parent=39 // pred_region
        %p4936 = scmp.lt.s32.totalorder %s15, 1
        %s4937 = scalar_select %p4936, %s15, 1
        %s4938 = smul.addr %s4937, 32
        %s4939 = smul.addr %s4938, 4
        %s4940 = scalar_lea.vmem %s3, %s4939
      $region44: #{basic_block_nchw.2} parent=39 // pred_fallthru
        _
    $region40: #{basic_block_nchw.2} parent=5 // pred_fallthru
      _
  $region6: #{basic_block_nchw.2} parent=0 // loop_footer
    %s13 = sadd.s32 1, %s9
  $region7: #{basic_block_nchw.2} parent=0 // loop_footer_branch
    %8 = sbr.rel target = $region3
  $region8: #{basic_block_nchw.2} parent=0 // loop_exit
    _

// kernel: basic_block_nchw.3
$region0: #{basic_block_nchw.3}
  #allocation0 [shape = 'u32[]', space=smem, size = 0x4, offset = 0x4, fixed_abs, tag = 'smem constant byte address 0x4 - core index']
  #allocation1 [shape = 'u32[144,128]{1,0:T(1,128)}', space=vmem, size = 0x12000, scoped, tag = 'internal scratch']
  %s0 = inlined_call_operand.vmem [shape: bf16[2,18,18,128], index: 0, kind: input, shape index: {}]
  %s1 = inlined_call_operand.vmem [shape: bf16[9,128,128], index: 1, kind: input, shape index: {}]
  %s2 = inlined_call_operand.vmem [shape: f32[1,128], index: 2, kind: input, shape index: {}]
  %s3 = inlined_call_operand.vmem [shape: bf16[2,256,128], index: 3, kind: input, shape index: {}]
  %s4 = inlined_call_operand.vmem [shape: bf16[128,128], index: 4, kind: input, shape index: {}]
  %s5 = inlined_call_operand.vmem [shape: f32[1,128], index: 5, kind: input, shape index: {}]
  %s6 = inlined_call_operand.vmem [shape: f32[2,256,128], index: 6, kind: output, shape index: {}]
  %s7 = sld [smem:[#allocation0]]
  $region57: #{basic_block_nchw.3} parent=0
    _
  %s9 = ssub.s32 1, %s7
  %s10 = scalar_select 0, %s9, %s7
  loop: start=0, step=1, limit=4
  $region2: #{basic_block_nchw.3} parent=0 // loop_pre_header
    _
  $region3: #{basic_block_nchw.3} parent=0 // loop_header
    %s12 = sphi 0, %s16
    %p13 = scmp.ge.s32.totalorder %s12, 4
    %s22 = sphi 0, %s24
    %s25 = sphi 0, %s22
    %s26 = sphi 0, %s25
    %s42 = sphi 0, %s26
    %s46 = sphi 0, %s46
    %s48 = sphi 0, %s46
    %s49 = sphi 0, %s48
    %s63 = sphi 0, %s49
    %s67 = sphi 0, %s67
    %s69 = sphi 0, %s67
    %s70 = sphi 0, %s69
    %s84 = sphi 0, %s70
    %s90 = sphi 0, %s92
    %s93 = sphi 0, %s90
    %s94 = sphi 0, %s93
    %s110 = sphi 0, %s94
    %s114 = sphi 0, %s114
    %s116 = sphi 0, %s114
    %s117 = sphi 0, %s116
    %s131 = sphi 0, %s117
    %s135 = sphi 0, %s135
    %s137 = sphi 0, %s135
    %s138 = sphi 0, %s137
    %s152 = sphi 0, %s138
    %s158 = sphi 0, %s160
    %s161 = sphi 0, %s158
    %s162 = sphi 0, %s161
    %s178 = sphi 0, %s162
  $region4: #{basic_block_nchw.3} parent=0 // loop_header_branch
    %15 = sbr.rel (%p13) target = $region8
  $region5: #{basic_block_nchw.3} parent=0 // loop_body
    %s17 = ssub.s32 %s12, 1
    %s18 = ssub.s32 %s12, 2
    %s19 = sadd.s32 %s12, 1
    %s20 = ssub.s32 %s12, %s19
    %p21 = scmp.eq.s32.totalorder %s20, 0
    %s23 = sadd.s32 %s22, 1
    %s24 = scalar_select %p21, %s22, %s23
    %p27 = pneg %p21
    %p28 = scmp.eq.s32.totalorder %s12, 1
    %p29 = por %p27, %p28
    %p30 = scmp.ne.s32.totalorder %s22, %s25
    %p31 = scmp.eq.s32.totalorder %s12, 0
    %p32 = por %p30, %p31
    %p33 = scmp.ne.s32.totalorder %s22, %s25
    %p34 = scmp.eq.s32.totalorder %s17, 1
    %p35 = por %p33, %p34
    %p36 = scmp.ne.s32.totalorder %s25, %s26
    %p37 = scmp.eq.s32.totalorder %s17, 0
    %p38 = por %p36, %p37
    %p39 = scmp.ne.s32.totalorder %s25, %s26
    %p40 = scmp.eq.s32.totalorder %s18, 1
    %p41 = por %p39, %p40
    %p43 = scmp.ne.s32.totalorder %s26, %s42
    %p44 = scmp.eq.s32.totalorder %s18, 0
    %p45 = por %p43, %p44
    %s47 = sadd.s32 %s46, 1
    %p50 = scmp.eq.s32.totalorder %s12, 1
    %p51 = scmp.ne.s32.totalorder %s46, %s48
    %p52 = scmp.eq.s32.totalorder %s12, 0
    %p53 = por %p51, %p52
    %p54 = scmp.ne.s32.totalorder %s46, %s48
    %p55 = scmp.eq.s32.totalorder %s17, 1
    %p56 = por %p54, %p55
    %p57 = scmp.ne.s32.totalorder %s48, %s49
    %p58 = scmp.eq.s32.totalorder %s17, 0
    %p59 = por %p57, %p58
    %p60 = scmp.ne.s32.totalorder %s48, %s49
    %p61 = scmp.eq.s32.totalorder %s18, 1
    %p62 = por %p60, %p61
    %p64 = scmp.ne.s32.totalorder %s49, %s63
    %p65 = scmp.eq.s32.totalorder %s18, 0
    %p66 = por %p64, %p65
    %s68 = sadd.s32 %s67, 1
    %p71 = scmp.eq.s32.totalorder %s12, 1
    %p72 = scmp.ne.s32.totalorder %s67, %s69
    %p73 = scmp.eq.s32.totalorder %s12, 0
    %p74 = por %p72, %p73
    %p75 = scmp.ne.s32.totalorder %s67, %s69
    %p76 = scmp.eq.s32.totalorder %s17, 1
    %p77 = por %p75, %p76
    %p78 = scmp.ne.s32.totalorder %s69, %s70
    %p79 = scmp.eq.s32.totalorder %s17, 0
    %p80 = por %p78, %p79
    %p81 = scmp.ne.s32.totalorder %s69, %s70
    %p82 = scmp.eq.s32.totalorder %s18, 1
    %p83 = por %p81, %p82
    %p85 = scmp.ne.s32.totalorder %s70, %s84
    %p86 = scmp.eq.s32.totalorder %s18, 0
    %p87 = por %p85, %p86
    %s88 = ssub.s32 %s12, %s19
    %p89 = scmp.eq.s32.totalorder %s88, 0
    %s91 = sadd.s32 %s90, 1
    %s92 = scalar_select %p89, %s90, %s91
    %p95 = pneg %p89
    %p96 = scmp.eq.s32.totalorder %s12, 1
    %p97 = por %p95, %p96
    %p98 = scmp.ne.s32.totalorder %s90, %s93
    %p99 = scmp.eq.s32.totalorder %s12, 0
    %p100 = por %p98, %p99
    %p101 = scmp.ne.s32.totalorder %s90, %s93
    %p102 = scmp.eq.s32.totalorder %s17, 1
    %p103 = por %p101, %p102
    %p104 = scmp.ne.s32.totalorder %s93, %s94
    %p105 = scmp.eq.s32.totalorder %s17, 0
    %p106 = por %p104, %p105
    %p107 = scmp.ne.s32.totalorder %s93, %s94
    %p108 = scmp.eq.s32.totalorder %s18, 1
    %p109 = por %p107, %p108
    %p111 = scmp.ne.s32.totalorder %s94, %s110
    %p112 = scmp.eq.s32.totalorder %s18, 0
    %p113 = por %p111, %p112
    %s115 = sadd.s32 %s114, 1
    %p118 = scmp.eq.s32.totalorder %s12, 1
    %p119 = scmp.ne.s32.totalorder %s114, %s116
    %p120 = scmp.eq.s32.totalorder %s12, 0
    %p121 = por %p119, %p120
    %p122 = scmp.ne.s32.totalorder %s114, %s116
    %p123 = scmp.eq.s32.totalorder %s17, 1
    %p124 = por %p122, %p123
    %p125 = scmp.ne.s32.totalorder %s116, %s117
    %p126 = scmp.eq.s32.totalorder %s17, 0
    %p127 = por %p125, %p126
    %p128 = scmp.ne.s32.totalorder %s116, %s117
    %p129 = scmp.eq.s32.totalorder %s18, 1
    %p130 = por %p128, %p129
    %p132 = scmp.ne.s32.totalorder %s117, %s131
    %p133 = scmp.eq.s32.totalorder %s18, 0
    %p134 = por %p132, %p133
    %s136 = sadd.s32 %s135, 1
    %p139 = scmp.eq.s32.totalorder %s12, 1
    %p140 = scmp.ne.s32.totalorder %s135, %s137
    %p141 = scmp.eq.s32.totalorder %s12, 0
    %p142 = por %p140, %p141
    %p143 = scmp.ne.s32.totalorder %s135, %s137
    %p144 = scmp.eq.s32.totalorder %s17, 1
    %p145 = por %p143, %p144
    %p146 = scmp.ne.s32.totalorder %s137, %s138
    %p147 = scmp.eq.s32.totalorder %s17, 0
    %p148 = por %p146, %p147
    %p149 = scmp.ne.s32.totalorder %s137, %s138
    %p150 = scmp.eq.s32.totalorder %s18, 1
    %p151 = por %p149, %p150
    %p153 = scmp.ne.s32.totalorder %s138, %s152
    %p154 = scmp.eq.s32.totalorder %s18, 0
    %p155 = por %p153, %p154
    %s156 = ssub.s32 %s12, %s19
    %p157 = scmp.eq.s32.totalorder %s156, 0
    %s159 = sadd.s32 %s158, 1
    %s160 = scalar_select %p157, %s158, %s159
    %p163 = pneg %p157
    %p164 = scmp.eq.s32.totalorder %s12, 1
    %p165 = por %p163, %p164
    %p166 = scmp.ne.s32.totalorder %s158, %s161
    %p167 = scmp.eq.s32.totalorder %s12, 0
    %p168 = por %p166, %p167
    %p169 = scmp.ne.s32.totalorder %s158, %s161
    %p170 = scmp.eq.s32.totalorder %s17, 1
    %p171 = por %p169, %p170
    %p172 = scmp.ne.s32.totalorder %s161, %s162
    %p173 = scmp.eq.s32.totalorder %s17, 0
    %p174 = por %p172, %p173
    %p175 = scmp.ne.s32.totalorder %s161, %s162
    %p176 = scmp.eq.s32.totalorder %s18, 1
    %p177 = por %p175, %p176
    %p179 = scmp.ne.s32.totalorder %s162, %s178
    %p180 = scmp.eq.s32.totalorder %s18, 0
    %p181 = por %p179, %p180
    %p182 = scmp.le.s32.totalorder 1, %s12
    %p183 = scmp.lt.s32.totalorder %s12, 3
    %p184 = pnand %p182, %p183
    %p185 = pneg %p184
    // Predicated region
    $region9: #{basic_block_nchw.3} parent=5 // pred_check
      _
    $region10: #{basic_block_nchw.3} parent=5 // pred_check_branch
      %187 = sbr.rel (%p184) target = $region12
    $region11: #{basic_block_nchw.3} parent=5 // pred_region
      %s188 = ssub.s32 %s12, 1
      // Predicated region
      $region13: #{basic_block_nchw.3} parent=11 // pred_check
        %p189 = pneg %p59
      $region14: #{basic_block_nchw.3} parent=11 // pred_check_branch
        %191 = sbr.rel (%p189) target = $region16
      $region15: #{basic_block_nchw.3} parent=11 // pred_region
        _
      $region16: #{basic_block_nchw.3} parent=11 // pred_fallthru
        _
      // Predicated region
      $region17: #{basic_block_nchw.3} parent=11 // pred_check
        %p192 = pneg %p80
      $region18: #{basic_block_nchw.3} parent=11 // pred_check_branch
        %194 = sbr.rel (%p192) target = $region20
      $region19: #{basic_block_nchw.3} parent=11 // pred_region
        _
      $region20: #{basic_block_nchw.3} parent=11 // pred_fallthru
        _
      // Predicated region
      $region21: #{basic_block_nchw.3} parent=11 // pred_check
        %p195 = pneg %p127
      $region22: #{basic_block_nchw.3} parent=11 // pred_check_branch
        %197 = sbr.rel (%p195) target = $region24
      $region23: #{basic_block_nchw.3} parent=11 // pred_region
        _
      $region24: #{basic_block_nchw.3} parent=11 // pred_fallthru
        _
      // Predicated region
      $region25: #{basic_block_nchw.3} parent=11 // pred_check
        %p198 = pneg %p148
      $region26: #{basic_block_nchw.3} parent=11 // pred_check_branch
        %200 = sbr.rel (%p198) target = $region28
      $region27: #{basic_block_nchw.3} parent=11 // pred_region
        _
      $region28: #{basic_block_nchw.3} parent=11 // pred_fallthru
        _
    $region12: #{basic_block_nchw.3} parent=5 // pred_fallthru
      _
    %p201 = scmp.lt.s32.totalorder %s12, 2
    // Predicated region
    $region29: #{basic_block_nchw.3} parent=5 // pred_check
      %p202 = pneg %p201
    $region30: #{basic_block_nchw.3} parent=5 // pred_check_branch
      %204 = sbr.rel (%p202) target = $region32
    $region31: #{basic_block_nchw.3} parent=5 // pred_region
      // Predicated region
      $region33: #{basic_block_nchw.3} parent=31 // pred_check
        %p205 = pneg %p32
      $region34: #{basic_block_nchw.3} parent=31 // pred_check_branch
        %207 = sbr.rel (%p205) target = $region36
      $region35: #{basic_block_nchw.3} parent=31 // pred_region
        %p208 = scmp.lt.s32.totalorder %s12, 1
        %s209 = scalar_select %p208, %s12, 1
        %s210 = smul.addr %s209, 54
        %s211 = smul.addr %s210, 4
        %s212 = scalar_lea.vmem %s0, %s211
      $region36: #{basic_block_nchw.3} parent=31 // pred_fallthru
        _
      // Predicated region
      $region37: #{basic_block_nchw.3} parent=31 // pred_check
        %p213 = pneg %p100
      $region38: #{basic_block_nchw.3} parent=31 // pred_check_branch
        %215 = sbr.rel (%p213) target = $region40
      $region39: #{basic_block_nchw.3} parent=31 // pred_region
        %p216 = scmp.lt.s32.totalorder %s12, 1
        %s217 = scalar_select %p216, %s12, 1
        %s218 = smul.addr %s217, 32
        %s219 = smul.addr %s218, 4
        %s220 = scalar_lea.vmem %s3, %s219
      $region40: #{basic_block_nchw.3} parent=31 // pred_fallthru
        _
    $region32: #{basic_block_nchw.3} parent=5 // pred_fallthru
      _
    %p221 = scmp.le.s32.totalorder 1, %s12
    %p222 = scmp.lt.s32.totalorder %s12, 3
    %p223 = pnand %p221, %p222
    %p224 = pneg %p223
    // Predicated region
    $region41: #{basic_block_nchw.3} parent=5 // pred_check
      _
    $region42: #{basic_block_nchw.3} parent=5 // pred_check_branch
      %226 = sbr.rel (%p223) target = $region44
    $region43: #{basic_block_nchw.3} parent=5 // pred_region
      %s227 = ssub.s32 %s12, 1
      %p228 = scmp.lt.s32.totalorder %s17, 1
      %s229 = scalar_select %p228, %s17, 1
      %s230 = smul.addr %s229, 54
      %s231 = smul.addr %s230, 4
      %s232 = scalar_lea.vmem %s0, %s231
      %p233 = pneg %p38
      %p234 = pneg %p35
      %p235 = pneg %p59
      %p236 = pneg %p56
      %p237 = pneg %p80
      %p238 = pneg %p77
      %p239 = scmp.lt.s32.totalorder %s17, 1
      %s240 = scalar_select %p239, %s17, 1
      %s241 = smul.addr %s240, 32
      %s242 = smul.addr %s241, 4
      %s243 = scalar_lea.vmem %s3, %s242
      %p244 = pneg %p106
      %p245 = pneg %p103
      %p246 = pneg %p127
      %p247 = pneg %p124
      %p248 = pneg %p148
      %p249 = pneg %p145
      %p250 = pneg %p174
      %p251 = pneg %p171
      %p252 = scmp.lt.s32.totalorder %s17, 1
      %s253 = scalar_select %p252, %s17, 1
      %s254 = smul.addr %s253, 32
      %s255 = smul.addr %s254, 8
      %s256 = scalar_lea.vmem %s6, %s255
      %p257 = scmp.lt.s32.totalorder %s17, 1
      %s258 = scalar_select %p257, %s17, 1
      %s259 = smul.addr %s258, 54
      %s260 = smul.addr %s259, 4
      %s261 = scalar_lea.vmem %s0, %s260
      %p262 = scmp.lt.s32.totalorder %s17, 1
      %s263 = scalar_select %p262, %s17, 1
      %s264 = smul.addr %s263, 32
      %s265 = smul.addr %s264, 4
      %s266 = scalar_lea.vmem %s3, %s265
      %p267 = scmp.lt.s32.totalorder %s17, 1
      %s268 = scalar_select %p267, %s17, 1
      %s269 = smul.addr %s268, 32
      %s270 = smul.addr %s269, 8
      %s271 = scalar_lea.vmem %s6, %s270
      %v273 = vld [vmem:[%s261] sm:$0xf]
      %v274 = vld [vmem:[%s261 + $0x4] sm:$0xf]
      %v275 = vld [vmem:[%s261 + $0xc] sm:$0xf]
      %v276 = vld [vmem:[%s261 + $0x10] sm:$0xf]
      %v277 = vld [vmem:[%s261 + $0x18] sm:$0xf]
      %v278 = vld [vmem:[%s261 + $0x1c] sm:$0xf]
      %v279 = vld [vmem:[%s261 + $0x24] sm:$0xf]
      %v280 = vld [vmem:[%s261 + $0x28] sm:$0xf]
      %v281 = vld [vmem:[%s261 + $0x30] sm:$0xf]
      %v282 = vld [vmem:[%s261 + $0x34] sm:$0xf]
      %v283 = vld [vmem:[%s261 + $0x3c] sm:$0xf]
      %v284 = vld [vmem:[%s261 + $0x40] sm:$0xf]
      %v285 = vld [vmem:[%s261 + $0x48] sm:$0xf]
      %v286 = vld [vmem:[%s261 + $0x4c] sm:$0xf]
      %v287 = vld [vmem:[%s261 + $0x54] sm:$0xf]
      %v288 = vld [vmem:[%s261 + $0x58] sm:$0xf]
      %v289 = vld [vmem:[%s261 + $0x60] sm:$0xf]
      %v290 = vld [vmem:[%s261 + $0x64] sm:$0xf]
      %v291 = vld [vmem:[%s261 + $0x6c] sm:$0xf]
      %v292 = vld [vmem:[%s261 + $0x70] sm:$0xf]
      %v293 = vld [vmem:[%s261 + $0x78] sm:$0xf]
      %v294 = vld [vmem:[%s261 + $0x7c] sm:$0xf]
      %v295 = vld [vmem:[%s261 + $0x84] sm:$0xf]
      %v296 = vld [vmem:[%s261 + $0x88] sm:$0xf]
      %v297 = vld [vmem:[%s261 + $0x90] sm:$0xf]
      %v298 = vld [vmem:[%s261 + $0x94] sm:$0xf]
      %v299 = vld [vmem:[%s261 + $0x9c] sm:$0xf]
      %v300 = vld [vmem:[%s261 + $0xa0] sm:$0xf]
      %v301 = vld [vmem:[%s261 + $0xa8] sm:$0xf]
      %v302 = vld [vmem:[%s261 + $0xac] sm:$0xf]
      %v303 = vld [vmem:[%s261 + $0xb4] sm:$0xf]
      %v304 = vld [vmem:[%s261 + $0xb8] sm:$0xf]
      %v305 = vld [vmem:[%s1] sm:$0xf]
      %v306 = vld [vmem:[%s1 + $0x4] sm:$0xf]
      %v307 = vld [vmem:[%s1 + $0x8] sm:$0xf]
      %v308 = vld [vmem:[%s1 + $0xc] sm:$0xf]
      %v309 = vld [vmem:[%s1 + $0x10] sm:$0xf]
      %v310 = vld [vmem:[%s1 + $0x14] sm:$0xf]
      %v311 = vld [vmem:[%s1 + $0x18] sm:$0xf]
      %v312 = vld [vmem:[%s1 + $0x1c] sm:$0xf]
      %v313 = vld [vmem:[%s1 + $0x20] sm:$0xf]
      %v314 = vld [vmem:[%s1 + $0x24] sm:$0xf]
      %v315 = vld [vmem:[%s1 + $0x28] sm:$0xf]
      %v316 = vld [vmem:[%s1 + $0x2c] sm:$0xf]
      %v317 = vld [vmem:[%s1 + $0x30] sm:$0xf]
      %v318 = vld [vmem:[%s1 + $0x34] sm:$0xf]
      %v319 = vld [vmem:[%s1 + $0x38] sm:$0xf]
      %v320 = vld [vmem:[%s1 + $0x3c] sm:$0xf]
      %v321 = vld [vmem:[%s261 + $0x8] sm:$0x1]
      %v322 = vld [vmem:[%s261 + $0x14] sm:$0x1]
      %v323 = vld [vmem:[%s261 + $0x20] sm:$0x1]
      %v324 = vld [vmem:[%s261 + $0x2c] sm:$0x1]
      %v325 = vld [vmem:[%s261 + $0x38] sm:$0x1]
      %v326 = vld [vmem:[%s261 + $0x44] sm:$0x1]
      %v327 = vld [vmem:[%s261 + $0x50] sm:$0x1]
      %v328 = vld [vmem:[%s261 + $0x5c] sm:$0x1]
      %v329 = vld [vmem:[%s261 + $0x68] sm:$0x1]
      %v330 = vld [vmem:[%s261 + $0x74] sm:$0x1]
      %v331 = vld [vmem:[%s261 + $0x80] sm:$0x1]
      %v332 = vld [vmem:[%s261 + $0x8c] sm:$0x1]
      %v333 = vld [vmem:[%s261 + $0x98] sm:$0x1]
      %v334 = vld [vmem:[%s261 + $0xa4] sm:$0x1]
      %v335 = vld [vmem:[%s261 + $0xb0] sm:$0x1]
      %v336 = vld [vmem:[%s261 + $0xbc] sm:$0x1]
      %vm337 = vsmask.f32 3328
      %vm338 = vsmask.f32 7440
      %vm339 = vmor %vm337, %vm338
      %v341 = vshrl.u32 %v273, 16
      %v343 = vrot.slane %v341, 4
      %v344 = vshll.u32 %v273, 16
      %v346 = vrot.slane %v344, 5
      %v347 = vor.u32 %v343, %v346
      %v348 = vrot.slane %v347, 4
      %v350 = vshll.u32 %v274, 16
      %v352 = vrot.slane %v350, 5
      %v353 = vsel %vm339, %v348, %v352
      %v354 = vshrl.u32 %v274, 16
      %v356 = vrot.slane %v354, 4
      %v357 = vor.u32 %v356, %v352
      %v358 = vrot.slane %v357, 4
      %v360 = vshll.u32 %v321, 16
      %v362 = vrot.slane %v360, 5
      %v363 = vsel %vm339, %v358, %v362
      %v365 = vshrl.u32 %v275, 16
      %v367 = vrot.slane %v365, 4
      %v368 = vshll.u32 %v275, 16
      %v370 = vrot.slane %v368, 5
      %v371 = vor.u32 %v367, %v370
      %v372 = vrot.slane %v371, 4
      %v374 = vshll.u32 %v276, 16
      %v376 = vrot.slane %v374, 5
      %v377 = vsel %vm339, %v372, %v376
      %v378 = vshrl.u32 %v276, 16
      %v380 = vrot.slane %v378, 4
      %v381 = vor.u32 %v380, %v376
      %v382 = vrot.slane %v381, 4
      %v384 = vshll.u32 %v322, 16
      %v386 = vrot.slane %v384, 5
      %v387 = vsel %vm339, %v382, %v386
      %v389 = vshrl.u32 %v277, 16
      %v391 = vrot.slane %v389, 4
      %v392 = vshll.u32 %v277, 16
      %v394 = vrot.slane %v392, 5
      %v395 = vor.u32 %v391, %v394
      %v396 = vrot.slane %v395, 4
      %v398 = vshll.u32 %v278, 16
      %v400 = vrot.slane %v398, 5
      %v401 = vsel %vm339, %v396, %v400
      %v402 = vshrl.u32 %v278, 16
      %v404 = vrot.slane %v402, 4
      %v405 = vor.u32 %v404, %v400
      %v406 = vrot.slane %v405, 4
      %v408 = vshll.u32 %v323, 16
      %v410 = vrot.slane %v408, 5
      %v411 = vsel %vm339, %v406, %v410
      %v413 = vshrl.u32 %v279, 16
      %v415 = vrot.slane %v413, 4
      %v416 = vshll.u32 %v279, 16
      %v418 = vrot.slane %v416, 5
      %v419 = vor.u32 %v415, %v418
      %v420 = vrot.slane %v419, 4
      %v422 = vshll.u32 %v280, 16
      %v424 = vrot.slane %v422, 5
      %v425 = vsel %vm339, %v420, %v424
      %v426 = vshrl.u32 %v280, 16
      %v428 = vrot.slane %v426, 4
      %v429 = vor.u32 %v428, %v424
      %v430 = vrot.slane %v429, 4
      %v432 = vshll.u32 %v324, 16
      %v434 = vrot.slane %v432, 5
      %v435 = vsel %vm339, %v430, %v434
      %v437 = vshrl.u32 %v281, 16
      %v439 = vrot.slane %v437, 4
      %v440 = vshll.u32 %v281, 16
      %v442 = vrot.slane %v440, 5
      %v443 = vor.u32 %v439, %v442
      %v444 = vrot.slane %v443, 4
      %v446 = vshll.u32 %v282, 16
      %v448 = vrot.slane %v446, 5
      %v449 = vsel %vm339, %v444, %v448
      %v450 = vshrl.u32 %v282, 16
      %v452 = vrot.slane %v450, 4
      %v453 = vor.u32 %v452, %v448
      %v454 = vrot.slane %v453, 4
      %v456 = vshll.u32 %v325, 16
      %v458 = vrot.slane %v456, 5
      %v459 = vsel %vm339, %v454, %v458
      %v461 = vshrl.u32 %v283, 16
      %v463 = vrot.slane %v461, 4
      %v464 = vshll.u32 %v283, 16
      %v466 = vrot.slane %v464, 5
      %v467 = vor.u32 %v463, %v466
      %v468 = vrot.slane %v467, 4
      %v470 = vshll.u32 %v284, 16
      %v472 = vrot.slane %v470, 5
      %v473 = vsel %vm339, %v468, %v472
      %v474 = vshrl.u32 %v284, 16
      %v476 = vrot.slane %v474, 4
      %v477 = vor.u32 %v476, %v472
      %v478 = vrot.slane %v477, 4
      %v480 = vshll.u32 %v326, 16
      %v482 = vrot.slane %v480, 5
      %v483 = vsel %vm339, %v478, %v482
      %v485 = vshrl.u32 %v285, 16
      %v487 = vrot.slane %v485, 4
      %v488 = vshll.u32 %v285, 16
      %v490 = vrot.slane %v488, 5
      %v491 = vor.u32 %v487, %v490
      %v492 = vrot.slane %v491, 4
      %v494 = vshll.u32 %v286, 16
      %v496 = vrot.slane %v494, 5
      %v497 = vsel %vm339, %v492, %v496
      %v498 = vshrl.u32 %v286, 16
      %v500 = vrot.slane %v498, 4
      %v501 = vor.u32 %v500, %v496
      %v502 = vrot.slane %v501, 4
      %v504 = vshll.u32 %v327, 16
      %v506 = vrot.slane %v504, 5
      %v507 = vsel %vm339, %v502, %v506
      %v509 = vshrl.u32 %v287, 16
      %v511 = vrot.slane %v509, 4
      %v512 = vshll.u32 %v287, 16
      %v514 = vrot.slane %v512, 5
      %v515 = vor.u32 %v511, %v514
      %v516 = vrot.slane %v515, 4
      %v518 = vshll.u32 %v288, 16
      %v520 = vrot.slane %v518, 5
      %v521 = vsel %vm339, %v516, %v520
      %v522 = vshrl.u32 %v288, 16
      %v524 = vrot.slane %v522, 4
      %v525 = vor.u32 %v524, %v520
      %v526 = vrot.slane %v525, 4
      %v528 = vshll.u32 %v328, 16
      %v530 = vrot.slane %v528, 5
      %v531 = vsel %vm339, %v526, %v530
      %v533 = vshrl.u32 %v289, 16
      %v535 = vrot.slane %v533, 4
      %v536 = vshll.u32 %v289, 16
      %v538 = vrot.slane %v536, 5
      %v539 = vor.u32 %v535, %v538
      %v540 = vrot.slane %v539, 4
      %v542 = vshll.u32 %v290, 16
      %v544 = vrot.slane %v542, 5
      %v545 = vsel %vm339, %v540, %v544
      %v546 = vshrl.u32 %v290, 16
      %v548 = vrot.slane %v546, 4
      %v549 = vor.u32 %v548, %v544
      %v550 = vrot.slane %v549, 4
      %v552 = vshll.u32 %v329, 16
      %v554 = vrot.slane %v552, 5
      %v555 = vsel %vm339, %v550, %v554
      %v557 = vshrl.u32 %v291, 16
      %v559 = vrot.slane %v557, 4
      %v560 = vshll.u32 %v291, 16
      %v562 = vrot.slane %v560, 5
      %v563 = vor.u32 %v559, %v562
      %v564 = vrot.slane %v563, 4
      %v566 = vshll.u32 %v292, 16
      %v568 = vrot.slane %v566, 5
      %v569 = vsel %vm339, %v564, %v568
      %v570 = vshrl.u32 %v292, 16
      %v572 = vrot.slane %v570, 4
      %v573 = vor.u32 %v572, %v568
      %v574 = vrot.slane %v573, 4
      %v576 = vshll.u32 %v330, 16
      %v578 = vrot.slane %v576, 5
      %v579 = vsel %vm339, %v574, %v578
      %v581 = vshrl.u32 %v293, 16
      %v583 = vrot.slane %v581, 4
      %v584 = vshll.u32 %v293, 16
      %v586 = vrot.slane %v584, 5
      %v587 = vor.u32 %v583, %v586
      %v588 = vrot.slane %v587, 4
      %v590 = vshll.u32 %v294, 16
      %v592 = vrot.slane %v590, 5
      %v593 = vsel %vm339, %v588, %v592
      %v594 = vshrl.u32 %v294, 16
      %v596 = vrot.slane %v594, 4
      %v597 = vor.u32 %v596, %v592
      %v598 = vrot.slane %v597, 4
      %v600 = vshll.u32 %v331, 16
      %v602 = vrot.slane %v600, 5
      %v603 = vsel %vm339, %v598, %v602
      %v605 = vshrl.u32 %v295, 16
      %v607 = vrot.slane %v605, 4
      %v608 = vshll.u32 %v295, 16
      %v610 = vrot.slane %v608, 5
      %v611 = vor.u32 %v607, %v610
      %v612 = vrot.slane %v611, 4
      %v614 = vshll.u32 %v296, 16
      %v616 = vrot.slane %v614, 5
      %v617 = vsel %vm339, %v612, %v616
      %v618 = vshrl.u32 %v296, 16
      %v620 = vrot.slane %v618, 4
      %v621 = vor.u32 %v620, %v616
      %v622 = vrot.slane %v621, 4
      %v624 = vshll.u32 %v332, 16
      %v626 = vrot.slane %v624, 5
      %v627 = vsel %vm339, %v622, %v626
      %v629 = vshrl.u32 %v297, 16
      %v631 = vrot.slane %v629, 4
      %v632 = vshll.u32 %v297, 16
      %v634 = vrot.slane %v632, 5
      %v635 = vor.u32 %v631, %v634
      %v636 = vrot.slane %v635, 4
      %v638 = vshll.u32 %v298, 16
      %v640 = vrot.slane %v638, 5
      %v641 = vsel %vm339, %v636, %v640
      %v642 = vshrl.u32 %v298, 16
      %v644 = vrot.slane %v642, 4
      %v645 = vor.u32 %v644, %v640
      %v646 = vrot.slane %v645, 4
      %v648 = vshll.u32 %v333, 16
      %v650 = vrot.slane %v648, 5
      %v651 = vsel %vm339, %v646, %v650
      %v653 = vshrl.u32 %v299, 16
      %v655 = vrot.slane %v653, 4
      %v656 = vshll.u32 %v299, 16
      %v658 = vrot.slane %v656, 5
      %v659 = vor.u32 %v655, %v658
      %v660 = vrot.slane %v659, 4
      %v662 = vshll.u32 %v300, 16
      %v664 = vrot.slane %v662, 5
      %v665 = vsel %vm339, %v660, %v664
      %v666 = vshrl.u32 %v300, 16
      %v668 = vrot.slane %v666, 4
      %v669 = vor.u32 %v668, %v664
      %v670 = vrot.slane %v669, 4
      %v672 = vshll.u32 %v334, 16
      %v674 = vrot.slane %v672, 5
      %v675 = vsel %vm339, %v670, %v674
      %v677 = vshrl.u32 %v301, 16
      %v679 = vrot.slane %v677, 4
      %v680 = vshll.u32 %v301, 16
      %v682 = vrot.slane %v680, 5
      %v683 = vor.u32 %v679, %v682
      %v684 = vrot.slane %v683, 4
      %v686 = vshll.u32 %v302, 16
      %v688 = vrot.slane %v686, 5
      %v689 = vsel %vm339, %v684, %v688
      %v690 = vshrl.u32 %v302, 16
      %v692 = vrot.slane %v690, 4
      %v693 = vor.u32 %v692, %v688
      %v694 = vrot.slane %v693, 4
      %v696 = vshll.u32 %v335, 16
      %v698 = vrot.slane %v696, 5
      %v699 = vsel %vm339, %v694, %v698
      %v701 = vshrl.u32 %v303, 16
      %v703 = vrot.slane %v701, 4
      %v704 = vshll.u32 %v303, 16
      %v706 = vrot.slane %v704, 5
      %v707 = vor.u32 %v703, %v706
      %v708 = vrot.slane %v707, 4
      %v710 = vshll.u32 %v304, 16
      %v712 = vrot.slane %v710, 5
      %v713 = vsel %vm339, %v708, %v712
      %v714 = vshrl.u32 %v304, 16
      %v716 = vrot.slane %v714, 4
      %v717 = vor.u32 %v716, %v712
      %v718 = vrot.slane %v717, 4
      %v720 = vshll.u32 %v336, 16
      %v722 = vrot.slane %v720, 5
      %v723 = vsel %vm339, %v718, %v722
      %s724 = scalar_lea.vmem %s1, 64
      %v725 = vld [vmem:[%s724] sm:$0xf]
      %v726 = vld [vmem:[%s724 + $0x4] sm:$0xf]
      %v727 = vld [vmem:[%s724 + $0x8] sm:$0xf]
      %v728 = vld [vmem:[%s724 + $0xc] sm:$0xf]
      %v729 = vld [vmem:[%s724 + $0x10] sm:$0xf]
      %v730 = vld [vmem:[%s724 + $0x14] sm:$0xf]
      %v731 = vld [vmem:[%s724 + $0x18] sm:$0xf]
      %v732 = vld [vmem:[%s724 + $0x1c] sm:$0xf]
      %v733 = vld [vmem:[%s724 + $0x20] sm:$0xf]
      %v734 = vld [vmem:[%s724 + $0x24] sm:$0xf]
      %v735 = vld [vmem:[%s724 + $0x28] sm:$0xf]
      %v736 = vld [vmem:[%s724 + $0x2c] sm:$0xf]
      %v737 = vld [vmem:[%s724 + $0x30] sm:$0xf]
      %v738 = vld [vmem:[%s724 + $0x34] sm:$0xf]
      %v739 = vld [vmem:[%s724 + $0x38] sm:$0xf]
      %v740 = vld [vmem:[%s724 + $0x3c] sm:$0xf]
      %v741 = vunpack.c.l.b16 %v353
      %v742 = vunpack.c.l.b16 %v363
      %v743 = vunpack.c.l.b16 %v377
      %v744 = vunpack.c.l.b16 %v387
      %v745 = vunpack.c.l.b16 %v401
      %v746 = vunpack.c.l.b16 %v411
      %v747 = vunpack.c.l.b16 %v425
      %v748 = vunpack.c.l.b16 %v435
      %v749 = vunpack.c.l.b16 %v449
      %v750 = vunpack.c.l.b16 %v459
      %v751 = vunpack.c.l.b16 %v473
      %v752 = vunpack.c.l.b16 %v483
      %v753 = vunpack.c.l.b16 %v497
      %v754 = vunpack.c.l.b16 %v507
      %v755 = vunpack.c.l.b16 %v521
      %v756 = vunpack.c.l.b16 %v531
      %v757 = vunpack.c.l.b16 %v545
      %v758 = vunpack.c.l.b16 %v555
      %v759 = vunpack.c.l.b16 %v569
      %v760 = vunpack.c.l.b16 %v579
      %v761 = vunpack.c.l.b16 %v593
      %v762 = vunpack.c.l.b16 %v603
      %v763 = vunpack.c.l.b16 %v617
      %v764 = vunpack.c.l.b16 %v627
      %v765 = vunpack.c.l.b16 %v641
      %v766 = vunpack.c.l.b16 %v651
      %v767 = vunpack.c.l.b16 %v665
      %v768 = vunpack.c.l.b16 %v675
      %v769 = vunpack.c.l.b16 %v689
      %v770 = vunpack.c.l.b16 %v699
      %v771 = vunpack.c.l.b16 %v713
      %v772 = vunpack.c.l.b16 %v723
      %v773 = vpack.c.b16 %v742, %v741
      %v774 = vpack.c.b16 %v744, %v743
      %v775 = vpack.c.b16 %v746, %v745
      %v776 = vpack.c.b16 %v748, %v747
      %v777 = vpack.c.b16 %v750, %v749
      %v778 = vpack.c.b16 %v752, %v751
      %v779 = vpack.c.b16 %v754, %v753
      %v780 = vpack.c.b16 %v756, %v755
      %v781 = vpack.c.b16 %v758, %v757
      %v782 = vpack.c.b16 %v760, %v759
      %v783 = vpack.c.b16 %v762, %v761
      %v784 = vpack.c.b16 %v764, %v763
      %v785 = vpack.c.b16 %v766, %v765
      %v786 = vpack.c.b16 %v768, %v767
      %v787 = vpack.c.b16 %v770, %v769
      %v788 = vpack.c.b16 %v772, %v771
      %v821 = vunpack.c.l.b16 %v725
      %v822 = vunpack.c.l.b16 %v726
      %v823 = vunpack.c.l.b16 %v727
      %v824 = vunpack.c.l.b16 %v728
      %v825 = vunpack.c.l.b16 %v729
      %v826 = vunpack.c.l.b16 %v730
      %v827 = vunpack.c.l.b16 %v731
      %v828 = vunpack.c.l.b16 %v732
      %v829 = vunpack.c.l.b16 %v733
      %v830 = vunpack.c.l.b16 %v734
      %v831 = vunpack.c.l.b16 %v735
      %v832 = vunpack.c.l.b16 %v736
      %v833 = vunpack.c.l.b16 %v737
      %v834 = vunpack.c.l.b16 %v738
      %v835 = vunpack.c.l.b16 %v739
      %v836 = vunpack.c.l.b16 %v740
      %v837 = vpack.c.b16 %v822, %v821
      %v838 = vpack.c.b16 %v824, %v823
      %v839 = vpack.c.b16 %v826, %v825
      %v840 = vpack.c.b16 %v828, %v827
      %v841 = vpack.c.b16 %v830, %v829
      %v842 = vpack.c.b16 %v832, %v831
      %v843 = vpack.c.b16 %v834, %v833
      %v844 = vpack.c.b16 %v836, %v835
      %853 = vmatprep.subr.bf16.mxu0 0
      %854 = vmatpush1.bf16.msra.mxu0 %v844
      %855 = vmatprep.subr.bf16.mxu0 0
      %856 = vmatpush1.bf16.msra.mxu0 %v843
      %857 = vmatprep.subr.bf16.mxu0 0
      %858 = vmatpush1.bf16.msra.mxu0 %v842
      %859 = vmatprep.subr.bf16.mxu0 0
      %860 = vmatpush1.bf16.msra.mxu0 %v841
      %861 = vmatprep.subr.bf16.mxu0 0
      %862 = vmatpush1.bf16.msra.mxu0 %v840
      %863 = vmatprep.subr.bf16.mxu0 0
      %864 = vmatpush1.bf16.msra.mxu0 %v839
      %865 = vmatprep.subr.bf16.mxu0 0
      %866 = vmatpush1.bf16.msra.mxu0 %v838
      %867 = vmatprep.subr.bf16.mxu0 0
      %868 = vmatpush1.bf16.msra.mxu0 %v837
      %869 = vmatprep.subr.bf16.mxu0 0
      %870 = vmatpush2.bf16.msra.mxu0 0
      %871 = vmatprep.subr.bf16.mxu0 0
      %872 = vmatpush2.bf16.msra.mxu0 0
      %873 = vmatprep.subr.bf16.mxu0 0
      %874 = vmatpush2.bf16.msra.mxu0 0
      %875 = vmatprep.subr.bf16.mxu0 0
      %876 = vmatpush2.bf16.msra.mxu0 0
      %877 = vmatprep.subr.bf16.mxu0 0
      %878 = vmatpush2.bf16.msra.mxu0 0
      %879 = vmatprep.subr.bf16.mxu0 0
      %880 = vmatpush2.bf16.msra.mxu0 0
      %881 = vmatprep.subr.bf16.mxu0 0
      %882 = vmatpush2.bf16.msra.mxu0 0
      %883 = vmatprep.subr.bf16.mxu0 0
      %884 = vmatpush2.bf16.msra.mxu0 0
      %885 = vmatprep.mubr.bf16.mxu0 0
      %886 = vmatmul.mubr.bf16.gmra.mxu0 %v773
      %v887 = vpop.f32.mrf.mxu0
      %v888 = vadd.f32 0.0, %v887
      %v889 = vpop.f32.mrf.mxu0
      %v890 = vpop.f32.mrf.mxu0
      %v891 = vadd.f32 0.0, %v890
      %v892 = vpop.f32.mrf.mxu0
      %893 = vmatprep.mubr.bf16.mxu0 0
      %894 = vmatmul.mubr.bf16.gmra.mxu0 %v774
      %v895 = vpop.f32.mrf.mxu0
      %v896 = vadd.f32 0.0, %v895
      %v897 = vpop.f32.mrf.mxu0
      %v898 = vpop.f32.mrf.mxu0
      %v899 = vadd.f32 0.0, %v898
      %v900 = vpop.f32.mrf.mxu0
      %901 = vmatprep.mubr.bf16.mxu0 0
      %902 = vmatmul.mubr.bf16.gmra.mxu0 %v775
      %v903 = vpop.f32.mrf.mxu0
      %v904 = vadd.f32 0.0, %v903
      %v905 = vpop.f32.mrf.mxu0
      %v906 = vpop.f32.mrf.mxu0
      %v907 = vadd.f32 0.0, %v906
      %v908 = vpop.f32.mrf.mxu0
      %909 = vmatprep.mubr.bf16.mxu0 0
      %910 = vmatmul.mubr.bf16.gmra.mxu0 %v776
      %v911 = vpop.f32.mrf.mxu0
      %v912 = vadd.f32 0.0, %v911
      %v913 = vpop.f32.mrf.mxu0
      %v914 = vpop.f32.mrf.mxu0
      %v915 = vadd.f32 0.0, %v914
      %v916 = vpop.f32.mrf.mxu0
      %917 = vmatprep.mubr.bf16.mxu0 0
      %918 = vmatmul.mubr.bf16.gmra.mxu0 %v777
      %v919 = vpop.f32.mrf.mxu0
      %v920 = vadd.f32 0.0, %v919
      %v921 = vpop.f32.mrf.mxu0
      %v922 = vpop.f32.mrf.mxu0
      %v923 = vadd.f32 0.0, %v922
      %v924 = vpop.f32.mrf.mxu0
      %925 = vmatprep.mubr.bf16.mxu0 0
      %926 = vmatmul.mubr.bf16.gmra.mxu0 %v778
      %v927 = vpop.f32.mrf.mxu0
      %v928 = vadd.f32 0.0, %v927
      %v929 = vpop.f32.mrf.mxu0
      %v930 = vpop.f32.mrf.mxu0
      %v931 = vadd.f32 0.0, %v930
      %v932 = vpop.f32.mrf.mxu0
      %933 = vmatprep.mubr.bf16.mxu0 0
      %934 = vmatmul.mubr.bf16.gmra.mxu0 %v779
      %v935 = vpop.f32.mrf.mxu0
      %v936 = vadd.f32 0.0, %v935
      %v937 = vpop.f32.mrf.mxu0
      %v938 = vpop.f32.mrf.mxu0
      %v939 = vadd.f32 0.0, %v938
      %v940 = vpop.f32.mrf.mxu0
      %941 = vmatprep.mubr.bf16.mxu0 0
      %942 = vmatmul.mubr.bf16.gmra.mxu0 %v780
      %v943 = vpop.f32.mrf.mxu0
      %v944 = vadd.f32 0.0, %v943
      %v945 = vpop.f32.mrf.mxu0
      %v946 = vpop.f32.mrf.mxu0
      %v947 = vadd.f32 0.0, %v946
      %v948 = vpop.f32.mrf.mxu0
      %949 = vmatprep.mubr.bf16.mxu0 0
      %950 = vmatmul.mubr.bf16.gmra.mxu0 %v781
      %v951 = vpop.f32.mrf.mxu0
      %v952 = vadd.f32 0.0, %v951
      %v953 = vpop.f32.mrf.mxu0
      %v954 = vpop.f32.mrf.mxu0
      %v955 = vadd.f32 0.0, %v954
      %v956 = vpop.f32.mrf.mxu0
      %957 = vmatprep.mubr.bf16.mxu0 0
      %958 = vmatmul.mubr.bf16.gmra.mxu0 %v782
      %v959 = vpop.f32.mrf.mxu0
      %v960 = vadd.f32 0.0, %v959
      %v961 = vpop.f32.mrf.mxu0
      %v962 = vpop.f32.mrf.mxu0
      %v963 = vadd.f32 0.0, %v962
      %v964 = vpop.f32.mrf.mxu0
      %965 = vmatprep.mubr.bf16.mxu0 0
      %966 = vmatmul.mubr.bf16.gmra.mxu0 %v783
      %v967 = vpop.f32.mrf.mxu0
      %v968 = vadd.f32 0.0, %v967
      %v969 = vpop.f32.mrf.mxu0
      %v970 = vpop.f32.mrf.mxu0
      %v971 = vadd.f32 0.0, %v970
      %v972 = vpop.f32.mrf.mxu0
      %973 = vmatprep.mubr.bf16.mxu0 0
      %974 = vmatmul.mubr.bf16.gmra.mxu0 %v784
      %v975 = vpop.f32.mrf.mxu0
      %v976 = vadd.f32 0.0, %v975
      %v977 = vpop.f32.mrf.mxu0
      %v978 = vpop.f32.mrf.mxu0
      %v979 = vadd.f32 0.0, %v978
      %v980 = vpop.f32.mrf.mxu0
      %981 = vmatprep.mubr.bf16.mxu0 0
      %982 = vmatmul.mubr.bf16.gmra.mxu0 %v785
      %v983 = vpop.f32.mrf.mxu0
      %v984 = vadd.f32 0.0, %v983
      %v985 = vpop.f32.mrf.mxu0
      %v986 = vpop.f32.mrf.mxu0
      %v987 = vadd.f32 0.0, %v986
      %v988 = vpop.f32.mrf.mxu0
      %989 = vmatprep.mubr.bf16.mxu0 0
      %990 = vmatmul.mubr.bf16.gmra.mxu0 %v786
      %v991 = vpop.f32.mrf.mxu0
      %v992 = vadd.f32 0.0, %v991
      %v993 = vpop.f32.mrf.mxu0
      %v994 = vpop.f32.mrf.mxu0
      %v995 = vadd.f32 0.0, %v994
      %v996 = vpop.f32.mrf.mxu0
      %997 = vmatprep.mubr.bf16.mxu0 0
      %998 = vmatmul.mubr.bf16.gmra.mxu0 %v787
      %v999 = vpop.f32.mrf.mxu0
      %v1000 = vadd.f32 0.0, %v999
      %v1001 = vpop.f32.mrf.mxu0
      %v1002 = vpop.f32.mrf.mxu0
      %v1003 = vadd.f32 0.0, %v1002
      %v1004 = vpop.f32.mrf.mxu0
      %1005 = vmatprep.mubr.bf16.mxu0 0
      %1006 = vmatmul.mubr.bf16.gmra.mxu0 %v788
      %v1007 = vpop.f32.mrf.mxu0
      %v1008 = vadd.f32 0.0, %v1007
      %v1009 = vpop.f32.mrf.mxu0
      %v1010 = vpop.f32.mrf.mxu0
      %v1011 = vadd.f32 0.0, %v1010
      %v1012 = vpop.f32.mrf.mxu0
      %1013 = vdwg.mxu0
      %v1046 = vunpack.c.l.b16 %v273
      %v1047 = vunpack.c.l.b16 %v274
      %v1048 = vunpack.c.l.b16 %v275
      %v1049 = vunpack.c.l.b16 %v276
      %v1050 = vunpack.c.l.b16 %v277
      %v1051 = vunpack.c.l.b16 %v278
      %v1052 = vunpack.c.l.b16 %v279
      %v1053 = vunpack.c.l.b16 %v280
      %v1054 = vunpack.c.l.b16 %v281
      %v1055 = vunpack.c.l.b16 %v282
      %v1056 = vunpack.c.l.b16 %v283
      %v1057 = vunpack.c.l.b16 %v284
      %v1058 = vunpack.c.l.b16 %v285
      %v1059 = vunpack.c.l.b16 %v286
      %v1060 = vunpack.c.l.b16 %v287
      %v1061 = vunpack.c.l.b16 %v288
      %v1062 = vunpack.c.l.b16 %v289
      %v1063 = vunpack.c.l.b16 %v290
      %v1064 = vunpack.c.l.b16 %v291
      %v1065 = vunpack.c.l.b16 %v292
      %v1066 = vunpack.c.l.b16 %v293
      %v1067 = vunpack.c.l.b16 %v294
      %v1068 = vunpack.c.l.b16 %v295
      %v1069 = vunpack.c.l.b16 %v296
      %v1070 = vunpack.c.l.b16 %v297
      %v1071 = vunpack.c.l.b16 %v298
      %v1072 = vunpack.c.l.b16 %v299
      %v1073 = vunpack.c.l.b16 %v300
      %v1074 = vunpack.c.l.b16 %v301
      %v1075 = vunpack.c.l.b16 %v302
      %v1076 = vunpack.c.l.b16 %v303
      %v1077 = vunpack.c.l.b16 %v304
      %v1078 = vpack.c.b16 %v1047, %v1046
      %v1079 = vpack.c.b16 %v1049, %v1048
      %v1080 = vpack.c.b16 %v1051, %v1050
      %v1081 = vpack.c.b16 %v1053, %v1052
      %v1082 = vpack.c.b16 %v1055, %v1054
      %v1083 = vpack.c.b16 %v1057, %v1056
      %v1084 = vpack.c.b16 %v1059, %v1058
      %v1085 = vpack.c.b16 %v1061, %v1060
      %v1086 = vpack.c.b16 %v1063, %v1062
      %v1087 = vpack.c.b16 %v1065, %v1064
      %v1088 = vpack.c.b16 %v1067, %v1066
      %v1089 = vpack.c.b16 %v1069, %v1068
      %v1090 = vpack.c.b16 %v1071, %v1070
      %v1091 = vpack.c.b16 %v1073, %v1072
      %v1092 = vpack.c.b16 %v1075, %v1074
      %v1093 = vpack.c.b16 %v1077, %v1076
      %v1126 = vunpack.c.l.b16 %v305
      %v1127 = vunpack.c.l.b16 %v306
      %v1128 = vunpack.c.l.b16 %v307
      %v1129 = vunpack.c.l.b16 %v308
      %v1130 = vunpack.c.l.b16 %v309
      %v1131 = vunpack.c.l.b16 %v310
      %v1132 = vunpack.c.l.b16 %v311
      %v1133 = vunpack.c.l.b16 %v312
      %v1134 = vunpack.c.l.b16 %v313
      %v1135 = vunpack.c.l.b16 %v314
      %v1136 = vunpack.c.l.b16 %v315
      %v1137 = vunpack.c.l.b16 %v316
      %v1138 = vunpack.c.l.b16 %v317
      %v1139 = vunpack.c.l.b16 %v318
      %v1140 = vunpack.c.l.b16 %v319
      %v1141 = vunpack.c.l.b16 %v320
      %v1142 = vpack.c.b16 %v1127, %v1126
      %v1143 = vpack.c.b16 %v1129, %v1128
      %v1144 = vpack.c.b16 %v1131, %v1130
      %v1145 = vpack.c.b16 %v1133, %v1132
      %v1146 = vpack.c.b16 %v1135, %v1134
      %v1147 = vpack.c.b16 %v1137, %v1136
      %v1148 = vpack.c.b16 %v1139, %v1138
      %v1149 = vpack.c.b16 %v1141, %v1140
      %1158 = vmatprep.subr.bf16.mxu0 0
      %1159 = vmatpush1.bf16.msra.mxu0 %v1149
      %1160 = vmatprep.subr.bf16.mxu0 0
      %1161 = vmatpush1.bf16.msra.mxu0 %v1148
      %1162 = vmatprep.subr.bf16.mxu0 0
      %1163 = vmatpush1.bf16.msra.mxu0 %v1147
      %1164 = vmatprep.subr.bf16.mxu0 0
      %1165 = vmatpush1.bf16.msra.mxu0 %v1146
      %1166 = vmatprep.subr.bf16.mxu0 0
      %1167 = vmatpush1.bf16.msra.mxu0 %v1145
      %1168 = vmatprep.subr.bf16.mxu0 0
      %1169 = vmatpush1.bf16.msra.mxu0 %v1144
      %1170 = vmatprep.subr.bf16.mxu0 0
      %1171 = vmatpush1.bf16.msra.mxu0 %v1143
      %1172 = vmatprep.subr.bf16.mxu0 0
      %1173 = vmatpush1.bf16.msra.mxu0 %v1142
      %1174 = vmatprep.subr.bf16.mxu0 0
      %1175 = vmatpush2.bf16.msra.mxu0 0
      %1176 = vmatprep.subr.bf16.mxu0 0
      %1177 = vmatpush2.bf16.msra.mxu0 0
      %1178 = vmatprep.subr.bf16.mxu0 0
      %1179 = vmatpush2.bf16.msra.mxu0 0
      %1180 = vmatprep.subr.bf16.mxu0 0
      %1181 = vmatpush2.bf16.msra.mxu0 0
      %1182 = vmatprep.subr.bf16.mxu0 0
      %1183 = vmatpush2.bf16.msra.mxu0 0
      %1184 = vmatprep.subr.bf16.mxu0 0
      %1185 = vmatpush2.bf16.msra.mxu0 0
      %1186 = vmatprep.subr.bf16.mxu0 0
      %1187 = vmatpush2.bf16.msra.mxu0 0
      %1188 = vmatprep.subr.bf16.mxu0 0
      %1189 = vmatpush2.bf16.msra.mxu0 0
      %1190 = vmatprep.mubr.bf16.mxu0 0
      %1191 = vmatmul.mubr.bf16.gmra.mxu0 %v1078
      %v1192 = vpop.f32.mrf.mxu0
      %v1193 = vadd.f32 %v888, %v1192
      %v1194 = vpop.f32.mrf.mxu0
      %v1195 = vpop.f32.mrf.mxu0
      %v1196 = vadd.f32 %v891, %v1195
      %v1197 = vpop.f32.mrf.mxu0
      %1198 = vmatprep.mubr.bf16.mxu0 0
      %1199 = vmatmul.mubr.bf16.gmra.mxu0 %v1079
      %v1200 = vpop.f32.mrf.mxu0
      %v1201 = vadd.f32 %v896, %v1200
      %v1202 = vpop.f32.mrf.mxu0
      %v1203 = vpop.f32.mrf.mxu0
      %v1204 = vadd.f32 %v899, %v1203
      %v1205 = vpop.f32.mrf.mxu0
      %1206 = vmatprep.mubr.bf16.mxu0 0
      %1207 = vmatmul.mubr.bf16.gmra.mxu0 %v1080
      %v1208 = vpop.f32.mrf.mxu0
      %v1209 = vadd.f32 %v904, %v1208
      %v1210 = vpop.f32.mrf.mxu0
      %v1211 = vpop.f32.mrf.mxu0
      %v1212 = vadd.f32 %v907, %v1211
      %v1213 = vpop.f32.mrf.mxu0
      %1214 = vmatprep.mubr.bf16.mxu0 0
      %1215 = vmatmul.mubr.bf16.gmra.mxu0 %v1081
      %v1216 = vpop.f32.mrf.mxu0
      %v1217 = vadd.f32 %v912, %v1216
      %v1218 = vpop.f32.mrf.mxu0
      %v1219 = vpop.f32.mrf.mxu0
      %v1220 = vadd.f32 %v915, %v1219
      %v1221 = vpop.f32.mrf.mxu0
      %1222 = vmatprep.mubr.bf16.mxu0 0
      %1223 = vmatmul.mubr.bf16.gmra.mxu0 %v1082
      %v1224 = vpop.f32.mrf.mxu0
      %v1225 = vadd.f32 %v920, %v1224
      %v1226 = vpop.f32.mrf.mxu0
      %v1227 = vpop.f32.mrf.mxu0
      %v1228 = vadd.f32 %v923, %v1227
      %v1229 = vpop.f32.mrf.mxu0
      %1230 = vmatprep.mubr.bf16.mxu0 0
      %1231 = vmatmul.mubr.bf16.gmra.mxu0 %v1083
      %v1232 = vpop.f32.mrf.mxu0
      %v1233 = vadd.f32 %v928, %v1232
      %v1234 = vpop.f32.mrf.mxu0
      %v1235 = vpop.f32.mrf.mxu0
      %v1236 = vadd.f32 %v931, %v1235
      %v1237 = vpop.f32.mrf.mxu0
      %1238 = vmatprep.mubr.bf16.mxu0 0
      %1239 = vmatmul.mubr.bf16.gmra.mxu0 %v1084
      %v1240 = vpop.f32.mrf.mxu0
      %v1241 = vadd.f32 %v936, %v1240
      %v1242 = vpop.f32.mrf.mxu0
      %v1243 = vpop.f32.mrf.mxu0
      %v1244 = vadd.f32 %v939, %v1243
      %v1245 = vpop.f32.mrf.mxu0
      %1246 = vmatprep.mubr.bf16.mxu0 0
      %1247 = vmatmul.mubr.bf16.gmra.mxu0 %v1085
      %v1248 = vpop.f32.mrf.mxu0
      %v1249 = vadd.f32 %v944, %v1248
      %v1250 = vpop.f32.mrf.mxu0
      %v1251 = vpop.f32.mrf.mxu0
      %v1252 = vadd.f32 %v947, %v1251
      %v1253 = vpop.f32.mrf.mxu0
      %1254 = vmatprep.mubr.bf16.mxu0 0
      %1255 = vmatmul.mubr.bf16.gmra.mxu0 %v1086
      %v1256 = vpop.f32.mrf.mxu0
      %v1257 = vadd.f32 %v952, %v1256
      %v1258 = vpop.f32.mrf.mxu0
      %v1259 = vpop.f32.mrf.mxu0
      %v1260 = vadd.f32 %v955, %v1259
      %v1261 = vpop.f32.mrf.mxu0
      %1262 = vmatprep.mubr.bf16.mxu0 0
      %1263 = vmatmul.mubr.bf16.gmra.mxu0 %v1087
      %v1264 = vpop.f32.mrf.mxu0
      %v1265 = vadd.f32 %v960, %v1264
      %v1266 = vpop.f32.mrf.mxu0
      %v1267 = vpop.f32.mrf.mxu0
      %v1268 = vadd.f32 %v963, %v1267
      %v1269 = vpop.f32.mrf.mxu0
      %1270 = vmatprep.mubr.bf16.mxu0 0
      %1271 = vmatmul.mubr.bf16.gmra.mxu0 %v1088
      %v1272 = vpop.f32.mrf.mxu0
      %v1273 = vadd.f32 %v968, %v1272
      %v1274 = vpop.f32.mrf.mxu0
      %v1275 = vpop.f32.mrf.mxu0
      %v1276 = vadd.f32 %v971, %v1275
      %v1277 = vpop.f32.mrf.mxu0
      %1278 = vmatprep.mubr.bf16.mxu0 0
      %1279 = vmatmul.mubr.bf16.gmra.mxu0 %v1089
      %v1280 = vpop.f32.mrf.mxu0
      %v1281 = vadd.f32 %v976, %v1280
      %v1282 = vpop.f32.mrf.mxu0
      %v1283 = vpop.f32.mrf.mxu0
      %v1284 = vadd.f32 %v979, %v1283
      %v1285 = vpop.f32.mrf.mxu0
      %1286 = vmatprep.mubr.bf16.mxu0 0
      %1287 = vmatmul.mubr.bf16.gmra.mxu0 %v1090
      %v1288 = vpop.f32.mrf.mxu0
      %v1289 = vadd.f32 %v984, %v1288
      %v1290 = vpop.f32.mrf.mxu0
      %v1291 = vpop.f32.mrf.mxu0
      %v1292 = vadd.f32 %v987, %v1291
      %v1293 = vpop.f32.mrf.mxu0
      %1294 = vmatprep.mubr.bf16.mxu0 0
      %1295 = vmatmul.mubr.bf16.gmra.mxu0 %v1091
      %v1296 = vpop.f32.mrf.mxu0
      %v1297 = vadd.f32 %v992, %v1296
      %v1298 = vpop.f32.mrf.mxu0
      %v1299 = vpop.f32.mrf.mxu0
      %v1300 = vadd.f32 %v995, %v1299
      %v1301 = vpop.f32.mrf.mxu0
      %1302 = vmatprep.mubr.bf16.mxu0 0
      %1303 = vmatmul.mubr.bf16.gmra.mxu0 %v1092
      %v1304 = vpop.f32.mrf.mxu0
      %v1305 = vadd.f32 %v1000, %v1304
      %v1306 = vpop.f32.mrf.mxu0
      %v1307 = vpop.f32.mrf.mxu0
      %v1308 = vadd.f32 %v1003, %v1307
      %v1309 = vpop.f32.mrf.mxu0
      %1310 = vmatprep.mubr.bf16.mxu0 0
      %1311 = vmatmul.mubr.bf16.gmra.mxu0 %v1093
      %v1312 = vpop.f32.mrf.mxu0
      %v1313 = vadd.f32 %v1008, %v1312
      %v1314 = vpop.f32.mrf.mxu0
      %v1315 = vpop.f32.mrf.mxu0
      %v1316 = vadd.f32 %v1011, %v1315
      %v1317 = vpop.f32.mrf.mxu0
      %1318 = vdwg.mxu0
      %v1319 = vld [vmem:[%s261] sm:$0xe]
      %v1320 = vld [vmem:[%s261 + $0xc] sm:$0xe]
      %v1321 = vld [vmem:[%s261 + $0x18] sm:$0xe]
      %v1322 = vld [vmem:[%s261 + $0x24] sm:$0xe]
      %v1323 = vld [vmem:[%s261 + $0x30] sm:$0xe]
      %v1324 = vld [vmem:[%s261 + $0x3c] sm:$0xe]
      %v1325 = vld [vmem:[%s261 + $0x48] sm:$0xe]
      %v1326 = vld [vmem:[%s261 + $0x54] sm:$0xe]
      %v1327 = vld [vmem:[%s261 + $0x60] sm:$0xe]
      %v1328 = vld [vmem:[%s261 + $0x6c] sm:$0xe]
      %v1329 = vld [vmem:[%s261 + $0x78] sm:$0xe]
      %v1330 = vld [vmem:[%s261 + $0x84] sm:$0xe]
      %v1331 = vld [vmem:[%s261 + $0x90] sm:$0xe]
      %v1332 = vld [vmem:[%s261 + $0x9c] sm:$0xe]
      %v1333 = vld [vmem:[%s261 + $0xa8] sm:$0xe]
      %v1334 = vld [vmem:[%s261 + $0xb4] sm:$0xe]
      %vm1367 = vcmask 1042432
      %vm1368 = vcmask 1046532
      %vm1369 = vmor %vm1367, %vm1368
      %v1370 = vrot.slane %v1319, 5
      %v1371 = vrot.slane %v1370, 4
      %v1372 = vrot.slane %v274, 5
      %v1373 = vsel %vm1369, %v1371, %v1372
      %v1374 = vrot.slane %v1372, 4
      %v1375 = vrot.slane %v321, 5
      %v1376 = vsel %vm1369, %v1374, %v1375
      %v1377 = vrot.slane %v1320, 5
      %v1378 = vrot.slane %v1377, 4
      %v1379 = vrot.slane %v276, 5
      %v1380 = vsel %vm1369, %v1378, %v1379
      %v1381 = vrot.slane %v1379, 4
      %v1382 = vrot.slane %v322, 5
      %v1383 = vsel %vm1369, %v1381, %v1382
      %v1384 = vrot.slane %v1321, 5
      %v1385 = vrot.slane %v1384, 4
      %v1386 = vrot.slane %v278, 5
      %v1387 = vsel %vm1369, %v1385, %v1386
      %v1388 = vrot.slane %v1386, 4
      %v1389 = vrot.slane %v323, 5
      %v1390 = vsel %vm1369, %v1388, %v1389
      %v1391 = vrot.slane %v1322, 5
      %v1392 = vrot.slane %v1391, 4
      %v1393 = vrot.slane %v280, 5
      %v1394 = vsel %vm1369, %v1392, %v1393
      %v1395 = vrot.slane %v1393, 4
      %v1396 = vrot.slane %v324, 5
      %v1397 = vsel %vm1369, %v1395, %v1396
      %v1398 = vrot.slane %v1323, 5
      %v1399 = vrot.slane %v1398, 4
      %v1400 = vrot.slane %v282, 5
      %v1401 = vsel %vm1369, %v1399, %v1400
      %v1402 = vrot.slane %v1400, 4
      %v1403 = vrot.slane %v325, 5
      %v1404 = vsel %vm1369, %v1402, %v1403
      %v1405 = vrot.slane %v1324, 5
      %v1406 = vrot.slane %v1405, 4
      %v1407 = vrot.slane %v284, 5
      %v1408 = vsel %vm1369, %v1406, %v1407
      %v1409 = vrot.slane %v1407, 4
      %v1410 = vrot.slane %v326, 5
      %v1411 = vsel %vm1369, %v1409, %v1410
      %v1412 = vrot.slane %v1325, 5
      %v1413 = vrot.slane %v1412, 4
      %v1414 = vrot.slane %v286, 5
      %v1415 = vsel %vm1369, %v1413, %v1414
      %v1416 = vrot.slane %v1414, 4
      %v1417 = vrot.slane %v327, 5
      %v1418 = vsel %vm1369, %v1416, %v1417
      %v1419 = vrot.slane %v1326, 5
      %v1420 = vrot.slane %v1419, 4
      %v1421 = vrot.slane %v288, 5
      %v1422 = vsel %vm1369, %v1420, %v1421
      %v1423 = vrot.slane %v1421, 4
      %v1424 = vrot.slane %v328, 5
      %v1425 = vsel %vm1369, %v1423, %v1424
      %v1426 = vrot.slane %v1327, 5
      %v1427 = vrot.slane %v1426, 4
      %v1428 = vrot.slane %v290, 5
      %v1429 = vsel %vm1369, %v1427, %v1428
      %v1430 = vrot.slane %v1428, 4
      %v1431 = vrot.slane %v329, 5
      %v1432 = vsel %vm1369, %v1430, %v1431
      %v1433 = vrot.slane %v1328, 5
      %v1434 = vrot.slane %v1433, 4
      %v1435 = vrot.slane %v292, 5
      %v1436 = vsel %vm1369, %v1434, %v1435
      %v1437 = vrot.slane %v1435, 4
      %v1438 = vrot.slane %v330, 5
      %v1439 = vsel %vm1369, %v1437, %v1438
      %v1440 = vrot.slane %v1329, 5
      %v1441 = vrot.slane %v1440, 4
      %v1442 = vrot.slane %v294, 5
      %v1443 = vsel %vm1369, %v1441, %v1442
      %v1444 = vrot.slane %v1442, 4
      %v1445 = vrot.slane %v331, 5
      %v1446 = vsel %vm1369, %v1444, %v1445
      %v1447 = vrot.slane %v1330, 5
      %v1448 = vrot.slane %v1447, 4
      %v1449 = vrot.slane %v296, 5
      %v1450 = vsel %vm1369, %v1448, %v1449
      %v1451 = vrot.slane %v1449, 4
      %v1452 = vrot.slane %v332, 5
      %v1453 = vsel %vm1369, %v1451, %v1452
      %v1454 = vrot.slane %v1331, 5
      %v1455 = vrot.slane %v1454, 4
      %v1456 = vrot.slane %v298, 5
      %v1457 = vsel %vm1369, %v1455, %v1456
      %v1458 = vrot.slane %v1456, 4
      %v1459 = vrot.slane %v333, 5
      %v1460 = vsel %vm1369, %v1458, %v1459
      %v1461 = vrot.slane %v1332, 5
      %v1462 = vrot.slane %v1461, 4
      %v1463 = vrot.slane %v300, 5
      %v1464 = vsel %vm1369, %v1462, %v1463
      %v1465 = vrot.slane %v1463, 4
      %v1466 = vrot.slane %v334, 5
      %v1467 = vsel %vm1369, %v1465, %v1466
      %v1468 = vrot.slane %v1333, 5
      %v1469 = vrot.slane %v1468, 4
      %v1470 = vrot.slane %v302, 5
      %v1471 = vsel %vm1369, %v1469, %v1470
      %v1472 = vrot.slane %v1470, 4
      %v1473 = vrot.slane %v335, 5
      %v1474 = vsel %vm1369, %v1472, %v1473
      %v1475 = vrot.slane %v1334, 5
      %v1476 = vrot.slane %v1475, 4
      %v1477 = vrot.slane %v304, 5
      %v1478 = vsel %vm1369, %v1476, %v1477
      %v1479 = vrot.slane %v1477, 4
      %v1480 = vrot.slane %v336, 5
      %v1481 = vsel %vm1369, %v1479, %v1480
      %s1482 = scalar_lea.vmem %s1, 128
      %v1483 = vld [vmem:[%s1482] sm:$0xf]
      %v1484 = vld [vmem:[%s1482 + $0x4] sm:$0xf]
      %v1485 = vld [vmem:[%s1482 + $0x8] sm:$0xf]
      %v1486 = vld [vmem:[%s1482 + $0xc] sm:$0xf]
      %v1487 = vld [vmem:[%s1482 + $0x10] sm:$0xf]
      %v1488 = vld [vmem:[%s1482 + $0x14] sm:$0xf]
      %v1489 = vld [vmem:[%s1482 + $0x18] sm:$0xf]
      %v1490 = vld [vmem:[%s1482 + $0x1c] sm:$0xf]
      %v1491 = vld [vmem:[%s1482 + $0x20] sm:$0xf]
      %v1492 = vld [vmem:[%s1482 + $0x24] sm:$0xf]
      %v1493 = vld [vmem:[%s1482 + $0x28] sm:$0xf]
      %v1494 = vld [vmem:[%s1482 + $0x2c] sm:$0xf]
      %v1495 = vld [vmem:[%s1482 + $0x30] sm:$0xf]
      %v1496 = vld [vmem:[%s1482 + $0x34] sm:$0xf]
      %v1497 = vld [vmem:[%s1482 + $0x38] sm:$0xf]
      %v1498 = vld [vmem:[%s1482 + $0x3c] sm:$0xf]
      %v1499 = vunpack.c.l.b16 %v1373
      %v1500 = vunpack.c.l.b16 %v1376
      %v1501 = vunpack.c.l.b16 %v1380
      %v1502 = vunpack.c.l.b16 %v1383
      %v1503 = vunpack.c.l.b16 %v1387
      %v1504 = vunpack.c.l.b16 %v1390
      %v1505 = vunpack.c.l.b16 %v1394
      %v1506 = vunpack.c.l.b16 %v1397
      %v1507 = vunpack.c.l.b16 %v1401
      %v1508 = vunpack.c.l.b16 %v1404
      %v1509 = vunpack.c.l.b16 %v1408
      %v1510 = vunpack.c.l.b16 %v1411
      %v1511 = vunpack.c.l.b16 %v1415
      %v1512 = vunpack.c.l.b16 %v1418
      %v1513 = vunpack.c.l.b16 %v1422
      %v1514 = vunpack.c.l.b16 %v1425
      %v1515 = vunpack.c.l.b16 %v1429
      %v1516 = vunpack.c.l.b16 %v1432
      %v1517 = vunpack.c.l.b16 %v1436
      %v1518 = vunpack.c.l.b16 %v1439
      %v1519 = vunpack.c.l.b16 %v1443
      %v1520 = vunpack.c.l.b16 %v1446
      %v1521 = vunpack.c.l.b16 %v1450
      %v1522 = vunpack.c.l.b16 %v1453
      %v1523 = vunpack.c.l.b16 %v1457
      %v1524 = vunpack.c.l.b16 %v1460
      %v1525 = vunpack.c.l.b16 %v1464
      %v1526 = vunpack.c.l.b16 %v1467
      %v1527 = vunpack.c.l.b16 %v1471
      %v1528 = vunpack.c.l.b16 %v1474
      %v1529 = vunpack.c.l.b16 %v1478
      %v1530 = vunpack.c.l.b16 %v1481
      %v1531 = vpack.c.b16 %v1500, %v1499
      %v1532 = vpack.c.b16 %v1502, %v1501
      %v1533 = vpack.c.b16 %v1504, %v1503
      %v1534 = vpack.c.b16 %v1506, %v1505
      %v1535 = vpack.c.b16 %v1508, %v1507
      %v1536 = vpack.c.b16 %v1510, %v1509
      %v1537 = vpack.c.b16 %v1512, %v1511
      %v1538 = vpack.c.b16 %v1514, %v1513
      %v1539 = vpack.c.b16 %v1516, %v1515
      %v1540 = vpack.c.b16 %v1518, %v1517
      %v1541 = vpack.c.b16 %v1520, %v1519
      %v1542 = vpack.c.b16 %v1522, %v1521
      %v1543 = vpack.c.b16 %v1524, %v1523
      %v1544 = vpack.c.b16 %v1526, %v1525
      %v1545 = vpack.c.b16 %v1528, %v1527
      %v1546 = vpack.c.b16 %v1530, %v1529
      %v1579 = vunpack.c.l.b16 %v1483
      %v1580 = vunpack.c.l.b16 %v1484
      %v1581 = vunpack.c.l.b16 %v1485
      %v1582 = vunpack.c.l.b16 %v1486
      %v1583 = vunpack.c.l.b16 %v1487
      %v1584 = vunpack.c.l.b16 %v1488
      %v1585 = vunpack.c.l.b16 %v1489
      %v1586 = vunpack.c.l.b16 %v1490
      %v1587 = vunpack.c.l.b16 %v1491
      %v1588 = vunpack.c.l.b16 %v1492
      %v1589 = vunpack.c.l.b16 %v1493
      %v1590 = vunpack.c.l.b16 %v1494
      %v1591 = vunpack.c.l.b16 %v1495
      %v1592 = vunpack.c.l.b16 %v1496
      %v1593 = vunpack.c.l.b16 %v1497
      %v1594 = vunpack.c.l.b16 %v1498
      %v1595 = vpack.c.b16 %v1580, %v1579
      %v1596 = vpack.c.b16 %v1582, %v1581
      %v1597 = vpack.c.b16 %v1584, %v1583
      %v1598 = vpack.c.b16 %v1586, %v1585
      %v1599 = vpack.c.b16 %v1588, %v1587
      %v1600 = vpack.c.b16 %v1590, %v1589
      %v1601 = vpack.c.b16 %v1592, %v1591
      %v1602 = vpack.c.b16 %v1594, %v1593
      %1611 = vmatprep.subr.bf16.mxu0 0
      %1612 = vmatpush1.bf16.msra.mxu0 %v1602
      %1613 = vmatprep.subr.bf16.mxu0 0
      %1614 = vmatpush1.bf16.msra.mxu0 %v1601
      %1615 = vmatprep.subr.bf16.mxu0 0
      %1616 = vmatpush1.bf16.msra.mxu0 %v1600
      %1617 = vmatprep.subr.bf16.mxu0 0
      %1618 = vmatpush1.bf16.msra.mxu0 %v1599
      %1619 = vmatprep.subr.bf16.mxu0 0
      %1620 = vmatpush1.bf16.msra.mxu0 %v1598
      %1621 = vmatprep.subr.bf16.mxu0 0
      %1622 = vmatpush1.bf16.msra.mxu0 %v1597
      %1623 = vmatprep.subr.bf16.mxu0 0
      %1624 = vmatpush1.bf16.msra.mxu0 %v1596
      %1625 = vmatprep.subr.bf16.mxu0 0
      %1626 = vmatpush1.bf16.msra.mxu0 %v1595
      %1627 = vmatprep.subr.bf16.mxu0 0
      %1628 = vmatpush2.bf16.msra.mxu0 0
      %1629 = vmatprep.subr.bf16.mxu0 0
      %1630 = vmatpush2.bf16.msra.mxu0 0
      %1631 = vmatprep.subr.bf16.mxu0 0
      %1632 = vmatpush2.bf16.msra.mxu0 0
      %1633 = vmatprep.subr.bf16.mxu0 0
      %1634 = vmatpush2.bf16.msra.mxu0 0
      %1635 = vmatprep.subr.bf16.mxu0 0
      %1636 = vmatpush2.bf16.msra.mxu0 0
      %1637 = vmatprep.subr.bf16.mxu0 0
      %1638 = vmatpush2.bf16.msra.mxu0 0
      %1639 = vmatprep.subr.bf16.mxu0 0
      %1640 = vmatpush2.bf16.msra.mxu0 0
      %1641 = vmatprep.subr.bf16.mxu0 0
      %1642 = vmatpush2.bf16.msra.mxu0 0
      %1643 = vmatprep.mubr.bf16.mxu0 0
      %1644 = vmatmul.mubr.bf16.gmra.mxu0 %v1531
      %v1645 = vpop.f32.mrf.mxu0
      %v1646 = vadd.f32 0.0, %v1645
      %v1647 = vpop.f32.mrf.mxu0
      %v1648 = vpop.f32.mrf.mxu0
      %v1649 = vadd.f32 0.0, %v1648
      %v1650 = vpop.f32.mrf.mxu0
      %1651 = vmatprep.mubr.bf16.mxu0 0
      %1652 = vmatmul.mubr.bf16.gmra.mxu0 %v1532
      %v1653 = vpop.f32.mrf.mxu0
      %v1654 = vadd.f32 0.0, %v1653
      %v1655 = vpop.f32.mrf.mxu0
      %v1656 = vpop.f32.mrf.mxu0
      %v1657 = vadd.f32 0.0, %v1656
      %v1658 = vpop.f32.mrf.mxu0
      %1659 = vmatprep.mubr.bf16.mxu0 0
      %1660 = vmatmul.mubr.bf16.gmra.mxu0 %v1533
      %v1661 = vpop.f32.mrf.mxu0
      %v1662 = vadd.f32 0.0, %v1661
      %v1663 = vpop.f32.mrf.mxu0
      %v1664 = vpop.f32.mrf.mxu0
      %v1665 = vadd.f32 0.0, %v1664
      %v1666 = vpop.f32.mrf.mxu0
      %1667 = vmatprep.mubr.bf16.mxu0 0
      %1668 = vmatmul.mubr.bf16.gmra.mxu0 %v1534
      %v1669 = vpop.f32.mrf.mxu0
      %v1670 = vadd.f32 0.0, %v1669
      %v1671 = vpop.f32.mrf.mxu0
      %v1672 = vpop.f32.mrf.mxu0
      %v1673 = vadd.f32 0.0, %v1672
      %v1674 = vpop.f32.mrf.mxu0
      %1675 = vmatprep.mubr.bf16.mxu0 0
      %1676 = vmatmul.mubr.bf16.gmra.mxu0 %v1535
      %v1677 = vpop.f32.mrf.mxu0
      %v1678 = vadd.f32 0.0, %v1677
      %v1679 = vpop.f32.mrf.mxu0
      %v1680 = vpop.f32.mrf.mxu0
      %v1681 = vadd.f32 0.0, %v1680
      %v1682 = vpop.f32.mrf.mxu0
      %1683 = vmatprep.mubr.bf16.mxu0 0
      %1684 = vmatmul.mubr.bf16.gmra.mxu0 %v1536
      %v1685 = vpop.f32.mrf.mxu0
      %v1686 = vadd.f32 0.0, %v1685
      %v1687 = vpop.f32.mrf.mxu0
      %v1688 = vpop.f32.mrf.mxu0
      %v1689 = vadd.f32 0.0, %v1688
      %v1690 = vpop.f32.mrf.mxu0
      %1691 = vmatprep.mubr.bf16.mxu0 0
      %1692 = vmatmul.mubr.bf16.gmra.mxu0 %v1537
      %v1693 = vpop.f32.mrf.mxu0
      %v1694 = vadd.f32 0.0, %v1693
      %v1695 = vpop.f32.mrf.mxu0
      %v1696 = vpop.f32.mrf.mxu0
      %v1697 = vadd.f32 0.0, %v1696
      %v1698 = vpop.f32.mrf.mxu0
      %1699 = vmatprep.mubr.bf16.mxu0 0
      %1700 = vmatmul.mubr.bf16.gmra.mxu0 %v1538
      %v1701 = vpop.f32.mrf.mxu0
      %v1702 = vadd.f32 0.0, %v1701
      %v1703 = vpop.f32.mrf.mxu0
      %v1704 = vpop.f32.mrf.mxu0
      %v1705 = vadd.f32 0.0, %v1704
      %v1706 = vpop.f32.mrf.mxu0
      %1707 = vmatprep.mubr.bf16.mxu0 0
      %1708 = vmatmul.mubr.bf16.gmra.mxu0 %v1539
      %v1709 = vpop.f32.mrf.mxu0
      %v1710 = vadd.f32 0.0, %v1709
      %v1711 = vpop.f32.mrf.mxu0
      %v1712 = vpop.f32.mrf.mxu0
      %v1713 = vadd.f32 0.0, %v1712
      %v1714 = vpop.f32.mrf.mxu0
      %1715 = vmatprep.mubr.bf16.mxu0 0
      %1716 = vmatmul.mubr.bf16.gmra.mxu0 %v1540
      %v1717 = vpop.f32.mrf.mxu0
      %v1718 = vadd.f32 0.0, %v1717
      %v1719 = vpop.f32.mrf.mxu0
      %v1720 = vpop.f32.mrf.mxu0
      %v1721 = vadd.f32 0.0, %v1720
      %v1722 = vpop.f32.mrf.mxu0
      %1723 = vmatprep.mubr.bf16.mxu0 0
      %1724 = vmatmul.mubr.bf16.gmra.mxu0 %v1541
      %v1725 = vpop.f32.mrf.mxu0
      %v1726 = vadd.f32 0.0, %v1725
      %v1727 = vpop.f32.mrf.mxu0
      %v1728 = vpop.f32.mrf.mxu0
      %v1729 = vadd.f32 0.0, %v1728
      %v1730 = vpop.f32.mrf.mxu0
      %1731 = vmatprep.mubr.bf16.mxu0 0
      %1732 = vmatmul.mubr.bf16.gmra.mxu0 %v1542
      %v1733 = vpop.f32.mrf.mxu0
      %v1734 = vadd.f32 0.0, %v1733
      %v1735 = vpop.f32.mrf.mxu0
      %v1736 = vpop.f32.mrf.mxu0
      %v1737 = vadd.f32 0.0, %v1736
      %v1738 = vpop.f32.mrf.mxu0
      %1739 = vmatprep.mubr.bf16.mxu0 0
      %1740 = vmatmul.mubr.bf16.gmra.mxu0 %v1543
      %v1741 = vpop.f32.mrf.mxu0
      %v1742 = vadd.f32 0.0, %v1741
      %v1743 = vpop.f32.mrf.mxu0
      %v1744 = vpop.f32.mrf.mxu0
      %v1745 = vadd.f32 0.0, %v1744
      %v1746 = vpop.f32.mrf.mxu0
      %1747 = vmatprep.mubr.bf16.mxu0 0
      %1748 = vmatmul.mubr.bf16.gmra.mxu0 %v1544
      %v1749 = vpop.f32.mrf.mxu0
      %v1750 = vadd.f32 0.0, %v1749
      %v1751 = vpop.f32.mrf.mxu0
      %v1752 = vpop.f32.mrf.mxu0
      %v1753 = vadd.f32 0.0, %v1752
      %v1754 = vpop.f32.mrf.mxu0
      %1755 = vmatprep.mubr.bf16.mxu0 0
      %1756 = vmatmul.mubr.bf16.gmra.mxu0 %v1545
      %v1757 = vpop.f32.mrf.mxu0
      %v1758 = vadd.f32 0.0, %v1757
      %v1759 = vpop.f32.mrf.mxu0
      %v1760 = vpop.f32.mrf.mxu0
      %v1761 = vadd.f32 0.0, %v1760
      %v1762 = vpop.f32.mrf.mxu0
      %1763 = vmatprep.mubr.bf16.mxu0 0
      %1764 = vmatmul.mubr.bf16.gmra.mxu0 %v1546
      %v1765 = vpop.f32.mrf.mxu0
      %v1766 = vadd.f32 0.0, %v1765
      %v1767 = vpop.f32.mrf.mxu0
      %v1768 = vpop.f32.mrf.mxu0
      %v1769 = vadd.f32 0.0, %v1768
      %v1770 = vpop.f32.mrf.mxu0
      %1771 = vdwg.mxu0
      %v1772 = vadd.f32 %v1193, %v1646
      %v1773 = vadd.f32 %v1196, %v1649
      %v1774 = vadd.f32 %v1201, %v1654
      %v1775 = vadd.f32 %v1204, %v1657
      %v1776 = vadd.f32 %v1209, %v1662
      %v1777 = vadd.f32 %v1212, %v1665
      %v1778 = vadd.f32 %v1217, %v1670
      %v1779 = vadd.f32 %v1220, %v1673
      %v1780 = vadd.f32 %v1225, %v1678
      %v1781 = vadd.f32 %v1228, %v1681
      %v1782 = vadd.f32 %v1233, %v1686
      %v1783 = vadd.f32 %v1236, %v1689
      %v1784 = vadd.f32 %v1241, %v1694
      %v1785 = vadd.f32 %v1244, %v1697
      %v1786 = vadd.f32 %v1249, %v1702
      %v1787 = vadd.f32 %v1252, %v1705
      %v1788 = vadd.f32 %v1257, %v1710
      %v1789 = vadd.f32 %v1260, %v1713
      %v1790 = vadd.f32 %v1265, %v1718
      %v1791 = vadd.f32 %v1268, %v1721
      %v1792 = vadd.f32 %v1273, %v1726
      %v1793 = vadd.f32 %v1276, %v1729
      %v1794 = vadd.f32 %v1281, %v1734
      %v1795 = vadd.f32 %v1284, %v1737
      %v1796 = vadd.f32 %v1289, %v1742
      %v1797 = vadd.f32 %v1292, %v1745
      %v1798 = vadd.f32 %v1297, %v1750
      %v1799 = vadd.f32 %v1300, %v1753
      %v1800 = vadd.f32 %v1305, %v1758
      %v1801 = vadd.f32 %v1308, %v1761
      %v1802 = vadd.f32 %v1313, %v1766
      %v1803 = vadd.f32 %v1316, %v1769
      %s1804 = scalar_lea.vmem %s261, 12
      %v1805 = vld [vmem:[%s1804] sm:$0xf]
      %v1806 = vld [vmem:[%s1804 + $0x4] sm:$0xf]
      %v1807 = vld [vmem:[%s1804 + $0xc] sm:$0xf]
      %v1808 = vld [vmem:[%s1804 + $0x10] sm:$0xf]
      %v1809 = vld [vmem:[%s1804 + $0x18] sm:$0xf]
      %v1810 = vld [vmem:[%s1804 + $0x1c] sm:$0xf]
      %v1811 = vld [vmem:[%s1804 + $0x24] sm:$0xf]
      %v1812 = vld [vmem:[%s1804 + $0x28] sm:$0xf]
      %v1813 = vld [vmem:[%s1804 + $0x30] sm:$0xf]
      %v1814 = vld [vmem:[%s1804 + $0x34] sm:$0xf]
      %v1815 = vld [vmem:[%s1804 + $0x3c] sm:$0xf]
      %v1816 = vld [vmem:[%s1804 + $0x40] sm:$0xf]
      %v1817 = vld [vmem:[%s1804 + $0x48] sm:$0xf]
      %v1818 = vld [vmem:[%s1804 + $0x4c] sm:$0xf]
      %v1819 = vld [vmem:[%s1804 + $0x54] sm:$0xf]
      %v1820 = vld [vmem:[%s1804 + $0x58] sm:$0xf]
      %v1821 = vld [vmem:[%s1804 + $0x60] sm:$0xf]
      %v1822 = vld [vmem:[%s1804 + $0x64] sm:$0xf]
      %v1823 = vld [vmem:[%s1804 + $0x6c] sm:$0xf]
      %v1824 = vld [vmem:[%s1804 + $0x70] sm:$0xf]
      %v1825 = vld [vmem:[%s1804 + $0x78] sm:$0xf]
      %v1826 = vld [vmem:[%s1804 + $0x7c] sm:$0xf]
      %v1827 = vld [vmem:[%s1804 + $0x84] sm:$0xf]
      %v1828 = vld [vmem:[%s1804 + $0x88] sm:$0xf]
      %v1829 = vld [vmem:[%s1804 + $0x90] sm:$0xf]
      %v1830 = vld [vmem:[%s1804 + $0x94] sm:$0xf]
      %v1831 = vld [vmem:[%s1804 + $0x9c] sm:$0xf]
      %v1832 = vld [vmem:[%s1804 + $0xa0] sm:$0xf]
      %v1833 = vld [vmem:[%s1804 + $0xa8] sm:$0xf]
      %v1834 = vld [vmem:[%s1804 + $0xac] sm:$0xf]
      %v1835 = vld [vmem:[%s1804 + $0xb4] sm:$0xf]
      %v1836 = vld [vmem:[%s1804 + $0xb8] sm:$0xf]
      %s1837 = scalar_lea.vmem %s1, 192
      %v1838 = vld [vmem:[%s1837] sm:$0xf]
      %v1839 = vld [vmem:[%s1837 + $0x4] sm:$0xf]
      %v1840 = vld [vmem:[%s1837 + $0x8] sm:$0xf]
      %v1841 = vld [vmem:[%s1837 + $0xc] sm:$0xf]
      %v1842 = vld [vmem:[%s1837 + $0x10] sm:$0xf]
      %v1843 = vld [vmem:[%s1837 + $0x14] sm:$0xf]
      %v1844 = vld [vmem:[%s1837 + $0x18] sm:$0xf]
      %v1845 = vld [vmem:[%s1837 + $0x1c] sm:$0xf]
      %v1846 = vld [vmem:[%s1837 + $0x20] sm:$0xf]
      %v1847 = vld [vmem:[%s1837 + $0x24] sm:$0xf]
      %v1848 = vld [vmem:[%s1837 + $0x28] sm:$0xf]
      %v1849 = vld [vmem:[%s1837 + $0x2c] sm:$0xf]
      %v1850 = vld [vmem:[%s1837 + $0x30] sm:$0xf]
      %v1851 = vld [vmem:[%s1837 + $0x34] sm:$0xf]
      %v1852 = vld [vmem:[%s1837 + $0x38] sm:$0xf]
      %v1853 = vld [vmem:[%s1837 + $0x3c] sm:$0xf]
      %v1886 = vunpack.c.l.b16 %v1805
      %v1887 = vunpack.c.l.b16 %v1806
      %v1888 = vunpack.c.l.b16 %v1807
      %v1889 = vunpack.c.l.b16 %v1808
      %v1890 = vunpack.c.l.b16 %v1809
      %v1891 = vunpack.c.l.b16 %v1810
      %v1892 = vunpack.c.l.b16 %v1811
      %v1893 = vunpack.c.l.b16 %v1812
      %v1894 = vunpack.c.l.b16 %v1813
      %v1895 = vunpack.c.l.b16 %v1814
      %v1896 = vunpack.c.l.b16 %v1815
      %v1897 = vunpack.c.l.b16 %v1816
      %v1898 = vunpack.c.l.b16 %v1817
      %v1899 = vunpack.c.l.b16 %v1818
      %v1900 = vunpack.c.l.b16 %v1819
      %v1901 = vunpack.c.l.b16 %v1820
      %v1902 = vunpack.c.l.b16 %v1821
      %v1903 = vunpack.c.l.b16 %v1822
      %v1904 = vunpack.c.l.b16 %v1823
      %v1905 = vunpack.c.l.b16 %v1824
      %v1906 = vunpack.c.l.b16 %v1825
      %v1907 = vunpack.c.l.b16 %v1826
      %v1908 = vunpack.c.l.b16 %v1827
      %v1909 = vunpack.c.l.b16 %v1828
      %v1910 = vunpack.c.l.b16 %v1829
      %v1911 = vunpack.c.l.b16 %v1830
      %v1912 = vunpack.c.l.b16 %v1831
      %v1913 = vunpack.c.l.b16 %v1832
      %v1914 = vunpack.c.l.b16 %v1833
      %v1915 = vunpack.c.l.b16 %v1834
      %v1916 = vunpack.c.l.b16 %v1835
      %v1917 = vunpack.c.l.b16 %v1836
      %v1918 = vpack.c.b16 %v1887, %v1886
      %v1919 = vpack.c.b16 %v1889, %v1888
      %v1920 = vpack.c.b16 %v1891, %v1890
      %v1921 = vpack.c.b16 %v1893, %v1892
      %v1922 = vpack.c.b16 %v1895, %v1894
      %v1923 = vpack.c.b16 %v1897, %v1896
      %v1924 = vpack.c.b16 %v1899, %v1898
      %v1925 = vpack.c.b16 %v1901, %v1900
      %v1926 = vpack.c.b16 %v1903, %v1902
      %v1927 = vpack.c.b16 %v1905, %v1904
      %v1928 = vpack.c.b16 %v1907, %v1906
      %v1929 = vpack.c.b16 %v1909, %v1908
      %v1930 = vpack.c.b16 %v1911, %v1910
      %v1931 = vpack.c.b16 %v1913, %v1912
      %v1932 = vpack.c.b16 %v1915, %v1914
      %v1933 = vpack.c.b16 %v1917, %v1916
      %v1966 = vunpack.c.l.b16 %v1838
      %v1967 = vunpack.c.l.b16 %v1839
      %v1968 = vunpack.c.l.b16 %v1840
      %v1969 = vunpack.c.l.b16 %v1841
      %v1970 = vunpack.c.l.b16 %v1842
      %v1971 = vunpack.c.l.b16 %v1843
      %v1972 = vunpack.c.l.b16 %v1844
      %v1973 = vunpack.c.l.b16 %v1845
      %v1974 = vunpack.c.l.b16 %v1846
      %v1975 = vunpack.c.l.b16 %v1847
      %v1976 = vunpack.c.l.b16 %v1848
      %v1977 = vunpack.c.l.b16 %v1849
      %v1978 = vunpack.c.l.b16 %v1850
      %v1979 = vunpack.c.l.b16 %v1851
      %v1980 = vunpack.c.l.b16 %v1852
      %v1981 = vunpack.c.l.b16 %v1853
      %v1982 = vpack.c.b16 %v1967, %v1966
      %v1983 = vpack.c.b16 %v1969, %v1968
      %v1984 = vpack.c.b16 %v1971, %v1970
      %v1985 = vpack.c.b16 %v1973, %v1972
      %v1986 = vpack.c.b16 %v1975, %v1974
      %v1987 = vpack.c.b16 %v1977, %v1976
      %v1988 = vpack.c.b16 %v1979, %v1978
      %v1989 = vpack.c.b16 %v1981, %v1980
      %1998 = vmatprep.subr.bf16.mxu0 0
      %1999 = vmatpush1.bf16.msra.mxu0 %v1989
      %2000 = vmatprep.subr.bf16.mxu0 0
      %2001 = vmatpush1.bf16.msra.mxu0 %v1988
      %2002 = vmatprep.subr.bf16.mxu0 0
      %2003 = vmatpush1.bf16.msra.mxu0 %v1987
      %2004 = vmatprep.subr.bf16.mxu0 0
      %2005 = vmatpush1.bf16.msra.mxu0 %v1986
      %2006 = vmatprep.subr.bf16.mxu0 0
      %2007 = vmatpush1.bf16.msra.mxu0 %v1985
      %2008 = vmatprep.subr.bf16.mxu0 0
      %2009 = vmatpush1.bf16.msra.mxu0 %v1984
      %2010 = vmatprep.subr.bf16.mxu0 0
      %2011 = vmatpush1.bf16.msra.mxu0 %v1983
      %2012 = vmatprep.subr.bf16.mxu0 0
      %2013 = vmatpush1.bf16.msra.mxu0 %v1982
      %2014 = vmatprep.subr.bf16.mxu0 0
      %2015 = vmatpush2.bf16.msra.mxu0 0
      %2016 = vmatprep.subr.bf16.mxu0 0
      %2017 = vmatpush2.bf16.msra.mxu0 0
      %2018 = vmatprep.subr.bf16.mxu0 0
      %2019 = vmatpush2.bf16.msra.mxu0 0
      %2020 = vmatprep.subr.bf16.mxu0 0
      %2021 = vmatpush2.bf16.msra.mxu0 0
      %2022 = vmatprep.subr.bf16.mxu0 0
      %2023 = vmatpush2.bf16.msra.mxu0 0
      %2024 = vmatprep.subr.bf16.mxu0 0
      %2025 = vmatpush2.bf16.msra.mxu0 0
      %2026 = vmatprep.subr.bf16.mxu0 0
      %2027 = vmatpush2.bf16.msra.mxu0 0
      %2028 = vmatprep.subr.bf16.mxu0 0
      %2029 = vmatpush2.bf16.msra.mxu0 0
      %2030 = vmatprep.mubr.bf16.mxu0 0
      %2031 = vmatmul.mubr.bf16.gmra.mxu0 %v1918
      %v2032 = vpop.f32.mrf.mxu0
      %v2033 = vadd.f32 0.0, %v2032
      %v2034 = vpop.f32.mrf.mxu0
      %v2035 = vpop.f32.mrf.mxu0
      %v2036 = vadd.f32 0.0, %v2035
      %v2037 = vpop.f32.mrf.mxu0
      %2038 = vmatprep.mubr.bf16.mxu0 0
      %2039 = vmatmul.mubr.bf16.gmra.mxu0 %v1919
      %v2040 = vpop.f32.mrf.mxu0
      %v2041 = vadd.f32 0.0, %v2040
      %v2042 = vpop.f32.mrf.mxu0
      %v2043 = vpop.f32.mrf.mxu0
      %v2044 = vadd.f32 0.0, %v2043
      %v2045 = vpop.f32.mrf.mxu0
      %2046 = vmatprep.mubr.bf16.mxu0 0
      %2047 = vmatmul.mubr.bf16.gmra.mxu0 %v1920
      %v2048 = vpop.f32.mrf.mxu0
      %v2049 = vadd.f32 0.0, %v2048
      %v2050 = vpop.f32.mrf.mxu0
      %v2051 = vpop.f32.mrf.mxu0
      %v2052 = vadd.f32 0.0, %v2051
      %v2053 = vpop.f32.mrf.mxu0
      %2054 = vmatprep.mubr.bf16.mxu0 0
      %2055 = vmatmul.mubr.bf16.gmra.mxu0 %v1921
      %v2056 = vpop.f32.mrf.mxu0
      %v2057 = vadd.f32 0.0, %v2056
      %v2058 = vpop.f32.mrf.mxu0
      %v2059 = vpop.f32.mrf.mxu0
      %v2060 = vadd.f32 0.0, %v2059
      %v2061 = vpop.f32.mrf.mxu0
      %2062 = vmatprep.mubr.bf16.mxu0 0
      %2063 = vmatmul.mubr.bf16.gmra.mxu0 %v1922
      %v2064 = vpop.f32.mrf.mxu0
      %v2065 = vadd.f32 0.0, %v2064
      %v2066 = vpop.f32.mrf.mxu0
      %v2067 = vpop.f32.mrf.mxu0
      %v2068 = vadd.f32 0.0, %v2067
      %v2069 = vpop.f32.mrf.mxu0
      %2070 = vmatprep.mubr.bf16.mxu0 0
      %2071 = vmatmul.mubr.bf16.gmra.mxu0 %v1923
      %v2072 = vpop.f32.mrf.mxu0
      %v2073 = vadd.f32 0.0, %v2072
      %v2074 = vpop.f32.mrf.mxu0
      %v2075 = vpop.f32.mrf.mxu0
      %v2076 = vadd.f32 0.0, %v2075
      %v2077 = vpop.f32.mrf.mxu0
      %2078 = vmatprep.mubr.bf16.mxu0 0
      %2079 = vmatmul.mubr.bf16.gmra.mxu0 %v1924
      %v2080 = vpop.f32.mrf.mxu0
      %v2081 = vadd.f32 0.0, %v2080
      %v2082 = vpop.f32.mrf.mxu0
      %v2083 = vpop.f32.mrf.mxu0
      %v2084 = vadd.f32 0.0, %v2083
      %v2085 = vpop.f32.mrf.mxu0
      %2086 = vmatprep.mubr.bf16.mxu0 0
      %2087 = vmatmul.mubr.bf16.gmra.mxu0 %v1925
      %v2088 = vpop.f32.mrf.mxu0
      %v2089 = vadd.f32 0.0, %v2088
      %v2090 = vpop.f32.mrf.mxu0
      %v2091 = vpop.f32.mrf.mxu0
      %v2092 = vadd.f32 0.0, %v2091
      %v2093 = vpop.f32.mrf.mxu0
      %2094 = vmatprep.mubr.bf16.mxu0 0
      %2095 = vmatmul.mubr.bf16.gmra.mxu0 %v1926
      %v2096 = vpop.f32.mrf.mxu0
      %v2097 = vadd.f32 0.0, %v2096
      %v2098 = vpop.f32.mrf.mxu0
      %v2099 = vpop.f32.mrf.mxu0
      %v2100 = vadd.f32 0.0, %v2099
      %v2101 = vpop.f32.mrf.mxu0
      %2102 = vmatprep.mubr.bf16.mxu0 0
      %2103 = vmatmul.mubr.bf16.gmra.mxu0 %v1927
      %v2104 = vpop.f32.mrf.mxu0
      %v2105 = vadd.f32 0.0, %v2104
      %v2106 = vpop.f32.mrf.mxu0
      %v2107 = vpop.f32.mrf.mxu0
      %v2108 = vadd.f32 0.0, %v2107
      %v2109 = vpop.f32.mrf.mxu0
      %2110 = vmatprep.mubr.bf16.mxu0 0
      %2111 = vmatmul.mubr.bf16.gmra.mxu0 %v1928
      %v2112 = vpop.f32.mrf.mxu0
      %v2113 = vadd.f32 0.0, %v2112
      %v2114 = vpop.f32.mrf.mxu0
      %v2115 = vpop.f32.mrf.mxu0
      %v2116 = vadd.f32 0.0, %v2115
      %v2117 = vpop.f32.mrf.mxu0
      %2118 = vmatprep.mubr.bf16.mxu0 0
      %2119 = vmatmul.mubr.bf16.gmra.mxu0 %v1929
      %v2120 = vpop.f32.mrf.mxu0
      %v2121 = vadd.f32 0.0, %v2120
      %v2122 = vpop.f32.mrf.mxu0
      %v2123 = vpop.f32.mrf.mxu0
      %v2124 = vadd.f32 0.0, %v2123
      %v2125 = vpop.f32.mrf.mxu0
      %2126 = vmatprep.mubr.bf16.mxu0 0
      %2127 = vmatmul.mubr.bf16.gmra.mxu0 %v1930
      %v2128 = vpop.f32.mrf.mxu0
      %v2129 = vadd.f32 0.0, %v2128
      %v2130 = vpop.f32.mrf.mxu0
      %v2131 = vpop.f32.mrf.mxu0
      %v2132 = vadd.f32 0.0, %v2131
      %v2133 = vpop.f32.mrf.mxu0
      %2134 = vmatprep.mubr.bf16.mxu0 0
      %2135 = vmatmul.mubr.bf16.gmra.mxu0 %v1931
      %v2136 = vpop.f32.mrf.mxu0
      %v2137 = vadd.f32 0.0, %v2136
      %v2138 = vpop.f32.mrf.mxu0
      %v2139 = vpop.f32.mrf.mxu0
      %v2140 = vadd.f32 0.0, %v2139
      %v2141 = vpop.f32.mrf.mxu0
      %2142 = vmatprep.mubr.bf16.mxu0 0
      %2143 = vmatmul.mubr.bf16.gmra.mxu0 %v1932
      %v2144 = vpop.f32.mrf.mxu0
      %v2145 = vadd.f32 0.0, %v2144
      %v2146 = vpop.f32.mrf.mxu0
      %v2147 = vpop.f32.mrf.mxu0
      %v2148 = vadd.f32 0.0, %v2147
      %v2149 = vpop.f32.mrf.mxu0
      %2150 = vmatprep.mubr.bf16.mxu0 0
      %2151 = vmatmul.mubr.bf16.gmra.mxu0 %v1933
      %v2152 = vpop.f32.mrf.mxu0
      %v2153 = vadd.f32 0.0, %v2152
      %v2154 = vpop.f32.mrf.mxu0
      %v2155 = vpop.f32.mrf.mxu0
      %v2156 = vadd.f32 0.0, %v2155
      %v2157 = vpop.f32.mrf.mxu0
      %2158 = vdwg.mxu0
      %v2159 = vadd.f32 %v1772, %v2033
      %v2160 = vadd.f32 %v1773, %v2036
      %v2161 = vadd.f32 %v1774, %v2041
      %v2162 = vadd.f32 %v1775, %v2044
      %v2163 = vadd.f32 %v1776, %v2049
      %v2164 = vadd.f32 %v1777, %v2052
      %v2165 = vadd.f32 %v1778, %v2057
      %v2166 = vadd.f32 %v1779, %v2060
      %v2167 = vadd.f32 %v1780, %v2065
      %v2168 = vadd.f32 %v1781, %v2068
      %v2169 = vadd.f32 %v1782, %v2073
      %v2170 = vadd.f32 %v1783, %v2076
      %v2171 = vadd.f32 %v1784, %v2081
      %v2172 = vadd.f32 %v1785, %v2084
      %v2173 = vadd.f32 %v1786, %v2089
      %v2174 = vadd.f32 %v1787, %v2092
      %v2175 = vadd.f32 %v1788, %v2097
      %v2176 = vadd.f32 %v1789, %v2100
      %v2177 = vadd.f32 %v1790, %v2105
      %v2178 = vadd.f32 %v1791, %v2108
      %v2179 = vadd.f32 %v1792, %v2113
      %v2180 = vadd.f32 %v1793, %v2116
      %v2181 = vadd.f32 %v1794, %v2121
      %v2182 = vadd.f32 %v1795, %v2124
      %v2183 = vadd.f32 %v1796, %v2129
      %v2184 = vadd.f32 %v1797, %v2132
      %v2185 = vadd.f32 %v1798, %v2137
      %v2186 = vadd.f32 %v1799, %v2140
      %v2187 = vadd.f32 %v1800, %v2145
      %v2188 = vadd.f32 %v1801, %v2148
      %v2189 = vadd.f32 %v1802, %v2153
      %v2190 = vadd.f32 %v1803, %v2156
      %v2191 = vld [vmem:[%s1804] sm:$0xf]
      %v2192 = vld [vmem:[%s1804 + $0x4] sm:$0xf]
      %v2193 = vld [vmem:[%s1804 + $0x8] sm:$0x1]
      %v2194 = vld [vmem:[%s1804 + $0xc] sm:$0xf]
      %v2195 = vld [vmem:[%s1804 + $0x10] sm:$0xf]
      %v2196 = vld [vmem:[%s1804 + $0x14] sm:$0x1]
      %v2197 = vld [vmem:[%s1804 + $0x18] sm:$0xf]
      %v2198 = vld [vmem:[%s1804 + $0x1c] sm:$0xf]
      %v2199 = vld [vmem:[%s1804 + $0x20] sm:$0x1]
      %v2200 = vld [vmem:[%s1804 + $0x24] sm:$0xf]
      %v2201 = vld [vmem:[%s1804 + $0x28] sm:$0xf]
      %v2202 = vld [vmem:[%s1804 + $0x2c] sm:$0x1]
      %v2203 = vld [vmem:[%s1804 + $0x30] sm:$0xf]
      %v2204 = vld [vmem:[%s1804 + $0x34] sm:$0xf]
      %v2205 = vld [vmem:[%s1804 + $0x38] sm:$0x1]
      %v2206 = vld [vmem:[%s1804 + $0x3c] sm:$0xf]
      %v2207 = vld [vmem:[%s1804 + $0x40] sm:$0xf]
      %v2208 = vld [vmem:[%s1804 + $0x44] sm:$0x1]
      %v2209 = vld [vmem:[%s1804 + $0x48] sm:$0xf]
      %v2210 = vld [vmem:[%s1804 + $0x4c] sm:$0xf]
      %v2211 = vld [vmem:[%s1804 + $0x50] sm:$0x1]
      %v2212 = vld [vmem:[%s1804 + $0x54] sm:$0xf]
      %v2213 = vld [vmem:[%s1804 + $0x58] sm:$0xf]
      %v2214 = vld [vmem:[%s1804 + $0x5c] sm:$0x1]
      %v2215 = vld [vmem:[%s1804 + $0x60] sm:$0xf]
      %v2216 = vld [vmem:[%s1804 + $0x64] sm:$0xf]
      %v2217 = vld [vmem:[%s1804 + $0x68] sm:$0x1]
      %v2218 = vld [vmem:[%s1804 + $0x6c] sm:$0xf]
      %v2219 = vld [vmem:[%s1804 + $0x70] sm:$0xf]
      %v2220 = vld [vmem:[%s1804 + $0x74] sm:$0x1]
      %v2221 = vld [vmem:[%s1804 + $0x78] sm:$0xf]
      %v2222 = vld [vmem:[%s1804 + $0x7c] sm:$0xf]
      %v2223 = vld [vmem:[%s1804 + $0x80] sm:$0x1]
      %v2224 = vld [vmem:[%s1804 + $0x84] sm:$0xf]
      %v2225 = vld [vmem:[%s1804 + $0x88] sm:$0xf]
      %v2226 = vld [vmem:[%s1804 + $0x8c] sm:$0x1]
      %v2227 = vld [vmem:[%s1804 + $0x90] sm:$0xf]
      %v2228 = vld [vmem:[%s1804 + $0x94] sm:$0xf]
      %v2229 = vld [vmem:[%s1804 + $0x98] sm:$0x1]
      %v2230 = vld [vmem:[%s1804 + $0x9c] sm:$0xf]
      %v2231 = vld [vmem:[%s1804 + $0xa0] sm:$0xf]
      %v2232 = vld [vmem:[%s1804 + $0xa4] sm:$0x1]
      %v2233 = vld [vmem:[%s1804 + $0xa8] sm:$0xf]
      %v2234 = vld [vmem:[%s1804 + $0xac] sm:$0xf]
      %v2235 = vld [vmem:[%s1804 + $0xb0] sm:$0x1]
      %v2236 = vld [vmem:[%s1804 + $0xb4] sm:$0xf]
      %v2237 = vld [vmem:[%s1804 + $0xb8] sm:$0xf]
      %v2238 = vld [vmem:[%s1804 + $0xbc] sm:$0x1]
      %v2240 = vshrl.u32 %v2191, 16
      %v2242 = vrot.slane %v2240, 4
      %v2243 = vshll.u32 %v2191, 16
      %v2245 = vrot.slane %v2243, 5
      %v2246 = vor.u32 %v2242, %v2245
      %v2247 = vrot.slane %v2246, 4
      %v2249 = vshll.u32 %v2192, 16
      %v2251 = vrot.slane %v2249, 5
      %v2252 = vsel %vm339, %v2247, %v2251
      %v2253 = vshrl.u32 %v2192, 16
      %v2255 = vrot.slane %v2253, 4
      %v2256 = vor.u32 %v2255, %v2251
      %v2257 = vrot.slane %v2256, 4
      %v2259 = vshll.u32 %v2193, 16
      %v2261 = vrot.slane %v2259, 5
      %v2262 = vsel %vm339, %v2257, %v2261
      %v2264 = vshrl.u32 %v2194, 16
      %v2266 = vrot.slane %v2264, 4
      %v2267 = vshll.u32 %v2194, 16
      %v2269 = vrot.slane %v2267, 5
      %v2270 = vor.u32 %v2266, %v2269
      %v2271 = vrot.slane %v2270, 4
      %v2273 = vshll.u32 %v2195, 16
      %v2275 = vrot.slane %v2273, 5
      %v2276 = vsel %vm339, %v2271, %v2275
      %v2277 = vshrl.u32 %v2195, 16
      %v2279 = vrot.slane %v2277, 4
      %v2280 = vor.u32 %v2279, %v2275
      %v2281 = vrot.slane %v2280, 4
      %v2283 = vshll.u32 %v2196, 16
      %v2285 = vrot.slane %v2283, 5
      %v2286 = vsel %vm339, %v2281, %v2285
      %v2288 = vshrl.u32 %v2197, 16
      %v2290 = vrot.slane %v2288, 4
      %v2291 = vshll.u32 %v2197, 16
      %v2293 = vrot.slane %v2291, 5
      %v2294 = vor.u32 %v2290, %v2293
      %v2295 = vrot.slane %v2294, 4
      %v2297 = vshll.u32 %v2198, 16
      %v2299 = vrot.slane %v2297, 5
      %v2300 = vsel %vm339, %v2295, %v2299
      %v2301 = vshrl.u32 %v2198, 16
      %v2303 = vrot.slane %v2301, 4
      %v2304 = vor.u32 %v2303, %v2299
      %v2305 = vrot.slane %v2304, 4
      %v2307 = vshll.u32 %v2199, 16
      %v2309 = vrot.slane %v2307, 5
      %v2310 = vsel %vm339, %v2305, %v2309
      %v2312 = vshrl.u32 %v2200, 16
      %v2314 = vrot.slane %v2312, 4
      %v2315 = vshll.u32 %v2200, 16
      %v2317 = vrot.slane %v2315, 5
      %v2318 = vor.u32 %v2314, %v2317
      %v2319 = vrot.slane %v2318, 4
      %v2321 = vshll.u32 %v2201, 16
      %v2323 = vrot.slane %v2321, 5
      %v2324 = vsel %vm339, %v2319, %v2323
      %v2325 = vshrl.u32 %v2201, 16
      %v2327 = vrot.slane %v2325, 4
      %v2328 = vor.u32 %v2327, %v2323
      %v2329 = vrot.slane %v2328, 4
      %v2331 = vshll.u32 %v2202, 16
      %v2333 = vrot.slane %v2331, 5
      %v2334 = vsel %vm339, %v2329, %v2333
      %v2336 = vshrl.u32 %v2203, 16
      %v2338 = vrot.slane %v2336, 4
      %v2339 = vshll.u32 %v2203, 16
      %v2341 = vrot.slane %v2339, 5
      %v2342 = vor.u32 %v2338, %v2341
      %v2343 = vrot.slane %v2342, 4
      %v2345 = vshll.u32 %v2204, 16
      %v2347 = vrot.slane %v2345, 5
      %v2348 = vsel %vm339, %v2343, %v2347
      %v2349 = vshrl.u32 %v2204, 16
      %v2351 = vrot.slane %v2349, 4
      %v2352 = vor.u32 %v2351, %v2347
      %v2353 = vrot.slane %v2352, 4
      %v2355 = vshll.u32 %v2205, 16
      %v2357 = vrot.slane %v2355, 5
      %v2358 = vsel %vm339, %v2353, %v2357
      %v2360 = vshrl.u32 %v2206, 16
      %v2362 = vrot.slane %v2360, 4
      %v2363 = vshll.u32 %v2206, 16
      %v2365 = vrot.slane %v2363, 5
      %v2366 = vor.u32 %v2362, %v2365
      %v2367 = vrot.slane %v2366, 4
      %v2369 = vshll.u32 %v2207, 16
      %v2371 = vrot.slane %v2369, 5
      %v2372 = vsel %vm339, %v2367, %v2371
      %v2373 = vshrl.u32 %v2207, 16
      %v2375 = vrot.slane %v2373, 4
      %v2376 = vor.u32 %v2375, %v2371
      %v2377 = vrot.slane %v2376, 4
      %v2379 = vshll.u32 %v2208, 16
      %v2381 = vrot.slane %v2379, 5
      %v2382 = vsel %vm339, %v2377, %v2381
      %v2384 = vshrl.u32 %v2209, 16
      %v2386 = vrot.slane %v2384, 4
      %v2387 = vshll.u32 %v2209, 16
      %v2389 = vrot.slane %v2387, 5
      %v2390 = vor.u32 %v2386, %v2389
      %v2391 = vrot.slane %v2390, 4
      %v2393 = vshll.u32 %v2210, 16
      %v2395 = vrot.slane %v2393, 5
      %v2396 = vsel %vm339, %v2391, %v2395
      %v2397 = vshrl.u32 %v2210, 16
      %v2399 = vrot.slane %v2397, 4
      %v2400 = vor.u32 %v2399, %v2395
      %v2401 = vrot.slane %v2400, 4
      %v2403 = vshll.u32 %v2211, 16
      %v2405 = vrot.slane %v2403, 5
      %v2406 = vsel %vm339, %v2401, %v2405
      %v2408 = vshrl.u32 %v2212, 16
      %v2410 = vrot.slane %v2408, 4
      %v2411 = vshll.u32 %v2212, 16
      %v2413 = vrot.slane %v2411, 5
      %v2414 = vor.u32 %v2410, %v2413
      %v2415 = vrot.slane %v2414, 4
      %v2417 = vshll.u32 %v2213, 16
      %v2419 = vrot.slane %v2417, 5
      %v2420 = vsel %vm339, %v2415, %v2419
      %v2421 = vshrl.u32 %v2213, 16
      %v2423 = vrot.slane %v2421, 4
      %v2424 = vor.u32 %v2423, %v2419
      %v2425 = vrot.slane %v2424, 4
      %v2427 = vshll.u32 %v2214, 16
      %v2429 = vrot.slane %v2427, 5
      %v2430 = vsel %vm339, %v2425, %v2429
      %v2432 = vshrl.u32 %v2215, 16
      %v2434 = vrot.slane %v2432, 4
      %v2435 = vshll.u32 %v2215, 16
      %v2437 = vrot.slane %v2435, 5
      %v2438 = vor.u32 %v2434, %v2437
      %v2439 = vrot.slane %v2438, 4
      %v2441 = vshll.u32 %v2216, 16
      %v2443 = vrot.slane %v2441, 5
      %v2444 = vsel %vm339, %v2439, %v2443
      %v2445 = vshrl.u32 %v2216, 16
      %v2447 = vrot.slane %v2445, 4
      %v2448 = vor.u32 %v2447, %v2443
      %v2449 = vrot.slane %v2448, 4
      %v2451 = vshll.u32 %v2217, 16
      %v2453 = vrot.slane %v2451, 5
      %v2454 = vsel %vm339, %v2449, %v2453
      %v2456 = vshrl.u32 %v2218, 16
      %v2458 = vrot.slane %v2456, 4
      %v2459 = vshll.u32 %v2218, 16
      %v2461 = vrot.slane %v2459, 5
      %v2462 = vor.u32 %v2458, %v2461
      %v2463 = vrot.slane %v2462, 4
      %v2465 = vshll.u32 %v2219, 16
      %v2467 = vrot.slane %v2465, 5
      %v2468 = vsel %vm339, %v2463, %v2467
      %v2469 = vshrl.u32 %v2219, 16
      %v2471 = vrot.slane %v2469, 4
      %v2472 = vor.u32 %v2471, %v2467
      %v2473 = vrot.slane %v2472, 4
      %v2475 = vshll.u32 %v2220, 16
      %v2477 = vrot.slane %v2475, 5
      %v2478 = vsel %vm339, %v2473, %v2477
      %v2480 = vshrl.u32 %v2221, 16
      %v2482 = vrot.slane %v2480, 4
      %v2483 = vshll.u32 %v2221, 16
      %v2485 = vrot.slane %v2483, 5
      %v2486 = vor.u32 %v2482, %v2485
      %v2487 = vrot.slane %v2486, 4
      %v2489 = vshll.u32 %v2222, 16
      %v2491 = vrot.slane %v2489, 5
      %v2492 = vsel %vm339, %v2487, %v2491
      %v2493 = vshrl.u32 %v2222, 16
      %v2495 = vrot.slane %v2493, 4
      %v2496 = vor.u32 %v2495, %v2491
      %v2497 = vrot.slane %v2496, 4
      %v2499 = vshll.u32 %v2223, 16
      %v2501 = vrot.slane %v2499, 5
      %v2502 = vsel %vm339, %v2497, %v2501
      %v2504 = vshrl.u32 %v2224, 16
      %v2506 = vrot.slane %v2504, 4
      %v2507 = vshll.u32 %v2224, 16
      %v2509 = vrot.slane %v2507, 5
      %v2510 = vor.u32 %v2506, %v2509
      %v2511 = vrot.slane %v2510, 4
      %v2513 = vshll.u32 %v2225, 16
      %v2515 = vrot.slane %v2513, 5
      %v2516 = vsel %vm339, %v2511, %v2515
      %v2517 = vshrl.u32 %v2225, 16
      %v2519 = vrot.slane %v2517, 4
      %v2520 = vor.u32 %v2519, %v2515
      %v2521 = vrot.slane %v2520, 4
      %v2523 = vshll.u32 %v2226, 16
      %v2525 = vrot.slane %v2523, 5
      %v2526 = vsel %vm339, %v2521, %v2525
      %v2528 = vshrl.u32 %v2227, 16
      %v2530 = vrot.slane %v2528, 4
      %v2531 = vshll.u32 %v2227, 16
      %v2533 = vrot.slane %v2531, 5
      %v2534 = vor.u32 %v2530, %v2533
      %v2535 = vrot.slane %v2534, 4
      %v2537 = vshll.u32 %v2228, 16
      %v2539 = vrot.slane %v2537, 5
      %v2540 = vsel %vm339, %v2535, %v2539
      %v2541 = vshrl.u32 %v2228, 16
      %v2543 = vrot.slane %v2541, 4
      %v2544 = vor.u32 %v2543, %v2539
      %v2545 = vrot.slane %v2544, 4
      %v2547 = vshll.u32 %v2229, 16
      %v2549 = vrot.slane %v2547, 5
      %v2550 = vsel %vm339, %v2545, %v2549
      %v2552 = vshrl.u32 %v2230, 16
      %v2554 = vrot.slane %v2552, 4
      %v2555 = vshll.u32 %v2230, 16
      %v2557 = vrot.slane %v2555, 5
      %v2558 = vor.u32 %v2554, %v2557
      %v2559 = vrot.slane %v2558, 4
      %v2561 = vshll.u32 %v2231, 16
      %v2563 = vrot.slane %v2561, 5
      %v2564 = vsel %vm339, %v2559, %v2563
      %v2565 = vshrl.u32 %v2231, 16
      %v2567 = vrot.slane %v2565, 4
      %v2568 = vor.u32 %v2567, %v2563
      %v2569 = vrot.slane %v2568, 4
      %v2571 = vshll.u32 %v2232, 16
      %v2573 = vrot.slane %v2571, 5
      %v2574 = vsel %vm339, %v2569, %v2573
      %v2576 = vshrl.u32 %v2233, 16
      %v2578 = vrot.slane %v2576, 4
      %v2579 = vshll.u32 %v2233, 16
      %v2581 = vrot.slane %v2579, 5
      %v2582 = vor.u32 %v2578, %v2581
      %v2583 = vrot.slane %v2582, 4
      %v2585 = vshll.u32 %v2234, 16
      %v2587 = vrot.slane %v2585, 5
      %v2588 = vsel %vm339, %v2583, %v2587
      %v2589 = vshrl.u32 %v2234, 16
      %v2591 = vrot.slane %v2589, 4
      %v2592 = vor.u32 %v2591, %v2587
      %v2593 = vrot.slane %v2592, 4
      %v2595 = vshll.u32 %v2235, 16
      %v2597 = vrot.slane %v2595, 5
      %v2598 = vsel %vm339, %v2593, %v2597
      %v2600 = vshrl.u32 %v2236, 16
      %v2602 = vrot.slane %v2600, 4
      %v2603 = vshll.u32 %v2236, 16
      %v2605 = vrot.slane %v2603, 5
      %v2606 = vor.u32 %v2602, %v2605
      %v2607 = vrot.slane %v2606, 4
      %v2609 = vshll.u32 %v2237, 16
      %v2611 = vrot.slane %v2609, 5
      %v2612 = vsel %vm339, %v2607, %v2611
      %v2613 = vshrl.u32 %v2237, 16
      %v2615 = vrot.slane %v2613, 4
      %v2616 = vor.u32 %v2615, %v2611
      %v2617 = vrot.slane %v2616, 4
      %v2619 = vshll.u32 %v2238, 16
      %v2621 = vrot.slane %v2619, 5
      %v2622 = vsel %vm339, %v2617, %v2621
      %s2623 = scalar_lea.vmem %s1, 256
      %v2624 = vld [vmem:[%s2623] sm:$0xf]
      %v2625 = vld [vmem:[%s2623 + $0x4] sm:$0xf]
      %v2626 = vld [vmem:[%s2623 + $0x8] sm:$0xf]
      %v2627 = vld [vmem:[%s2623 + $0xc] sm:$0xf]
      %v2628 = vld [vmem:[%s2623 + $0x10] sm:$0xf]
      %v2629 = vld [vmem:[%s2623 + $0x14] sm:$0xf]
      %v2630 = vld [vmem:[%s2623 + $0x18] sm:$0xf]
      %v2631 = vld [vmem:[%s2623 + $0x1c] sm:$0xf]
      %v2632 = vld [vmem:[%s2623 + $0x20] sm:$0xf]
      %v2633 = vld [vmem:[%s2623 + $0x24] sm:$0xf]
      %v2634 = vld [vmem:[%s2623 + $0x28] sm:$0xf]
      %v2635 = vld [vmem:[%s2623 + $0x2c] sm:$0xf]
      %v2636 = vld [vmem:[%s2623 + $0x30] sm:$0xf]
      %v2637 = vld [vmem:[%s2623 + $0x34] sm:$0xf]
      %v2638 = vld [vmem:[%s2623 + $0x38] sm:$0xf]
      %v2639 = vld [vmem:[%s2623 + $0x3c] sm:$0xf]
      %v2640 = vunpack.c.l.b16 %v2252
      %v2641 = vunpack.c.l.b16 %v2262
      %v2642 = vunpack.c.l.b16 %v2276
      %v2643 = vunpack.c.l.b16 %v2286
      %v2644 = vunpack.c.l.b16 %v2300
      %v2645 = vunpack.c.l.b16 %v2310
      %v2646 = vunpack.c.l.b16 %v2324
      %v2647 = vunpack.c.l.b16 %v2334
      %v2648 = vunpack.c.l.b16 %v2348
      %v2649 = vunpack.c.l.b16 %v2358
      %v2650 = vunpack.c.l.b16 %v2372
      %v2651 = vunpack.c.l.b16 %v2382
      %v2652 = vunpack.c.l.b16 %v2396
      %v2653 = vunpack.c.l.b16 %v2406
      %v2654 = vunpack.c.l.b16 %v2420
      %v2655 = vunpack.c.l.b16 %v2430
      %v2656 = vunpack.c.l.b16 %v2444
      %v2657 = vunpack.c.l.b16 %v2454
      %v2658 = vunpack.c.l.b16 %v2468
      %v2659 = vunpack.c.l.b16 %v2478
      %v2660 = vunpack.c.l.b16 %v2492
      %v2661 = vunpack.c.l.b16 %v2502
      %v2662 = vunpack.c.l.b16 %v2516
      %v2663 = vunpack.c.l.b16 %v2526
      %v2664 = vunpack.c.l.b16 %v2540
      %v2665 = vunpack.c.l.b16 %v2550
      %v2666 = vunpack.c.l.b16 %v2564
      %v2667 = vunpack.c.l.b16 %v2574
      %v2668 = vunpack.c.l.b16 %v2588
      %v2669 = vunpack.c.l.b16 %v2598
      %v2670 = vunpack.c.l.b16 %v2612
      %v2671 = vunpack.c.l.b16 %v2622
      %v2672 = vpack.c.b16 %v2641, %v2640
      %v2673 = vpack.c.b16 %v2643, %v2642
      %v2674 = vpack.c.b16 %v2645, %v2644
      %v2675 = vpack.c.b16 %v2647, %v2646
      %v2676 = vpack.c.b16 %v2649, %v2648
      %v2677 = vpack.c.b16 %v2651, %v2650
      %v2678 = vpack.c.b16 %v2653, %v2652
      %v2679 = vpack.c.b16 %v2655, %v2654
      %v2680 = vpack.c.b16 %v2657, %v2656
      %v2681 = vpack.c.b16 %v2659, %v2658
      %v2682 = vpack.c.b16 %v2661, %v2660
      %v2683 = vpack.c.b16 %v2663, %v2662
      %v2684 = vpack.c.b16 %v2665, %v2664
      %v2685 = vpack.c.b16 %v2667, %v2666
      %v2686 = vpack.c.b16 %v2669, %v2668
      %v2687 = vpack.c.b16 %v2671, %v2670
      %v2720 = vunpack.c.l.b16 %v2624
      %v2721 = vunpack.c.l.b16 %v2625
      %v2722 = vunpack.c.l.b16 %v2626
      %v2723 = vunpack.c.l.b16 %v2627
      %v2724 = vunpack.c.l.b16 %v2628
      %v2725 = vunpack.c.l.b16 %v2629
      %v2726 = vunpack.c.l.b16 %v2630
      %v2727 = vunpack.c.l.b16 %v2631
      %v2728 = vunpack.c.l.b16 %v2632
      %v2729 = vunpack.c.l.b16 %v2633
      %v2730 = vunpack.c.l.b16 %v2634
      %v2731 = vunpack.c.l.b16 %v2635
      %v2732 = vunpack.c.l.b16 %v2636
      %v2733 = vunpack.c.l.b16 %v2637
      %v2734 = vunpack.c.l.b16 %v2638
      %v2735 = vunpack.c.l.b16 %v2639
      %v2736 = vpack.c.b16 %v2721, %v2720
      %v2737 = vpack.c.b16 %v2723, %v2722
      %v2738 = vpack.c.b16 %v2725, %v2724
      %v2739 = vpack.c.b16 %v2727, %v2726
      %v2740 = vpack.c.b16 %v2729, %v2728
      %v2741 = vpack.c.b16 %v2731, %v2730
      %v2742 = vpack.c.b16 %v2733, %v2732
      %v2743 = vpack.c.b16 %v2735, %v2734
      %2752 = vmatprep.subr.bf16.mxu0 0
      %2753 = vmatpush1.bf16.msra.mxu0 %v2743
      %2754 = vmatprep.subr.bf16.mxu0 0
      %2755 = vmatpush1.bf16.msra.mxu0 %v2742
      %2756 = vmatprep.subr.bf16.mxu0 0
      %2757 = vmatpush1.bf16.msra.mxu0 %v2741
      %2758 = vmatprep.subr.bf16.mxu0 0
      %2759 = vmatpush1.bf16.msra.mxu0 %v2740
      %2760 = vmatprep.subr.bf16.mxu0 0
      %2761 = vmatpush1.bf16.msra.mxu0 %v2739
      %2762 = vmatprep.subr.bf16.mxu0 0
      %2763 = vmatpush1.bf16.msra.mxu0 %v2738
      %2764 = vmatprep.subr.bf16.mxu0 0
      %2765 = vmatpush1.bf16.msra.mxu0 %v2737
      %2766 = vmatprep.subr.bf16.mxu0 0
      %2767 = vmatpush1.bf16.msra.mxu0 %v2736
      %2768 = vmatprep.subr.bf16.mxu0 0
      %2769 = vmatpush2.bf16.msra.mxu0 0
      %2770 = vmatprep.subr.bf16.mxu0 0
      %2771 = vmatpush2.bf16.msra.mxu0 0
      %2772 = vmatprep.subr.bf16.mxu0 0
      %2773 = vmatpush2.bf16.msra.mxu0 0
      %2774 = vmatprep.subr.bf16.mxu0 0
      %2775 = vmatpush2.bf16.msra.mxu0 0
      %2776 = vmatprep.subr.bf16.mxu0 0
      %2777 = vmatpush2.bf16.msra.mxu0 0
      %2778 = vmatprep.subr.bf16.mxu0 0
      %2779 = vmatpush2.bf16.msra.mxu0 0
      %2780 = vmatprep.subr.bf16.mxu0 0
      %2781 = vmatpush2.bf16.msra.mxu0 0
      %2782 = vmatprep.subr.bf16.mxu0 0
      %2783 = vmatpush2.bf16.msra.mxu0 0
      %2784 = vmatprep.mubr.bf16.mxu0 0
      %2785 = vmatmul.mubr.bf16.gmra.mxu0 %v2672
      %v2786 = vpop.f32.mrf.mxu0
      %v2787 = vadd.f32 0.0, %v2786
      %v2788 = vpop.f32.mrf.mxu0
      %v2789 = vpop.f32.mrf.mxu0
      %v2790 = vadd.f32 0.0, %v2789
      %v2791 = vpop.f32.mrf.mxu0
      %2792 = vmatprep.mubr.bf16.mxu0 0
      %2793 = vmatmul.mubr.bf16.gmra.mxu0 %v2673
      %v2794 = vpop.f32.mrf.mxu0
      %v2795 = vadd.f32 0.0, %v2794
      %v2796 = vpop.f32.mrf.mxu0
      %v2797 = vpop.f32.mrf.mxu0
      %v2798 = vadd.f32 0.0, %v2797
      %v2799 = vpop.f32.mrf.mxu0
      %2800 = vmatprep.mubr.bf16.mxu0 0
      %2801 = vmatmul.mubr.bf16.gmra.mxu0 %v2674
      %v2802 = vpop.f32.mrf.mxu0
      %v2803 = vadd.f32 0.0, %v2802
      %v2804 = vpop.f32.mrf.mxu0
      %v2805 = vpop.f32.mrf.mxu0
      %v2806 = vadd.f32 0.0, %v2805
      %v2807 = vpop.f32.mrf.mxu0
      %2808 = vmatprep.mubr.bf16.mxu0 0
      %2809 = vmatmul.mubr.bf16.gmra.mxu0 %v2675
      %v2810 = vpop.f32.mrf.mxu0
      %v2811 = vadd.f32 0.0, %v2810
      %v2812 = vpop.f32.mrf.mxu0
      %v2813 = vpop.f32.mrf.mxu0
      %v2814 = vadd.f32 0.0, %v2813
      %v2815 = vpop.f32.mrf.mxu0
      %2816 = vmatprep.mubr.bf16.mxu0 0
      %2817 = vmatmul.mubr.bf16.gmra.mxu0 %v2676
      %v2818 = vpop.f32.mrf.mxu0
      %v2819 = vadd.f32 0.0, %v2818
      %v2820 = vpop.f32.mrf.mxu0
      %v2821 = vpop.f32.mrf.mxu0
      %v2822 = vadd.f32 0.0, %v2821
      %v2823 = vpop.f32.mrf.mxu0
      %2824 = vmatprep.mubr.bf16.mxu0 0
      %2825 = vmatmul.mubr.bf16.gmra.mxu0 %v2677
      %v2826 = vpop.f32.mrf.mxu0
      %v2827 = vadd.f32 0.0, %v2826
      %v2828 = vpop.f32.mrf.mxu0
      %v2829 = vpop.f32.mrf.mxu0
      %v2830 = vadd.f32 0.0, %v2829
      %v2831 = vpop.f32.mrf.mxu0
      %2832 = vmatprep.mubr.bf16.mxu0 0
      %2833 = vmatmul.mubr.bf16.gmra.mxu0 %v2678
      %v2834 = vpop.f32.mrf.mxu0
      %v2835 = vadd.f32 0.0, %v2834
      %v2836 = vpop.f32.mrf.mxu0
      %v2837 = vpop.f32.mrf.mxu0
      %v2838 = vadd.f32 0.0, %v2837
      %v2839 = vpop.f32.mrf.mxu0
      %2840 = vmatprep.mubr.bf16.mxu0 0
      %2841 = vmatmul.mubr.bf16.gmra.mxu0 %v2679
      %v2842 = vpop.f32.mrf.mxu0
      %v2843 = vadd.f32 0.0, %v2842
      %v2844 = vpop.f32.mrf.mxu0
      %v2845 = vpop.f32.mrf.mxu0
      %v2846 = vadd.f32 0.0, %v2845
      %v2847 = vpop.f32.mrf.mxu0
      %2848 = vmatprep.mubr.bf16.mxu0 0
      %2849 = vmatmul.mubr.bf16.gmra.mxu0 %v2680
      %v2850 = vpop.f32.mrf.mxu0
      %v2851 = vadd.f32 0.0, %v2850
      %v2852 = vpop.f32.mrf.mxu0
      %v2853 = vpop.f32.mrf.mxu0
      %v2854 = vadd.f32 0.0, %v2853
      %v2855 = vpop.f32.mrf.mxu0
      %2856 = vmatprep.mubr.bf16.mxu0 0
      %2857 = vmatmul.mubr.bf16.gmra.mxu0 %v2681
      %v2858 = vpop.f32.mrf.mxu0
      %v2859 = vadd.f32 0.0, %v2858
      %v2860 = vpop.f32.mrf.mxu0
      %v2861 = vpop.f32.mrf.mxu0
      %v2862 = vadd.f32 0.0, %v2861
      %v2863 = vpop.f32.mrf.mxu0
      %2864 = vmatprep.mubr.bf16.mxu0 0
      %2865 = vmatmul.mubr.bf16.gmra.mxu0 %v2682
      %v2866 = vpop.f32.mrf.mxu0
      %v2867 = vadd.f32 0.0, %v2866
      %v2868 = vpop.f32.mrf.mxu0
      %v2869 = vpop.f32.mrf.mxu0
      %v2870 = vadd.f32 0.0, %v2869
      %v2871 = vpop.f32.mrf.mxu0
      %2872 = vmatprep.mubr.bf16.mxu0 0
      %2873 = vmatmul.mubr.bf16.gmra.mxu0 %v2683
      %v2874 = vpop.f32.mrf.mxu0
      %v2875 = vadd.f32 0.0, %v2874
      %v2876 = vpop.f32.mrf.mxu0
      %v2877 = vpop.f32.mrf.mxu0
      %v2878 = vadd.f32 0.0, %v2877
      %v2879 = vpop.f32.mrf.mxu0
      %2880 = vmatprep.mubr.bf16.mxu0 0
      %2881 = vmatmul.mubr.bf16.gmra.mxu0 %v2684
      %v2882 = vpop.f32.mrf.mxu0
      %v2883 = vadd.f32 0.0, %v2882
      %v2884 = vpop.f32.mrf.mxu0
      %v2885 = vpop.f32.mrf.mxu0
      %v2886 = vadd.f32 0.0, %v2885
      %v2887 = vpop.f32.mrf.mxu0
      %2888 = vmatprep.mubr.bf16.mxu0 0
      %2889 = vmatmul.mubr.bf16.gmra.mxu0 %v2685
      %v2890 = vpop.f32.mrf.mxu0
      %v2891 = vadd.f32 0.0, %v2890
      %v2892 = vpop.f32.mrf.mxu0
      %v2893 = vpop.f32.mrf.mxu0
      %v2894 = vadd.f32 0.0, %v2893
      %v2895 = vpop.f32.mrf.mxu0
      %2896 = vmatprep.mubr.bf16.mxu0 0
      %2897 = vmatmul.mubr.bf16.gmra.mxu0 %v2686
      %v2898 = vpop.f32.mrf.mxu0
      %v2899 = vadd.f32 0.0, %v2898
      %v2900 = vpop.f32.mrf.mxu0
      %v2901 = vpop.f32.mrf.mxu0
      %v2902 = vadd.f32 0.0, %v2901
      %v2903 = vpop.f32.mrf.mxu0
      %2904 = vmatprep.mubr.bf16.mxu0 0
      %2905 = vmatmul.mubr.bf16.gmra.mxu0 %v2687
      %v2906 = vpop.f32.mrf.mxu0
      %v2907 = vadd.f32 0.0, %v2906
      %v2908 = vpop.f32.mrf.mxu0
      %v2909 = vpop.f32.mrf.mxu0
      %v2910 = vadd.f32 0.0, %v2909
      %v2911 = vpop.f32.mrf.mxu0
      %2912 = vdwg.mxu0
      %v2913 = vadd.f32 %v2159, %v2787
      %v2914 = vadd.f32 %v2160, %v2790
      %v2915 = vadd.f32 %v2161, %v2795
      %v2916 = vadd.f32 %v2162, %v2798
      %v2917 = vadd.f32 %v2163, %v2803
      %v2918 = vadd.f32 %v2164, %v2806
      %v2919 = vadd.f32 %v2165, %v2811
      %v2920 = vadd.f32 %v2166, %v2814
      %v2921 = vadd.f32 %v2167, %v2819
      %v2922 = vadd.f32 %v2168, %v2822
      %v2923 = vadd.f32 %v2169, %v2827
      %v2924 = vadd.f32 %v2170, %v2830
      %v2925 = vadd.f32 %v2171, %v2835
      %v2926 = vadd.f32 %v2172, %v2838
      %v2927 = vadd.f32 %v2173, %v2843
      %v2928 = vadd.f32 %v2174, %v2846
      %v2929 = vadd.f32 %v2175, %v2851
      %v2930 = vadd.f32 %v2176, %v2854
      %v2931 = vadd.f32 %v2177, %v2859
      %v2932 = vadd.f32 %v2178, %v2862
      %v2933 = vadd.f32 %v2179, %v2867
      %v2934 = vadd.f32 %v2180, %v2870
      %v2935 = vadd.f32 %v2181, %v2875
      %v2936 = vadd.f32 %v2182, %v2878
      %v2937 = vadd.f32 %v2183, %v2883
      %v2938 = vadd.f32 %v2184, %v2886
      %v2939 = vadd.f32 %v2185, %v2891
      %v2940 = vadd.f32 %v2186, %v2894
      %v2941 = vadd.f32 %v2187, %v2899
      %v2942 = vadd.f32 %v2188, %v2902
      %v2943 = vadd.f32 %v2189, %v2907
      %v2944 = vadd.f32 %v2190, %v2910
      %v2945 = vld [vmem:[%s1804] sm:$0xe]
      %v2946 = vld [vmem:[%s1804 + $0xc] sm:$0xe]
      %v2947 = vld [vmem:[%s1804 + $0x18] sm:$0xe]
      %v2948 = vld [vmem:[%s1804 + $0x24] sm:$0xe]
      %v2949 = vld [vmem:[%s1804 + $0x30] sm:$0xe]
      %v2950 = vld [vmem:[%s1804 + $0x3c] sm:$0xe]
      %v2951 = vld [vmem:[%s1804 + $0x48] sm:$0xe]
      %v2952 = vld [vmem:[%s1804 + $0x54] sm:$0xe]
      %v2953 = vld [vmem:[%s1804 + $0x60] sm:$0xe]
      %v2954 = vld [vmem:[%s1804 + $0x6c] sm:$0xe]
      %v2955 = vld [vmem:[%s1804 + $0x78] sm:$0xe]
      %v2956 = vld [vmem:[%s1804 + $0x84] sm:$0xe]
      %v2957 = vld [vmem:[%s1804 + $0x90] sm:$0xe]
      %v2958 = vld [vmem:[%s1804 + $0x9c] sm:$0xe]
      %v2959 = vld [vmem:[%s1804 + $0xa8] sm:$0xe]
      %v2960 = vld [vmem:[%s1804 + $0xb4] sm:$0xe]
      %v3009 = vrot.slane %v2945, 5
      %v3010 = vrot.slane %v3009, 4
      %v3011 = vrot.slane %v2192, 5
      %v3012 = vsel %vm1369, %v3010, %v3011
      %v3013 = vrot.slane %v3011, 4
      %v3014 = vrot.slane %v2193, 5
      %v3015 = vsel %vm1369, %v3013, %v3014
      %v3016 = vrot.slane %v2946, 5
      %v3017 = vrot.slane %v3016, 4
      %v3018 = vrot.slane %v2195, 5
      %v3019 = vsel %vm1369, %v3017, %v3018
      %v3020 = vrot.slane %v3018, 4
      %v3021 = vrot.slane %v2196, 5
      %v3022 = vsel %vm1369, %v3020, %v3021
      %v3023 = vrot.slane %v2947, 5
      %v3024 = vrot.slane %v3023, 4
      %v3025 = vrot.slane %v2198, 5
      %v3026 = vsel %vm1369, %v3024, %v3025
      %v3027 = vrot.slane %v3025, 4
      %v3028 = vrot.slane %v2199, 5
      %v3029 = vsel %vm1369, %v3027, %v3028
      %v3030 = vrot.slane %v2948, 5
      %v3031 = vrot.slane %v3030, 4
      %v3032 = vrot.slane %v2201, 5
      %v3033 = vsel %vm1369, %v3031, %v3032
      %v3034 = vrot.slane %v3032, 4
      %v3035 = vrot.slane %v2202, 5
      %v3036 = vsel %vm1369, %v3034, %v3035
      %v3037 = vrot.slane %v2949, 5
      %v3038 = vrot.slane %v3037, 4
      %v3039 = vrot.slane %v2204, 5
      %v3040 = vsel %vm1369, %v3038, %v3039
      %v3041 = vrot.slane %v3039, 4
      %v3042 = vrot.slane %v2205, 5
      %v3043 = vsel %vm1369, %v3041, %v3042
      %v3044 = vrot.slane %v2950, 5
      %v3045 = vrot.slane %v3044, 4
      %v3046 = vrot.slane %v2207, 5
      %v3047 = vsel %vm1369, %v3045, %v3046
      %v3048 = vrot.slane %v3046, 4
      %v3049 = vrot.slane %v2208, 5
      %v3050 = vsel %vm1369, %v3048, %v3049
      %v3051 = vrot.slane %v2951, 5
      %v3052 = vrot.slane %v3051, 4
      %v3053 = vrot.slane %v2210, 5
      %v3054 = vsel %vm1369, %v3052, %v3053
      %v3055 = vrot.slane %v3053, 4
      %v3056 = vrot.slane %v2211, 5
      %v3057 = vsel %vm1369, %v3055, %v3056
      %v3058 = vrot.slane %v2952, 5
      %v3059 = vrot.slane %v3058, 4
      %v3060 = vrot.slane %v2213, 5
      %v3061 = vsel %vm1369, %v3059, %v3060
      %v3062 = vrot.slane %v3060, 4
      %v3063 = vrot.slane %v2214, 5
      %v3064 = vsel %vm1369, %v3062, %v3063
      %v3065 = vrot.slane %v2953, 5
      %v3066 = vrot.slane %v3065, 4
      %v3067 = vrot.slane %v2216, 5
      %v3068 = vsel %vm1369, %v3066, %v3067
      %v3069 = vrot.slane %v3067, 4
      %v3070 = vrot.slane %v2217, 5
      %v3071 = vsel %vm1369, %v3069, %v3070
      %v3072 = vrot.slane %v2954, 5
      %v3073 = vrot.slane %v3072, 4
      %v3074 = vrot.slane %v2219, 5
      %v3075 = vsel %vm1369, %v3073, %v3074
      %v3076 = vrot.slane %v3074, 4
      %v3077 = vrot.slane %v2220, 5
      %v3078 = vsel %vm1369, %v3076, %v3077
      %v3079 = vrot.slane %v2955, 5
      %v3080 = vrot.slane %v3079, 4
      %v3081 = vrot.slane %v2222, 5
      %v3082 = vsel %vm1369, %v3080, %v3081
      %v3083 = vrot.slane %v3081, 4
      %v3084 = vrot.slane %v2223, 5
      %v3085 = vsel %vm1369, %v3083, %v3084
      %v3086 = vrot.slane %v2956, 5
      %v3087 = vrot.slane %v3086, 4
      %v3088 = vrot.slane %v2225, 5
      %v3089 = vsel %vm1369, %v3087, %v3088
      %v3090 = vrot.slane %v3088, 4
      %v3091 = vrot.slane %v2226, 5
      %v3092 = vsel %vm1369, %v3090, %v3091
      %v3093 = vrot.slane %v2957, 5
      %v3094 = vrot.slane %v3093, 4
      %v3095 = vrot.slane %v2228, 5
      %v3096 = vsel %vm1369, %v3094, %v3095
      %v3097 = vrot.slane %v3095, 4
      %v3098 = vrot.slane %v2229, 5
      %v3099 = vsel %vm1369, %v3097, %v3098
      %v3100 = vrot.slane %v2958, 5
      %v3101 = vrot.slane %v3100, 4
      %v3102 = vrot.slane %v2231, 5
      %v3103 = vsel %vm1369, %v3101, %v3102
      %v3104 = vrot.slane %v3102, 4
      %v3105 = vrot.slane %v2232, 5
      %v3106 = vsel %vm1369, %v3104, %v3105
      %v3107 = vrot.slane %v2959, 5
      %v3108 = vrot.slane %v3107, 4
      %v3109 = vrot.slane %v2234, 5
      %v3110 = vsel %vm1369, %v3108, %v3109
      %v3111 = vrot.slane %v3109, 4
      %v3112 = vrot.slane %v2235, 5
      %v3113 = vsel %vm1369, %v3111, %v3112
      %v3114 = vrot.slane %v2960, 5
      %v3115 = vrot.slane %v3114, 4
      %v3116 = vrot.slane %v2237, 5
      %v3117 = vsel %vm1369, %v3115, %v3116
      %v3118 = vrot.slane %v3116, 4
      %v3119 = vrot.slane %v2238, 5
      %v3120 = vsel %vm1369, %v3118, %v3119
      %s3121 = scalar_lea.vmem %s1, 320
      %v3122 = vld [vmem:[%s3121] sm:$0xf]
      %v3123 = vld [vmem:[%s3121 + $0x4] sm:$0xf]
      %v3124 = vld [vmem:[%s3121 + $0x8] sm:$0xf]
      %v3125 = vld [vmem:[%s3121 + $0xc] sm:$0xf]
      %v3126 = vld [vmem:[%s3121 + $0x10] sm:$0xf]
      %v3127 = vld [vmem:[%s3121 + $0x14] sm:$0xf]
      %v3128 = vld [vmem:[%s3121 + $0x18] sm:$0xf]
      %v3129 = vld [vmem:[%s3121 + $0x1c] sm:$0xf]
      %v3130 = vld [vmem:[%s3121 + $0x20] sm:$0xf]
      %v3131 = vld [vmem:[%s3121 + $0x24] sm:$0xf]
      %v3132 = vld [vmem:[%s3121 + $0x28] sm:$0xf]
      %v3133 = vld [vmem:[%s3121 + $0x2c] sm:$0xf]
      %v3134 = vld [vmem:[%s3121 + $0x30] sm:$0xf]
      %v3135 = vld [vmem:[%s3121 + $0x34] sm:$0xf]
      %v3136 = vld [vmem:[%s3121 + $0x38] sm:$0xf]
      %v3137 = vld [vmem:[%s3121 + $0x3c] sm:$0xf]
      %v3138 = vunpack.c.l.b16 %v3012
      %v3139 = vunpack.c.l.b16 %v3015
      %v3140 = vunpack.c.l.b16 %v3019
      %v3141 = vunpack.c.l.b16 %v3022
      %v3142 = vunpack.c.l.b16 %v3026
      %v3143 = vunpack.c.l.b16 %v3029
      %v3144 = vunpack.c.l.b16 %v3033
      %v3145 = vunpack.c.l.b16 %v3036
      %v3146 = vunpack.c.l.b16 %v3040
      %v3147 = vunpack.c.l.b16 %v3043
      %v3148 = vunpack.c.l.b16 %v3047
      %v3149 = vunpack.c.l.b16 %v3050
      %v3150 = vunpack.c.l.b16 %v3054
      %v3151 = vunpack.c.l.b16 %v3057
      %v3152 = vunpack.c.l.b16 %v3061
      %v3153 = vunpack.c.l.b16 %v3064
      %v3154 = vunpack.c.l.b16 %v3068
      %v3155 = vunpack.c.l.b16 %v3071
      %v3156 = vunpack.c.l.b16 %v3075
      %v3157 = vunpack.c.l.b16 %v3078
      %v3158 = vunpack.c.l.b16 %v3082
      %v3159 = vunpack.c.l.b16 %v3085
      %v3160 = vunpack.c.l.b16 %v3089
      %v3161 = vunpack.c.l.b16 %v3092
      %v3162 = vunpack.c.l.b16 %v3096
      %v3163 = vunpack.c.l.b16 %v3099
      %v3164 = vunpack.c.l.b16 %v3103
      %v3165 = vunpack.c.l.b16 %v3106
      %v3166 = vunpack.c.l.b16 %v3110
      %v3167 = vunpack.c.l.b16 %v3113
      %v3168 = vunpack.c.l.b16 %v3117
      %v3169 = vunpack.c.l.b16 %v3120
      %v3170 = vpack.c.b16 %v3139, %v3138
      %v3171 = vpack.c.b16 %v3141, %v3140
      %v3172 = vpack.c.b16 %v3143, %v3142
      %v3173 = vpack.c.b16 %v3145, %v3144
      %v3174 = vpack.c.b16 %v3147, %v3146
      %v3175 = vpack.c.b16 %v3149, %v3148
      %v3176 = vpack.c.b16 %v3151, %v3150
      %v3177 = vpack.c.b16 %v3153, %v3152
      %v3178 = vpack.c.b16 %v3155, %v3154
      %v3179 = vpack.c.b16 %v3157, %v3156
      %v3180 = vpack.c.b16 %v3159, %v3158
      %v3181 = vpack.c.b16 %v3161, %v3160
      %v3182 = vpack.c.b16 %v3163, %v3162
      %v3183 = vpack.c.b16 %v3165, %v3164
      %v3184 = vpack.c.b16 %v3167, %v3166
      %v3185 = vpack.c.b16 %v3169, %v3168
      %v3218 = vunpack.c.l.b16 %v3122
      %v3219 = vunpack.c.l.b16 %v3123
      %v3220 = vunpack.c.l.b16 %v3124
      %v3221 = vunpack.c.l.b16 %v3125
      %v3222 = vunpack.c.l.b16 %v3126
      %v3223 = vunpack.c.l.b16 %v3127
      %v3224 = vunpack.c.l.b16 %v3128
      %v3225 = vunpack.c.l.b16 %v3129
      %v3226 = vunpack.c.l.b16 %v3130
      %v3227 = vunpack.c.l.b16 %v3131
      %v3228 = vunpack.c.l.b16 %v3132
      %v3229 = vunpack.c.l.b16 %v3133
      %v3230 = vunpack.c.l.b16 %v3134
      %v3231 = vunpack.c.l.b16 %v3135
      %v3232 = vunpack.c.l.b16 %v3136
      %v3233 = vunpack.c.l.b16 %v3137
      %v3234 = vpack.c.b16 %v3219, %v3218
      %v3235 = vpack.c.b16 %v3221, %v3220
      %v3236 = vpack.c.b16 %v3223, %v3222
      %v3237 = vpack.c.b16 %v3225, %v3224
      %v3238 = vpack.c.b16 %v3227, %v3226
      %v3239 = vpack.c.b16 %v3229, %v3228
      %v3240 = vpack.c.b16 %v3231, %v3230
      %v3241 = vpack.c.b16 %v3233, %v3232
      %3250 = vmatprep.subr.bf16.mxu0 0
      %3251 = vmatpush1.bf16.msra.mxu0 %v3241
      %3252 = vmatprep.subr.bf16.mxu0 0
      %3253 = vmatpush1.bf16.msra.mxu0 %v3240
      %3254 = vmatprep.subr.bf16.mxu0 0
      %3255 = vmatpush1.bf16.msra.mxu0 %v3239
      %3256 = vmatprep.subr.bf16.mxu0 0
      %3257 = vmatpush1.bf16.msra.mxu0 %v3238
      %3258 = vmatprep.subr.bf16.mxu0 0
      %3259 = vmatpush1.bf16.msra.mxu0 %v3237
      %3260 = vmatprep.subr.bf16.mxu0 0
      %3261 = vmatpush1.bf16.msra.mxu0 %v3236
      %3262 = vmatprep.subr.bf16.mxu0 0
      %3263 = vmatpush1.bf16.msra.mxu0 %v3235
      %3264 = vmatprep.subr.bf16.mxu0 0
      %3265 = vmatpush1.bf16.msra.mxu0 %v3234
      %3266 = vmatprep.subr.bf16.mxu0 0
      %3267 = vmatpush2.bf16.msra.mxu0 0
      %3268 = vmatprep.subr.bf16.mxu0 0
      %3269 = vmatpush2.bf16.msra.mxu0 0
      %3270 = vmatprep.subr.bf16.mxu0 0
      %3271 = vmatpush2.bf16.msra.mxu0 0
      %3272 = vmatprep.subr.bf16.mxu0 0
      %3273 = vmatpush2.bf16.msra.mxu0 0
      %3274 = vmatprep.subr.bf16.mxu0 0
      %3275 = vmatpush2.bf16.msra.mxu0 0
      %3276 = vmatprep.subr.bf16.mxu0 0
      %3277 = vmatpush2.bf16.msra.mxu0 0
      %3278 = vmatprep.subr.bf16.mxu0 0
      %3279 = vmatpush2.bf16.msra.mxu0 0
      %3280 = vmatprep.subr.bf16.mxu0 0
      %3281 = vmatpush2.bf16.msra.mxu0 0
      %3282 = vmatprep.mubr.bf16.mxu0 0
      %3283 = vmatmul.mubr.bf16.gmra.mxu0 %v3170
      %v3284 = vpop.f32.mrf.mxu0
      %v3285 = vadd.f32 0.0, %v3284
      %v3286 = vpop.f32.mrf.mxu0
      %v3287 = vpop.f32.mrf.mxu0
      %v3288 = vadd.f32 0.0, %v3287
      %v3289 = vpop.f32.mrf.mxu0
      %3290 = vmatprep.mubr.bf16.mxu0 0
      %3291 = vmatmul.mubr.bf16.gmra.mxu0 %v3171
      %v3292 = vpop.f32.mrf.mxu0
      %v3293 = vadd.f32 0.0, %v3292
      %v3294 = vpop.f32.mrf.mxu0
      %v3295 = vpop.f32.mrf.mxu0
      %v3296 = vadd.f32 0.0, %v3295
      %v3297 = vpop.f32.mrf.mxu0
      %3298 = vmatprep.mubr.bf16.mxu0 0
      %3299 = vmatmul.mubr.bf16.gmra.mxu0 %v3172
      %v3300 = vpop.f32.mrf.mxu0
      %v3301 = vadd.f32 0.0, %v3300
      %v3302 = vpop.f32.mrf.mxu0
      %v3303 = vpop.f32.mrf.mxu0
      %v3304 = vadd.f32 0.0, %v3303
      %v3305 = vpop.f32.mrf.mxu0
      %3306 = vmatprep.mubr.bf16.mxu0 0
      %3307 = vmatmul.mubr.bf16.gmra.mxu0 %v3173
      %v3308 = vpop.f32.mrf.mxu0
      %v3309 = vadd.f32 0.0, %v3308
      %v3310 = vpop.f32.mrf.mxu0
      %v3311 = vpop.f32.mrf.mxu0
      %v3312 = vadd.f32 0.0, %v3311
      %v3313 = vpop.f32.mrf.mxu0
      %3314 = vmatprep.mubr.bf16.mxu0 0
      %3315 = vmatmul.mubr.bf16.gmra.mxu0 %v3174
      %v3316 = vpop.f32.mrf.mxu0
      %v3317 = vadd.f32 0.0, %v3316
      %v3318 = vpop.f32.mrf.mxu0
      %v3319 = vpop.f32.mrf.mxu0
      %v3320 = vadd.f32 0.0, %v3319
      %v3321 = vpop.f32.mrf.mxu0
      %3322 = vmatprep.mubr.bf16.mxu0 0
      %3323 = vmatmul.mubr.bf16.gmra.mxu0 %v3175
      %v3324 = vpop.f32.mrf.mxu0
      %v3325 = vadd.f32 0.0, %v3324
      %v3326 = vpop.f32.mrf.mxu0
      %v3327 = vpop.f32.mrf.mxu0
      %v3328 = vadd.f32 0.0, %v3327
      %v3329 = vpop.f32.mrf.mxu0
      %3330 = vmatprep.mubr.bf16.mxu0 0
      %3331 = vmatmul.mubr.bf16.gmra.mxu0 %v3176
      %v3332 = vpop.f32.mrf.mxu0
      %v3333 = vadd.f32 0.0, %v3332
      %v3334 = vpop.f32.mrf.mxu0
      %v3335 = vpop.f32.mrf.mxu0
      %v3336 = vadd.f32 0.0, %v3335
      %v3337 = vpop.f32.mrf.mxu0
      %3338 = vmatprep.mubr.bf16.mxu0 0
      %3339 = vmatmul.mubr.bf16.gmra.mxu0 %v3177
      %v3340 = vpop.f32.mrf.mxu0
      %v3341 = vadd.f32 0.0, %v3340
      %v3342 = vpop.f32.mrf.mxu0
      %v3343 = vpop.f32.mrf.mxu0
      %v3344 = vadd.f32 0.0, %v3343
      %v3345 = vpop.f32.mrf.mxu0
      %3346 = vmatprep.mubr.bf16.mxu0 0
      %3347 = vmatmul.mubr.bf16.gmra.mxu0 %v3178
      %v3348 = vpop.f32.mrf.mxu0
      %v3349 = vadd.f32 0.0, %v3348
      %v3350 = vpop.f32.mrf.mxu0
      %v3351 = vpop.f32.mrf.mxu0
      %v3352 = vadd.f32 0.0, %v3351
      %v3353 = vpop.f32.mrf.mxu0
      %3354 = vmatprep.mubr.bf16.mxu0 0
      %3355 = vmatmul.mubr.bf16.gmra.mxu0 %v3179
      %v3356 = vpop.f32.mrf.mxu0
      %v3357 = vadd.f32 0.0, %v3356
      %v3358 = vpop.f32.mrf.mxu0
      %v3359 = vpop.f32.mrf.mxu0
      %v3360 = vadd.f32 0.0, %v3359
      %v3361 = vpop.f32.mrf.mxu0
      %3362 = vmatprep.mubr.bf16.mxu0 0
      %3363 = vmatmul.mubr.bf16.gmra.mxu0 %v3180
      %v3364 = vpop.f32.mrf.mxu0
      %v3365 = vadd.f32 0.0, %v3364
      %v3366 = vpop.f32.mrf.mxu0
      %v3367 = vpop.f32.mrf.mxu0
      %v3368 = vadd.f32 0.0, %v3367
      %v3369 = vpop.f32.mrf.mxu0
      %3370 = vmatprep.mubr.bf16.mxu0 0
      %3371 = vmatmul.mubr.bf16.gmra.mxu0 %v3181
      %v3372 = vpop.f32.mrf.mxu0
      %v3373 = vadd.f32 0.0, %v3372
      %v3374 = vpop.f32.mrf.mxu0
      %v3375 = vpop.f32.mrf.mxu0
      %v3376 = vadd.f32 0.0, %v3375
      %v3377 = vpop.f32.mrf.mxu0
      %3378 = vmatprep.mubr.bf16.mxu0 0
      %3379 = vmatmul.mubr.bf16.gmra.mxu0 %v3182
      %v3380 = vpop.f32.mrf.mxu0
      %v3381 = vadd.f32 0.0, %v3380
      %v3382 = vpop.f32.mrf.mxu0
      %v3383 = vpop.f32.mrf.mxu0
      %v3384 = vadd.f32 0.0, %v3383
      %v3385 = vpop.f32.mrf.mxu0
      %3386 = vmatprep.mubr.bf16.mxu0 0
      %3387 = vmatmul.mubr.bf16.gmra.mxu0 %v3183
      %v3388 = vpop.f32.mrf.mxu0
      %v3389 = vadd.f32 0.0, %v3388
      %v3390 = vpop.f32.mrf.mxu0
      %v3391 = vpop.f32.mrf.mxu0
      %v3392 = vadd.f32 0.0, %v3391
      %v3393 = vpop.f32.mrf.mxu0
      %3394 = vmatprep.mubr.bf16.mxu0 0
      %3395 = vmatmul.mubr.bf16.gmra.mxu0 %v3184
      %v3396 = vpop.f32.mrf.mxu0
      %v3397 = vadd.f32 0.0, %v3396
      %v3398 = vpop.f32.mrf.mxu0
      %v3399 = vpop.f32.mrf.mxu0
      %v3400 = vadd.f32 0.0, %v3399
      %v3401 = vpop.f32.mrf.mxu0
      %3402 = vmatprep.mubr.bf16.mxu0 0
      %3403 = vmatmul.mubr.bf16.gmra.mxu0 %v3185
      %v3404 = vpop.f32.mrf.mxu0
      %v3405 = vadd.f32 0.0, %v3404
      %v3406 = vpop.f32.mrf.mxu0
      %v3407 = vpop.f32.mrf.mxu0
      %v3408 = vadd.f32 0.0, %v3407
      %v3409 = vpop.f32.mrf.mxu0
      %3410 = vdwg.mxu0
      %v3411 = vadd.f32 %v2913, %v3285
      %v3412 = vadd.f32 %v2914, %v3288
      %v3413 = vadd.f32 %v2915, %v3293
      %v3414 = vadd.f32 %v2916, %v3296
      %v3415 = vadd.f32 %v2917, %v3301
      %v3416 = vadd.f32 %v2918, %v3304
      %v3417 = vadd.f32 %v2919, %v3309
      %v3418 = vadd.f32 %v2920, %v3312
      %v3419 = vadd.f32 %v2921, %v3317
      %v3420 = vadd.f32 %v2922, %v3320
      %v3421 = vadd.f32 %v2923, %v3325
      %v3422 = vadd.f32 %v2924, %v3328
      %v3423 = vadd.f32 %v2925, %v3333
      %v3424 = vadd.f32 %v2926, %v3336
      %v3425 = vadd.f32 %v2927, %v3341
      %v3426 = vadd.f32 %v2928, %v3344
      %v3427 = vadd.f32 %v2929, %v3349
      %v3428 = vadd.f32 %v2930, %v3352
      %v3429 = vadd.f32 %v2931, %v3357
      %v3430 = vadd.f32 %v2932, %v3360
      %v3431 = vadd.f32 %v2933, %v3365
      %v3432 = vadd.f32 %v2934, %v3368
      %v3433 = vadd.f32 %v2935, %v3373
      %v3434 = vadd.f32 %v2936, %v3376
      %v3435 = vadd.f32 %v2937, %v3381
      %v3436 = vadd.f32 %v2938, %v3384
      %v3437 = vadd.f32 %v2939, %v3389
      %v3438 = vadd.f32 %v2940, %v3392
      %v3439 = vadd.f32 %v2941, %v3397
      %v3440 = vadd.f32 %v2942, %v3400
      %v3441 = vadd.f32 %v2943, %v3405
      %v3442 = vadd.f32 %v2944, %v3408
      %s3443 = scalar_lea.vmem %s261, 24
      %v3444 = vld [vmem:[%s3443] sm:$0xf]
      %v3445 = vld [vmem:[%s3443 + $0x4] sm:$0xf]
      %v3446 = vld [vmem:[%s3443 + $0xc] sm:$0xf]
      %v3447 = vld [vmem:[%s3443 + $0x10] sm:$0xf]
      %v3448 = vld [vmem:[%s3443 + $0x18] sm:$0xf]
      %v3449 = vld [vmem:[%s3443 + $0x1c] sm:$0xf]
      %v3450 = vld [vmem:[%s3443 + $0x24] sm:$0xf]
      %v3451 = vld [vmem:[%s3443 + $0x28] sm:$0xf]
      %v3452 = vld [vmem:[%s3443 + $0x30] sm:$0xf]
      %v3453 = vld [vmem:[%s3443 + $0x34] sm:$0xf]
      %v3454 = vld [vmem:[%s3443 + $0x3c] sm:$0xf]
      %v3455 = vld [vmem:[%s3443 + $0x40] sm:$0xf]
      %v3456 = vld [vmem:[%s3443 + $0x48] sm:$0xf]
      %v3457 = vld [vmem:[%s3443 + $0x4c] sm:$0xf]
      %v3458 = vld [vmem:[%s3443 + $0x54] sm:$0xf]
      %v3459 = vld [vmem:[%s3443 + $0x58] sm:$0xf]
      %v3460 = vld [vmem:[%s3443 + $0x60] sm:$0xf]
      %v3461 = vld [vmem:[%s3443 + $0x64] sm:$0xf]
      %v3462 = vld [vmem:[%s3443 + $0x6c] sm:$0xf]
      %v3463 = vld [vmem:[%s3443 + $0x70] sm:$0xf]
      %v3464 = vld [vmem:[%s3443 + $0x78] sm:$0xf]
      %v3465 = vld [vmem:[%s3443 + $0x7c] sm:$0xf]
      %v3466 = vld [vmem:[%s3443 + $0x84] sm:$0xf]
      %v3467 = vld [vmem:[%s3443 + $0x88] sm:$0xf]
      %v3468 = vld [vmem:[%s3443 + $0x90] sm:$0xf]
      %v3469 = vld [vmem:[%s3443 + $0x94] sm:$0xf]
      %v3470 = vld [vmem:[%s3443 + $0x9c] sm:$0xf]
      %v3471 = vld [vmem:[%s3443 + $0xa0] sm:$0xf]
      %v3472 = vld [vmem:[%s3443 + $0xa8] sm:$0xf]
      %v3473 = vld [vmem:[%s3443 + $0xac] sm:$0xf]
      %v3474 = vld [vmem:[%s3443 + $0xb4] sm:$0xf]
      %v3475 = vld [vmem:[%s3443 + $0xb8] sm:$0xf]
      %s3476 = scalar_lea.vmem %s1, 384
      %v3477 = vld [vmem:[%s3476] sm:$0xf]
      %v3478 = vld [vmem:[%s3476 + $0x4] sm:$0xf]
      %v3479 = vld [vmem:[%s3476 + $0x8] sm:$0xf]
      %v3480 = vld [vmem:[%s3476 + $0xc] sm:$0xf]
      %v3481 = vld [vmem:[%s3476 + $0x10] sm:$0xf]
      %v3482 = vld [vmem:[%s3476 + $0x14] sm:$0xf]
      %v3483 = vld [vmem:[%s3476 + $0x18] sm:$0xf]
      %v3484 = vld [vmem:[%s3476 + $0x1c] sm:$0xf]
      %v3485 = vld [vmem:[%s3476 + $0x20] sm:$0xf]
      %v3486 = vld [vmem:[%s3476 + $0x24] sm:$0xf]
      %v3487 = vld [vmem:[%s3476 + $0x28] sm:$0xf]
      %v3488 = vld [vmem:[%s3476 + $0x2c] sm:$0xf]
      %v3489 = vld [vmem:[%s3476 + $0x30] sm:$0xf]
      %v3490 = vld [vmem:[%s3476 + $0x34] sm:$0xf]
      %v3491 = vld [vmem:[%s3476 + $0x38] sm:$0xf]
      %v3492 = vld [vmem:[%s3476 + $0x3c] sm:$0xf]
      %v3525 = vunpack.c.l.b16 %v3444
      %v3526 = vunpack.c.l.b16 %v3445
      %v3527 = vunpack.c.l.b16 %v3446
      %v3528 = vunpack.c.l.b16 %v3447
      %v3529 = vunpack.c.l.b16 %v3448
      %v3530 = vunpack.c.l.b16 %v3449
      %v3531 = vunpack.c.l.b16 %v3450
      %v3532 = vunpack.c.l.b16 %v3451
      %v3533 = vunpack.c.l.b16 %v3452
      %v3534 = vunpack.c.l.b16 %v3453
      %v3535 = vunpack.c.l.b16 %v3454
      %v3536 = vunpack.c.l.b16 %v3455
      %v3537 = vunpack.c.l.b16 %v3456
      %v3538 = vunpack.c.l.b16 %v3457
      %v3539 = vunpack.c.l.b16 %v3458
      %v3540 = vunpack.c.l.b16 %v3459
      %v3541 = vunpack.c.l.b16 %v3460
      %v3542 = vunpack.c.l.b16 %v3461
      %v3543 = vunpack.c.l.b16 %v3462
      %v3544 = vunpack.c.l.b16 %v3463
      %v3545 = vunpack.c.l.b16 %v3464
      %v3546 = vunpack.c.l.b16 %v3465
      %v3547 = vunpack.c.l.b16 %v3466
      %v3548 = vunpack.c.l.b16 %v3467
      %v3549 = vunpack.c.l.b16 %v3468
      %v3550 = vunpack.c.l.b16 %v3469
      %v3551 = vunpack.c.l.b16 %v3470
      %v3552 = vunpack.c.l.b16 %v3471
      %v3553 = vunpack.c.l.b16 %v3472
      %v3554 = vunpack.c.l.b16 %v3473
      %v3555 = vunpack.c.l.b16 %v3474
      %v3556 = vunpack.c.l.b16 %v3475
      %v3557 = vpack.c.b16 %v3526, %v3525
      %v3558 = vpack.c.b16 %v3528, %v3527
      %v3559 = vpack.c.b16 %v3530, %v3529
      %v3560 = vpack.c.b16 %v3532, %v3531
      %v3561 = vpack.c.b16 %v3534, %v3533
      %v3562 = vpack.c.b16 %v3536, %v3535
      %v3563 = vpack.c.b16 %v3538, %v3537
      %v3564 = vpack.c.b16 %v3540, %v3539
      %v3565 = vpack.c.b16 %v3542, %v3541
      %v3566 = vpack.c.b16 %v3544, %v3543
      %v3567 = vpack.c.b16 %v3546, %v3545
      %v3568 = vpack.c.b16 %v3548, %v3547
      %v3569 = vpack.c.b16 %v3550, %v3549
      %v3570 = vpack.c.b16 %v3552, %v3551
      %v3571 = vpack.c.b16 %v3554, %v3553
      %v3572 = vpack.c.b16 %v3556, %v3555
      %v3605 = vunpack.c.l.b16 %v3477
      %v3606 = vunpack.c.l.b16 %v3478
      %v3607 = vunpack.c.l.b16 %v3479
      %v3608 = vunpack.c.l.b16 %v3480
      %v3609 = vunpack.c.l.b16 %v3481
      %v3610 = vunpack.c.l.b16 %v3482
      %v3611 = vunpack.c.l.b16 %v3483
      %v3612 = vunpack.c.l.b16 %v3484
      %v3613 = vunpack.c.l.b16 %v3485
      %v3614 = vunpack.c.l.b16 %v3486
      %v3615 = vunpack.c.l.b16 %v3487
      %v3616 = vunpack.c.l.b16 %v3488
      %v3617 = vunpack.c.l.b16 %v3489
      %v3618 = vunpack.c.l.b16 %v3490
      %v3619 = vunpack.c.l.b16 %v3491
      %v3620 = vunpack.c.l.b16 %v3492
      %v3621 = vpack.c.b16 %v3606, %v3605
      %v3622 = vpack.c.b16 %v3608, %v3607
      %v3623 = vpack.c.b16 %v3610, %v3609
      %v3624 = vpack.c.b16 %v3612, %v3611
      %v3625 = vpack.c.b16 %v3614, %v3613
      %v3626 = vpack.c.b16 %v3616, %v3615
      %v3627 = vpack.c.b16 %v3618, %v3617
      %v3628 = vpack.c.b16 %v3620, %v3619
      %3637 = vmatprep.subr.bf16.mxu0 0
      %3638 = vmatpush1.bf16.msra.mxu0 %v3628
      %3639 = vmatprep.subr.bf16.mxu0 0
      %3640 = vmatpush1.bf16.msra.mxu0 %v3627
      %3641 = vmatprep.subr.bf16.mxu0 0
      %3642 = vmatpush1.bf16.msra.mxu0 %v3626
      %3643 = vmatprep.subr.bf16.mxu0 0
      %3644 = vmatpush1.bf16.msra.mxu0 %v3625
      %3645 = vmatprep.subr.bf16.mxu0 0
      %3646 = vmatpush1.bf16.msra.mxu0 %v3624
      %3647 = vmatprep.subr.bf16.mxu0 0
      %3648 = vmatpush1.bf16.msra.mxu0 %v3623
      %3649 = vmatprep.subr.bf16.mxu0 0
      %3650 = vmatpush1.bf16.msra.mxu0 %v3622
      %3651 = vmatprep.subr.bf16.mxu0 0
      %3652 = vmatpush1.bf16.msra.mxu0 %v3621
      %3653 = vmatprep.subr.bf16.mxu0 0
      %3654 = vmatpush2.bf16.msra.mxu0 0
      %3655 = vmatprep.subr.bf16.mxu0 0
      %3656 = vmatpush2.bf16.msra.mxu0 0
      %3657 = vmatprep.subr.bf16.mxu0 0
      %3658 = vmatpush2.bf16.msra.mxu0 0
      %3659 = vmatprep.subr.bf16.mxu0 0
      %3660 = vmatpush2.bf16.msra.mxu0 0
      %3661 = vmatprep.subr.bf16.mxu0 0
      %3662 = vmatpush2.bf16.msra.mxu0 0
      %3663 = vmatprep.subr.bf16.mxu0 0
      %3664 = vmatpush2.bf16.msra.mxu0 0
      %3665 = vmatprep.subr.bf16.mxu0 0
      %3666 = vmatpush2.bf16.msra.mxu0 0
      %3667 = vmatprep.subr.bf16.mxu0 0
      %3668 = vmatpush2.bf16.msra.mxu0 0
      %3669 = vmatprep.mubr.bf16.mxu0 0
      %3670 = vmatmul.mubr.bf16.gmra.mxu0 %v3557
      %v3671 = vpop.f32.mrf.mxu0
      %v3672 = vadd.f32 0.0, %v3671
      %v3673 = vpop.f32.mrf.mxu0
      %v3674 = vpop.f32.mrf.mxu0
      %v3675 = vadd.f32 0.0, %v3674
      %v3676 = vpop.f32.mrf.mxu0
      %3677 = vmatprep.mubr.bf16.mxu0 0
      %3678 = vmatmul.mubr.bf16.gmra.mxu0 %v3558
      %v3679 = vpop.f32.mrf.mxu0
      %v3680 = vadd.f32 0.0, %v3679
      %v3681 = vpop.f32.mrf.mxu0
      %v3682 = vpop.f32.mrf.mxu0
      %v3683 = vadd.f32 0.0, %v3682
      %v3684 = vpop.f32.mrf.mxu0
      %3685 = vmatprep.mubr.bf16.mxu0 0
      %3686 = vmatmul.mubr.bf16.gmra.mxu0 %v3559
      %v3687 = vpop.f32.mrf.mxu0
      %v3688 = vadd.f32 0.0, %v3687
      %v3689 = vpop.f32.mrf.mxu0
      %v3690 = vpop.f32.mrf.mxu0
      %v3691 = vadd.f32 0.0, %v3690
      %v3692 = vpop.f32.mrf.mxu0
      %3693 = vmatprep.mubr.bf16.mxu0 0
      %3694 = vmatmul.mubr.bf16.gmra.mxu0 %v3560
      %v3695 = vpop.f32.mrf.mxu0
      %v3696 = vadd.f32 0.0, %v3695
      %v3697 = vpop.f32.mrf.mxu0
      %v3698 = vpop.f32.mrf.mxu0
      %v3699 = vadd.f32 0.0, %v3698
      %v3700 = vpop.f32.mrf.mxu0
      %3701 = vmatprep.mubr.bf16.mxu0 0
      %3702 = vmatmul.mubr.bf16.gmra.mxu0 %v3561
      %v3703 = vpop.f32.mrf.mxu0
      %v3704 = vadd.f32 0.0, %v3703
      %v3705 = vpop.f32.mrf.mxu0
      %v3706 = vpop.f32.mrf.mxu0
      %v3707 = vadd.f32 0.0, %v3706
      %v3708 = vpop.f32.mrf.mxu0
      %3709 = vmatprep.mubr.bf16.mxu0 0
      %3710 = vmatmul.mubr.bf16.gmra.mxu0 %v3562
      %v3711 = vpop.f32.mrf.mxu0
      %v3712 = vadd.f32 0.0, %v3711
      %v3713 = vpop.f32.mrf.mxu0
      %v3714 = vpop.f32.mrf.mxu0
      %v3715 = vadd.f32 0.0, %v3714
      %v3716 = vpop.f32.mrf.mxu0
      %3717 = vmatprep.mubr.bf16.mxu0 0
      %3718 = vmatmul.mubr.bf16.gmra.mxu0 %v3563
      %v3719 = vpop.f32.mrf.mxu0
      %v3720 = vadd.f32 0.0, %v3719
      %v3721 = vpop.f32.mrf.mxu0
      %v3722 = vpop.f32.mrf.mxu0
      %v3723 = vadd.f32 0.0, %v3722
      %v3724 = vpop.f32.mrf.mxu0
      %3725 = vmatprep.mubr.bf16.mxu0 0
      %3726 = vmatmul.mubr.bf16.gmra.mxu0 %v3564
      %v3727 = vpop.f32.mrf.mxu0
      %v3728 = vadd.f32 0.0, %v3727
      %v3729 = vpop.f32.mrf.mxu0
      %v3730 = vpop.f32.mrf.mxu0
      %v3731 = vadd.f32 0.0, %v3730
      %v3732 = vpop.f32.mrf.mxu0
      %3733 = vmatprep.mubr.bf16.mxu0 0
      %3734 = vmatmul.mubr.bf16.gmra.mxu0 %v3565
      %v3735 = vpop.f32.mrf.mxu0
      %v3736 = vadd.f32 0.0, %v3735
      %v3737 = vpop.f32.mrf.mxu0
      %v3738 = vpop.f32.mrf.mxu0
      %v3739 = vadd.f32 0.0, %v3738
      %v3740 = vpop.f32.mrf.mxu0
      %3741 = vmatprep.mubr.bf16.mxu0 0
      %3742 = vmatmul.mubr.bf16.gmra.mxu0 %v3566
      %v3743 = vpop.f32.mrf.mxu0
      %v3744 = vadd.f32 0.0, %v3743
      %v3745 = vpop.f32.mrf.mxu0
      %v3746 = vpop.f32.mrf.mxu0
      %v3747 = vadd.f32 0.0, %v3746
      %v3748 = vpop.f32.mrf.mxu0
      %3749 = vmatprep.mubr.bf16.mxu0 0
      %3750 = vmatmul.mubr.bf16.gmra.mxu0 %v3567
      %v3751 = vpop.f32.mrf.mxu0
      %v3752 = vadd.f32 0.0, %v3751
      %v3753 = vpop.f32.mrf.mxu0
      %v3754 = vpop.f32.mrf.mxu0
      %v3755 = vadd.f32 0.0, %v3754
      %v3756 = vpop.f32.mrf.mxu0
      %3757 = vmatprep.mubr.bf16.mxu0 0
      %3758 = vmatmul.mubr.bf16.gmra.mxu0 %v3568
      %v3759 = vpop.f32.mrf.mxu0
      %v3760 = vadd.f32 0.0, %v3759
      %v3761 = vpop.f32.mrf.mxu0
      %v3762 = vpop.f32.mrf.mxu0
      %v3763 = vadd.f32 0.0, %v3762
      %v3764 = vpop.f32.mrf.mxu0
      %3765 = vmatprep.mubr.bf16.mxu0 0
      %3766 = vmatmul.mubr.bf16.gmra.mxu0 %v3569
      %v3767 = vpop.f32.mrf.mxu0
      %v3768 = vadd.f32 0.0, %v3767
      %v3769 = vpop.f32.mrf.mxu0
      %v3770 = vpop.f32.mrf.mxu0
      %v3771 = vadd.f32 0.0, %v3770
      %v3772 = vpop.f32.mrf.mxu0
      %3773 = vmatprep.mubr.bf16.mxu0 0
      %3774 = vmatmul.mubr.bf16.gmra.mxu0 %v3570
      %v3775 = vpop.f32.mrf.mxu0
      %v3776 = vadd.f32 0.0, %v3775
      %v3777 = vpop.f32.mrf.mxu0
      %v3778 = vpop.f32.mrf.mxu0
      %v3779 = vadd.f32 0.0, %v3778
      %v3780 = vpop.f32.mrf.mxu0
      %3781 = vmatprep.mubr.bf16.mxu0 0
      %3782 = vmatmul.mubr.bf16.gmra.mxu0 %v3571
      %v3783 = vpop.f32.mrf.mxu0
      %v3784 = vadd.f32 0.0, %v3783
      %v3785 = vpop.f32.mrf.mxu0
      %v3786 = vpop.f32.mrf.mxu0
      %v3787 = vadd.f32 0.0, %v3786
      %v3788 = vpop.f32.mrf.mxu0
      %3789 = vmatprep.mubr.bf16.mxu0 0
      %3790 = vmatmul.mubr.bf16.gmra.mxu0 %v3572
      %v3791 = vpop.f32.mrf.mxu0
      %v3792 = vadd.f32 0.0, %v3791
      %v3793 = vpop.f32.mrf.mxu0
      %v3794 = vpop.f32.mrf.mxu0
      %v3795 = vadd.f32 0.0, %v3794
      %v3796 = vpop.f32.mrf.mxu0
      %3797 = vdwg.mxu0
      %v3798 = vadd.f32 %v3411, %v3672
      %v3799 = vadd.f32 %v3412, %v3675
      %v3800 = vadd.f32 %v3413, %v3680
      %v3801 = vadd.f32 %v3414, %v3683
      %v3802 = vadd.f32 %v3415, %v3688
      %v3803 = vadd.f32 %v3416, %v3691
      %v3804 = vadd.f32 %v3417, %v3696
      %v3805 = vadd.f32 %v3418, %v3699
      %v3806 = vadd.f32 %v3419, %v3704
      %v3807 = vadd.f32 %v3420, %v3707
      %v3808 = vadd.f32 %v3421, %v3712
      %v3809 = vadd.f32 %v3422, %v3715
      %v3810 = vadd.f32 %v3423, %v3720
      %v3811 = vadd.f32 %v3424, %v3723
      %v3812 = vadd.f32 %v3425, %v3728
      %v3813 = vadd.f32 %v3426, %v3731
      %v3814 = vadd.f32 %v3427, %v3736
      %v3815 = vadd.f32 %v3428, %v3739
      %v3816 = vadd.f32 %v3429, %v3744
      %v3817 = vadd.f32 %v3430, %v3747
      %v3818 = vadd.f32 %v3431, %v3752
      %v3819 = vadd.f32 %v3432, %v3755
      %v3820 = vadd.f32 %v3433, %v3760
      %v3821 = vadd.f32 %v3434, %v3763
      %v3822 = vadd.f32 %v3435, %v3768
      %v3823 = vadd.f32 %v3436, %v3771
      %v3824 = vadd.f32 %v3437, %v3776
      %v3825 = vadd.f32 %v3438, %v3779
      %v3826 = vadd.f32 %v3439, %v3784
      %v3827 = vadd.f32 %v3440, %v3787
      %v3828 = vadd.f32 %v3441, %v3792
      %v3829 = vadd.f32 %v3442, %v3795
      %v3830 = vld [vmem:[%s3443] sm:$0xf]
      %v3831 = vld [vmem:[%s3443 + $0x4] sm:$0xf]
      %v3832 = vld [vmem:[%s3443 + $0x8] sm:$0x1]
      %v3833 = vld [vmem:[%s3443 + $0xc] sm:$0xf]
      %v3834 = vld [vmem:[%s3443 + $0x10] sm:$0xf]
      %v3835 = vld [vmem:[%s3443 + $0x14] sm:$0x1]
      %v3836 = vld [vmem:[%s3443 + $0x18] sm:$0xf]
      %v3837 = vld [vmem:[%s3443 + $0x1c] sm:$0xf]
      %v3838 = vld [vmem:[%s3443 + $0x20] sm:$0x1]
      %v3839 = vld [vmem:[%s3443 + $0x24] sm:$0xf]
      %v3840 = vld [vmem:[%s3443 + $0x28] sm:$0xf]
      %v3841 = vld [vmem:[%s3443 + $0x2c] sm:$0x1]
      %v3842 = vld [vmem:[%s3443 + $0x30] sm:$0xf]
      %v3843 = vld [vmem:[%s3443 + $0x34] sm:$0xf]
      %v3844 = vld [vmem:[%s3443 + $0x38] sm:$0x1]
      %v3845 = vld [vmem:[%s3443 + $0x3c] sm:$0xf]
      %v3846 = vld [vmem:[%s3443 + $0x40] sm:$0xf]
      %v3847 = vld [vmem:[%s3443 + $0x44] sm:$0x1]
      %v3848 = vld [vmem:[%s3443 + $0x48] sm:$0xf]
      %v3849 = vld [vmem:[%s3443 + $0x4c] sm:$0xf]
      %v3850 = vld [vmem:[%s3443 + $0x50] sm:$0x1]
      %v3851 = vld [vmem:[%s3443 + $0x54] sm:$0xf]
      %v3852 = vld [vmem:[%s3443 + $0x58] sm:$0xf]
      %v3853 = vld [vmem:[%s3443 + $0x5c] sm:$0x1]
      %v3854 = vld [vmem:[%s3443 + $0x60] sm:$0xf]
      %v3855 = vld [vmem:[%s3443 + $0x64] sm:$0xf]
      %v3856 = vld [vmem:[%s3443 + $0x68] sm:$0x1]
      %v3857 = vld [vmem:[%s3443 + $0x6c] sm:$0xf]
      %v3858 = vld [vmem:[%s3443 + $0x70] sm:$0xf]
      %v3859 = vld [vmem:[%s3443 + $0x74] sm:$0x1]
      %v3860 = vld [vmem:[%s3443 + $0x78] sm:$0xf]
      %v3861 = vld [vmem:[%s3443 + $0x7c] sm:$0xf]
      %v3862 = vld [vmem:[%s3443 + $0x80] sm:$0x1]
      %v3863 = vld [vmem:[%s3443 + $0x84] sm:$0xf]
      %v3864 = vld [vmem:[%s3443 + $0x88] sm:$0xf]
      %v3865 = vld [vmem:[%s3443 + $0x8c] sm:$0x1]
      %v3866 = vld [vmem:[%s3443 + $0x90] sm:$0xf]
      %v3867 = vld [vmem:[%s3443 + $0x94] sm:$0xf]
      %v3868 = vld [vmem:[%s3443 + $0x98] sm:$0x1]
      %v3869 = vld [vmem:[%s3443 + $0x9c] sm:$0xf]
      %v3870 = vld [vmem:[%s3443 + $0xa0] sm:$0xf]
      %v3871 = vld [vmem:[%s3443 + $0xa4] sm:$0x1]
      %v3872 = vld [vmem:[%s3443 + $0xa8] sm:$0xf]
      %v3873 = vld [vmem:[%s3443 + $0xac] sm:$0xf]
      %v3874 = vld [vmem:[%s3443 + $0xb0] sm:$0x1]
      %v3875 = vld [vmem:[%s3443 + $0xb4] sm:$0xf]
      %v3876 = vld [vmem:[%s3443 + $0xb8] sm:$0xf]
      %v3877 = vld [vmem:[%s3443 + $0xbc] sm:$0x1]
      %v3879 = vshrl.u32 %v3830, 16
      %v3881 = vrot.slane %v3879, 4
      %v3882 = vshll.u32 %v3830, 16
      %v3884 = vrot.slane %v3882, 5
      %v3885 = vor.u32 %v3881, %v3884
      %v3886 = vrot.slane %v3885, 4
      %v3888 = vshll.u32 %v3831, 16
      %v3890 = vrot.slane %v3888, 5
      %v3891 = vsel %vm339, %v3886, %v3890
      %v3892 = vshrl.u32 %v3831, 16
      %v3894 = vrot.slane %v3892, 4
      %v3895 = vor.u32 %v3894, %v3890
      %v3896 = vrot.slane %v3895, 4
      %v3898 = vshll.u32 %v3832, 16
      %v3900 = vrot.slane %v3898, 5
      %v3901 = vsel %vm339, %v3896, %v3900
      %v3903 = vshrl.u32 %v3833, 16
      %v3905 = vrot.slane %v3903, 4
      %v3906 = vshll.u32 %v3833, 16
      %v3908 = vrot.slane %v3906, 5
      %v3909 = vor.u32 %v3905, %v3908
      %v3910 = vrot.slane %v3909, 4
      %v3912 = vshll.u32 %v3834, 16
      %v3914 = vrot.slane %v3912, 5
      %v3915 = vsel %vm339, %v3910, %v3914
      %v3916 = vshrl.u32 %v3834, 16
      %v3918 = vrot.slane %v3916, 4
      %v3919 = vor.u32 %v3918, %v3914
      %v3920 = vrot.slane %v3919, 4
      %v3922 = vshll.u32 %v3835, 16
      %v3924 = vrot.slane %v3922, 5
      %v3925 = vsel %vm339, %v3920, %v3924
      %v3927 = vshrl.u32 %v3836, 16
      %v3929 = vrot.slane %v3927, 4
      %v3930 = vshll.u32 %v3836, 16
      %v3932 = vrot.slane %v3930, 5
      %v3933 = vor.u32 %v3929, %v3932
      %v3934 = vrot.slane %v3933, 4
      %v3936 = vshll.u32 %v3837, 16
      %v3938 = vrot.slane %v3936, 5
      %v3939 = vsel %vm339, %v3934, %v3938
      %v3940 = vshrl.u32 %v3837, 16
      %v3942 = vrot.slane %v3940, 4
      %v3943 = vor.u32 %v3942, %v3938
      %v3944 = vrot.slane %v3943, 4
      %v3946 = vshll.u32 %v3838, 16
      %v3948 = vrot.slane %v3946, 5
      %v3949 = vsel %vm339, %v3944, %v3948
      %v3951 = vshrl.u32 %v3839, 16
      %v3953 = vrot.slane %v3951, 4
      %v3954 = vshll.u32 %v3839, 16
      %v3956 = vrot.slane %v3954, 5
      %v3957 = vor.u32 %v3953, %v3956
      %v3958 = vrot.slane %v3957, 4
      %v3960 = vshll.u32 %v3840, 16
      %v3962 = vrot.slane %v3960, 5
      %v3963 = vsel %vm339, %v3958, %v3962
      %v3964 = vshrl.u32 %v3840, 16
      %v3966 = vrot.slane %v3964, 4
      %v3967 = vor.u32 %v3966, %v3962
      %v3968 = vrot.slane %v3967, 4
      %v3970 = vshll.u32 %v3841, 16
      %v3972 = vrot.slane %v3970, 5
      %v3973 = vsel %vm339, %v3968, %v3972
      %v3975 = vshrl.u32 %v3842, 16
      %v3977 = vrot.slane %v3975, 4
      %v3978 = vshll.u32 %v3842, 16
      %v3980 = vrot.slane %v3978, 5
      %v3981 = vor.u32 %v3977, %v3980
      %v3982 = vrot.slane %v3981, 4
      %v3984 = vshll.u32 %v3843, 16
      %v3986 = vrot.slane %v3984, 5
      %v3987 = vsel %vm339, %v3982, %v3986
      %v3988 = vshrl.u32 %v3843, 16
      %v3990 = vrot.slane %v3988, 4
      %v3991 = vor.u32 %v3990, %v3986
      %v3992 = vrot.slane %v3991, 4
      %v3994 = vshll.u32 %v3844, 16
      %v3996 = vrot.slane %v3994, 5
      %v3997 = vsel %vm339, %v3992, %v3996
      %v3999 = vshrl.u32 %v3845, 16
      %v4001 = vrot.slane %v3999, 4
      %v4002 = vshll.u32 %v3845, 16
      %v4004 = vrot.slane %v4002, 5
      %v4005 = vor.u32 %v4001, %v4004
      %v4006 = vrot.slane %v4005, 4
      %v4008 = vshll.u32 %v3846, 16
      %v4010 = vrot.slane %v4008, 5
      %v4011 = vsel %vm339, %v4006, %v4010
      %v4012 = vshrl.u32 %v3846, 16
      %v4014 = vrot.slane %v4012, 4
      %v4015 = vor.u32 %v4014, %v4010
      %v4016 = vrot.slane %v4015, 4
      %v4018 = vshll.u32 %v3847, 16
      %v4020 = vrot.slane %v4018, 5
      %v4021 = vsel %vm339, %v4016, %v4020
      %v4023 = vshrl.u32 %v3848, 16
      %v4025 = vrot.slane %v4023, 4
      %v4026 = vshll.u32 %v3848, 16
      %v4028 = vrot.slane %v4026, 5
      %v4029 = vor.u32 %v4025, %v4028
      %v4030 = vrot.slane %v4029, 4
      %v4032 = vshll.u32 %v3849, 16
      %v4034 = vrot.slane %v4032, 5
      %v4035 = vsel %vm339, %v4030, %v4034
      %v4036 = vshrl.u32 %v3849, 16
      %v4038 = vrot.slane %v4036, 4
      %v4039 = vor.u32 %v4038, %v4034
      %v4040 = vrot.slane %v4039, 4
      %v4042 = vshll.u32 %v3850, 16
      %v4044 = vrot.slane %v4042, 5
      %v4045 = vsel %vm339, %v4040, %v4044
      %v4047 = vshrl.u32 %v3851, 16
      %v4049 = vrot.slane %v4047, 4
      %v4050 = vshll.u32 %v3851, 16
      %v4052 = vrot.slane %v4050, 5
      %v4053 = vor.u32 %v4049, %v4052
      %v4054 = vrot.slane %v4053, 4
      %v4056 = vshll.u32 %v3852, 16
      %v4058 = vrot.slane %v4056, 5
      %v4059 = vsel %vm339, %v4054, %v4058
      %v4060 = vshrl.u32 %v3852, 16
      %v4062 = vrot.slane %v4060, 4
      %v4063 = vor.u32 %v4062, %v4058
      %v4064 = vrot.slane %v4063, 4
      %v4066 = vshll.u32 %v3853, 16
      %v4068 = vrot.slane %v4066, 5
      %v4069 = vsel %vm339, %v4064, %v4068
      %v4071 = vshrl.u32 %v3854, 16
      %v4073 = vrot.slane %v4071, 4
      %v4074 = vshll.u32 %v3854, 16
      %v4076 = vrot.slane %v4074, 5
      %v4077 = vor.u32 %v4073, %v4076
      %v4078 = vrot.slane %v4077, 4
      %v4080 = vshll.u32 %v3855, 16
      %v4082 = vrot.slane %v4080, 5
      %v4083 = vsel %vm339, %v4078, %v4082
      %v4084 = vshrl.u32 %v3855, 16
      %v4086 = vrot.slane %v4084, 4
      %v4087 = vor.u32 %v4086, %v4082
      %v4088 = vrot.slane %v4087, 4
      %v4090 = vshll.u32 %v3856, 16
      %v4092 = vrot.slane %v4090, 5
      %v4093 = vsel %vm339, %v4088, %v4092
      %v4095 = vshrl.u32 %v3857, 16
      %v4097 = vrot.slane %v4095, 4
      %v4098 = vshll.u32 %v3857, 16
      %v4100 = vrot.slane %v4098, 5
      %v4101 = vor.u32 %v4097, %v4100
      %v4102 = vrot.slane %v4101, 4
      %v4104 = vshll.u32 %v3858, 16
      %v4106 = vrot.slane %v4104, 5
      %v4107 = vsel %vm339, %v4102, %v4106
      %v4108 = vshrl.u32 %v3858, 16
      %v4110 = vrot.slane %v4108, 4
      %v4111 = vor.u32 %v4110, %v4106
      %v4112 = vrot.slane %v4111, 4
      %v4114 = vshll.u32 %v3859, 16
      %v4116 = vrot.slane %v4114, 5
      %v4117 = vsel %vm339, %v4112, %v4116
      %v4119 = vshrl.u32 %v3860, 16
      %v4121 = vrot.slane %v4119, 4
      %v4122 = vshll.u32 %v3860, 16
      %v4124 = vrot.slane %v4122, 5
      %v4125 = vor.u32 %v4121, %v4124
      %v4126 = vrot.slane %v4125, 4
      %v4128 = vshll.u32 %v3861, 16
      %v4130 = vrot.slane %v4128, 5
      %v4131 = vsel %vm339, %v4126, %v4130
      %v4132 = vshrl.u32 %v3861, 16
      %v4134 = vrot.slane %v4132, 4
      %v4135 = vor.u32 %v4134, %v4130
      %v4136 = vrot.slane %v4135, 4
      %v4138 = vshll.u32 %v3862, 16
      %v4140 = vrot.slane %v4138, 5
      %v4141 = vsel %vm339, %v4136, %v4140
      %v4143 = vshrl.u32 %v3863, 16
      %v4145 = vrot.slane %v4143, 4
      %v4146 = vshll.u32 %v3863, 16
      %v4148 = vrot.slane %v4146, 5
      %v4149 = vor.u32 %v4145, %v4148
      %v4150 = vrot.slane %v4149, 4
      %v4152 = vshll.u32 %v3864, 16
      %v4154 = vrot.slane %v4152, 5
      %v4155 = vsel %vm339, %v4150, %v4154
      %v4156 = vshrl.u32 %v3864, 16
      %v4158 = vrot.slane %v4156, 4
      %v4159 = vor.u32 %v4158, %v4154
      %v4160 = vrot.slane %v4159, 4
      %v4162 = vshll.u32 %v3865, 16
      %v4164 = vrot.slane %v4162, 5
      %v4165 = vsel %vm339, %v4160, %v4164
      %v4167 = vshrl.u32 %v3866, 16
      %v4169 = vrot.slane %v4167, 4
      %v4170 = vshll.u32 %v3866, 16
      %v4172 = vrot.slane %v4170, 5
      %v4173 = vor.u32 %v4169, %v4172
      %v4174 = vrot.slane %v4173, 4
      %v4176 = vshll.u32 %v3867, 16
      %v4178 = vrot.slane %v4176, 5
      %v4179 = vsel %vm339, %v4174, %v4178
      %v4180 = vshrl.u32 %v3867, 16
      %v4182 = vrot.slane %v4180, 4
      %v4183 = vor.u32 %v4182, %v4178
      %v4184 = vrot.slane %v4183, 4
      %v4186 = vshll.u32 %v3868, 16
      %v4188 = vrot.slane %v4186, 5
      %v4189 = vsel %vm339, %v4184, %v4188
      %v4191 = vshrl.u32 %v3869, 16
      %v4193 = vrot.slane %v4191, 4
      %v4194 = vshll.u32 %v3869, 16
      %v4196 = vrot.slane %v4194, 5
      %v4197 = vor.u32 %v4193, %v4196
      %v4198 = vrot.slane %v4197, 4
      %v4200 = vshll.u32 %v3870, 16
      %v4202 = vrot.slane %v4200, 5
      %v4203 = vsel %vm339, %v4198, %v4202
      %v4204 = vshrl.u32 %v3870, 16
      %v4206 = vrot.slane %v4204, 4
      %v4207 = vor.u32 %v4206, %v4202
      %v4208 = vrot.slane %v4207, 4
      %v4210 = vshll.u32 %v3871, 16
      %v4212 = vrot.slane %v4210, 5
      %v4213 = vsel %vm339, %v4208, %v4212
      %v4215 = vshrl.u32 %v3872, 16
      %v4217 = vrot.slane %v4215, 4
      %v4218 = vshll.u32 %v3872, 16
      %v4220 = vrot.slane %v4218, 5
      %v4221 = vor.u32 %v4217, %v4220
      %v4222 = vrot.slane %v4221, 4
      %v4224 = vshll.u32 %v3873, 16
      %v4226 = vrot.slane %v4224, 5
      %v4227 = vsel %vm339, %v4222, %v4226
      %v4228 = vshrl.u32 %v3873, 16
      %v4230 = vrot.slane %v4228, 4
      %v4231 = vor.u32 %v4230, %v4226
      %v4232 = vrot.slane %v4231, 4
      %v4234 = vshll.u32 %v3874, 16
      %v4236 = vrot.slane %v4234, 5
      %v4237 = vsel %vm339, %v4232, %v4236
      %v4239 = vshrl.u32 %v3875, 16
      %v4241 = vrot.slane %v4239, 4
      %v4242 = vshll.u32 %v3875, 16
      %v4244 = vrot.slane %v4242, 5
      %v4245 = vor.u32 %v4241, %v4244
      %v4246 = vrot.slane %v4245, 4
      %v4248 = vshll.u32 %v3876, 16
      %v4250 = vrot.slane %v4248, 5
      %v4251 = vsel %vm339, %v4246, %v4250
      %v4252 = vshrl.u32 %v3876, 16
      %v4254 = vrot.slane %v4252, 4
      %v4255 = vor.u32 %v4254, %v4250
      %v4256 = vrot.slane %v4255, 4
      %v4258 = vshll.u32 %v3877, 16
      %v4260 = vrot.slane %v4258, 5
      %v4261 = vsel %vm339, %v4256, %v4260
      %s4262 = scalar_lea.vmem %s1, 448
      %v4263 = vld [vmem:[%s4262] sm:$0xf]
      %v4264 = vld [vmem:[%s4262 + $0x4] sm:$0xf]
      %v4265 = vld [vmem:[%s4262 + $0x8] sm:$0xf]
      %v4266 = vld [vmem:[%s4262 + $0xc] sm:$0xf]
      %v4267 = vld [vmem:[%s4262 + $0x10] sm:$0xf]
      %v4268 = vld [vmem:[%s4262 + $0x14] sm:$0xf]
      %v4269 = vld [vmem:[%s4262 + $0x18] sm:$0xf]
      %v4270 = vld [vmem:[%s4262 + $0x1c] sm:$0xf]
      %v4271 = vld [vmem:[%s4262 + $0x20] sm:$0xf]
      %v4272 = vld [vmem:[%s4262 + $0x24] sm:$0xf]
      %v4273 = vld [vmem:[%s4262 + $0x28] sm:$0xf]
      %v4274 = vld [vmem:[%s4262 + $0x2c] sm:$0xf]
      %v4275 = vld [vmem:[%s4262 + $0x30] sm:$0xf]
      %v4276 = vld [vmem:[%s4262 + $0x34] sm:$0xf]
      %v4277 = vld [vmem:[%s4262 + $0x38] sm:$0xf]
      %v4278 = vld [vmem:[%s4262 + $0x3c] sm:$0xf]
      %v4279 = vunpack.c.l.b16 %v3891
      %v4280 = vunpack.c.l.b16 %v3901
      %v4281 = vunpack.c.l.b16 %v3915
      %v4282 = vunpack.c.l.b16 %v3925
      %v4283 = vunpack.c.l.b16 %v3939
      %v4284 = vunpack.c.l.b16 %v3949
      %v4285 = vunpack.c.l.b16 %v3963
      %v4286 = vunpack.c.l.b16 %v3973
      %v4287 = vunpack.c.l.b16 %v3987
      %v4288 = vunpack.c.l.b16 %v3997
      %v4289 = vunpack.c.l.b16 %v4011
      %v4290 = vunpack.c.l.b16 %v4021
      %v4291 = vunpack.c.l.b16 %v4035
      %v4292 = vunpack.c.l.b16 %v4045
      %v4293 = vunpack.c.l.b16 %v4059
      %v4294 = vunpack.c.l.b16 %v4069
      %v4295 = vunpack.c.l.b16 %v4083
      %v4296 = vunpack.c.l.b16 %v4093
      %v4297 = vunpack.c.l.b16 %v4107
      %v4298 = vunpack.c.l.b16 %v4117
      %v4299 = vunpack.c.l.b16 %v4131
      %v4300 = vunpack.c.l.b16 %v4141
      %v4301 = vunpack.c.l.b16 %v4155
      %v4302 = vunpack.c.l.b16 %v4165
      %v4303 = vunpack.c.l.b16 %v4179
      %v4304 = vunpack.c.l.b16 %v4189
      %v4305 = vunpack.c.l.b16 %v4203
      %v4306 = vunpack.c.l.b16 %v4213
      %v4307 = vunpack.c.l.b16 %v4227
      %v4308 = vunpack.c.l.b16 %v4237
      %v4309 = vunpack.c.l.b16 %v4251
      %v4310 = vunpack.c.l.b16 %v4261
      %v4311 = vpack.c.b16 %v4280, %v4279
      %v4312 = vpack.c.b16 %v4282, %v4281
      %v4313 = vpack.c.b16 %v4284, %v4283
      %v4314 = vpack.c.b16 %v4286, %v4285
      %v4315 = vpack.c.b16 %v4288, %v4287
      %v4316 = vpack.c.b16 %v4290, %v4289
      %v4317 = vpack.c.b16 %v4292, %v4291
      %v4318 = vpack.c.b16 %v4294, %v4293
      %v4319 = vpack.c.b16 %v4296, %v4295
      %v4320 = vpack.c.b16 %v4298, %v4297
      %v4321 = vpack.c.b16 %v4300, %v4299
      %v4322 = vpack.c.b16 %v4302, %v4301
      %v4323 = vpack.c.b16 %v4304, %v4303
      %v4324 = vpack.c.b16 %v4306, %v4305
      %v4325 = vpack.c.b16 %v4308, %v4307
      %v4326 = vpack.c.b16 %v4310, %v4309
      %v4359 = vunpack.c.l.b16 %v4263
      %v4360 = vunpack.c.l.b16 %v4264
      %v4361 = vunpack.c.l.b16 %v4265
      %v4362 = vunpack.c.l.b16 %v4266
      %v4363 = vunpack.c.l.b16 %v4267
      %v4364 = vunpack.c.l.b16 %v4268
      %v4365 = vunpack.c.l.b16 %v4269
      %v4366 = vunpack.c.l.b16 %v4270
      %v4367 = vunpack.c.l.b16 %v4271
      %v4368 = vunpack.c.l.b16 %v4272
      %v4369 = vunpack.c.l.b16 %v4273
      %v4370 = vunpack.c.l.b16 %v4274
      %v4371 = vunpack.c.l.b16 %v4275
      %v4372 = vunpack.c.l.b16 %v4276
      %v4373 = vunpack.c.l.b16 %v4277
      %v4374 = vunpack.c.l.b16 %v4278
      %v4375 = vpack.c.b16 %v4360, %v4359
      %v4376 = vpack.c.b16 %v4362, %v4361
      %v4377 = vpack.c.b16 %v4364, %v4363
      %v4378 = vpack.c.b16 %v4366, %v4365
      %v4379 = vpack.c.b16 %v4368, %v4367
      %v4380 = vpack.c.b16 %v4370, %v4369
      %v4381 = vpack.c.b16 %v4372, %v4371
      %v4382 = vpack.c.b16 %v4374, %v4373
      %4391 = vmatprep.subr.bf16.mxu0 0
      %4392 = vmatpush1.bf16.msra.mxu0 %v4382
      %4393 = vmatprep.subr.bf16.mxu0 0
      %4394 = vmatpush1.bf16.msra.mxu0 %v4381
      %4395 = vmatprep.subr.bf16.mxu0 0
      %4396 = vmatpush1.bf16.msra.mxu0 %v4380
      %4397 = vmatprep.subr.bf16.mxu0 0
      %4398 = vmatpush1.bf16.msra.mxu0 %v4379
      %4399 = vmatprep.subr.bf16.mxu0 0
      %4400 = vmatpush1.bf16.msra.mxu0 %v4378
      %4401 = vmatprep.subr.bf16.mxu0 0
      %4402 = vmatpush1.bf16.msra.mxu0 %v4377
      %4403 = vmatprep.subr.bf16.mxu0 0
      %4404 = vmatpush1.bf16.msra.mxu0 %v4376
      %4405 = vmatprep.subr.bf16.mxu0 0
      %4406 = vmatpush1.bf16.msra.mxu0 %v4375
      %4407 = vmatprep.subr.bf16.mxu0 0
      %4408 = vmatpush2.bf16.msra.mxu0 0
      %4409 = vmatprep.subr.bf16.mxu0 0
      %4410 = vmatpush2.bf16.msra.mxu0 0
      %4411 = vmatprep.subr.bf16.mxu0 0
      %4412 = vmatpush2.bf16.msra.mxu0 0
      %4413 = vmatprep.subr.bf16.mxu0 0
      %4414 = vmatpush2.bf16.msra.mxu0 0
      %4415 = vmatprep.subr.bf16.mxu0 0
      %4416 = vmatpush2.bf16.msra.mxu0 0
      %4417 = vmatprep.subr.bf16.mxu0 0
      %4418 = vmatpush2.bf16.msra.mxu0 0
      %4419 = vmatprep.subr.bf16.mxu0 0
      %4420 = vmatpush2.bf16.msra.mxu0 0
      %4421 = vmatprep.subr.bf16.mxu0 0
      %4422 = vmatpush2.bf16.msra.mxu0 0
      %4423 = vmatprep.mubr.bf16.mxu0 0
      %4424 = vmatmul.mubr.bf16.gmra.mxu0 %v4311
      %v4425 = vpop.f32.mrf.mxu0
      %v4426 = vadd.f32 0.0, %v4425
      %v4427 = vpop.f32.mrf.mxu0
      %v4428 = vpop.f32.mrf.mxu0
      %v4429 = vadd.f32 0.0, %v4428
      %v4430 = vpop.f32.mrf.mxu0
      %4431 = vmatprep.mubr.bf16.mxu0 0
      %4432 = vmatmul.mubr.bf16.gmra.mxu0 %v4312
      %v4433 = vpop.f32.mrf.mxu0
      %v4434 = vadd.f32 0.0, %v4433
      %v4435 = vpop.f32.mrf.mxu0
      %v4436 = vpop.f32.mrf.mxu0
      %v4437 = vadd.f32 0.0, %v4436
      %v4438 = vpop.f32.mrf.mxu0
      %4439 = vmatprep.mubr.bf16.mxu0 0
      %4440 = vmatmul.mubr.bf16.gmra.mxu0 %v4313
      %v4441 = vpop.f32.mrf.mxu0
      %v4442 = vadd.f32 0.0, %v4441
      %v4443 = vpop.f32.mrf.mxu0
      %v4444 = vpop.f32.mrf.mxu0
      %v4445 = vadd.f32 0.0, %v4444
      %v4446 = vpop.f32.mrf.mxu0
      %4447 = vmatprep.mubr.bf16.mxu0 0
      %4448 = vmatmul.mubr.bf16.gmra.mxu0 %v4314
      %v4449 = vpop.f32.mrf.mxu0
      %v4450 = vadd.f32 0.0, %v4449
      %v4451 = vpop.f32.mrf.mxu0
      %v4452 = vpop.f32.mrf.mxu0
      %v4453 = vadd.f32 0.0, %v4452
      %v4454 = vpop.f32.mrf.mxu0
      %4455 = vmatprep.mubr.bf16.mxu0 0
      %4456 = vmatmul.mubr.bf16.gmra.mxu0 %v4315
      %v4457 = vpop.f32.mrf.mxu0
      %v4458 = vadd.f32 0.0, %v4457
      %v4459 = vpop.f32.mrf.mxu0
      %v4460 = vpop.f32.mrf.mxu0
      %v4461 = vadd.f32 0.0, %v4460
      %v4462 = vpop.f32.mrf.mxu0
      %4463 = vmatprep.mubr.bf16.mxu0 0
      %4464 = vmatmul.mubr.bf16.gmra.mxu0 %v4316
      %v4465 = vpop.f32.mrf.mxu0
      %v4466 = vadd.f32 0.0, %v4465
      %v4467 = vpop.f32.mrf.mxu0
      %v4468 = vpop.f32.mrf.mxu0
      %v4469 = vadd.f32 0.0, %v4468
      %v4470 = vpop.f32.mrf.mxu0
      %4471 = vmatprep.mubr.bf16.mxu0 0
      %4472 = vmatmul.mubr.bf16.gmra.mxu0 %v4317
      %v4473 = vpop.f32.mrf.mxu0
      %v4474 = vadd.f32 0.0, %v4473
      %v4475 = vpop.f32.mrf.mxu0
      %v4476 = vpop.f32.mrf.mxu0
      %v4477 = vadd.f32 0.0, %v4476
      %v4478 = vpop.f32.mrf.mxu0
      %4479 = vmatprep.mubr.bf16.mxu0 0
      %4480 = vmatmul.mubr.bf16.gmra.mxu0 %v4318
      %v4481 = vpop.f32.mrf.mxu0
      %v4482 = vadd.f32 0.0, %v4481
      %v4483 = vpop.f32.mrf.mxu0
      %v4484 = vpop.f32.mrf.mxu0
      %v4485 = vadd.f32 0.0, %v4484
      %v4486 = vpop.f32.mrf.mxu0
      %4487 = vmatprep.mubr.bf16.mxu0 0
      %4488 = vmatmul.mubr.bf16.gmra.mxu0 %v4319
      %v4489 = vpop.f32.mrf.mxu0
      %v4490 = vadd.f32 0.0, %v4489
      %v4491 = vpop.f32.mrf.mxu0
      %v4492 = vpop.f32.mrf.mxu0
      %v4493 = vadd.f32 0.0, %v4492
      %v4494 = vpop.f32.mrf.mxu0
      %4495 = vmatprep.mubr.bf16.mxu0 0
      %4496 = vmatmul.mubr.bf16.gmra.mxu0 %v4320
      %v4497 = vpop.f32.mrf.mxu0
      %v4498 = vadd.f32 0.0, %v4497
      %v4499 = vpop.f32.mrf.mxu0
      %v4500 = vpop.f32.mrf.mxu0
      %v4501 = vadd.f32 0.0, %v4500
      %v4502 = vpop.f32.mrf.mxu0
      %4503 = vmatprep.mubr.bf16.mxu0 0
      %4504 = vmatmul.mubr.bf16.gmra.mxu0 %v4321
      %v4505 = vpop.f32.mrf.mxu0
      %v4506 = vadd.f32 0.0, %v4505
      %v4507 = vpop.f32.mrf.mxu0
      %v4508 = vpop.f32.mrf.mxu0
      %v4509 = vadd.f32 0.0, %v4508
      %v4510 = vpop.f32.mrf.mxu0
      %4511 = vmatprep.mubr.bf16.mxu0 0
      %4512 = vmatmul.mubr.bf16.gmra.mxu0 %v4322
      %v4513 = vpop.f32.mrf.mxu0
      %v4514 = vadd.f32 0.0, %v4513
      %v4515 = vpop.f32.mrf.mxu0
      %v4516 = vpop.f32.mrf.mxu0
      %v4517 = vadd.f32 0.0, %v4516
      %v4518 = vpop.f32.mrf.mxu0
      %4519 = vmatprep.mubr.bf16.mxu0 0
      %4520 = vmatmul.mubr.bf16.gmra.mxu0 %v4323
      %v4521 = vpop.f32.mrf.mxu0
      %v4522 = vadd.f32 0.0, %v4521
      %v4523 = vpop.f32.mrf.mxu0
      %v4524 = vpop.f32.mrf.mxu0
      %v4525 = vadd.f32 0.0, %v4524
      %v4526 = vpop.f32.mrf.mxu0
      %4527 = vmatprep.mubr.bf16.mxu0 0
      %4528 = vmatmul.mubr.bf16.gmra.mxu0 %v4324
      %v4529 = vpop.f32.mrf.mxu0
      %v4530 = vadd.f32 0.0, %v4529
      %v4531 = vpop.f32.mrf.mxu0
      %v4532 = vpop.f32.mrf.mxu0
      %v4533 = vadd.f32 0.0, %v4532
      %v4534 = vpop.f32.mrf.mxu0
      %4535 = vmatprep.mubr.bf16.mxu0 0
      %4536 = vmatmul.mubr.bf16.gmra.mxu0 %v4325
      %v4537 = vpop.f32.mrf.mxu0
      %v4538 = vadd.f32 0.0, %v4537
      %v4539 = vpop.f32.mrf.mxu0
      %v4540 = vpop.f32.mrf.mxu0
      %v4541 = vadd.f32 0.0, %v4540
      %v4542 = vpop.f32.mrf.mxu0
      %4543 = vmatprep.mubr.bf16.mxu0 0
      %4544 = vmatmul.mubr.bf16.gmra.mxu0 %v4326
      %v4545 = vpop.f32.mrf.mxu0
      %v4546 = vadd.f32 0.0, %v4545
      %v4547 = vpop.f32.mrf.mxu0
      %v4548 = vpop.f32.mrf.mxu0
      %v4549 = vadd.f32 0.0, %v4548
      %v4550 = vpop.f32.mrf.mxu0
      %4551 = vdwg.mxu0
      %v4552 = vadd.f32 %v3798, %v4426
      %v4553 = vadd.f32 %v3799, %v4429
      %v4554 = vadd.f32 %v3800, %v4434
      %v4555 = vadd.f32 %v3801, %v4437
      %v4556 = vadd.f32 %v3802, %v4442
      %v4557 = vadd.f32 %v3803, %v4445
      %v4558 = vadd.f32 %v3804, %v4450
      %v4559 = vadd.f32 %v3805, %v4453
      %v4560 = vadd.f32 %v3806, %v4458
      %v4561 = vadd.f32 %v3807, %v4461
      %v4562 = vadd.f32 %v3808, %v4466
      %v4563 = vadd.f32 %v3809, %v4469
      %v4564 = vadd.f32 %v3810, %v4474
      %v4565 = vadd.f32 %v3811, %v4477
      %v4566 = vadd.f32 %v3812, %v4482
      %v4567 = vadd.f32 %v3813, %v4485
      %v4568 = vadd.f32 %v3814, %v4490
      %v4569 = vadd.f32 %v3815, %v4493
      %v4570 = vadd.f32 %v3816, %v4498
      %v4571 = vadd.f32 %v3817, %v4501
      %v4572 = vadd.f32 %v3818, %v4506
      %v4573 = vadd.f32 %v3819, %v4509
      %v4574 = vadd.f32 %v3820, %v4514
      %v4575 = vadd.f32 %v3821, %v4517
      %v4576 = vadd.f32 %v3822, %v4522
      %v4577 = vadd.f32 %v3823, %v4525
      %v4578 = vadd.f32 %v3824, %v4530
      %v4579 = vadd.f32 %v3825, %v4533
      %v4580 = vadd.f32 %v3826, %v4538
      %v4581 = vadd.f32 %v3827, %v4541
      %v4582 = vadd.f32 %v3828, %v4546
      %v4583 = vadd.f32 %v3829, %v4549
      %v4584 = vld [vmem:[%s3443] sm:$0xe]
      %v4585 = vld [vmem:[%s3443 + $0xc] sm:$0xe]
      %v4586 = vld [vmem:[%s3443 + $0x18] sm:$0xe]
      %v4587 = vld [vmem:[%s3443 + $0x24] sm:$0xe]
      %v4588 = vld [vmem:[%s3443 + $0x30] sm:$0xe]
      %v4589 = vld [vmem:[%s3443 + $0x3c] sm:$0xe]
      %v4590 = vld [vmem:[%s3443 + $0x48] sm:$0xe]
      %v4591 = vld [vmem:[%s3443 + $0x54] sm:$0xe]
      %v4592 = vld [vmem:[%s3443 + $0x60] sm:$0xe]
      %v4593 = vld [vmem:[%s3443 + $0x6c] sm:$0xe]
      %v4594 = vld [vmem:[%s3443 + $0x78] sm:$0xe]
      %v4595 = vld [vmem:[%s3443 + $0x84] sm:$0xe]
      %v4596 = vld [vmem:[%s3443 + $0x90] sm:$0xe]
      %v4597 = vld [vmem:[%s3443 + $0x9c] sm:$0xe]
      %v4598 = vld [vmem:[%s3443 + $0xa8] sm:$0xe]
      %v4599 = vld [vmem:[%s3443 + $0xb4] sm:$0xe]
      %v4648 = vrot.slane %v4584, 5
      %v4649 = vrot.slane %v4648, 4
      %v4650 = vrot.slane %v3831, 5
      %v4651 = vsel %vm1369, %v4649, %v4650
      %v4652 = vrot.slane %v4650, 4
      %v4653 = vrot.slane %v3832, 5
      %v4654 = vsel %vm1369, %v4652, %v4653
      %v4655 = vrot.slane %v4585, 5
      %v4656 = vrot.slane %v4655, 4
      %v4657 = vrot.slane %v3834, 5
      %v4658 = vsel %vm1369, %v4656, %v4657
      %v4659 = vrot.slane %v4657, 4
      %v4660 = vrot.slane %v3835, 5
      %v4661 = vsel %vm1369, %v4659, %v4660
      %v4662 = vrot.slane %v4586, 5
      %v4663 = vrot.slane %v4662, 4
      %v4664 = vrot.slane %v3837, 5
      %v4665 = vsel %vm1369, %v4663, %v4664
      %v4666 = vrot.slane %v4664, 4
      %v4667 = vrot.slane %v3838, 5
      %v4668 = vsel %vm1369, %v4666, %v4667
      %v4669 = vrot.slane %v4587, 5
      %v4670 = vrot.slane %v4669, 4
      %v4671 = vrot.slane %v3840, 5
      %v4672 = vsel %vm1369, %v4670, %v4671
      %v4673 = vrot.slane %v4671, 4
      %v4674 = vrot.slane %v3841, 5
      %v4675 = vsel %vm1369, %v4673, %v4674
      %v4676 = vrot.slane %v4588, 5
      %v4677 = vrot.slane %v4676, 4
      %v4678 = vrot.slane %v3843, 5
      %v4679 = vsel %vm1369, %v4677, %v4678
      %v4680 = vrot.slane %v4678, 4
      %v4681 = vrot.slane %v3844, 5
      %v4682 = vsel %vm1369, %v4680, %v4681
      %v4683 = vrot.slane %v4589, 5
      %v4684 = vrot.slane %v4683, 4
      %v4685 = vrot.slane %v3846, 5
      %v4686 = vsel %vm1369, %v4684, %v4685
      %v4687 = vrot.slane %v4685, 4
      %v4688 = vrot.slane %v3847, 5
      %v4689 = vsel %vm1369, %v4687, %v4688
      %v4690 = vrot.slane %v4590, 5
      %v4691 = vrot.slane %v4690, 4
      %v4692 = vrot.slane %v3849, 5
      %v4693 = vsel %vm1369, %v4691, %v4692
      %v4694 = vrot.slane %v4692, 4
      %v4695 = vrot.slane %v3850, 5
      %v4696 = vsel %vm1369, %v4694, %v4695
      %v4697 = vrot.slane %v4591, 5
      %v4698 = vrot.slane %v4697, 4
      %v4699 = vrot.slane %v3852, 5
      %v4700 = vsel %vm1369, %v4698, %v4699
      %v4701 = vrot.slane %v4699, 4
      %v4702 = vrot.slane %v3853, 5
      %v4703 = vsel %vm1369, %v4701, %v4702
      %v4704 = vrot.slane %v4592, 5
      %v4705 = vrot.slane %v4704, 4
      %v4706 = vrot.slane %v3855, 5
      %v4707 = vsel %vm1369, %v4705, %v4706
      %v4708 = vrot.slane %v4706, 4
      %v4709 = vrot.slane %v3856, 5
      %v4710 = vsel %vm1369, %v4708, %v4709
      %v4711 = vrot.slane %v4593, 5
      %v4712 = vrot.slane %v4711, 4
      %v4713 = vrot.slane %v3858, 5
      %v4714 = vsel %vm1369, %v4712, %v4713
      %v4715 = vrot.slane %v4713, 4
      %v4716 = vrot.slane %v3859, 5
      %v4717 = vsel %vm1369, %v4715, %v4716
      %v4718 = vrot.slane %v4594, 5
      %v4719 = vrot.slane %v4718, 4
      %v4720 = vrot.slane %v3861, 5
      %v4721 = vsel %vm1369, %v4719, %v4720
      %v4722 = vrot.slane %v4720, 4
      %v4723 = vrot.slane %v3862, 5
      %v4724 = vsel %vm1369, %v4722, %v4723
      %v4725 = vrot.slane %v4595, 5
      %v4726 = vrot.slane %v4725, 4
      %v4727 = vrot.slane %v3864, 5
      %v4728 = vsel %vm1369, %v4726, %v4727
      %v4729 = vrot.slane %v4727, 4
      %v4730 = vrot.slane %v3865, 5
      %v4731 = vsel %vm1369, %v4729, %v4730
      %v4732 = vrot.slane %v4596, 5
      %v4733 = vrot.slane %v4732, 4
      %v4734 = vrot.slane %v3867, 5
      %v4735 = vsel %vm1369, %v4733, %v4734
      %v4736 = vrot.slane %v4734, 4
      %v4737 = vrot.slane %v3868, 5
      %v4738 = vsel %vm1369, %v4736, %v4737
      %v4739 = vrot.slane %v4597, 5
      %v4740 = vrot.slane %v4739, 4
      %v4741 = vrot.slane %v3870, 5
      %v4742 = vsel %vm1369, %v4740, %v4741
      %v4743 = vrot.slane %v4741, 4
      %v4744 = vrot.slane %v3871, 5
      %v4745 = vsel %vm1369, %v4743, %v4744
      %v4746 = vrot.slane %v4598, 5
      %v4747 = vrot.slane %v4746, 4
      %v4748 = vrot.slane %v3873, 5
      %v4749 = vsel %vm1369, %v4747, %v4748
      %v4750 = vrot.slane %v4748, 4
      %v4751 = vrot.slane %v3874, 5
      %v4752 = vsel %vm1369, %v4750, %v4751
      %v4753 = vrot.slane %v4599, 5
      %v4754 = vrot.slane %v4753, 4
      %v4755 = vrot.slane %v3876, 5
      %v4756 = vsel %vm1369, %v4754, %v4755
      %v4757 = vrot.slane %v4755, 4
      %v4758 = vrot.slane %v3877, 5
      %v4759 = vsel %vm1369, %v4757, %v4758
      %s4760 = scalar_lea.vmem %s1, 512
      %v4761 = vld [vmem:[%s4760] sm:$0xf]
      %v4762 = vld [vmem:[%s4760 + $0x4] sm:$0xf]
      %v4763 = vld [vmem:[%s4760 + $0x8] sm:$0xf]
      %v4764 = vld [vmem:[%s4760 + $0xc] sm:$0xf]
      %v4765 = vld [vmem:[%s4760 + $0x10] sm:$0xf]
      %v4766 = vld [vmem:[%s4760 + $0x14] sm:$0xf]
      %v4767 = vld [vmem:[%s4760 + $0x18] sm:$0xf]
      %v4768 = vld [vmem:[%s4760 + $0x1c] sm:$0xf]
      %v4769 = vld [vmem:[%s4760 + $0x20] sm:$0xf]
      %v4770 = vld [vmem:[%s4760 + $0x24] sm:$0xf]
      %v4771 = vld [vmem:[%s4760 + $0x28] sm:$0xf]
      %v4772 = vld [vmem:[%s4760 + $0x2c] sm:$0xf]
      %v4773 = vld [vmem:[%s4760 + $0x30] sm:$0xf]
      %v4774 = vld [vmem:[%s4760 + $0x34] sm:$0xf]
      %v4775 = vld [vmem:[%s4760 + $0x38] sm:$0xf]
      %v4776 = vld [vmem:[%s4760 + $0x3c] sm:$0xf]
      %v4777 = vunpack.c.l.b16 %v4651
      %v4778 = vunpack.c.l.b16 %v4654
      %v4779 = vunpack.c.l.b16 %v4658
      %v4780 = vunpack.c.l.b16 %v4661
      %v4781 = vunpack.c.l.b16 %v4665
      %v4782 = vunpack.c.l.b16 %v4668
      %v4783 = vunpack.c.l.b16 %v4672
      %v4784 = vunpack.c.l.b16 %v4675
      %v4785 = vunpack.c.l.b16 %v4679
      %v4786 = vunpack.c.l.b16 %v4682
      %v4787 = vunpack.c.l.b16 %v4686
      %v4788 = vunpack.c.l.b16 %v4689
      %v4789 = vunpack.c.l.b16 %v4693
      %v4790 = vunpack.c.l.b16 %v4696
      %v4791 = vunpack.c.l.b16 %v4700
      %v4792 = vunpack.c.l.b16 %v4703
      %v4793 = vunpack.c.l.b16 %v4707
      %v4794 = vunpack.c.l.b16 %v4710
      %v4795 = vunpack.c.l.b16 %v4714
      %v4796 = vunpack.c.l.b16 %v4717
      %v4797 = vunpack.c.l.b16 %v4721
      %v4798 = vunpack.c.l.b16 %v4724
      %v4799 = vunpack.c.l.b16 %v4728
      %v4800 = vunpack.c.l.b16 %v4731
      %v4801 = vunpack.c.l.b16 %v4735
      %v4802 = vunpack.c.l.b16 %v4738
      %v4803 = vunpack.c.l.b16 %v4742
      %v4804 = vunpack.c.l.b16 %v4745
      %v4805 = vunpack.c.l.b16 %v4749
      %v4806 = vunpack.c.l.b16 %v4752
      %v4807 = vunpack.c.l.b16 %v4756
      %v4808 = vunpack.c.l.b16 %v4759
      %v4809 = vpack.c.b16 %v4778, %v4777
      %v4810 = vpack.c.b16 %v4780, %v4779
      %v4811 = vpack.c.b16 %v4782, %v4781
      %v4812 = vpack.c.b16 %v4784, %v4783
      %v4813 = vpack.c.b16 %v4786, %v4785
      %v4814 = vpack.c.b16 %v4788, %v4787
      %v4815 = vpack.c.b16 %v4790, %v4789
      %v4816 = vpack.c.b16 %v4792, %v4791
      %v4817 = vpack.c.b16 %v4794, %v4793
      %v4818 = vpack.c.b16 %v4796, %v4795
      %v4819 = vpack.c.b16 %v4798, %v4797
      %v4820 = vpack.c.b16 %v4800, %v4799
      %v4821 = vpack.c.b16 %v4802, %v4801
      %v4822 = vpack.c.b16 %v4804, %v4803
      %v4823 = vpack.c.b16 %v4806, %v4805
      %v4824 = vpack.c.b16 %v4808, %v4807
      %v4857 = vunpack.c.l.b16 %v4761
      %v4858 = vunpack.c.l.b16 %v4762
      %v4859 = vunpack.c.l.b16 %v4763
      %v4860 = vunpack.c.l.b16 %v4764
      %v4861 = vunpack.c.l.b16 %v4765
      %v4862 = vunpack.c.l.b16 %v4766
      %v4863 = vunpack.c.l.b16 %v4767
      %v4864 = vunpack.c.l.b16 %v4768
      %v4865 = vunpack.c.l.b16 %v4769
      %v4866 = vunpack.c.l.b16 %v4770
      %v4867 = vunpack.c.l.b16 %v4771
      %v4868 = vunpack.c.l.b16 %v4772
      %v4869 = vunpack.c.l.b16 %v4773
      %v4870 = vunpack.c.l.b16 %v4774
      %v4871 = vunpack.c.l.b16 %v4775
      %v4872 = vunpack.c.l.b16 %v4776
      %v4873 = vpack.c.b16 %v4858, %v4857
      %v4874 = vpack.c.b16 %v4860, %v4859
      %v4875 = vpack.c.b16 %v4862, %v4861
      %v4876 = vpack.c.b16 %v4864, %v4863
      %v4877 = vpack.c.b16 %v4866, %v4865
      %v4878 = vpack.c.b16 %v4868, %v4867
      %v4879 = vpack.c.b16 %v4870, %v4869
      %v4880 = vpack.c.b16 %v4872, %v4871
      %4889 = vmatprep.subr.bf16.mxu0 0
      %4890 = vmatpush1.bf16.msra.mxu0 %v4880
      %4891 = vmatprep.subr.bf16.mxu0 0
      %4892 = vmatpush1.bf16.msra.mxu0 %v4879
      %4893 = vmatprep.subr.bf16.mxu0 0
      %4894 = vmatpush1.bf16.msra.mxu0 %v4878
      %4895 = vmatprep.subr.bf16.mxu0 0
      %4896 = vmatpush1.bf16.msra.mxu0 %v4877
      %4897 = vmatprep.subr.bf16.mxu0 0
      %4898 = vmatpush1.bf16.msra.mxu0 %v4876
      %4899 = vmatprep.subr.bf16.mxu0 0
      %4900 = vmatpush1.bf16.msra.mxu0 %v4875
      %4901 = vmatprep.subr.bf16.mxu0 0
      %4902 = vmatpush1.bf16.msra.mxu0 %v4874
      %4903 = vmatprep.subr.bf16.mxu0 0
      %4904 = vmatpush1.bf16.msra.mxu0 %v4873
      %4905 = vmatprep.subr.bf16.mxu0 0
      %4906 = vmatpush2.bf16.msra.mxu0 0
      %4907 = vmatprep.subr.bf16.mxu0 0
      %4908 = vmatpush2.bf16.msra.mxu0 0
      %4909 = vmatprep.subr.bf16.mxu0 0
      %4910 = vmatpush2.bf16.msra.mxu0 0
      %4911 = vmatprep.subr.bf16.mxu0 0
      %4912 = vmatpush2.bf16.msra.mxu0 0
      %4913 = vmatprep.subr.bf16.mxu0 0
      %4914 = vmatpush2.bf16.msra.mxu0 0
      %4915 = vmatprep.subr.bf16.mxu0 0
      %4916 = vmatpush2.bf16.msra.mxu0 0
      %4917 = vmatprep.subr.bf16.mxu0 0
      %4918 = vmatpush2.bf16.msra.mxu0 0
      %4919 = vmatprep.subr.bf16.mxu0 0
      %4920 = vmatpush2.bf16.msra.mxu0 0
      %4921 = vmatprep.mubr.bf16.mxu0 0
      %4922 = vmatmul.mubr.bf16.gmra.mxu0 %v4809
      %v4923 = vpop.f32.mrf.mxu0
      %v4924 = vadd.f32 0.0, %v4923
      %v4925 = vpop.f32.mrf.mxu0
      %v4926 = vpop.f32.mrf.mxu0
      %v4927 = vadd.f32 0.0, %v4926
      %v4928 = vpop.f32.mrf.mxu0
      %4929 = vmatprep.mubr.bf16.mxu0 0
      %4930 = vmatmul.mubr.bf16.gmra.mxu0 %v4810
      %v4931 = vpop.f32.mrf.mxu0
      %v4932 = vadd.f32 0.0, %v4931
      %v4933 = vpop.f32.mrf.mxu0
      %v4934 = vpop.f32.mrf.mxu0
      %v4935 = vadd.f32 0.0, %v4934
      %v4936 = vpop.f32.mrf.mxu0
      %4937 = vmatprep.mubr.bf16.mxu0 0
      %4938 = vmatmul.mubr.bf16.gmra.mxu0 %v4811
      %v4939 = vpop.f32.mrf.mxu0
      %v4940 = vadd.f32 0.0, %v4939
      %v4941 = vpop.f32.mrf.mxu0
      %v4942 = vpop.f32.mrf.mxu0
      %v4943 = vadd.f32 0.0, %v4942
      %v4944 = vpop.f32.mrf.mxu0
      %4945 = vmatprep.mubr.bf16.mxu0 0
      %4946 = vmatmul.mubr.bf16.gmra.mxu0 %v4812
      %v4947 = vpop.f32.mrf.mxu0
      %v4948 = vadd.f32 0.0, %v4947
      %v4949 = vpop.f32.mrf.mxu0
      %v4950 = vpop.f32.mrf.mxu0
      %v4951 = vadd.f32 0.0, %v4950
      %v4952 = vpop.f32.mrf.mxu0
      %4953 = vmatprep.mubr.bf16.mxu0 0
      %4954 = vmatmul.mubr.bf16.gmra.mxu0 %v4813
      %v4955 = vpop.f32.mrf.mxu0
      %v4956 = vadd.f32 0.0, %v4955
      %v4957 = vpop.f32.mrf.mxu0
      %v4958 = vpop.f32.mrf.mxu0
      %v4959 = vadd.f32 0.0, %v4958
      %v4960 = vpop.f32.mrf.mxu0
      %4961 = vmatprep.mubr.bf16.mxu0 0
      %4962 = vmatmul.mubr.bf16.gmra.mxu0 %v4814
      %v4963 = vpop.f32.mrf.mxu0
      %v4964 = vadd.f32 0.0, %v4963
      %v4965 = vpop.f32.mrf.mxu0
      %v4966 = vpop.f32.mrf.mxu0
      %v4967 = vadd.f32 0.0, %v4966
      %v4968 = vpop.f32.mrf.mxu0
      %4969 = vmatprep.mubr.bf16.mxu0 0
      %4970 = vmatmul.mubr.bf16.gmra.mxu0 %v4815
      %v4971 = vpop.f32.mrf.mxu0
      %v4972 = vadd.f32 0.0, %v4971
      %v4973 = vpop.f32.mrf.mxu0
      %v4974 = vpop.f32.mrf.mxu0
      %v4975 = vadd.f32 0.0, %v4974
      %v4976 = vpop.f32.mrf.mxu0
      %4977 = vmatprep.mubr.bf16.mxu0 0
      %4978 = vmatmul.mubr.bf16.gmra.mxu0 %v4816
      %v4979 = vpop.f32.mrf.mxu0
      %v4980 = vadd.f32 0.0, %v4979
      %v4981 = vpop.f32.mrf.mxu0
      %v4982 = vpop.f32.mrf.mxu0
      %v4983 = vadd.f32 0.0, %v4982
      %v4984 = vpop.f32.mrf.mxu0
      %4985 = vmatprep.mubr.bf16.mxu0 0
      %4986 = vmatmul.mubr.bf16.gmra.mxu0 %v4817
      %v4987 = vpop.f32.mrf.mxu0
      %v4988 = vadd.f32 0.0, %v4987
      %v4989 = vpop.f32.mrf.mxu0
      %v4990 = vpop.f32.mrf.mxu0
      %v4991 = vadd.f32 0.0, %v4990
      %v4992 = vpop.f32.mrf.mxu0
      %4993 = vmatprep.mubr.bf16.mxu0 0
      %4994 = vmatmul.mubr.bf16.gmra.mxu0 %v4818
      %v4995 = vpop.f32.mrf.mxu0
      %v4996 = vadd.f32 0.0, %v4995
      %v4997 = vpop.f32.mrf.mxu0
      %v4998 = vpop.f32.mrf.mxu0
      %v4999 = vadd.f32 0.0, %v4998
      %v5000 = vpop.f32.mrf.mxu0
      %5001 = vmatprep.mubr.bf16.mxu0 0
      %5002 = vmatmul.mubr.bf16.gmra.mxu0 %v4819
      %v5003 = vpop.f32.mrf.mxu0
      %v5004 = vadd.f32 0.0, %v5003
      %v5005 = vpop.f32.mrf.mxu0
      %v5006 = vpop.f32.mrf.mxu0
      %v5007 = vadd.f32 0.0, %v5006
      %v5008 = vpop.f32.mrf.mxu0
      %5009 = vmatprep.mubr.bf16.mxu0 0
      %5010 = vmatmul.mubr.bf16.gmra.mxu0 %v4820
      %v5011 = vpop.f32.mrf.mxu0
      %v5012 = vadd.f32 0.0, %v5011
      %v5013 = vpop.f32.mrf.mxu0
      %v5014 = vpop.f32.mrf.mxu0
      %v5015 = vadd.f32 0.0, %v5014
      %v5016 = vpop.f32.mrf.mxu0
      %5017 = vmatprep.mubr.bf16.mxu0 0
      %5018 = vmatmul.mubr.bf16.gmra.mxu0 %v4821
      %v5019 = vpop.f32.mrf.mxu0
      %v5020 = vadd.f32 0.0, %v5019
      %v5021 = vpop.f32.mrf.mxu0
      %v5022 = vpop.f32.mrf.mxu0
      %v5023 = vadd.f32 0.0, %v5022
      %v5024 = vpop.f32.mrf.mxu0
      %5025 = vmatprep.mubr.bf16.mxu0 0
      %5026 = vmatmul.mubr.bf16.gmra.mxu0 %v4822
      %v5027 = vpop.f32.mrf.mxu0
      %v5028 = vadd.f32 0.0, %v5027
      %v5029 = vpop.f32.mrf.mxu0
      %v5030 = vpop.f32.mrf.mxu0
      %v5031 = vadd.f32 0.0, %v5030
      %v5032 = vpop.f32.mrf.mxu0
      %5033 = vmatprep.mubr.bf16.mxu0 0
      %5034 = vmatmul.mubr.bf16.gmra.mxu0 %v4823
      %v5035 = vpop.f32.mrf.mxu0
      %v5036 = vadd.f32 0.0, %v5035
      %v5037 = vpop.f32.mrf.mxu0
      %v5038 = vpop.f32.mrf.mxu0
      %v5039 = vadd.f32 0.0, %v5038
      %v5040 = vpop.f32.mrf.mxu0
      %5041 = vmatprep.mubr.bf16.mxu0 0
      %5042 = vmatmul.mubr.bf16.gmra.mxu0 %v4824
      %v5043 = vpop.f32.mrf.mxu0
      %v5044 = vadd.f32 0.0, %v5043
      %v5045 = vpop.f32.mrf.mxu0
      %v5046 = vpop.f32.mrf.mxu0
      %v5047 = vadd.f32 0.0, %v5046
      %v5048 = vpop.f32.mrf.mxu0
      %5049 = vdwg.mxu0
      %v5050 = vadd.f32 %v4552, %v4924
      %v5051 = vadd.f32 %v4553, %v4927
      %v5052 = vadd.f32 %v4554, %v4932
      %v5053 = vadd.f32 %v4555, %v4935
      %v5054 = vadd.f32 %v4556, %v4940
      %v5055 = vadd.f32 %v4557, %v4943
      %v5056 = vadd.f32 %v4558, %v4948
      %v5057 = vadd.f32 %v4559, %v4951
      %v5058 = vadd.f32 %v4560, %v4956
      %v5059 = vadd.f32 %v4561, %v4959
      %v5060 = vadd.f32 %v4562, %v4964
      %v5061 = vadd.f32 %v4563, %v4967
      %v5062 = vadd.f32 %v4564, %v4972
      %v5063 = vadd.f32 %v4565, %v4975
      %v5064 = vadd.f32 %v4566, %v4980
      %v5065 = vadd.f32 %v4567, %v4983
      %v5066 = vadd.f32 %v4568, %v4988
      %v5067 = vadd.f32 %v4569, %v4991
      %v5068 = vadd.f32 %v4570, %v4996
      %v5069 = vadd.f32 %v4571, %v4999
      %v5070 = vadd.f32 %v4572, %v5004
      %v5071 = vadd.f32 %v4573, %v5007
      %v5072 = vadd.f32 %v4574, %v5012
      %v5073 = vadd.f32 %v4575, %v5015
      %v5074 = vadd.f32 %v4576, %v5020
      %v5075 = vadd.f32 %v4577, %v5023
      %v5076 = vadd.f32 %v4578, %v5028
      %v5077 = vadd.f32 %v4579, %v5031
      %v5078 = vadd.f32 %v4580, %v5036
      %v5079 = vadd.f32 %v4581, %v5039
      %v5080 = vadd.f32 %v4582, %v5044
      %v5081 = vadd.f32 %v4583, %v5047
      %v5082 = vld [vmem:[%s2] sm:$0x1]
      %v5084 = vlaneseq
      %v5085 = vshrl.u32 %v5084, 7
      %v5086 = vsub.s32 0, %v5085
      %v5087 = vrot.slane %v5082, %v5086
      %v5089 = vadd.f32 %v5050, %v5087
      %v5090 = vadd.f32 %v5051, %v5087
      %v5091 = vadd.f32 %v5052, %v5087
      %v5092 = vadd.f32 %v5053, %v5087
      %v5093 = vadd.f32 %v5054, %v5087
      %v5094 = vadd.f32 %v5055, %v5087
      %v5095 = vadd.f32 %v5056, %v5087
      %v5096 = vadd.f32 %v5057, %v5087
      %v5097 = vadd.f32 %v5058, %v5087
      %v5098 = vadd.f32 %v5059, %v5087
      %v5099 = vadd.f32 %v5060, %v5087
      %v5100 = vadd.f32 %v5061, %v5087
      %v5101 = vadd.f32 %v5062, %v5087
      %v5102 = vadd.f32 %v5063, %v5087
      %v5103 = vadd.f32 %v5064, %v5087
      %v5104 = vadd.f32 %v5065, %v5087
      %v5105 = vadd.f32 %v5066, %v5087
      %v5106 = vadd.f32 %v5067, %v5087
      %v5107 = vadd.f32 %v5068, %v5087
      %v5108 = vadd.f32 %v5069, %v5087
      %v5109 = vadd.f32 %v5070, %v5087
      %v5110 = vadd.f32 %v5071, %v5087
      %v5111 = vadd.f32 %v5072, %v5087
      %v5112 = vadd.f32 %v5073, %v5087
      %v5113 = vadd.f32 %v5074, %v5087
      %v5114 = vadd.f32 %v5075, %v5087
      %v5115 = vadd.f32 %v5076, %v5087
      %v5116 = vadd.f32 %v5077, %v5087
      %v5117 = vadd.f32 %v5078, %v5087
      %v5118 = vadd.f32 %v5079, %v5087
      %v5119 = vadd.f32 %v5080, %v5087
      %v5120 = vadd.f32 %v5081, %v5087
      %v5121 = vld [vmem:[%s266] sm:$0xf]
      %v5122 = vld [vmem:[%s266 + $0x4] sm:$0xf]
      %v5123 = vld [vmem:[%s266 + $0x8] sm:$0xf]
      %v5124 = vld [vmem:[%s266 + $0xc] sm:$0xf]
      %v5125 = vld [vmem:[%s266 + $0x10] sm:$0xf]
      %v5126 = vld [vmem:[%s266 + $0x14] sm:$0xf]
      %v5127 = vld [vmem:[%s266 + $0x18] sm:$0xf]
      %v5128 = vld [vmem:[%s266 + $0x1c] sm:$0xf]
      %v5129 = vld [vmem:[%s266 + $0x20] sm:$0xf]
      %v5130 = vld [vmem:[%s266 + $0x24] sm:$0xf]
      %v5131 = vld [vmem:[%s266 + $0x28] sm:$0xf]
      %v5132 = vld [vmem:[%s266 + $0x2c] sm:$0xf]
      %v5133 = vld [vmem:[%s266 + $0x30] sm:$0xf]
      %v5134 = vld [vmem:[%s266 + $0x34] sm:$0xf]
      %v5135 = vld [vmem:[%s266 + $0x38] sm:$0xf]
      %v5136 = vld [vmem:[%s266 + $0x3c] sm:$0xf]
      %v5137 = vld [vmem:[%s266 + $0x40] sm:$0xf]
      %v5138 = vld [vmem:[%s266 + $0x44] sm:$0xf]
      %v5139 = vld [vmem:[%s266 + $0x48] sm:$0xf]
      %v5140 = vld [vmem:[%s266 + $0x4c] sm:$0xf]
      %v5141 = vld [vmem:[%s266 + $0x50] sm:$0xf]
      %v5142 = vld [vmem:[%s266 + $0x54] sm:$0xf]
      %v5143 = vld [vmem:[%s266 + $0x58] sm:$0xf]
      %v5144 = vld [vmem:[%s266 + $0x5c] sm:$0xf]
      %v5145 = vld [vmem:[%s266 + $0x60] sm:$0xf]
      %v5146 = vld [vmem:[%s266 + $0x64] sm:$0xf]
      %v5147 = vld [vmem:[%s266 + $0x68] sm:$0xf]
      %v5148 = vld [vmem:[%s266 + $0x6c] sm:$0xf]
      %v5149 = vld [vmem:[%s266 + $0x70] sm:$0xf]
      %v5150 = vld [vmem:[%s266 + $0x74] sm:$0xf]
      %v5151 = vld [vmem:[%s266 + $0x78] sm:$0xf]
      %v5152 = vld [vmem:[%s266 + $0x7c] sm:$0xf]
      %v5153 = vld [vmem:[%s4] sm:$0xf]
      %v5154 = vld [vmem:[%s4 + $0x4] sm:$0xf]
      %v5155 = vld [vmem:[%s4 + $0x8] sm:$0xf]
      %v5156 = vld [vmem:[%s4 + $0xc] sm:$0xf]
      %v5157 = vld [vmem:[%s4 + $0x10] sm:$0xf]
      %v5158 = vld [vmem:[%s4 + $0x14] sm:$0xf]
      %v5159 = vld [vmem:[%s4 + $0x18] sm:$0xf]
      %v5160 = vld [vmem:[%s4 + $0x1c] sm:$0xf]
      %v5161 = vld [vmem:[%s4 + $0x20] sm:$0xf]
      %v5162 = vld [vmem:[%s4 + $0x24] sm:$0xf]
      %v5163 = vld [vmem:[%s4 + $0x28] sm:$0xf]
      %v5164 = vld [vmem:[%s4 + $0x2c] sm:$0xf]
      %v5165 = vld [vmem:[%s4 + $0x30] sm:$0xf]
      %v5166 = vld [vmem:[%s4 + $0x34] sm:$0xf]
      %v5167 = vld [vmem:[%s4 + $0x38] sm:$0xf]
      %v5168 = vld [vmem:[%s4 + $0x3c] sm:$0xf]
      %v5201 = vunpack.c.l.b16 %v5121
      %v5202 = vunpack.c.l.b16 %v5122
      %v5203 = vunpack.c.l.b16 %v5123
      %v5204 = vunpack.c.l.b16 %v5124
      %v5205 = vunpack.c.l.b16 %v5125
      %v5206 = vunpack.c.l.b16 %v5126
      %v5207 = vunpack.c.l.b16 %v5127
      %v5208 = vunpack.c.l.b16 %v5128
      %v5209 = vunpack.c.l.b16 %v5129
      %v5210 = vunpack.c.l.b16 %v5130
      %v5211 = vunpack.c.l.b16 %v5131
      %v5212 = vunpack.c.l.b16 %v5132
      %v5213 = vunpack.c.l.b16 %v5133
      %v5214 = vunpack.c.l.b16 %v5134
      %v5215 = vunpack.c.l.b16 %v5135
      %v5216 = vunpack.c.l.b16 %v5136
      %v5217 = vunpack.c.l.b16 %v5137
      %v5218 = vunpack.c.l.b16 %v5138
      %v5219 = vunpack.c.l.b16 %v5139
      %v5220 = vunpack.c.l.b16 %v5140
      %v5221 = vunpack.c.l.b16 %v5141
      %v5222 = vunpack.c.l.b16 %v5142
      %v5223 = vunpack.c.l.b16 %v5143
      %v5224 = vunpack.c.l.b16 %v5144
      %v5225 = vunpack.c.l.b16 %v5145
      %v5226 = vunpack.c.l.b16 %v5146
      %v5227 = vunpack.c.l.b16 %v5147
      %v5228 = vunpack.c.l.b16 %v5148
      %v5229 = vunpack.c.l.b16 %v5149
      %v5230 = vunpack.c.l.b16 %v5150
      %v5231 = vunpack.c.l.b16 %v5151
      %v5232 = vunpack.c.l.b16 %v5152
      %v5233 = vpack.c.b16 %v5202, %v5201
      %v5234 = vpack.c.b16 %v5204, %v5203
      %v5235 = vpack.c.b16 %v5206, %v5205
      %v5236 = vpack.c.b16 %v5208, %v5207
      %v5237 = vpack.c.b16 %v5210, %v5209
      %v5238 = vpack.c.b16 %v5212, %v5211
      %v5239 = vpack.c.b16 %v5214, %v5213
      %v5240 = vpack.c.b16 %v5216, %v5215
      %v5241 = vpack.c.b16 %v5218, %v5217
      %v5242 = vpack.c.b16 %v5220, %v5219
      %v5243 = vpack.c.b16 %v5222, %v5221
      %v5244 = vpack.c.b16 %v5224, %v5223
      %v5245 = vpack.c.b16 %v5226, %v5225
      %v5246 = vpack.c.b16 %v5228, %v5227
      %v5247 = vpack.c.b16 %v5230, %v5229
      %v5248 = vpack.c.b16 %v5232, %v5231
      %v5281 = vunpack.c.l.b16 %v5153
      %v5282 = vunpack.c.l.b16 %v5154
      %v5283 = vunpack.c.l.b16 %v5155
      %v5284 = vunpack.c.l.b16 %v5156
      %v5285 = vunpack.c.l.b16 %v5157
      %v5286 = vunpack.c.l.b16 %v5158
      %v5287 = vunpack.c.l.b16 %v5159
      %v5288 = vunpack.c.l.b16 %v5160
      %v5289 = vunpack.c.l.b16 %v5161
      %v5290 = vunpack.c.l.b16 %v5162
      %v5291 = vunpack.c.l.b16 %v5163
      %v5292 = vunpack.c.l.b16 %v5164
      %v5293 = vunpack.c.l.b16 %v5165
      %v5294 = vunpack.c.l.b16 %v5166
      %v5295 = vunpack.c.l.b16 %v5167
      %v5296 = vunpack.c.l.b16 %v5168
      %v5297 = vpack.c.b16 %v5282, %v5281
      %v5298 = vpack.c.b16 %v5284, %v5283
      %v5299 = vpack.c.b16 %v5286, %v5285
      %v5300 = vpack.c.b16 %v5288, %v5287
      %v5301 = vpack.c.b16 %v5290, %v5289
      %v5302 = vpack.c.b16 %v5292, %v5291
      %v5303 = vpack.c.b16 %v5294, %v5293
      %v5304 = vpack.c.b16 %v5296, %v5295
      %5313 = vmatprep.subr.bf16.mxu0 0
      %5314 = vmatpush1.bf16.msra.mxu0 %v5304
      %5315 = vmatprep.subr.bf16.mxu0 0
      %5316 = vmatpush1.bf16.msra.mxu0 %v5303
      %5317 = vmatprep.subr.bf16.mxu0 0
      %5318 = vmatpush1.bf16.msra.mxu0 %v5302
      %5319 = vmatprep.subr.bf16.mxu0 0
      %5320 = vmatpush1.bf16.msra.mxu0 %v5301
      %5321 = vmatprep.subr.bf16.mxu0 0
      %5322 = vmatpush1.bf16.msra.mxu0 %v5300
      %5323 = vmatprep.subr.bf16.mxu0 0
      %5324 = vmatpush1.bf16.msra.mxu0 %v5299
      %5325 = vmatprep.subr.bf16.mxu0 0
      %5326 = vmatpush1.bf16.msra.mxu0 %v5298
      %5327 = vmatprep.subr.bf16.mxu0 0
      %5328 = vmatpush1.bf16.msra.mxu0 %v5297
      %5329 = vmatprep.subr.bf16.mxu0 0
      %5330 = vmatpush2.bf16.msra.mxu0 0
      %5331 = vmatprep.subr.bf16.mxu0 0
      %5332 = vmatpush2.bf16.msra.mxu0 0
      %5333 = vmatprep.subr.bf16.mxu0 0
      %5334 = vmatpush2.bf16.msra.mxu0 0
      %5335 = vmatprep.subr.bf16.mxu0 0
      %5336 = vmatpush2.bf16.msra.mxu0 0
      %5337 = vmatprep.subr.bf16.mxu0 0
      %5338 = vmatpush2.bf16.msra.mxu0 0
      %5339 = vmatprep.subr.bf16.mxu0 0
      %5340 = vmatpush2.bf16.msra.mxu0 0
      %5341 = vmatprep.subr.bf16.mxu0 0
      %5342 = vmatpush2.bf16.msra.mxu0 0
      %5343 = vmatprep.subr.bf16.mxu0 0
      %5344 = vmatpush2.bf16.msra.mxu0 0
      %5345 = vmatprep.mubr.bf16.mxu0 0
      %5346 = vmatmul.mubr.bf16.gmra.mxu0 %v5233
      %v5347 = vpop.f32.mrf.mxu0
      %v5348 = vadd.f32 0.0, %v5347
      %v5349 = vpop.f32.mrf.mxu0
      %v5350 = vpop.f32.mrf.mxu0
      %v5351 = vadd.f32 0.0, %v5350
      %v5352 = vpop.f32.mrf.mxu0
      %5353 = vmatprep.mubr.bf16.mxu0 0
      %5354 = vmatmul.mubr.bf16.gmra.mxu0 %v5234
      %v5355 = vpop.f32.mrf.mxu0
      %v5356 = vadd.f32 0.0, %v5355
      %v5357 = vpop.f32.mrf.mxu0
      %v5358 = vpop.f32.mrf.mxu0
      %v5359 = vadd.f32 0.0, %v5358
      %v5360 = vpop.f32.mrf.mxu0
      %5361 = vmatprep.mubr.bf16.mxu0 0
      %5362 = vmatmul.mubr.bf16.gmra.mxu0 %v5235
      %v5363 = vpop.f32.mrf.mxu0
      %v5364 = vadd.f32 0.0, %v5363
      %v5365 = vpop.f32.mrf.mxu0
      %v5366 = vpop.f32.mrf.mxu0
      %v5367 = vadd.f32 0.0, %v5366
      %v5368 = vpop.f32.mrf.mxu0
      %5369 = vmatprep.mubr.bf16.mxu0 0
      %5370 = vmatmul.mubr.bf16.gmra.mxu0 %v5236
      %v5371 = vpop.f32.mrf.mxu0
      %v5372 = vadd.f32 0.0, %v5371
      %v5373 = vpop.f32.mrf.mxu0
      %v5374 = vpop.f32.mrf.mxu0
      %v5375 = vadd.f32 0.0, %v5374
      %v5376 = vpop.f32.mrf.mxu0
      %5377 = vmatprep.mubr.bf16.mxu0 0
      %5378 = vmatmul.mubr.bf16.gmra.mxu0 %v5237
      %v5379 = vpop.f32.mrf.mxu0
      %v5380 = vadd.f32 0.0, %v5379
      %v5381 = vpop.f32.mrf.mxu0
      %v5382 = vpop.f32.mrf.mxu0
      %v5383 = vadd.f32 0.0, %v5382
      %v5384 = vpop.f32.mrf.mxu0
      %5385 = vmatprep.mubr.bf16.mxu0 0
      %5386 = vmatmul.mubr.bf16.gmra.mxu0 %v5238
      %v5387 = vpop.f32.mrf.mxu0
      %v5388 = vadd.f32 0.0, %v5387
      %v5389 = vpop.f32.mrf.mxu0
      %v5390 = vpop.f32.mrf.mxu0
      %v5391 = vadd.f32 0.0, %v5390
      %v5392 = vpop.f32.mrf.mxu0
      %5393 = vmatprep.mubr.bf16.mxu0 0
      %5394 = vmatmul.mubr.bf16.gmra.mxu0 %v5239
      %v5395 = vpop.f32.mrf.mxu0
      %v5396 = vadd.f32 0.0, %v5395
      %v5397 = vpop.f32.mrf.mxu0
      %v5398 = vpop.f32.mrf.mxu0
      %v5399 = vadd.f32 0.0, %v5398
      %v5400 = vpop.f32.mrf.mxu0
      %5401 = vmatprep.mubr.bf16.mxu0 0
      %5402 = vmatmul.mubr.bf16.gmra.mxu0 %v5240
      %v5403 = vpop.f32.mrf.mxu0
      %v5404 = vadd.f32 0.0, %v5403
      %v5405 = vpop.f32.mrf.mxu0
      %v5406 = vpop.f32.mrf.mxu0
      %v5407 = vadd.f32 0.0, %v5406
      %v5408 = vpop.f32.mrf.mxu0
      %5409 = vmatprep.mubr.bf16.mxu0 0
      %5410 = vmatmul.mubr.bf16.gmra.mxu0 %v5241
      %v5411 = vpop.f32.mrf.mxu0
      %v5412 = vadd.f32 0.0, %v5411
      %v5413 = vpop.f32.mrf.mxu0
      %v5414 = vpop.f32.mrf.mxu0
      %v5415 = vadd.f32 0.0, %v5414
      %v5416 = vpop.f32.mrf.mxu0
      %5417 = vmatprep.mubr.bf16.mxu0 0
      %5418 = vmatmul.mubr.bf16.gmra.mxu0 %v5242
      %v5419 = vpop.f32.mrf.mxu0
      %v5420 = vadd.f32 0.0, %v5419
      %v5421 = vpop.f32.mrf.mxu0
      %v5422 = vpop.f32.mrf.mxu0
      %v5423 = vadd.f32 0.0, %v5422
      %v5424 = vpop.f32.mrf.mxu0
      %5425 = vmatprep.mubr.bf16.mxu0 0
      %5426 = vmatmul.mubr.bf16.gmra.mxu0 %v5243
      %v5427 = vpop.f32.mrf.mxu0
      %v5428 = vadd.f32 0.0, %v5427
      %v5429 = vpop.f32.mrf.mxu0
      %v5430 = vpop.f32.mrf.mxu0
      %v5431 = vadd.f32 0.0, %v5430
      %v5432 = vpop.f32.mrf.mxu0
      %5433 = vmatprep.mubr.bf16.mxu0 0
      %5434 = vmatmul.mubr.bf16.gmra.mxu0 %v5244
      %v5435 = vpop.f32.mrf.mxu0
      %v5436 = vadd.f32 0.0, %v5435
      %v5437 = vpop.f32.mrf.mxu0
      %v5438 = vpop.f32.mrf.mxu0
      %v5439 = vadd.f32 0.0, %v5438
      %v5440 = vpop.f32.mrf.mxu0
      %5441 = vmatprep.mubr.bf16.mxu0 0
      %5442 = vmatmul.mubr.bf16.gmra.mxu0 %v5245
      %v5443 = vpop.f32.mrf.mxu0
      %v5444 = vadd.f32 0.0, %v5443
      %v5445 = vpop.f32.mrf.mxu0
      %v5446 = vpop.f32.mrf.mxu0
      %v5447 = vadd.f32 0.0, %v5446
      %v5448 = vpop.f32.mrf.mxu0
      %5449 = vmatprep.mubr.bf16.mxu0 0
      %5450 = vmatmul.mubr.bf16.gmra.mxu0 %v5246
      %v5451 = vpop.f32.mrf.mxu0
      %v5452 = vadd.f32 0.0, %v5451
      %v5453 = vpop.f32.mrf.mxu0
      %v5454 = vpop.f32.mrf.mxu0
      %v5455 = vadd.f32 0.0, %v5454
      %v5456 = vpop.f32.mrf.mxu0
      %5457 = vmatprep.mubr.bf16.mxu0 0
      %5458 = vmatmul.mubr.bf16.gmra.mxu0 %v5247
      %v5459 = vpop.f32.mrf.mxu0
      %v5460 = vadd.f32 0.0, %v5459
      %v5461 = vpop.f32.mrf.mxu0
      %v5462 = vpop.f32.mrf.mxu0
      %v5463 = vadd.f32 0.0, %v5462
      %v5464 = vpop.f32.mrf.mxu0
      %5465 = vmatprep.mubr.bf16.mxu0 0
      %5466 = vmatmul.mubr.bf16.gmra.mxu0 %v5248
      %v5467 = vpop.f32.mrf.mxu0
      %v5468 = vadd.f32 0.0, %v5467
      %v5469 = vpop.f32.mrf.mxu0
      %v5470 = vpop.f32.mrf.mxu0
      %v5471 = vadd.f32 0.0, %v5470
      %v5472 = vpop.f32.mrf.mxu0
      %5473 = vdwg.mxu0
      %v5474 = vadd.f32 %v5089, %v5348
      %v5475 = vadd.f32 %v5090, %v5351
      %v5476 = vadd.f32 %v5091, %v5356
      %v5477 = vadd.f32 %v5092, %v5359
      %v5478 = vadd.f32 %v5093, %v5364
      %v5479 = vadd.f32 %v5094, %v5367
      %v5480 = vadd.f32 %v5095, %v5372
      %v5481 = vadd.f32 %v5096, %v5375
      %v5482 = vadd.f32 %v5097, %v5380
      %v5483 = vadd.f32 %v5098, %v5383
      %v5484 = vadd.f32 %v5099, %v5388
      %v5485 = vadd.f32 %v5100, %v5391
      %v5486 = vadd.f32 %v5101, %v5396
      %v5487 = vadd.f32 %v5102, %v5399
      %v5488 = vadd.f32 %v5103, %v5404
      %v5489 = vadd.f32 %v5104, %v5407
      %v5490 = vadd.f32 %v5105, %v5412
      %v5491 = vadd.f32 %v5106, %v5415
      %v5492 = vadd.f32 %v5107, %v5420
      %v5493 = vadd.f32 %v5108, %v5423
      %v5494 = vadd.f32 %v5109, %v5428
      %v5495 = vadd.f32 %v5110, %v5431
      %v5496 = vadd.f32 %v5111, %v5436
      %v5497 = vadd.f32 %v5112, %v5439
      %v5498 = vadd.f32 %v5113, %v5444
      %v5499 = vadd.f32 %v5114, %v5447
      %v5500 = vadd.f32 %v5115, %v5452
      %v5501 = vadd.f32 %v5116, %v5455
      %v5502 = vadd.f32 %v5117, %v5460
      %v5503 = vadd.f32 %v5118, %v5463
      %v5504 = vadd.f32 %v5119, %v5468
      %v5505 = vadd.f32 %v5120, %v5471
      %v5506 = vld [vmem:[%s5] sm:$0x1]
      %v5508 = vlaneseq
      %v5509 = vshrl.u32 %v5508, 7
      %v5510 = vsub.s32 0, %v5509
      %v5511 = vrot.slane %v5506, %v5510
      %v5513 = vadd.f32 %v5474, %v5511
      %v5514 = vadd.f32 %v5475, %v5511
      %v5515 = vadd.f32 %v5476, %v5511
      %v5516 = vadd.f32 %v5477, %v5511
      %v5517 = vadd.f32 %v5478, %v5511
      %v5518 = vadd.f32 %v5479, %v5511
      %v5519 = vadd.f32 %v5480, %v5511
      %v5520 = vadd.f32 %v5481, %v5511
      %v5521 = vadd.f32 %v5482, %v5511
      %v5522 = vadd.f32 %v5483, %v5511
      %v5523 = vadd.f32 %v5484, %v5511
      %v5524 = vadd.f32 %v5485, %v5511
      %v5525 = vadd.f32 %v5486, %v5511
      %v5526 = vadd.f32 %v5487, %v5511
      %v5527 = vadd.f32 %v5488, %v5511
      %v5528 = vadd.f32 %v5489, %v5511
      %v5529 = vadd.f32 %v5490, %v5511
      %v5530 = vadd.f32 %v5491, %v5511
      %v5531 = vadd.f32 %v5492, %v5511
      %v5532 = vadd.f32 %v5493, %v5511
      %v5533 = vadd.f32 %v5494, %v5511
      %v5534 = vadd.f32 %v5495, %v5511
      %v5535 = vadd.f32 %v5496, %v5511
      %v5536 = vadd.f32 %v5497, %v5511
      %v5537 = vadd.f32 %v5498, %v5511
      %v5538 = vadd.f32 %v5499, %v5511
      %v5539 = vadd.f32 %v5500, %v5511
      %v5540 = vadd.f32 %v5501, %v5511
      %v5541 = vadd.f32 %v5502, %v5511
      %v5542 = vadd.f32 %v5503, %v5511
      %v5543 = vadd.f32 %v5504, %v5511
      %v5544 = vadd.f32 %v5505, %v5511
      %v5545 = vmax.f32 %v5513, 0.0
      %v5546 = vmax.f32 %v5514, 0.0
      %v5547 = vmax.f32 %v5515, 0.0
      %v5548 = vmax.f32 %v5516, 0.0
      %v5549 = vmax.f32 %v5517, 0.0
      %v5550 = vmax.f32 %v5518, 0.0
      %v5551 = vmax.f32 %v5519, 0.0
      %v5552 = vmax.f32 %v5520, 0.0
      %v5553 = vmax.f32 %v5521, 0.0
      %v5554 = vmax.f32 %v5522, 0.0
      %v5555 = vmax.f32 %v5523, 0.0
      %v5556 = vmax.f32 %v5524, 0.0
      %v5557 = vmax.f32 %v5525, 0.0
      %v5558 = vmax.f32 %v5526, 0.0
      %v5559 = vmax.f32 %v5527, 0.0
      %v5560 = vmax.f32 %v5528, 0.0
      %v5561 = vmax.f32 %v5529, 0.0
      %v5562 = vmax.f32 %v5530, 0.0
      %v5563 = vmax.f32 %v5531, 0.0
      %v5564 = vmax.f32 %v5532, 0.0
      %v5565 = vmax.f32 %v5533, 0.0
      %v5566 = vmax.f32 %v5534, 0.0
      %v5567 = vmax.f32 %v5535, 0.0
      %v5568 = vmax.f32 %v5536, 0.0
      %v5569 = vmax.f32 %v5537, 0.0
      %v5570 = vmax.f32 %v5538, 0.0
      %v5571 = vmax.f32 %v5539, 0.0
      %v5572 = vmax.f32 %v5540, 0.0
      %v5573 = vmax.f32 %v5541, 0.0
      %v5574 = vmax.f32 %v5542, 0.0
      %v5575 = vmax.f32 %v5543, 0.0
      %v5576 = vmax.f32 %v5544, 0.0
      %5577 = vst [vmem:[%s271] sm:$0xff] %v5545
      %5578 = vst [vmem:[%s271 + $0x8] sm:$0xff] %v5546
      %5579 = vst [vmem:[%s271 + $0x10] sm:$0xff] %v5547
      %5580 = vst [vmem:[%s271 + $0x18] sm:$0xff] %v5548
      %5581 = vst [vmem:[%s271 + $0x20] sm:$0xff] %v5549
      %5582 = vst [vmem:[%s271 + $0x28] sm:$0xff] %v5550
      %5583 = vst [vmem:[%s271 + $0x30] sm:$0xff] %v5551
      %5584 = vst [vmem:[%s271 + $0x38] sm:$0xff] %v5552
      %5585 = vst [vmem:[%s271 + $0x40] sm:$0xff] %v5553
      %5586 = vst [vmem:[%s271 + $0x48] sm:$0xff] %v5554
      %5587 = vst [vmem:[%s271 + $0x50] sm:$0xff] %v5555
      %5588 = vst [vmem:[%s271 + $0x58] sm:$0xff] %v5556
      %5589 = vst [vmem:[%s271 + $0x60] sm:$0xff] %v5557
      %5590 = vst [vmem:[%s271 + $0x68] sm:$0xff] %v5558
      %5591 = vst [vmem:[%s271 + $0x70] sm:$0xff] %v5559
      %5592 = vst [vmem:[%s271 + $0x78] sm:$0xff] %v5560
      %5593 = vst [vmem:[%s271 + $0x80] sm:$0xff] %v5561
      %5594 = vst [vmem:[%s271 + $0x88] sm:$0xff] %v5562
      %5595 = vst [vmem:[%s271 + $0x90] sm:$0xff] %v5563
      %5596 = vst [vmem:[%s271 + $0x98] sm:$0xff] %v5564
      %5597 = vst [vmem:[%s271 + $0xa0] sm:$0xff] %v5565
      %5598 = vst [vmem:[%s271 + $0xa8] sm:$0xff] %v5566
      %5599 = vst [vmem:[%s271 + $0xb0] sm:$0xff] %v5567
      %5600 = vst [vmem:[%s271 + $0xb8] sm:$0xff] %v5568
      %5601 = vst [vmem:[%s271 + $0xc0] sm:$0xff] %v5569
      %5602 = vst [vmem:[%s271 + $0xc8] sm:$0xff] %v5570
      %5603 = vst [vmem:[%s271 + $0xd0] sm:$0xff] %v5571
      %5604 = vst [vmem:[%s271 + $0xd8] sm:$0xff] %v5572
      %5605 = vst [vmem:[%s271 + $0xe0] sm:$0xff] %v5573
      %5606 = vst [vmem:[%s271 + $0xe8] sm:$0xff] %v5574
      %5607 = vst [vmem:[%s271 + $0xf0] sm:$0xff] %v5575
      %5608 = vst [vmem:[%s271 + $0xf8] sm:$0xff] %v5576
      %p5609 = scmp.lt.s32.totalorder %s17, 1
      %s5610 = scalar_select %p5609, %s17, 1
      %s5611 = smul.addr %s5610, 32
      %s5612 = smul.addr %s5611, 8
      %s5613 = scalar_lea.vmem %s6, %s5612
      // Predicated region
      $region45: #{basic_block_nchw.3} parent=43 // pred_check
        %p5614 = pneg %p171
      $region46: #{basic_block_nchw.3} parent=43 // pred_check_branch
        %5616 = sbr.rel (%p5614) target = $region48
      $region47: #{basic_block_nchw.3} parent=43 // pred_region
        _
      $region48: #{basic_block_nchw.3} parent=43 // pred_fallthru
        _
    $region44: #{basic_block_nchw.3} parent=5 // pred_fallthru
      _
    %p5617 = scmp.le.s32.totalorder 2, %s12
    // Predicated region
    $region49: #{basic_block_nchw.3} parent=5 // pred_check
      %p5618 = pneg %p5617
    $region50: #{basic_block_nchw.3} parent=5 // pred_check_branch
      %5620 = sbr.rel (%p5618) target = $region52
    $region51: #{basic_block_nchw.3} parent=5 // pred_region
      %s5621 = ssub.s32 %s12, 2
      // Predicated region
      $region53: #{basic_block_nchw.3} parent=51 // pred_check
        %p5622 = pneg %p177
      $region54: #{basic_block_nchw.3} parent=51 // pred_check_branch
        %5624 = sbr.rel (%p5622) target = $region56
      $region55: #{basic_block_nchw.3} parent=51 // pred_region
        %p5625 = scmp.lt.s32.totalorder %s18, 1
        %s5626 = scalar_select %p5625, %s18, 1
        %s5627 = smul.addr %s5626, 32
        %s5628 = smul.addr %s5627, 8
        %s5629 = scalar_lea.vmem %s6, %s5628
      $region56: #{basic_block_nchw.3} parent=51 // pred_fallthru
        _
    $region52: #{basic_block_nchw.3} parent=5 // pred_fallthru
      _
  $region6: #{basic_block_nchw.3} parent=0 // loop_footer
    %s16 = sadd.s32 1, %s12
  $region7: #{basic_block_nchw.3} parent=0 // loop_footer_branch
    %11 = sbr.rel target = $region3
  $region8: #{basic_block_nchw.3} parent=0 // loop_exit
    _

</llo_original>
